<compile_context>
chip_gen: v5e
topology: v5e:2x2
jax: 0.10.0
libtpu: 0.0.40
codegen_flags: <defaults>
</compile_context>

<pallas_src>
import jax
import jax.numpy as jnp
from jax import lax
from jax.experimental import pallas as pl
from jax.experimental.pallas import tpu as pltpu

CP = 128  # padded channel width == TPU lane width


# ---------------------------------------------------------------------------
# Fused whole-network Pallas kernel
# ---------------------------------------------------------------------------

def _make_kernel(plan, fh, fw, kmax, c2_idx, c3_idx):
    """Build the fused kernel body from a static per-block plan."""

    def kernel(p_ref, w0_ref, s0_ref, b0_ref, wst_ref, c2_ref, c3_ref,
               act_ref, tmp_ref):
        # ---------- first conv (stride 2, pad 1) + folded BN + ReLU ----------
        # One lane-dense MXU dot over all fh*fw output pixels.
        r = jnp.dot(p_ref[0], w0_ref[...],
                    preferred_element_type=jnp.float32)           # (fh*fw, CP)
        r = jnp.maximum(r * s0_ref[...] + b0_ref[...], 0.0)
        for y in range(fh):
            act_ref[y, pl.ds(0, fw), :] = r[fw * y:fw * (y + 1), :]

        # ---------- stage blocks: conv(valid)+ReLU fused with maxpool ----------
        for bi, blk in enumerate(plan):
            ks, ps = blk['ks'], blk['ps']
            w_in, oh, ow = blk['win'], blk['oh'], blk['ow']
            ph, pw = blk['ph'], blk['pw']
            kk = ks * ks * CP
            wslab = wst_ref[bi]                                   # (kmax, CP)
            if kk < kmax:
                wslab = wslab[0:kk, :]

            # Zero the temp canvas.  Its 1-pixel border doubles as the maxpool
            # padding: pool inputs are post-ReLU (>= 0), so a 0 border is
            # equivalent to PyTorch's implicit -inf padding.
            tmp_ref[...] = jnp.zeros(tmp_ref.shape, jnp.float32)

            # Conv rows: in-kernel im2col = lane-concat of the ks*ks taps, then
            # one lane-dense (ow, ks*ks*CP) @ (ks*ks*CP, CP) MXU dot per row.
            for y in range(oh):
                rows = [act_ref[y + i, pl.ds(0, w_in), :] for i in range(ks)]
                taps = [rows[i][j:j + ow, :]
                        for i in range(ks) for j in range(ks)]
                patch = jnp.concatenate(taps, axis=-1)            # (ow, kk)
                cr = jnp.dot(patch, wslab, preferred_element_type=jnp.float32)
                tmp_ref[1 + y, pl.ds(1, ow), :] = jnp.maximum(cr, 0.0)

            # Fused MaxPool2d(kernel=2, padding=1, stride=ps), floor mode.
            if ps == 2:
                # Constant 0/1 selection matrix: output col px <- col 2*px.
                ri = lax.broadcasted_iota(jnp.int32, (pw, ow + 1), 0)
                ci = lax.broadcasted_iota(jnp.int32, (pw, ow + 1), 1)
                sel = (ci == 2 * ri).astype(jnp.float32)
            for py in range(ph):
                ra = tmp_ref[ps * py, pl.ds(0, ow + 2), :]
                rb = tmp_ref[ps * py + 1, pl.ds(0, ow + 2), :]
                v = jnp.maximum(ra, rb)                           # (ow+2, CP)
                u = jnp.maximum(v[0:ow + 1, :], v[1:ow + 2, :])   # (ow+1, CP)
                if ps == 1:
                    out = u
                else:
                    out = jnp.dot(sel, u, preferred_element_type=jnp.float32)
                act_ref[py, pl.ds(0, pw), :] = out

            if bi == c2_idx:
                for y in range(ph):
                    c2_ref[0, y, pl.ds(0, pw), :] = act_ref[y, pl.ds(0, pw), :]
            if bi == c3_idx:
                for y in range(ph):
                    c3_ref[0, y, pl.ds(0, pw), :] = act_ref[y, pl.ds(0, pw), :]

    return kernel


# ---------------------------------------------------------------------------
# Wrapper: layout plumbing + weight packing + pallas_call
# ---------------------------------------------------------------------------

def sembednet_forward(x_nchw, params):
    x = jnp.transpose(x_nchw, (0, 2, 3, 1)).astype(jnp.float32)   # NCHW -> NHWC
    N, H, W, Cin = x.shape

    # ---- static plan ----
    w0_hwio = params['first_conv_w']
    kh, kw, _, c1 = w0_hwio.shape
    fh = (H + 2 - kh) // 2 + 1
    fw = (W + 2 - kw) // 2 + 1

    blocks = [blk for stage in params['stages'] for blk in stage]
    nblk = len(blocks)
    plan = []
    h, w = fh, fw
    for blk in blocks:
        ks = blk['w'].shape[0]
        ps = blk['pool_stride']
        oh, ow = h - ks + 1, w - ks + 1
        ph, pw = oh // ps + 1, ow // ps + 1   # MaxPool2d(2, ps, pad=1), floor
        plan.append(dict(ks=ks, ps=ps, win=w, oh=oh, ow=ow, ph=ph, pw=pw))
        h, w = ph, pw
    c2_idx = len(params['stages'][0]) + len(params['stages'][1]) - 1
    c3_idx = nblk - 1
    kmax = max(p['ks'] for p in plan) ** 2 * CP
    ch = max([fh] + [p['oh'] + 2 for p in plan])
    cw = max([fw] + [p['ow'] + 2 for p in plan])

    # ---- first-conv im2col at the wrapper boundary (one-time, tiny) ----
    xp = jnp.pad(x, ((0, 0), (1, 1), (1, 1), (0, 0)))
    slabs = []
    for i in range(kh):
        for j in range(kw):
            slabs.append(xp[:, i::2, j::2, :][:, :fh, :fw, :])
    k0 = kh * kw * Cin
    k0p = ((k0 + 7) // 8) * 8
    patches = jnp.concatenate(slabs, axis=-1).reshape(N, fh * fw, k0)
    patches = jnp.pad(patches, ((0, 0), (0, 0), (0, k0p - k0)))

    # ---- weights packed into lane-dense (K, 128) slabs (zero-padded) ----
    w0m = jnp.zeros((k0p, CP), jnp.float32).at[:k0, :c1].set(
        w0_hwio.reshape(k0, c1))
    s0 = jnp.zeros((1, CP), jnp.float32).at[0, :c1].set(params['first_conv_scale'])
    b0 = jnp.zeros((1, CP), jnp.float32).at[0, :c1].set(params['first_conv_bias'])

    slabs_w = []
    for blk in blocks:
        ks, _, cin, cout = blk['w'].shape
        wp = jnp.zeros((ks, ks, CP, CP), jnp.float32).at[:, :, :cin, :cout].set(
            blk['w'])
        wp = wp.reshape(ks * ks * CP, CP)
        wp = jnp.pad(wp, ((0, kmax - ks * ks * CP), (0, 0)))
        slabs_w.append(wp)
    wst = jnp.stack(slabs_w, axis=0)                  # (nblk, kmax, CP)

    c2_hw = (plan[c2_idx]['ph'], plan[c2_idx]['pw'])
    c3_hw = (plan[c3_idx]['ph'], plan[c3_idx]['pw'])

    kernel = _make_kernel(plan, fh, fw, kmax, c2_idx, c3_idx)
    c2p, c3p = pl.pallas_call(
        kernel,
        out_shape=(jax.ShapeDtypeStruct((N, c2_hw[0], c2_hw[1], CP), jnp.float32),
                   jax.ShapeDtypeStruct((N, c3_hw[0], c3_hw[1], CP), jnp.float32)),
        grid=(N,),
        in_specs=[
            pl.BlockSpec((1, fh * fw, k0p), lambda b: (b, 0, 0)),
            pl.BlockSpec((k0p, CP), lambda b: (0, 0)),
            pl.BlockSpec((1, CP), lambda b: (0, 0)),
            pl.BlockSpec((1, CP), lambda b: (0, 0)),
            pl.BlockSpec((nblk, kmax, CP), lambda b: (0, 0, 0)),
        ],
        out_specs=(pl.BlockSpec((1, c2_hw[0], c2_hw[1], CP), lambda b: (b, 0, 0, 0)),
                   pl.BlockSpec((1, c3_hw[0], c3_hw[1], CP), lambda b: (b, 0, 0, 0))),
        scratch_shapes=[pltpu.VMEM((ch, cw, CP), jnp.float32),   # activation canvas
                        pltpu.VMEM((ch, cw, CP), jnp.float32)],  # conv-output canvas
        compiler_params=pltpu.CompilerParams(
            dimension_semantics=("parallel",)),   # shard batch across TCs (v7x)
    )(patches, w0m, s0, b0, wst)

    c2c = blocks[c2_idx]['w'].shape[-1]
    c3c = blocks[c3_idx]['w'].shape[-1]
    C2 = jnp.transpose(c2p[..., :c2c], (0, 3, 1, 2))
    C3 = jnp.transpose(c3p[..., :c3c], (0, 3, 1, 2))
    return C2, C3


# ---------------------------------------------------------------------------
# Parameter construction (deterministic, synthetic; eval-mode BN folded)
# ---------------------------------------------------------------------------

def init_params(key, stage_out_channels, stage_blocks, kernal_s, conv_gray):
    params = {}
    c1 = stage_out_channels[1]
    key, kw_ = jax.random.split(key)
    params['first_conv_w'] = (
        jax.random.normal(kw_, (3, 3, conv_gray, c1), jnp.float32) * 0.1)
    key, k1, k2, k3, k4 = jax.random.split(key, 5)
    gamma = jax.random.uniform(k1, (c1,), minval=0.5, maxval=1.5)
    beta = jax.random.normal(k2, (c1,)) * 0.1
    rmean = jax.random.normal(k3, (c1,)) * 0.1
    rvar = jax.random.uniform(k4, (c1,), minval=0.5, maxval=1.5)
    eps = 1e-5
    s = gamma / jnp.sqrt(rvar + eps)          # fold eval-mode BN into scale/bias
    params['first_conv_scale'] = s
    params['first_conv_bias'] = beta - rmean * s

    stages = []
    in_c = c1
    for idx, nrep in enumerate(stage_blocks):
        out_c = stage_out_channels[idx + 2]
        blocks = []
        for i in range(nrep):
            ks = kernal_s[0] if i == 0 else kernal_s[1]
            key, kk = jax.random.split(key)
            w = jax.random.normal(kk, (ks, ks, in_c, out_c), jnp.float32) * 0.1
            blocks.append({'w': w, 'pool_stride': 2 if i == 0 else 1})
            in_c = out_c
        stages.append(blocks)
    params['stages'] = stages
    return params


# ---------------------------------------------------------------------------
# Pure-JAX reference (for correctness checking only)
# ---------------------------------------------------------------------------

def reference_forward(x_nchw, params):
    x = jnp.transpose(x_nchw, (0, 2, 3, 1)).astype(jnp.float32)

    def conv(x, w, stride, pad):
        return lax.conv_general_dilated(
            x, w, (stride, stride), ((pad, pad), (pad, pad)),
            dimension_numbers=('NHWC', 'HWIO', 'NHWC'),
            precision=lax.Precision.HIGHEST)

    def pool(x, stride):
        return lax.reduce_window(x, -jnp.inf, lax.max, (1, 2, 2, 1),
                                 (1, stride, stride, 1),
                                 ((0, 0), (1, 1), (1, 1), (0, 0)))

    x = conv(x, params['first_conv_w'], 2, 1)
    x = jnp.maximum(x * params['first_conv_scale'] + params['first_conv_bias'], 0.0)
    outs = []
    for blocks in params['stages']:
        for blk in blocks:
            x = jnp.maximum(conv(x, blk['w'], 1, 0), 0.0)
            x = pool(x, blk['pool_stride'])
        outs.append(x)
    _C1, C2, C3 = outs
    return (jnp.transpose(C2, (0, 3, 1, 2)), jnp.transpose(C3, (0, 3, 1, 2)))


# ---------------------------------------------------------------------------

if __name__ == "__main__":
    key = jax.random.PRNGKey(0)
    stage_out_channels = [-1, 8, 16, 32, 64]
    stage_blocks = [2, 1, 1]
    kernal_s = [3, 3]
    conv_gray = 3

    pkey, xkey = jax.random.split(key)
    params = init_params(pkey, stage_out_channels, stage_blocks, kernal_s, conv_gray)
    x = jax.random.normal(xkey, (2, conv_gray, 32, 32), jnp.float32)

    C2, C3 = sembednet_forward(x, params)
    jax.block_until_ready((C2, C3))

    rC2, rC3 = reference_forward(x, params)
    assert C2.shape == rC2.shape and C3.shape == rC3.shape, (C2.shape, C3.shape)
    assert jnp.allclose(C2, rC2, atol=1e-3, rtol=1e-3), \
        float(jnp.max(jnp.abs(C2 - rC2)))
    assert jnp.allclose(C3, rC3, atol=1e-3, rtol=1e-3), \
        float(jnp.max(jnp.abs(C3 - rC3)))
    print("KERNEL_OK")
</pallas_src>

<mosaic_0001>
module attributes {stable_mosaic.version = 11 : i64} {
  func.func @kernel(%arg0: i32, %arg1: memref<1x256x32xf32, #tpu.memory_space<vmem>>, %arg2: memref<32x128xf32, #tpu.memory_space<vmem>>, %arg3: memref<1x128xf32, #tpu.memory_space<vmem>>, %arg4: memref<1x128xf32, #tpu.memory_space<vmem>>, %arg5: memref<4x1152x128xf32, #tpu.memory_space<vmem>>, %arg6: memref<1x3x3x128xf32, #tpu.memory_space<vmem>>, %arg7: memref<1x1x1x128xf32, #tpu.memory_space<vmem>>, %arg8: memref<16x16x128xf32, #tpu.memory_space<vmem>>, %arg9: memref<16x16x128xf32, #tpu.memory_space<vmem>>) attributes {dimension_semantics = [#tpu.dimension_semantics<parallel>], iteration_bounds = array<i64: 2>, scalar_prefetch = 0 : i64, scratch_operands = 2 : i64, tpu.core_type = #tpu.core_type<tc>, window_params = [{transform_indices = @transform_0, window_bounds = array<i64: 1, 256, 32>}, {pipeline_mode = #tpu.pipeline_mode<synchronous>, transform_indices = @transform_1, window_bounds = array<i64: 32, 128>}, {pipeline_mode = #tpu.pipeline_mode<synchronous>, transform_indices = @transform_2, window_bounds = array<i64: 1, 128>}, {pipeline_mode = #tpu.pipeline_mode<synchronous>, transform_indices = @transform_3, window_bounds = array<i64: 1, 128>}, {pipeline_mode = #tpu.pipeline_mode<synchronous>, transform_indices = @transform_4, window_bounds = array<i64: 4, 1152, 128>}, {transform_indices = @transform_5, window_bounds = array<i64: 1, 3, 3, 128>}, {transform_indices = @transform_6, window_bounds = array<i64: 1, 1, 1, 128>}]} {
    %c0 = arith.constant 0 : index
    %c0_0 = arith.constant 0 : index
    %c0_1 = arith.constant 0 : index
    %0 = vector.load %arg1[%c0, %c0_0, %c0_1] : memref<1x256x32xf32, #tpu.memory_space<vmem>>, vector<1x256x32xf32>
    %1 = vector.shape_cast %0 : vector<1x256x32xf32> to vector<256x32xf32>
    %c0_2 = arith.constant 0 : index
    %c0_3 = arith.constant 0 : index
    %2 = vector.load %arg2[%c0_2, %c0_3] : memref<32x128xf32, #tpu.memory_space<vmem>>, vector<32x128xf32>
    %cst = arith.constant dense<0.000000e+00> : vector<256x128xf32>
    %3 = tpu.matmul %1, %2, %cst {dimension_numbers = #tpu.dot_dimension_numbers<[1], [0], [0], [1], [0, 0, 1, 1], [], []>} : vector<256x32xf32>, vector<32x128xf32>, vector<256x128xf32> -> vector<256x128xf32>
    %c0_4 = arith.constant 0 : index
    %c0_5 = arith.constant 0 : index
    %4 = vector.load %arg3[%c0_4, %c0_5] : memref<1x128xf32, #tpu.memory_space<vmem>>, vector<1x128xf32>
    %5 = vector.broadcast %4 : vector<1x128xf32> to vector<256x128xf32>
    %6 = arith.mulf %3, %5 : vector<256x128xf32>
    %c0_6 = arith.constant 0 : index
    %c0_7 = arith.constant 0 : index
    %7 = vector.load %arg4[%c0_6, %c0_7] : memref<1x128xf32, #tpu.memory_space<vmem>>, vector<1x128xf32>
    %8 = vector.broadcast %7 : vector<1x128xf32> to vector<256x128xf32>
    %9 = arith.addf %6, %8 : vector<256x128xf32>
    %cst_8 = arith.constant 0.000000e+00 : f32
    %10 = vector.broadcast %cst_8 : f32 to vector<256x128xf32>
    %11 = arith.maximumf %9, %10 : vector<256x128xf32>
    %12 = vector.extract_strided_slice %11 {offsets = [0, 0], sizes = [16, 128], strides = [1, 1]} : vector<256x128xf32> to vector<16x128xf32>
    %c0_9 = arith.constant 0 : index
    %c0_10 = arith.constant 0 : index
    %c0_11 = arith.constant 0 : index
    %13 = vector.load %arg8[%c0_9, %c0_10, %c0_11] : memref<16x16x128xf32, #tpu.memory_space<vmem>>, vector<1x16x128xf32>
    %14 = vector.shape_cast %13 : vector<1x16x128xf32> to vector<16x128xf32>
    %15 = vector.shape_cast %12 : vector<16x128xf32> to vector<1x16x128xf32>
    tpu.vector_store %arg8[%c0_9, %c0_10, %c0_11], %15 {strides = array<i32>} : memref<16x16x128xf32, #tpu.memory_space<vmem>>, vector<1x16x128xf32>,
    %16 = vector.extract_strided_slice %11 {offsets = [16, 0], sizes = [16, 128], strides = [1, 1]} : vector<256x128xf32> to vector<16x128xf32>
    %c1 = arith.constant 1 : index
    %c0_12 = arith.constant 0 : index
    %c0_13 = arith.constant 0 : index
    %17 = vector.load %arg8[%c1, %c0_12, %c0_13] : memref<16x16x128xf32, #tpu.memory_space<vmem>>, vector<1x16x128xf32>
    %18 = vector.shape_cast %17 : vector<1x16x128xf32> to vector<16x128xf32>
    %19 = vector.shape_cast %16 : vector<16x128xf32> to vector<1x16x128xf32>
    tpu.vector_store %arg8[%c1, %c0_12, %c0_13], %19 {strides = array<i32>} : memref<16x16x128xf32, #tpu.memory_space<vmem>>, vector<1x16x128xf32>,
    %20 = vector.extract_strided_slice %11 {offsets = [32, 0], sizes = [16, 128], strides = [1, 1]} : vector<256x128xf32> to vector<16x128xf32>
    %c2 = arith.constant 2 : index
    %c0_14 = arith.constant 0 : index
    %c0_15 = arith.constant 0 : index
    %21 = vector.load %arg8[%c2, %c0_14, %c0_15] : memref<16x16x128xf32, #tpu.memory_space<vmem>>, vector<1x16x128xf32>
    %22 = vector.shape_cast %21 : vector<1x16x128xf32> to vector<16x128xf32>
    %23 = vector.shape_cast %20 : vector<16x128xf32> to vector<1x16x128xf32>
    tpu.vector_store %arg8[%c2, %c0_14, %c0_15], %23 {strides = array<i32>} : memref<16x16x128xf32, #tpu.memory_space<vmem>>, vector<1x16x128xf32>,
    %24 = vector.extract_strided_slice %11 {offsets = [48, 0], sizes = [16, 128], strides = [1, 1]} : vector<256x128xf32> to vector<16x128xf32>
    %c3 = arith.constant 3 : index
    %c0_16 = arith.constant 0 : index
    %c0_17 = arith.constant 0 : index
    %25 = vector.load %arg8[%c3, %c0_16, %c0_17] : memref<16x16x128xf32, #tpu.memory_space<vmem>>, vector<1x16x128xf32>
    %26 = vector.shape_cast %25 : vector<1x16x128xf32> to vector<16x128xf32>
    %27 = vector.shape_cast %24 : vector<16x128xf32> to vector<1x16x128xf32>
    tpu.vector_store %arg8[%c3, %c0_16, %c0_17], %27 {strides = array<i32>} : memref<16x16x128xf32, #tpu.memory_space<vmem>>, vector<1x16x128xf32>,
    %28 = vector.extract_strided_slice %11 {offsets = [64, 0], sizes = [16, 128], strides = [1, 1]} : vector<256x128xf32> to vector<16x128xf32>
    %c4 = arith.constant 4 : index
    %c0_18 = arith.constant 0 : index
    %c0_19 = arith.constant 0 : index
    %29 = vector.load %arg8[%c4, %c0_18, %c0_19] : memref<16x16x128xf32, #tpu.memory_space<vmem>>, vector<1x16x128xf32>
    %30 = vector.shape_cast %29 : vector<1x16x128xf32> to vector<16x128xf32>
    %31 = vector.shape_cast %28 : vector<16x128xf32> to vector<1x16x128xf32>
    tpu.vector_store %arg8[%c4, %c0_18, %c0_19], %31 {strides = array<i32>} : memref<16x16x128xf32, #tpu.memory_space<vmem>>, vector<1x16x128xf32>,
    %32 = vector.extract_strided_slice %11 {offsets = [80, 0], sizes = [16, 128], strides = [1, 1]} : vector<256x128xf32> to vector<16x128xf32>
    %c5 = arith.constant 5 : index
    %c0_20 = arith.constant 0 : index
    %c0_21 = arith.constant 0 : index
    %33 = vector.load %arg8[%c5, %c0_20, %c0_21] : memref<16x16x128xf32, #tpu.memory_space<vmem>>, vector<1x16x128xf32>
    %34 = vector.shape_cast %33 : vector<1x16x128xf32> to vector<16x128xf32>
    %35 = vector.shape_cast %32 : vector<16x128xf32> to vector<1x16x128xf32>
    tpu.vector_store %arg8[%c5, %c0_20, %c0_21], %35 {strides = array<i32>} : memref<16x16x128xf32, #tpu.memory_space<vmem>>, vector<1x16x128xf32>,
    %36 = vector.extract_strided_slice %11 {offsets = [96, 0], sizes = [16, 128], strides = [1, 1]} : vector<256x128xf32> to vector<16x128xf32>
    %c6 = arith.constant 6 : index
    %c0_22 = arith.constant 0 : index
    %c0_23 = arith.constant 0 : index
    %37 = vector.load %arg8[%c6, %c0_22, %c0_23] : memref<16x16x128xf32, #tpu.memory_space<vmem>>, vector<1x16x128xf32>
    %38 = vector.shape_cast %37 : vector<1x16x128xf32> to vector<16x128xf32>
    %39 = vector.shape_cast %36 : vector<16x128xf32> to vector<1x16x128xf32>
    tpu.vector_store %arg8[%c6, %c0_22, %c0_23], %39 {strides = array<i32>} : memref<16x16x128xf32, #tpu.memory_space<vmem>>, vector<1x16x128xf32>,
    %40 = vector.extract_strided_slice %11 {offsets = [112, 0], sizes = [16, 128], strides = [1, 1]} : vector<256x128xf32> to vector<16x128xf32>
    %c7 = arith.constant 7 : index
    %c0_24 = arith.constant 0 : index
    %c0_25 = arith.constant 0 : index
    %41 = vector.load %arg8[%c7, %c0_24, %c0_25] : memref<16x16x128xf32, #tpu.memory_space<vmem>>, vector<1x16x128xf32>
    %42 = vector.shape_cast %41 : vector<1x16x128xf32> to vector<16x128xf32>
    %43 = vector.shape_cast %40 : vector<16x128xf32> to vector<1x16x128xf32>
    tpu.vector_store %arg8[%c7, %c0_24, %c0_25], %43 {strides = array<i32>} : memref<16x16x128xf32, #tpu.memory_space<vmem>>, vector<1x16x128xf32>,
    %44 = vector.extract_strided_slice %11 {offsets = [128, 0], sizes = [16, 128], strides = [1, 1]} : vector<256x128xf32> to vector<16x128xf32>
    %c8 = arith.constant 8 : index
    %c0_26 = arith.constant 0 : index
    %c0_27 = arith.constant 0 : index
    %45 = vector.load %arg8[%c8, %c0_26, %c0_27] : memref<16x16x128xf32, #tpu.memory_space<vmem>>, vector<1x16x128xf32>
    %46 = vector.shape_cast %45 : vector<1x16x128xf32> to vector<16x128xf32>
    %47 = vector.shape_cast %44 : vector<16x128xf32> to vector<1x16x128xf32>
    tpu.vector_store %arg8[%c8, %c0_26, %c0_27], %47 {strides = array<i32>} : memref<16x16x128xf32, #tpu.memory_space<vmem>>, vector<1x16x128xf32>,
    %48 = vector.extract_strided_slice %11 {offsets = [144, 0], sizes = [16, 128], strides = [1, 1]} : vector<256x128xf32> to vector<16x128xf32>
    %c9 = arith.constant 9 : index
    %c0_28 = arith.constant 0 : index
    %c0_29 = arith.constant 0 : index
    %49 = vector.load %arg8[%c9, %c0_28, %c0_29] : memref<16x16x128xf32, #tpu.memory_space<vmem>>, vector<1x16x128xf32>
    %50 = vector.shape_cast %49 : vector<1x16x128xf32> to vector<16x128xf32>
    %51 = vector.shape_cast %48 : vector<16x128xf32> to vector<1x16x128xf32>
    tpu.vector_store %arg8[%c9, %c0_28, %c0_29], %51 {strides = array<i32>} : memref<16x16x128xf32, #tpu.memory_space<vmem>>, vector<1x16x128xf32>,
    %52 = vector.extract_strided_slice %11 {offsets = [160, 0], sizes = [16, 128], strides = [1, 1]} : vector<256x128xf32> to vector<16x128xf32>
    %c10 = arith.constant 10 : index
    %c0_30 = arith.constant 0 : index
    %c0_31 = arith.constant 0 : index
    %53 = vector.load %arg8[%c10, %c0_30, %c0_31] : memref<16x16x128xf32, #tpu.memory_space<vmem>>, vector<1x16x128xf32>
    %54 = vector.shape_cast %53 : vector<1x16x128xf32> to vector<16x128xf32>
    %55 = vector.shape_cast %52 : vector<16x128xf32> to vector<1x16x128xf32>
    tpu.vector_store %arg8[%c10, %c0_30, %c0_31], %55 {strides = array<i32>} : memref<16x16x128xf32, #tpu.memory_space<vmem>>, vector<1x16x128xf32>,
    %56 = vector.extract_strided_slice %11 {offsets = [176, 0], sizes = [16, 128], strides = [1, 1]} : vector<256x128xf32> to vector<16x128xf32>
    %c11 = arith.constant 11 : index
    %c0_32 = arith.constant 0 : index
    %c0_33 = arith.constant 0 : index
    %57 = vector.load %arg8[%c11, %c0_32, %c0_33] : memref<16x16x128xf32, #tpu.memory_space<vmem>>, vector<1x16x128xf32>
    %58 = vector.shape_cast %57 : vector<1x16x128xf32> to vector<16x128xf32>
    %59 = vector.shape_cast %56 : vector<16x128xf32> to vector<1x16x128xf32>
    tpu.vector_store %arg8[%c11, %c0_32, %c0_33], %59 {strides = array<i32>} : memref<16x16x128xf32, #tpu.memory_space<vmem>>, vector<1x16x128xf32>,
    %60 = vector.extract_strided_slice %11 {offsets = [192, 0], sizes = [16, 128], strides = [1, 1]} : vector<256x128xf32> to vector<16x128xf32>
    %c12 = arith.constant 12 : index
    %c0_34 = arith.constant 0 : index
    %c0_35 = arith.constant 0 : index
    %61 = vector.load %arg8[%c12, %c0_34, %c0_35] : memref<16x16x128xf32, #tpu.memory_space<vmem>>, vector<1x16x128xf32>
    %62 = vector.shape_cast %61 : vector<1x16x128xf32> to vector<16x128xf32>
    %63 = vector.shape_cast %60 : vector<16x128xf32> to vector<1x16x128xf32>
    tpu.vector_store %arg8[%c12, %c0_34, %c0_35], %63 {strides = array<i32>} : memref<16x16x128xf32, #tpu.memory_space<vmem>>, vector<1x16x128xf32>,
    %64 = vector.extract_strided_slice %11 {offsets = [208, 0], sizes = [16, 128], strides = [1, 1]} : vector<256x128xf32> to vector<16x128xf32>
    %c13 = arith.constant 13 : index
    %c0_36 = arith.constant 0 : index
    %c0_37 = arith.constant 0 : index
    %65 = vector.load %arg8[%c13, %c0_36, %c0_37] : memref<16x16x128xf32, #tpu.memory_space<vmem>>, vector<1x16x128xf32>
    %66 = vector.shape_cast %65 : vector<1x16x128xf32> to vector<16x128xf32>
    %67 = vector.shape_cast %64 : vector<16x128xf32> to vector<1x16x128xf32>
    tpu.vector_store %arg8[%c13, %c0_36, %c0_37], %67 {strides = array<i32>} : memref<16x16x128xf32, #tpu.memory_space<vmem>>, vector<1x16x128xf32>,
    %68 = vector.extract_strided_slice %11 {offsets = [224, 0], sizes = [16, 128], strides = [1, 1]} : vector<256x128xf32> to vector<16x128xf32>
    %c14 = arith.constant 14 : index
    %c0_38 = arith.constant 0 : index
    %c0_39 = arith.constant 0 : index
    %69 = vector.load %arg8[%c14, %c0_38, %c0_39] : memref<16x16x128xf32, #tpu.memory_space<vmem>>, vector<1x16x128xf32>
    %70 = vector.shape_cast %69 : vector<1x16x128xf32> to vector<16x128xf32>
    %71 = vector.shape_cast %68 : vector<16x128xf32> to vector<1x16x128xf32>
    tpu.vector_store %arg8[%c14, %c0_38, %c0_39], %71 {strides = array<i32>} : memref<16x16x128xf32, #tpu.memory_space<vmem>>, vector<1x16x128xf32>,
    %72 = vector.extract_strided_slice %11 {offsets = [240, 0], sizes = [16, 128], strides = [1, 1]} : vector<256x128xf32> to vector<16x128xf32>
    %c15 = arith.constant 15 : index
    %c0_40 = arith.constant 0 : index
    %c0_41 = arith.constant 0 : index
    %73 = vector.load %arg8[%c15, %c0_40, %c0_41] : memref<16x16x128xf32, #tpu.memory_space<vmem>>, vector<1x16x128xf32>
    %74 = vector.shape_cast %73 : vector<1x16x128xf32> to vector<16x128xf32>
    %75 = vector.shape_cast %72 : vector<16x128xf32> to vector<1x16x128xf32>
    tpu.vector_store %arg8[%c15, %c0_40, %c0_41], %75 {strides = array<i32>} : memref<16x16x128xf32, #tpu.memory_space<vmem>>, vector<1x16x128xf32>,
    %c0_42 = arith.constant 0 : index
    %c0_43 = arith.constant 0 : index
    %c0_44 = arith.constant 0 : index
    %76 = vector.load %arg5[%c0_42, %c0_43, %c0_44] : memref<4x1152x128xf32, #tpu.memory_space<vmem>>, vector<1x1152x128xf32>
    %77 = vector.shape_cast %76 : vector<1x1152x128xf32> to vector<1152x128xf32>
    %cst_45 = arith.constant 0.000000e+00 : f32
    %78 = vector.broadcast %cst_45 : f32 to vector<16x16x128xf32>
    %c0_46 = arith.constant 0 : index
    %c0_47 = arith.constant 0 : index
    %c0_48 = arith.constant 0 : index
    %79 = vector.load %arg9[%c0_46, %c0_47, %c0_48] : memref<16x16x128xf32, #tpu.memory_space<vmem>>, vector<16x16x128xf32>
    tpu.vector_store %arg9[%c0_46, %c0_47, %c0_48], %78 {strides = array<i32>} : memref<16x16x128xf32, #tpu.memory_space<vmem>>, vector<16x16x128xf32>,
    %c0_49 = arith.constant 0 : index
    %c0_50 = arith.constant 0 : index
    %c0_51 = arith.constant 0 : index
    %80 = vector.load %arg8[%c0_49, %c0_50, %c0_51] : memref<16x16x128xf32, #tpu.memory_space<vmem>>, vector<1x16x128xf32>
    %81 = vector.shape_cast %80 : vector<1x16x128xf32> to vector<16x128xf32>
    %c1_52 = arith.constant 1 : index
    %c0_53 = arith.constant 0 : index
    %c0_54 = arith.constant 0 : index
    %82 = vector.load %arg8[%c1_52, %c0_53, %c0_54] : memref<16x16x128xf32, #tpu.memory_space<vmem>>, vector<1x16x128xf32>
    %83 = vector.shape_cast %82 : vector<1x16x128xf32> to vector<16x128xf32>
    %c2_55 = arith.constant 2 : index
    %c0_56 = arith.constant 0 : index
    %c0_57 = arith.constant 0 : index
    %84 = vector.load %arg8[%c2_55, %c0_56, %c0_57] : memref<16x16x128xf32, #tpu.memory_space<vmem>>, vector<1x16x128xf32>
    %85 = vector.shape_cast %84 : vector<1x16x128xf32> to vector<16x128xf32>
    %86 = vector.extract_strided_slice %81 {offsets = [0, 0], sizes = [14, 128], strides = [1, 1]} : vector<16x128xf32> to vector<14x128xf32>
    %87 = vector.extract_strided_slice %81 {offsets = [1, 0], sizes = [14, 128], strides = [1, 1]} : vector<16x128xf32> to vector<14x128xf32>
    %88 = vector.extract_strided_slice %81 {offsets = [2, 0], sizes = [14, 128], strides = [1, 1]} : vector<16x128xf32> to vector<14x128xf32>
    %89 = vector.extract_strided_slice %83 {offsets = [0, 0], sizes = [14, 128], strides = [1, 1]} : vector<16x128xf32> to vector<14x128xf32>
    %90 = vector.extract_strided_slice %83 {offsets = [1, 0], sizes = [14, 128], strides = [1, 1]} : vector<16x128xf32> to vector<14x128xf32>
    %91 = vector.extract_strided_slice %83 {offsets = [2, 0], sizes = [14, 128], strides = [1, 1]} : vector<16x128xf32> to vector<14x128xf32>
    %92 = vector.extract_strided_slice %85 {offsets = [0, 0], sizes = [14, 128], strides = [1, 1]} : vector<16x128xf32> to vector<14x128xf32>
    %93 = vector.extract_strided_slice %85 {offsets = [1, 0], sizes = [14, 128], strides = [1, 1]} : vector<16x128xf32> to vector<14x128xf32>
    %94 = vector.extract_strided_slice %85 {offsets = [2, 0], sizes = [14, 128], strides = [1, 1]} : vector<16x128xf32> to vector<14x128xf32>
    %95 = tpu.concatenate %86, %87, %88, %89, %90, %91, %92, %93, %94 in 1 : vector<14x128xf32>, vector<14x128xf32>, vector<14x128xf32>, vector<14x128xf32>, vector<14x128xf32>, vector<14x128xf32>, vector<14x128xf32>, vector<14x128xf32>, vector<14x128xf32> -> vector<14x1152xf32>
    %cst_58 = arith.constant dense<0.000000e+00> : vector<14x128xf32>
    %96 = tpu.matmul %95, %77, %cst_58 {dimension_numbers = #tpu.dot_dimension_numbers<[1], [0], [0], [1], [0, 0, 1, 1], [], []>} : vector<14x1152xf32>, vector<1152x128xf32>, vector<14x128xf32> -> vector<14x128xf32>
    %cst_59 = arith.constant 0.000000e+00 : f32
    %97 = vector.broadcast %cst_59 : f32 to vector<14x128xf32>
    %98 = arith.maximumf %96, %97 : vector<14x128xf32>
    %c1_60 = arith.constant 1 : index
    %c1_61 = arith.constant 1 : index
    %c0_62 = arith.constant 0 : index
    %99 = vector.load %arg9[%c1_60, %c1_61, %c0_62] : memref<16x16x128xf32, #tpu.memory_space<vmem>>, vector<1x14x128xf32>
    %100 = vector.shape_cast %99 : vector<1x14x128xf32> to vector<14x128xf32>
    %101 = vector.shape_cast %98 : vector<14x128xf32> to vector<1x14x128xf32>
    tpu.vector_store %arg9[%c1_60, %c1_61, %c0_62], %101 {strides = array<i32>} : memref<16x16x128xf32, #tpu.memory_space<vmem>>, vector<1x14x128xf32>,
    %c1_63 = arith.constant 1 : index
    %c0_64 = arith.constant 0 : index
    %c0_65 = arith.constant 0 : index
    %102 = vector.load %arg8[%c1_63, %c0_64, %c0_65] : memref<16x16x128xf32, #tpu.memory_space<vmem>>, vector<1x16x128xf32>
    %103 = vector.shape_cast %102 : vector<1x16x128xf32> to vector<16x128xf32>
    %c2_66 = arith.constant 2 : index
    %c0_67 = arith.constant 0 : index
    %c0_68 = arith.constant 0 : index
    %104 = vector.load %arg8[%c2_66, %c0_67, %c0_68] : memref<16x16x128xf32, #tpu.memory_space<vmem>>, vector<1x16x128xf32>
    %105 = vector.shape_cast %104 : vector<1x16x128xf32> to vector<16x128xf32>
    %c3_69 = arith.constant 3 : index
    %c0_70 = arith.constant 0 : index
    %c0_71 = arith.constant 0 : index
    %106 = vector.load %arg8[%c3_69, %c0_70, %c0_71] : memref<16x16x128xf32, #tpu.memory_space<vmem>>, vector<1x16x128xf32>
    %107 = vector.shape_cast %106 : vector<1x16x128xf32> to vector<16x128xf32>
    %108 = vector.extract_strided_slice %103 {offsets = [0, 0], sizes = [14, 128], strides = [1, 1]} : vector<16x128xf32> to vector<14x128xf32>
    %109 = vector.extract_strided_slice %103 {offsets = [1, 0], sizes = [14, 128], strides = [1, 1]} : vector<16x128xf32> to vector<14x128xf32>
    %110 = vector.extract_strided_slice %103 {offsets = [2, 0], sizes = [14, 128], strides = [1, 1]} : vector<16x128xf32> to vector<14x128xf32>
    %111 = vector.extract_strided_slice %105 {offsets = [0, 0], sizes = [14, 128], strides = [1, 1]} : vector<16x128xf32> to vector<14x128xf32>
    %112 = vector.extract_strided_slice %105 {offsets = [1, 0], sizes = [14, 128], strides = [1, 1]} : vector<16x128xf32> to vector<14x128xf32>
    %113 = vector.extract_strided_slice %105 {offsets = [2, 0], sizes = [14, 128], strides = [1, 1]} : vector<16x128xf32> to vector<14x128xf32>
    %114 = vector.extract_strided_slice %107 {offsets = [0, 0], sizes = [14, 128], strides = [1, 1]} : vector<16x128xf32> to vector<14x128xf32>
    %115 = vector.extract_strided_slice %107 {offsets = [1, 0], sizes = [14, 128], strides = [1, 1]} : vector<16x128xf32> to vector<14x128xf32>
    %116 = vector.extract_strided_slice %107 {offsets = [2, 0], sizes = [14, 128], strides = [1, 1]} : vector<16x128xf32> to vector<14x128xf32>
    %117 = tpu.concatenate %108, %109, %110, %111, %112, %113, %114, %115, %116 in 1 : vector<14x128xf32>, vector<14x128xf32>, vector<14x128xf32>, vector<14x128xf32>, vector<14x128xf32>, vector<14x128xf32>, vector<14x128xf32>, vector<14x128xf32>, vector<14x128xf32> -> vector<14x1152xf32>
    %cst_72 = arith.constant dense<0.000000e+00> : vector<14x128xf32>
    %118 = tpu.matmul %117, %77, %cst_72 {dimension_numbers = #tpu.dot_dimension_numbers<[1], [0], [0], [1], [0, 0, 1, 1], [], []>} : vector<14x1152xf32>, vector<1152x128xf32>, vector<14x128xf32> -> vector<14x128xf32>
    %cst_73 = arith.constant 0.000000e+00 : f32
    %119 = vector.broadcast %cst_73 : f32 to vector<14x128xf32>
    %120 = arith.maximumf %118, %119 : vector<14x128xf32>
    %c2_74 = arith.constant 2 : index
    %c1_75 = arith.constant 1 : index
    %c0_76 = arith.constant 0 : index
    %121 = vector.load %arg9[%c2_74, %c1_75, %c0_76] : memref<16x16x128xf32, #tpu.memory_space<vmem>>, vector<1x14x128xf32>
    %122 = vector.shape_cast %121 : vector<1x14x128xf32> to vector<14x128xf32>
    %123 = vector.shape_cast %120 : vector<14x128xf32> to vector<1x14x128xf32>
    tpu.vector_store %arg9[%c2_74, %c1_75, %c0_76], %123 {strides = array<i32>} : memref<16x16x128xf32, #tpu.memory_space<vmem>>, vector<1x14x128xf32>,
    %c2_77 = arith.constant 2 : index
    %c0_78 = arith.constant 0 : index
    %c0_79 = arith.constant 0 : index
    %124 = vector.load %arg8[%c2_77, %c0_78, %c0_79] : memref<16x16x128xf32, #tpu.memory_space<vmem>>, vector<1x16x128xf32>
    %125 = vector.shape_cast %124 : vector<1x16x128xf32> to vector<16x128xf32>
    %c3_80 = arith.constant 3 : index
    %c0_81 = arith.constant 0 : index
    %c0_82 = arith.constant 0 : index
    %126 = vector.load %arg8[%c3_80, %c0_81, %c0_82] : memref<16x16x128xf32, #tpu.memory_space<vmem>>, vector<1x16x128xf32>
    %127 = vector.shape_cast %126 : vector<1x16x128xf32> to vector<16x128xf32>
    %c4_83 = arith.constant 4 : index
    %c0_84 = arith.constant 0 : index
    %c0_85 = arith.constant 0 : index
    %128 = vector.load %arg8[%c4_83, %c0_84, %c0_85] : memref<16x16x128xf32, #tpu.memory_space<vmem>>, vector<1x16x128xf32>
    %129 = vector.shape_cast %128 : vector<1x16x128xf32> to vector<16x128xf32>
    %130 = vector.extract_strided_slice %125 {offsets = [0, 0], sizes = [14, 128], strides = [1, 1]} : vector<16x128xf32> to vector<14x128xf32>
    %131 = vector.extract_strided_slice %125 {offsets = [1, 0], sizes = [14, 128], strides = [1, 1]} : vector<16x128xf32> to vector<14x128xf32>
    %132 = vector.extract_strided_slice %125 {offsets = [2, 0], sizes = [14, 128], strides = [1, 1]} : vector<16x128xf32> to vector<14x128xf32>
    %133 = vector.extract_strided_slice %127 {offsets = [0, 0], sizes = [14, 128], strides = [1, 1]} : vector<16x128xf32> to vector<14x128xf32>
    %134 = vector.extract_strided_slice %127 {offsets = [1, 0], sizes = [14, 128], strides = [1, 1]} : vector<16x128xf32> to vector<14x128xf32>
    %135 = vector.extract_strided_slice %127 {offsets = [2, 0], sizes = [14, 128], strides = [1, 1]} : vector<16x128xf32> to vector<14x128xf32>
    %136 = vector.extract_strided_slice %129 {offsets = [0, 0], sizes = [14, 128], strides = [1, 1]} : vector<16x128xf32> to vector<14x128xf32>
    %137 = vector.extract_strided_slice %129 {offsets = [1, 0], sizes = [14, 128], strides = [1, 1]} : vector<16x128xf32> to vector<14x128xf32>
    %138 = vector.extract_strided_slice %129 {offsets = [2, 0], sizes = [14, 128], strides = [1, 1]} : vector<16x128xf32> to vector<14x128xf32>
    %139 = tpu.concatenate %130, %131, %132, %133, %134, %135, %136, %137, %138 in 1 : vector<14x128xf32>, vector<14x128xf32>, vector<14x128xf32>, vector<14x128xf32>, vector<14x128xf32>, vector<14x128xf32>, vector<14x128xf32>, vector<14x128xf32>, vector<14x128xf32> -> vector<14x1152xf32>
    %cst_86 = arith.constant dense<0.000000e+00> : vector<14x128xf32>
    %140 = tpu.matmul %139, %77, %cst_86 {dimension_numbers = #tpu.dot_dimension_numbers<[1], [0], [0], [1], [0, 0, 1, 1], [], []>} : vector<14x1152xf32>, vector<1152x128xf32>, vector<14x128xf32> -> vector<14x128xf32>
    %cst_87 = arith.constant 0.000000e+00 : f32
    %141 = vector.broadcast %cst_87 : f32 to vector<14x128xf32>
    %142 = arith.maximumf %140, %141 : vector<14x128xf32>
    %c3_88 = arith.constant 3 : index
    %c1_89 = arith.constant 1 : index
    %c0_90 = arith.constant 0 : index
    %143 = vector.load %arg9[%c3_88, %c1_89, %c0_90] : memref<16x16x128xf32, #tpu.memory_space<vmem>>, vector<1x14x128xf32>
    %144 = vector.shape_cast %143 : vector<1x14x128xf32> to vector<14x128xf32>
    %145 = vector.shape_cast %142 : vector<14x128xf32> to vector<1x14x128xf32>
    tpu.vector_store %arg9[%c3_88, %c1_89, %c0_90], %145 {strides = array<i32>} : memref<16x16x128xf32, #tpu.memory_space<vmem>>, vector<1x14x128xf32>,
    %c3_91 = arith.constant 3 : index
    %c0_92 = arith.constant 0 : index
    %c0_93 = arith.constant 0 : index
    %146 = vector.load %arg8[%c3_91, %c0_92, %c0_93] : memref<16x16x128xf32, #tpu.memory_space<vmem>>, vector<1x16x128xf32>
    %147 = vector.shape_cast %146 : vector<1x16x128xf32> to vector<16x128xf32>
    %c4_94 = arith.constant 4 : index
    %c0_95 = arith.constant 0 : index
    %c0_96 = arith.constant 0 : index
    %148 = vector.load %arg8[%c4_94, %c0_95, %c0_96] : memref<16x16x128xf32, #tpu.memory_space<vmem>>, vector<1x16x128xf32>
    %149 = vector.shape_cast %148 : vector<1x16x128xf32> to vector<16x128xf32>
    %c5_97 = arith.constant 5 : index
    %c0_98 = arith.constant 0 : index
    %c0_99 = arith.constant 0 : index
    %150 = vector.load %arg8[%c5_97, %c0_98, %c0_99] : memref<16x16x128xf32, #tpu.memory_space<vmem>>, vector<1x16x128xf32>
    %151 = vector.shape_cast %150 : vector<1x16x128xf32> to vector<16x128xf32>
    %152 = vector.extract_strided_slice %147 {offsets = [0, 0], sizes = [14, 128], strides = [1, 1]} : vector<16x128xf32> to vector<14x128xf32>
    %153 = vector.extract_strided_slice %147 {offsets = [1, 0], sizes = [14, 128], strides = [1, 1]} : vector<16x128xf32> to vector<14x128xf32>
    %154 = vector.extract_strided_slice %147 {offsets = [2, 0], sizes = [14, 128], strides = [1, 1]} : vector<16x128xf32> to vector<14x128xf32>
    %155 = vector.extract_strided_slice %149 {offsets = [0, 0], sizes = [14, 128], strides = [1, 1]} : vector<16x128xf32> to vector<14x128xf32>
    %156 = vector.extract_strided_slice %149 {offsets = [1, 0], sizes = [14, 128], strides = [1, 1]} : vector<16x128xf32> to vector<14x128xf32>
    %157 = vector.extract_strided_slice %149 {offsets = [2, 0], sizes = [14, 128], strides = [1, 1]} : vector<16x128xf32> to vector<14x128xf32>
    %158 = vector.extract_strided_slice %151 {offsets = [0, 0], sizes = [14, 128], strides = [1, 1]} : vector<16x128xf32> to vector<14x128xf32>
    %159 = vector.extract_strided_slice %151 {offsets = [1, 0], sizes = [14, 128], strides = [1, 1]} : vector<16x128xf32> to vector<14x128xf32>
    %160 = vector.extract_strided_slice %151 {offsets = [2, 0], sizes = [14, 128], strides = [1, 1]} : vector<16x128xf32> to vector<14x128xf32>
    %161 = tpu.concatenate %152, %153, %154, %155, %156, %157, %158, %159, %160 in 1 : vector<14x128xf32>, vector<14x128xf32>, vector<14x128xf32>, vector<14x128xf32>, vector<14x128xf32>, vector<14x128xf32>, vector<14x128xf32>, vector<14x128xf32>, vector<14x128xf32> -> vector<14x1152xf32>
    %cst_100 = arith.constant dense<0.000000e+00> : vector<14x128xf32>
    %162 = tpu.matmul %161, %77, %cst_100 {dimension_numbers = #tpu.dot_dimension_numbers<[1], [0], [0], [1], [0, 0, 1, 1], [], []>} : vector<14x1152xf32>, vector<1152x128xf32>, vector<14x128xf32> -> vector<14x128xf32>
    %cst_101 = arith.constant 0.000000e+00 : f32
    %163 = vector.broadcast %cst_101 : f32 to vector<14x128xf32>
    %164 = arith.maximumf %162, %163 : vector<14x128xf32>
    %c4_102 = arith.constant 4 : index
    %c1_103 = arith.constant 1 : index
    %c0_104 = arith.constant 0 : index
    %165 = vector.load %arg9[%c4_102, %c1_103, %c0_104] : memref<16x16x128xf32, #tpu.memory_space<vmem>>, vector<1x14x128xf32>
    %166 = vector.shape_cast %165 : vector<1x14x128xf32> to vector<14x128xf32>
    %167 = vector.shape_cast %164 : vector<14x128xf32> to vector<1x14x128xf32>
    tpu.vector_store %arg9[%c4_102, %c1_103, %c0_104], %167 {strides = array<i32>} : memref<16x16x128xf32, #tpu.memory_space<vmem>>, vector<1x14x128xf32>,
    %c4_105 = arith.constant 4 : index
    %c0_106 = arith.constant 0 : index
    %c0_107 = arith.constant 0 : index
    %168 = vector.load %arg8[%c4_105, %c0_106, %c0_107] : memref<16x16x128xf32, #tpu.memory_space<vmem>>, vector<1x16x128xf32>
    %169 = vector.shape_cast %168 : vector<1x16x128xf32> to vector<16x128xf32>
    %c5_108 = arith.constant 5 : index
    %c0_109 = arith.constant 0 : index
    %c0_110 = arith.constant 0 : index
    %170 = vector.load %arg8[%c5_108, %c0_109, %c0_110] : memref<16x16x128xf32, #tpu.memory_space<vmem>>, vector<1x16x128xf32>
    %171 = vector.shape_cast %170 : vector<1x16x128xf32> to vector<16x128xf32>
    %c6_111 = arith.constant 6 : index
    %c0_112 = arith.constant 0 : index
    %c0_113 = arith.constant 0 : index
    %172 = vector.load %arg8[%c6_111, %c0_112, %c0_113] : memref<16x16x128xf32, #tpu.memory_space<vmem>>, vector<1x16x128xf32>
    %173 = vector.shape_cast %172 : vector<1x16x128xf32> to vector<16x128xf32>
    %174 = vector.extract_strided_slice %169 {offsets = [0, 0], sizes = [14, 128], strides = [1, 1]} : vector<16x128xf32> to vector<14x128xf32>
    %175 = vector.extract_strided_slice %169 {offsets = [1, 0], sizes = [14, 128], strides = [1, 1]} : vector<16x128xf32> to vector<14x128xf32>
    %176 = vector.extract_strided_slice %169 {offsets = [2, 0], sizes = [14, 128], strides = [1, 1]} : vector<16x128xf32> to vector<14x128xf32>
    %177 = vector.extract_strided_slice %171 {offsets = [0, 0], sizes = [14, 128], strides = [1, 1]} : vector<16x128xf32> to vector<14x128xf32>
    %178 = vector.extract_strided_slice %171 {offsets = [1, 0], sizes = [14, 128], strides = [1, 1]} : vector<16x128xf32> to vector<14x128xf32>
    %179 = vector.extract_strided_slice %171 {offsets = [2, 0], sizes = [14, 128], strides = [1, 1]} : vector<16x128xf32> to vector<14x128xf32>
    %180 = vector.extract_strided_slice %173 {offsets = [0, 0], sizes = [14, 128], strides = [1, 1]} : vector<16x128xf32> to vector<14x128xf32>
    %181 = vector.extract_strided_slice %173 {offsets = [1, 0], sizes = [14, 128], strides = [1, 1]} : vector<16x128xf32> to vector<14x128xf32>
    %182 = vector.extract_strided_slice %173 {offsets = [2, 0], sizes = [14, 128], strides = [1, 1]} : vector<16x128xf32> to vector<14x128xf32>
    %183 = tpu.concatenate %174, %175, %176, %177, %178, %179, %180, %181, %182 in 1 : vector<14x128xf32>, vector<14x128xf32>, vector<14x128xf32>, vector<14x128xf32>, vector<14x128xf32>, vector<14x128xf32>, vector<14x128xf32>, vector<14x128xf32>, vector<14x128xf32> -> vector<14x1152xf32>
    %cst_114 = arith.constant dense<0.000000e+00> : vector<14x128xf32>
    %184 = tpu.matmul %183, %77, %cst_114 {dimension_numbers = #tpu.dot_dimension_numbers<[1], [0], [0], [1], [0, 0, 1, 1], [], []>} : vector<14x1152xf32>, vector<1152x128xf32>, vector<14x128xf32> -> vector<14x128xf32>
    %cst_115 = arith.constant 0.000000e+00 : f32
    %185 = vector.broadcast %cst_115 : f32 to vector<14x128xf32>
    %186 = arith.maximumf %184, %185 : vector<14x128xf32>
    %c5_116 = arith.constant 5 : index
    %c1_117 = arith.constant 1 : index
    %c0_118 = arith.constant 0 : index
    %187 = vector.load %arg9[%c5_116, %c1_117, %c0_118] : memref<16x16x128xf32, #tpu.memory_space<vmem>>, vector<1x14x128xf32>
    %188 = vector.shape_cast %187 : vector<1x14x128xf32> to vector<14x128xf32>
    %189 = vector.shape_cast %186 : vector<14x128xf32> to vector<1x14x128xf32>
    tpu.vector_store %arg9[%c5_116, %c1_117, %c0_118], %189 {strides = array<i32>} : memref<16x16x128xf32, #tpu.memory_space<vmem>>, vector<1x14x128xf32>,
    %c5_119 = arith.constant 5 : index
    %c0_120 = arith.constant 0 : index
    %c0_121 = arith.constant 0 : index
    %190 = vector.load %arg8[%c5_119, %c0_120, %c0_121] : memref<16x16x128xf32, #tpu.memory_space<vmem>>, vector<1x16x128xf32>
    %191 = vector.shape_cast %190 : vector<1x16x128xf32> to vector<16x128xf32>
    %c6_122 = arith.constant 6 : index
    %c0_123 = arith.constant 0 : index
    %c0_124 = arith.constant 0 : index
    %192 = vector.load %arg8[%c6_122, %c0_123, %c0_124] : memref<16x16x128xf32, #tpu.memory_space<vmem>>, vector<1x16x128xf32>
    %193 = vector.shape_cast %192 : vector<1x16x128xf32> to vector<16x128xf32>
    %c7_125 = arith.constant 7 : index
    %c0_126 = arith.constant 0 : index
    %c0_127 = arith.constant 0 : index
    %194 = vector.load %arg8[%c7_125, %c0_126, %c0_127] : memref<16x16x128xf32, #tpu.memory_space<vmem>>, vector<1x16x128xf32>
    %195 = vector.shape_cast %194 : vector<1x16x128xf32> to vector<16x128xf32>
    %196 = vector.extract_strided_slice %191 {offsets = [0, 0], sizes = [14, 128], strides = [1, 1]} : vector<16x128xf32> to vector<14x128xf32>
    %197 = vector.extract_strided_slice %191 {offsets = [1, 0], sizes = [14, 128], strides = [1, 1]} : vector<16x128xf32> to vector<14x128xf32>
    %198 = vector.extract_strided_slice %191 {offsets = [2, 0], sizes = [14, 128], strides = [1, 1]} : vector<16x128xf32> to vector<14x128xf32>
    %199 = vector.extract_strided_slice %193 {offsets = [0, 0], sizes = [14, 128], strides = [1, 1]} : vector<16x128xf32> to vector<14x128xf32>
    %200 = vector.extract_strided_slice %193 {offsets = [1, 0], sizes = [14, 128], strides = [1, 1]} : vector<16x128xf32> to vector<14x128xf32>
    %201 = vector.extract_strided_slice %193 {offsets = [2, 0], sizes = [14, 128], strides = [1, 1]} : vector<16x128xf32> to vector<14x128xf32>
    %202 = vector.extract_strided_slice %195 {offsets = [0, 0], sizes = [14, 128], strides = [1, 1]} : vector<16x128xf32> to vector<14x128xf32>
    %203 = vector.extract_strided_slice %195 {offsets = [1, 0], sizes = [14, 128], strides = [1, 1]} : vector<16x128xf32> to vector<14x128xf32>
    %204 = vector.extract_strided_slice %195 {offsets = [2, 0], sizes = [14, 128], strides = [1, 1]} : vector<16x128xf32> to vector<14x128xf32>
    %205 = tpu.concatenate %196, %197, %198, %199, %200, %201, %202, %203, %204 in 1 : vector<14x128xf32>, vector<14x128xf32>, vector<14x128xf32>, vector<14x128xf32>, vector<14x128xf32>, vector<14x128xf32>, vector<14x128xf32>, vector<14x128xf32>, vector<14x128xf32> -> vector<14x1152xf32>
    %cst_128 = arith.constant dense<0.000000e+00> : vector<14x128xf32>
    %206 = tpu.matmul %205, %77, %cst_128 {dimension_numbers = #tpu.dot_dimension_numbers<[1], [0], [0], [1], [0, 0, 1, 1], [], []>} : vector<14x1152xf32>, vector<1152x128xf32>, vector<14x128xf32> -> vector<14x128xf32>
    %cst_129 = arith.constant 0.000000e+00 : f32
    %207 = vector.broadcast %cst_129 : f32 to vector<14x128xf32>
    %208 = arith.maximumf %206, %207 : vector<14x128xf32>
    %c6_130 = arith.constant 6 : index
    %c1_131 = arith.constant 1 : index
    %c0_132 = arith.constant 0 : index
    %209 = vector.load %arg9[%c6_130, %c1_131, %c0_132] : memref<16x16x128xf32, #tpu.memory_space<vmem>>, vector<1x14x128xf32>
    %210 = vector.shape_cast %209 : vector<1x14x128xf32> to vector<14x128xf32>
    %211 = vector.shape_cast %208 : vector<14x128xf32> to vector<1x14x128xf32>
    tpu.vector_store %arg9[%c6_130, %c1_131, %c0_132], %211 {strides = array<i32>} : memref<16x16x128xf32, #tpu.memory_space<vmem>>, vector<1x14x128xf32>,
    %c6_133 = arith.constant 6 : index
    %c0_134 = arith.constant 0 : index
    %c0_135 = arith.constant 0 : index
    %212 = vector.load %arg8[%c6_133, %c0_134, %c0_135] : memref<16x16x128xf32, #tpu.memory_space<vmem>>, vector<1x16x128xf32>
    %213 = vector.shape_cast %212 : vector<1x16x128xf32> to vector<16x128xf32>
    %c7_136 = arith.constant 7 : index
    %c0_137 = arith.constant 0 : index
    %c0_138 = arith.constant 0 : index
    %214 = vector.load %arg8[%c7_136, %c0_137, %c0_138] : memref<16x16x128xf32, #tpu.memory_space<vmem>>, vector<1x16x128xf32>
    %215 = vector.shape_cast %214 : vector<1x16x128xf32> to vector<16x128xf32>
    %c8_139 = arith.constant 8 : index
    %c0_140 = arith.constant 0 : index
    %c0_141 = arith.constant 0 : index
    %216 = vector.load %arg8[%c8_139, %c0_140, %c0_141] : memref<16x16x128xf32, #tpu.memory_space<vmem>>, vector<1x16x128xf32>
    %217 = vector.shape_cast %216 : vector<1x16x128xf32> to vector<16x128xf32>
    %218 = vector.extract_strided_slice %213 {offsets = [0, 0], sizes = [14, 128], strides = [1, 1]} : vector<16x128xf32> to vector<14x128xf32>
    %219 = vector.extract_strided_slice %213 {offsets = [1, 0], sizes = [14, 128], strides = [1, 1]} : vector<16x128xf32> to vector<14x128xf32>
    %220 = vector.extract_strided_slice %213 {offsets = [2, 0], sizes = [14, 128], strides = [1, 1]} : vector<16x128xf32> to vector<14x128xf32>
    %221 = vector.extract_strided_slice %215 {offsets = [0, 0], sizes = [14, 128], strides = [1, 1]} : vector<16x128xf32> to vector<14x128xf32>
    %222 = vector.extract_strided_slice %215 {offsets = [1, 0], sizes = [14, 128], strides = [1, 1]} : vector<16x128xf32> to vector<14x128xf32>
    %223 = vector.extract_strided_slice %215 {offsets = [2, 0], sizes = [14, 128], strides = [1, 1]} : vector<16x128xf32> to vector<14x128xf32>
    %224 = vector.extract_strided_slice %217 {offsets = [0, 0], sizes = [14, 128], strides = [1, 1]} : vector<16x128xf32> to vector<14x128xf32>
    %225 = vector.extract_strided_slice %217 {offsets = [1, 0], sizes = [14, 128], strides = [1, 1]} : vector<16x128xf32> to vector<14x128xf32>
    %226 = vector.extract_strided_slice %217 {offsets = [2, 0], sizes = [14, 128], strides = [1, 1]} : vector<16x128xf32> to vector<14x128xf32>
    %227 = tpu.concatenate %218, %219, %220, %221, %222, %223, %224, %225, %226 in 1 : vector<14x128xf32>, vector<14x128xf32>, vector<14x128xf32>, vector<14x128xf32>, vector<14x128xf32>, vector<14x128xf32>, vector<14x128xf32>, vector<14x128xf32>, vector<14x128xf32> -> vector<14x1152xf32>
    %cst_142 = arith.constant dense<0.000000e+00> : vector<14x128xf32>
    %228 = tpu.matmul %227, %77, %cst_142 {dimension_numbers = #tpu.dot_dimension_numbers<[1], [0], [0], [1], [0, 0, 1, 1], [], []>} : vector<14x1152xf32>, vector<1152x128xf32>, vector<14x128xf32> -> vector<14x128xf32>
    %cst_143 = arith.constant 0.000000e+00 : f32
    %229 = vector.broadcast %cst_143 : f32 to vector<14x128xf32>
    %230 = arith.maximumf %228, %229 : vector<14x128xf32>
    %c7_144 = arith.constant 7 : index
    %c1_145 = arith.constant 1 : index
    %c0_146 = arith.constant 0 : index
    %231 = vector.load %arg9[%c7_144, %c1_145, %c0_146] : memref<16x16x128xf32, #tpu.memory_space<vmem>>, vector<1x14x128xf32>
    %232 = vector.shape_cast %231 : vector<1x14x128xf32> to vector<14x128xf32>
    %233 = vector.shape_cast %230 : vector<14x128xf32> to vector<1x14x128xf32>
    tpu.vector_store %arg9[%c7_144, %c1_145, %c0_146], %233 {strides = array<i32>} : memref<16x16x128xf32, #tpu.memory_space<vmem>>, vector<1x14x128xf32>,
    %c7_147 = arith.constant 7 : index
    %c0_148 = arith.constant 0 : index
    %c0_149 = arith.constant 0 : index
    %234 = vector.load %arg8[%c7_147, %c0_148, %c0_149] : memref<16x16x128xf32, #tpu.memory_space<vmem>>, vector<1x16x128xf32>
    %235 = vector.shape_cast %234 : vector<1x16x128xf32> to vector<16x128xf32>
    %c8_150 = arith.constant 8 : index
    %c0_151 = arith.constant 0 : index
    %c0_152 = arith.constant 0 : index
    %236 = vector.load %arg8[%c8_150, %c0_151, %c0_152] : memref<16x16x128xf32, #tpu.memory_space<vmem>>, vector<1x16x128xf32>
    %237 = vector.shape_cast %236 : vector<1x16x128xf32> to vector<16x128xf32>
    %c9_153 = arith.constant 9 : index
    %c0_154 = arith.constant 0 : index
    %c0_155 = arith.constant 0 : index
    %238 = vector.load %arg8[%c9_153, %c0_154, %c0_155] : memref<16x16x128xf32, #tpu.memory_space<vmem>>, vector<1x16x128xf32>
    %239 = vector.shape_cast %238 : vector<1x16x128xf32> to vector<16x128xf32>
    %240 = vector.extract_strided_slice %235 {offsets = [0, 0], sizes = [14, 128], strides = [1, 1]} : vector<16x128xf32> to vector<14x128xf32>
    %241 = vector.extract_strided_slice %235 {offsets = [1, 0], sizes = [14, 128], strides = [1, 1]} : vector<16x128xf32> to vector<14x128xf32>
    %242 = vector.extract_strided_slice %235 {offsets = [2, 0], sizes = [14, 128], strides = [1, 1]} : vector<16x128xf32> to vector<14x128xf32>
    %243 = vector.extract_strided_slice %237 {offsets = [0, 0], sizes = [14, 128], strides = [1, 1]} : vector<16x128xf32> to vector<14x128xf32>
    %244 = vector.extract_strided_slice %237 {offsets = [1, 0], sizes = [14, 128], strides = [1, 1]} : vector<16x128xf32> to vector<14x128xf32>
    %245 = vector.extract_strided_slice %237 {offsets = [2, 0], sizes = [14, 128], strides = [1, 1]} : vector<16x128xf32> to vector<14x128xf32>
    %246 = vector.extract_strided_slice %239 {offsets = [0, 0], sizes = [14, 128], strides = [1, 1]} : vector<16x128xf32> to vector<14x128xf32>
    %247 = vector.extract_strided_slice %239 {offsets = [1, 0], sizes = [14, 128], strides = [1, 1]} : vector<16x128xf32> to vector<14x128xf32>
    %248 = vector.extract_strided_slice %239 {offsets = [2, 0], sizes = [14, 128], strides = [1, 1]} : vector<16x128xf32> to vector<14x128xf32>
    %249 = tpu.concatenate %240, %241, %242, %243, %244, %245, %246, %247, %248 in 1 : vector<14x128xf32>, vector<14x128xf32>, vector<14x128xf32>, vector<14x128xf32>, vector<14x128xf32>, vector<14x128xf32>, vector<14x128xf32>, vector<14x128xf32>, vector<14x128xf32> -> vector<14x1152xf32>
    %cst_156 = arith.constant dense<0.000000e+00> : vector<14x128xf32>
    %250 = tpu.matmul %249, %77, %cst_156 {dimension_numbers = #tpu.dot_dimension_numbers<[1], [0], [0], [1], [0, 0, 1, 1], [], []>} : vector<14x1152xf32>, vector<1152x128xf32>, vector<14x128xf32> -> vector<14x128xf32>
    %cst_157 = arith.constant 0.000000e+00 : f32
    %251 = vector.broadcast %cst_157 : f32 to vector<14x128xf32>
    %252 = arith.maximumf %250, %251 : vector<14x128xf32>
    %c8_158 = arith.constant 8 : index
    %c1_159 = arith.constant 1 : index
    %c0_160 = arith.constant 0 : index
    %253 = vector.load %arg9[%c8_158, %c1_159, %c0_160] : memref<16x16x128xf32, #tpu.memory_space<vmem>>, vector<1x14x128xf32>
    %254 = vector.shape_cast %253 : vector<1x14x128xf32> to vector<14x128xf32>
    %255 = vector.shape_cast %252 : vector<14x128xf32> to vector<1x14x128xf32>
    tpu.vector_store %arg9[%c8_158, %c1_159, %c0_160], %255 {strides = array<i32>} : memref<16x16x128xf32, #tpu.memory_space<vmem>>, vector<1x14x128xf32>,
    %c8_161 = arith.constant 8 : index
    %c0_162 = arith.constant 0 : index
    %c0_163 = arith.constant 0 : index
    %256 = vector.load %arg8[%c8_161, %c0_162, %c0_163] : memref<16x16x128xf32, #tpu.memory_space<vmem>>, vector<1x16x128xf32>
    %257 = vector.shape_cast %256 : vector<1x16x128xf32> to vector<16x128xf32>
    %c9_164 = arith.constant 9 : index
    %c0_165 = arith.constant 0 : index
    %c0_166 = arith.constant 0 : index
    %258 = vector.load %arg8[%c9_164, %c0_165, %c0_166] : memref<16x16x128xf32, #tpu.memory_space<vmem>>, vector<1x16x128xf32>
    %259 = vector.shape_cast %258 : vector<1x16x128xf32> to vector<16x128xf32>
    %c10_167 = arith.constant 10 : index
    %c0_168 = arith.constant 0 : index
    %c0_169 = arith.constant 0 : index
    %260 = vector.load %arg8[%c10_167, %c0_168, %c0_169] : memref<16x16x128xf32, #tpu.memory_space<vmem>>, vector<1x16x128xf32>
    %261 = vector.shape_cast %260 : vector<1x16x128xf32> to vector<16x128xf32>
    %262 = vector.extract_strided_slice %257 {offsets = [0, 0], sizes = [14, 128], strides = [1, 1]} : vector<16x128xf32> to vector<14x128xf32>
    %263 = vector.extract_strided_slice %257 {offsets = [1, 0], sizes = [14, 128], strides = [1, 1]} : vector<16x128xf32> to vector<14x128xf32>
    %264 = vector.extract_strided_slice %257 {offsets = [2, 0], sizes = [14, 128], strides = [1, 1]} : vector<16x128xf32> to vector<14x128xf32>
    %265 = vector.extract_strided_slice %259 {offsets = [0, 0], sizes = [14, 128], strides = [1, 1]} : vector<16x128xf32> to vector<14x128xf32>
    %266 = vector.extract_strided_slice %259 {offsets = [1, 0], sizes = [14, 128], strides = [1, 1]} : vector<16x128xf32> to vector<14x128xf32>
    %267 = vector.extract_strided_slice %259 {offsets = [2, 0], sizes = [14, 128], strides = [1, 1]} : vector<16x128xf32> to vector<14x128xf32>
    %268 = vector.extract_strided_slice %261 {offsets = [0, 0], sizes = [14, 128], strides = [1, 1]} : vector<16x128xf32> to vector<14x128xf32>
    %269 = vector.extract_strided_slice %261 {offsets = [1, 0], sizes = [14, 128], strides = [1, 1]} : vector<16x128xf32> to vector<14x128xf32>
    %270 = vector.extract_strided_slice %261 {offsets = [2, 0], sizes = [14, 128], strides = [1, 1]} : vector<16x128xf32> to vector<14x128xf32>
    %271 = tpu.concatenate %262, %263, %264, %265, %266, %267, %268, %269, %270 in 1 : vector<14x128xf32>, vector<14x128xf32>, vector<14x128xf32>, vector<14x128xf32>, vector<14x128xf32>, vector<14x128xf32>, vector<14x128xf32>, vector<14x128xf32>, vector<14x128xf32> -> vector<14x1152xf32>
    %cst_170 = arith.constant dense<0.000000e+00> : vector<14x128xf32>
    %272 = tpu.matmul %271, %77, %cst_170 {dimension_numbers = #tpu.dot_dimension_numbers<[1], [0], [0], [1], [0, 0, 1, 1], [], []>} : vector<14x1152xf32>, vector<1152x128xf32>, vector<14x128xf32> -> vector<14x128xf32>
    %cst_171 = arith.constant 0.000000e+00 : f32
    %273 = vector.broadcast %cst_171 : f32 to vector<14x128xf32>
    %274 = arith.maximumf %272, %273 : vector<14x128xf32>
    %c9_172 = arith.constant 9 : index
    %c1_173 = arith.constant 1 : index
    %c0_174 = arith.constant 0 : index
    %275 = vector.load %arg9[%c9_172, %c1_173, %c0_174] : memref<16x16x128xf32, #tpu.memory_space<vmem>>, vector<1x14x128xf32>
    %276 = vector.shape_cast %275 : vector<1x14x128xf32> to vector<14x128xf32>
    %277 = vector.shape_cast %274 : vector<14x128xf32> to vector<1x14x128xf32>
    tpu.vector_store %arg9[%c9_172, %c1_173, %c0_174], %277 {strides = array<i32>} : memref<16x16x128xf32, #tpu.memory_space<vmem>>, vector<1x14x128xf32>,
    %c9_175 = arith.constant 9 : index
    %c0_176 = arith.constant 0 : index
    %c0_177 = arith.constant 0 : index
    %278 = vector.load %arg8[%c9_175, %c0_176, %c0_177] : memref<16x16x128xf32, #tpu.memory_space<vmem>>, vector<1x16x128xf32>
    %279 = vector.shape_cast %278 : vector<1x16x128xf32> to vector<16x128xf32>
    %c10_178 = arith.constant 10 : index
    %c0_179 = arith.constant 0 : index
    %c0_180 = arith.constant 0 : index
    %280 = vector.load %arg8[%c10_178, %c0_179, %c0_180] : memref<16x16x128xf32, #tpu.memory_space<vmem>>, vector<1x16x128xf32>
    %281 = vector.shape_cast %280 : vector<1x16x128xf32> to vector<16x128xf32>
    %c11_181 = arith.constant 11 : index
    %c0_182 = arith.constant 0 : index
    %c0_183 = arith.constant 0 : index
    %282 = vector.load %arg8[%c11_181, %c0_182, %c0_183] : memref<16x16x128xf32, #tpu.memory_space<vmem>>, vector<1x16x128xf32>
    %283 = vector.shape_cast %282 : vector<1x16x128xf32> to vector<16x128xf32>
    %284 = vector.extract_strided_slice %279 {offsets = [0, 0], sizes = [14, 128], strides = [1, 1]} : vector<16x128xf32> to vector<14x128xf32>
    %285 = vector.extract_strided_slice %279 {offsets = [1, 0], sizes = [14, 128], strides = [1, 1]} : vector<16x128xf32> to vector<14x128xf32>
    %286 = vector.extract_strided_slice %279 {offsets = [2, 0], sizes = [14, 128], strides = [1, 1]} : vector<16x128xf32> to vector<14x128xf32>
    %287 = vector.extract_strided_slice %281 {offsets = [0, 0], sizes = [14, 128], strides = [1, 1]} : vector<16x128xf32> to vector<14x128xf32>
    %288 = vector.extract_strided_slice %281 {offsets = [1, 0], sizes = [14, 128], strides = [1, 1]} : vector<16x128xf32> to vector<14x128xf32>
    %289 = vector.extract_strided_slice %281 {offsets = [2, 0], sizes = [14, 128], strides = [1, 1]} : vector<16x128xf32> to vector<14x128xf32>
    %290 = vector.extract_strided_slice %283 {offsets = [0, 0], sizes = [14, 128], strides = [1, 1]} : vector<16x128xf32> to vector<14x128xf32>
    %291 = vector.extract_strided_slice %283 {offsets = [1, 0], sizes = [14, 128], strides = [1, 1]} : vector<16x128xf32> to vector<14x128xf32>
    %292 = vector.extract_strided_slice %283 {offsets = [2, 0], sizes = [14, 128], strides = [1, 1]} : vector<16x128xf32> to vector<14x128xf32>
    %293 = tpu.concatenate %284, %285, %286, %287, %288, %289, %290, %291, %292 in 1 : vector<14x128xf32>, vector<14x128xf32>, vector<14x128xf32>, vector<14x128xf32>, vector<14x128xf32>, vector<14x128xf32>, vector<14x128xf32>, vector<14x128xf32>, vector<14x128xf32> -> vector<14x1152xf32>
    %cst_184 = arith.constant dense<0.000000e+00> : vector<14x128xf32>
    %294 = tpu.matmul %293, %77, %cst_184 {dimension_numbers = #tpu.dot_dimension_numbers<[1], [0], [0], [1], [0, 0, 1, 1], [], []>} : vector<14x1152xf32>, vector<1152x128xf32>, vector<14x128xf32> -> vector<14x128xf32>
    %cst_185 = arith.constant 0.000000e+00 : f32
    %295 = vector.broadcast %cst_185 : f32 to vector<14x128xf32>
    %296 = arith.maximumf %294, %295 : vector<14x128xf32>
    %c10_186 = arith.constant 10 : index
    %c1_187 = arith.constant 1 : index
    %c0_188 = arith.constant 0 : index
    %297 = vector.load %arg9[%c10_186, %c1_187, %c0_188] : memref<16x16x128xf32, #tpu.memory_space<vmem>>, vector<1x14x128xf32>
    %298 = vector.shape_cast %297 : vector<1x14x128xf32> to vector<14x128xf32>
    %299 = vector.shape_cast %296 : vector<14x128xf32> to vector<1x14x128xf32>
    tpu.vector_store %arg9[%c10_186, %c1_187, %c0_188], %299 {strides = array<i32>} : memref<16x16x128xf32, #tpu.memory_space<vmem>>, vector<1x14x128xf32>,
    %c10_189 = arith.constant 10 : index
    %c0_190 = arith.constant 0 : index
    %c0_191 = arith.constant 0 : index
    %300 = vector.load %arg8[%c10_189, %c0_190, %c0_191] : memref<16x16x128xf32, #tpu.memory_space<vmem>>, vector<1x16x128xf32>
    %301 = vector.shape_cast %300 : vector<1x16x128xf32> to vector<16x128xf32>
    %c11_192 = arith.constant 11 : index
    %c0_193 = arith.constant 0 : index
    %c0_194 = arith.constant 0 : index
    %302 = vector.load %arg8[%c11_192, %c0_193, %c0_194] : memref<16x16x128xf32, #tpu.memory_space<vmem>>, vector<1x16x128xf32>
    %303 = vector.shape_cast %302 : vector<1x16x128xf32> to vector<16x128xf32>
    %c12_195 = arith.constant 12 : index
    %c0_196 = arith.constant 0 : index
    %c0_197 = arith.constant 0 : index
    %304 = vector.load %arg8[%c12_195, %c0_196, %c0_197] : memref<16x16x128xf32, #tpu.memory_space<vmem>>, vector<1x16x128xf32>
    %305 = vector.shape_cast %304 : vector<1x16x128xf32> to vector<16x128xf32>
    %306 = vector.extract_strided_slice %301 {offsets = [0, 0], sizes = [14, 128], strides = [1, 1]} : vector<16x128xf32> to vector<14x128xf32>
    %307 = vector.extract_strided_slice %301 {offsets = [1, 0], sizes = [14, 128], strides = [1, 1]} : vector<16x128xf32> to vector<14x128xf32>
    %308 = vector.extract_strided_slice %301 {offsets = [2, 0], sizes = [14, 128], strides = [1, 1]} : vector<16x128xf32> to vector<14x128xf32>
    %309 = vector.extract_strided_slice %303 {offsets = [0, 0], sizes = [14, 128], strides = [1, 1]} : vector<16x128xf32> to vector<14x128xf32>
    %310 = vector.extract_strided_slice %303 {offsets = [1, 0], sizes = [14, 128], strides = [1, 1]} : vector<16x128xf32> to vector<14x128xf32>
    %311 = vector.extract_strided_slice %303 {offsets = [2, 0], sizes = [14, 128], strides = [1, 1]} : vector<16x128xf32> to vector<14x128xf32>
    %312 = vector.extract_strided_slice %305 {offsets = [0, 0], sizes = [14, 128], strides = [1, 1]} : vector<16x128xf32> to vector<14x128xf32>
    %313 = vector.extract_strided_slice %305 {offsets = [1, 0], sizes = [14, 128], strides = [1, 1]} : vector<16x128xf32> to vector<14x128xf32>
    %314 = vector.extract_strided_slice %305 {offsets = [2, 0], sizes = [14, 128], strides = [1, 1]} : vector<16x128xf32> to vector<14x128xf32>
    %315 = tpu.concatenate %306, %307, %308, %309, %310, %311, %312, %313, %314 in 1 : vector<14x128xf32>, vector<14x128xf32>, vector<14x128xf32>, vector<14x128xf32>, vector<14x128xf32>, vector<14x128xf32>, vector<14x128xf32>, vector<14x128xf32>, vector<14x128xf32> -> vector<14x1152xf32>
    %cst_198 = arith.constant dense<0.000000e+00> : vector<14x128xf32>
    %316 = tpu.matmul %315, %77, %cst_198 {dimension_numbers = #tpu.dot_dimension_numbers<[1], [0], [0], [1], [0, 0, 1, 1], [], []>} : vector<14x1152xf32>, vector<1152x128xf32>, vector<14x128xf32> -> vector<14x128xf32>
    %cst_199 = arith.constant 0.000000e+00 : f32
    %317 = vector.broadcast %cst_199 : f32 to vector<14x128xf32>
    %318 = arith.maximumf %316, %317 : vector<14x128xf32>
    %c11_200 = arith.constant 11 : index
    %c1_201 = arith.constant 1 : index
    %c0_202 = arith.constant 0 : index
    %319 = vector.load %arg9[%c11_200, %c1_201, %c0_202] : memref<16x16x128xf32, #tpu.memory_space<vmem>>, vector<1x14x128xf32>
    %320 = vector.shape_cast %319 : vector<1x14x128xf32> to vector<14x128xf32>
    %321 = vector.shape_cast %318 : vector<14x128xf32> to vector<1x14x128xf32>
    tpu.vector_store %arg9[%c11_200, %c1_201, %c0_202], %321 {strides = array<i32>} : memref<16x16x128xf32, #tpu.memory_space<vmem>>, vector<1x14x128xf32>,
    %c11_203 = arith.constant 11 : index
    %c0_204 = arith.constant 0 : index
    %c0_205 = arith.constant 0 : index
    %322 = vector.load %arg8[%c11_203, %c0_204, %c0_205] : memref<16x16x128xf32, #tpu.memory_space<vmem>>, vector<1x16x128xf32>
    %323 = vector.shape_cast %322 : vector<1x16x128xf32> to vector<16x128xf32>
    %c12_206 = arith.constant 12 : index
    %c0_207 = arith.constant 0 : index
    %c0_208 = arith.constant 0 : index
    %324 = vector.load %arg8[%c12_206, %c0_207, %c0_208] : memref<16x16x128xf32, #tpu.memory_space<vmem>>, vector<1x16x128xf32>
    %325 = vector.shape_cast %324 : vector<1x16x128xf32> to vector<16x128xf32>
    %c13_209 = arith.constant 13 : index
    %c0_210 = arith.constant 0 : index
    %c0_211 = arith.constant 0 : index
    %326 = vector.load %arg8[%c13_209, %c0_210, %c0_211] : memref<16x16x128xf32, #tpu.memory_space<vmem>>, vector<1x16x128xf32>
    %327 = vector.shape_cast %326 : vector<1x16x128xf32> to vector<16x128xf32>
    %328 = vector.extract_strided_slice %323 {offsets = [0, 0], sizes = [14, 128], strides = [1, 1]} : vector<16x128xf32> to vector<14x128xf32>
    %329 = vector.extract_strided_slice %323 {offsets = [1, 0], sizes = [14, 128], strides = [1, 1]} : vector<16x128xf32> to vector<14x128xf32>
    %330 = vector.extract_strided_slice %323 {offsets = [2, 0], sizes = [14, 128], strides = [1, 1]} : vector<16x128xf32> to vector<14x128xf32>
    %331 = vector.extract_strided_slice %325 {offsets = [0, 0], sizes = [14, 128], strides = [1, 1]} : vector<16x128xf32> to vector<14x128xf32>
    %332 = vector.extract_strided_slice %325 {offsets = [1, 0], sizes = [14, 128], strides = [1, 1]} : vector<16x128xf32> to vector<14x128xf32>
    %333 = vector.extract_strided_slice %325 {offsets = [2, 0], sizes = [14, 128], strides = [1, 1]} : vector<16x128xf32> to vector<14x128xf32>
    %334 = vector.extract_strided_slice %327 {offsets = [0, 0], sizes = [14, 128], strides = [1, 1]} : vector<16x128xf32> to vector<14x128xf32>
    %335 = vector.extract_strided_slice %327 {offsets = [1, 0], sizes = [14, 128], strides = [1, 1]} : vector<16x128xf32> to vector<14x128xf32>
    %336 = vector.extract_strided_slice %327 {offsets = [2, 0], sizes = [14, 128], strides = [1, 1]} : vector<16x128xf32> to vector<14x128xf32>
    %337 = tpu.concatenate %328, %329, %330, %331, %332, %333, %334, %335, %336 in 1 : vector<14x128xf32>, vector<14x128xf32>, vector<14x128xf32>, vector<14x128xf32>, vector<14x128xf32>, vector<14x128xf32>, vector<14x128xf32>, vector<14x128xf32>, vector<14x128xf32> -> vector<14x1152xf32>
    %cst_212 = arith.constant dense<0.000000e+00> : vector<14x128xf32>
    %338 = tpu.matmul %337, %77, %cst_212 {dimension_numbers = #tpu.dot_dimension_numbers<[1], [0], [0], [1], [0, 0, 1, 1], [], []>} : vector<14x1152xf32>, vector<1152x128xf32>, vector<14x128xf32> -> vector<14x128xf32>
    %cst_213 = arith.constant 0.000000e+00 : f32
    %339 = vector.broadcast %cst_213 : f32 to vector<14x128xf32>
    %340 = arith.maximumf %338, %339 : vector<14x128xf32>
    %c12_214 = arith.constant 12 : index
    %c1_215 = arith.constant 1 : index
    %c0_216 = arith.constant 0 : index
    %341 = vector.load %arg9[%c12_214, %c1_215, %c0_216] : memref<16x16x128xf32, #tpu.memory_space<vmem>>, vector<1x14x128xf32>
    %342 = vector.shape_cast %341 : vector<1x14x128xf32> to vector<14x128xf32>
    %343 = vector.shape_cast %340 : vector<14x128xf32> to vector<1x14x128xf32>
    tpu.vector_store %arg9[%c12_214, %c1_215, %c0_216], %343 {strides = array<i32>} : memref<16x16x128xf32, #tpu.memory_space<vmem>>, vector<1x14x128xf32>,
    %c12_217 = arith.constant 12 : index
    %c0_218 = arith.constant 0 : index
    %c0_219 = arith.constant 0 : index
    %344 = vector.load %arg8[%c12_217, %c0_218, %c0_219] : memref<16x16x128xf32, #tpu.memory_space<vmem>>, vector<1x16x128xf32>
    %345 = vector.shape_cast %344 : vector<1x16x128xf32> to vector<16x128xf32>
    %c13_220 = arith.constant 13 : index
    %c0_221 = arith.constant 0 : index
    %c0_222 = arith.constant 0 : index
    %346 = vector.load %arg8[%c13_220, %c0_221, %c0_222] : memref<16x16x128xf32, #tpu.memory_space<vmem>>, vector<1x16x128xf32>
    %347 = vector.shape_cast %346 : vector<1x16x128xf32> to vector<16x128xf32>
    %c14_223 = arith.constant 14 : index
    %c0_224 = arith.constant 0 : index
    %c0_225 = arith.constant 0 : index
    %348 = vector.load %arg8[%c14_223, %c0_224, %c0_225] : memref<16x16x128xf32, #tpu.memory_space<vmem>>, vector<1x16x128xf32>
    %349 = vector.shape_cast %348 : vector<1x16x128xf32> to vector<16x128xf32>
    %350 = vector.extract_strided_slice %345 {offsets = [0, 0], sizes = [14, 128], strides = [1, 1]} : vector<16x128xf32> to vector<14x128xf32>
    %351 = vector.extract_strided_slice %345 {offsets = [1, 0], sizes = [14, 128], strides = [1, 1]} : vector<16x128xf32> to vector<14x128xf32>
    %352 = vector.extract_strided_slice %345 {offsets = [2, 0], sizes = [14, 128], strides = [1, 1]} : vector<16x128xf32> to vector<14x128xf32>
    %353 = vector.extract_strided_slice %347 {offsets = [0, 0], sizes = [14, 128], strides = [1, 1]} : vector<16x128xf32> to vector<14x128xf32>
    %354 = vector.extract_strided_slice %347 {offsets = [1, 0], sizes = [14, 128], strides = [1, 1]} : vector<16x128xf32> to vector<14x128xf32>
    %355 = vector.extract_strided_slice %347 {offsets = [2, 0], sizes = [14, 128], strides = [1, 1]} : vector<16x128xf32> to vector<14x128xf32>
    %356 = vector.extract_strided_slice %349 {offsets = [0, 0], sizes = [14, 128], strides = [1, 1]} : vector<16x128xf32> to vector<14x128xf32>
    %357 = vector.extract_strided_slice %349 {offsets = [1, 0], sizes = [14, 128], strides = [1, 1]} : vector<16x128xf32> to vector<14x128xf32>
    %358 = vector.extract_strided_slice %349 {offsets = [2, 0], sizes = [14, 128], strides = [1, 1]} : vector<16x128xf32> to vector<14x128xf32>
    %359 = tpu.concatenate %350, %351, %352, %353, %354, %355, %356, %357, %358 in 1 : vector<14x128xf32>, vector<14x128xf32>, vector<14x128xf32>, vector<14x128xf32>, vector<14x128xf32>, vector<14x128xf32>, vector<14x128xf32>, vector<14x128xf32>, vector<14x128xf32> -> vector<14x1152xf32>
    %cst_226 = arith.constant dense<0.000000e+00> : vector<14x128xf32>
    %360 = tpu.matmul %359, %77, %cst_226 {dimension_numbers = #tpu.dot_dimension_numbers<[1], [0], [0], [1], [0, 0, 1, 1], [], []>} : vector<14x1152xf32>, vector<1152x128xf32>, vector<14x128xf32> -> vector<14x128xf32>
    %cst_227 = arith.constant 0.000000e+00 : f32
    %361 = vector.broadcast %cst_227 : f32 to vector<14x128xf32>
    %362 = arith.maximumf %360, %361 : vector<14x128xf32>
    %c13_228 = arith.constant 13 : index
    %c1_229 = arith.constant 1 : index
    %c0_230 = arith.constant 0 : index
    %363 = vector.load %arg9[%c13_228, %c1_229, %c0_230] : memref<16x16x128xf32, #tpu.memory_space<vmem>>, vector<1x14x128xf32>
    %364 = vector.shape_cast %363 : vector<1x14x128xf32> to vector<14x128xf32>
    %365 = vector.shape_cast %362 : vector<14x128xf32> to vector<1x14x128xf32>
    tpu.vector_store %arg9[%c13_228, %c1_229, %c0_230], %365 {strides = array<i32>} : memref<16x16x128xf32, #tpu.memory_space<vmem>>, vector<1x14x128xf32>,
    %c13_231 = arith.constant 13 : index
    %c0_232 = arith.constant 0 : index
    %c0_233 = arith.constant 0 : index
    %366 = vector.load %arg8[%c13_231, %c0_232, %c0_233] : memref<16x16x128xf32, #tpu.memory_space<vmem>>, vector<1x16x128xf32>
    %367 = vector.shape_cast %366 : vector<1x16x128xf32> to vector<16x128xf32>
    %c14_234 = arith.constant 14 : index
    %c0_235 = arith.constant 0 : index
    %c0_236 = arith.constant 0 : index
    %368 = vector.load %arg8[%c14_234, %c0_235, %c0_236] : memref<16x16x128xf32, #tpu.memory_space<vmem>>, vector<1x16x128xf32>
    %369 = vector.shape_cast %368 : vector<1x16x128xf32> to vector<16x128xf32>
    %c15_237 = arith.constant 15 : index
    %c0_238 = arith.constant 0 : index
    %c0_239 = arith.constant 0 : index
    %370 = vector.load %arg8[%c15_237, %c0_238, %c0_239] : memref<16x16x128xf32, #tpu.memory_space<vmem>>, vector<1x16x128xf32>
    %371 = vector.shape_cast %370 : vector<1x16x128xf32> to vector<16x128xf32>
    %372 = vector.extract_strided_slice %367 {offsets = [0, 0], sizes = [14, 128], strides = [1, 1]} : vector<16x128xf32> to vector<14x128xf32>
    %373 = vector.extract_strided_slice %367 {offsets = [1, 0], sizes = [14, 128], strides = [1, 1]} : vector<16x128xf32> to vector<14x128xf32>
    %374 = vector.extract_strided_slice %367 {offsets = [2, 0], sizes = [14, 128], strides = [1, 1]} : vector<16x128xf32> to vector<14x128xf32>
    %375 = vector.extract_strided_slice %369 {offsets = [0, 0], sizes = [14, 128], strides = [1, 1]} : vector<16x128xf32> to vector<14x128xf32>
    %376 = vector.extract_strided_slice %369 {offsets = [1, 0], sizes = [14, 128], strides = [1, 1]} : vector<16x128xf32> to vector<14x128xf32>
    %377 = vector.extract_strided_slice %369 {offsets = [2, 0], sizes = [14, 128], strides = [1, 1]} : vector<16x128xf32> to vector<14x128xf32>
    %378 = vector.extract_strided_slice %371 {offsets = [0, 0], sizes = [14, 128], strides = [1, 1]} : vector<16x128xf32> to vector<14x128xf32>
    %379 = vector.extract_strided_slice %371 {offsets = [1, 0], sizes = [14, 128], strides = [1, 1]} : vector<16x128xf32> to vector<14x128xf32>
    %380 = vector.extract_strided_slice %371 {offsets = [2, 0], sizes = [14, 128], strides = [1, 1]} : vector<16x128xf32> to vector<14x128xf32>
    %381 = tpu.concatenate %372, %373, %374, %375, %376, %377, %378, %379, %380 in 1 : vector<14x128xf32>, vector<14x128xf32>, vector<14x128xf32>, vector<14x128xf32>, vector<14x128xf32>, vector<14x128xf32>, vector<14x128xf32>, vector<14x128xf32>, vector<14x128xf32> -> vector<14x1152xf32>
    %cst_240 = arith.constant dense<0.000000e+00> : vector<14x128xf32>
    %382 = tpu.matmul %381, %77, %cst_240 {dimension_numbers = #tpu.dot_dimension_numbers<[1], [0], [0], [1], [0, 0, 1, 1], [], []>} : vector<14x1152xf32>, vector<1152x128xf32>, vector<14x128xf32> -> vector<14x128xf32>
    %cst_241 = arith.constant 0.000000e+00 : f32
    %383 = vector.broadcast %cst_241 : f32 to vector<14x128xf32>
    %384 = arith.maximumf %382, %383 : vector<14x128xf32>
    %c14_242 = arith.constant 14 : index
    %c1_243 = arith.constant 1 : index
    %c0_244 = arith.constant 0 : index
    %385 = vector.load %arg9[%c14_242, %c1_243, %c0_244] : memref<16x16x128xf32, #tpu.memory_space<vmem>>, vector<1x14x128xf32>
    %386 = vector.shape_cast %385 : vector<1x14x128xf32> to vector<14x128xf32>
    %387 = vector.shape_cast %384 : vector<14x128xf32> to vector<1x14x128xf32>
    tpu.vector_store %arg9[%c14_242, %c1_243, %c0_244], %387 {strides = array<i32>} : memref<16x16x128xf32, #tpu.memory_space<vmem>>, vector<1x14x128xf32>,
    %388 = tpu.iota {dimensions = array<i32: 0>} : vector<8x15xi32>
    %389 = tpu.iota {dimensions = array<i32: 1>} : vector<8x15xi32>
    %c2_i32 = arith.constant 2 : i32
    %390 = vector.broadcast %c2_i32 : i32 to vector<8x15xi32>
    %391 = arith.muli %390, %388 : vector<8x15xi32>
    %392 = arith.cmpi eq, %389, %391 : vector<8x15xi32>
    %393 = arith.extui %392 : vector<8x15xi1> to vector<8x15xi32>
    %394 = arith.sitofp %393 : vector<8x15xi32> to vector<8x15xf32>
    %c0_245 = arith.constant 0 : index
    %c0_246 = arith.constant 0 : index
    %c0_247 = arith.constant 0 : index
    %395 = vector.load %arg9[%c0_245, %c0_246, %c0_247] : memref<16x16x128xf32, #tpu.memory_space<vmem>>, vector<1x16x128xf32>
    %396 = vector.shape_cast %395 : vector<1x16x128xf32> to vector<16x128xf32>
    %c1_248 = arith.constant 1 : index
    %c0_249 = arith.constant 0 : index
    %c0_250 = arith.constant 0 : index
    %397 = vector.load %arg9[%c1_248, %c0_249, %c0_250] : memref<16x16x128xf32, #tpu.memory_space<vmem>>, vector<1x16x128xf32>
    %398 = vector.shape_cast %397 : vector<1x16x128xf32> to vector<16x128xf32>
    %399 = arith.maximumf %396, %398 : vector<16x128xf32>
    %400 = vector.extract_strided_slice %399 {offsets = [0, 0], sizes = [15, 128], strides = [1, 1]} : vector<16x128xf32> to vector<15x128xf32>
    %401 = vector.extract_strided_slice %399 {offsets = [1, 0], sizes = [15, 128], strides = [1, 1]} : vector<16x128xf32> to vector<15x128xf32>
    %402 = arith.maximumf %400, %401 : vector<15x128xf32>
    %cst_251 = arith.constant dense<0.000000e+00> : vector<8x128xf32>
    %403 = tpu.matmul %394, %402, %cst_251 {dimension_numbers = #tpu.dot_dimension_numbers<[1], [0], [0], [1], [0, 0, 1, 1], [], []>} : vector<8x15xf32>, vector<15x128xf32>, vector<8x128xf32> -> vector<8x128xf32>
    %c0_252 = arith.constant 0 : index
    %c0_253 = arith.constant 0 : index
    %c0_254 = arith.constant 0 : index
    %404 = vector.load %arg8[%c0_252, %c0_253, %c0_254] : memref<16x16x128xf32, #tpu.memory_space<vmem>>, vector<1x8x128xf32>
    %405 = vector.shape_cast %404 : vector<1x8x128xf32> to vector<8x128xf32>
    %406 = vector.shape_cast %403 : vector<8x128xf32> to vector<1x8x128xf32>
    tpu.vector_store %arg8[%c0_252, %c0_253, %c0_254], %406 {strides = array<i32>} : memref<16x16x128xf32, #tpu.memory_space<vmem>>, vector<1x8x128xf32>,
    %c2_255 = arith.constant 2 : index
    %c0_256 = arith.constant 0 : index
    %c0_257 = arith.constant 0 : index
    %407 = vector.load %arg9[%c2_255, %c0_256, %c0_257] : memref<16x16x128xf32, #tpu.memory_space<vmem>>, vector<1x16x128xf32>
    %408 = vector.shape_cast %407 : vector<1x16x128xf32> to vector<16x128xf32>
    %c3_258 = arith.constant 3 : index
    %c0_259 = arith.constant 0 : index
    %c0_260 = arith.constant 0 : index
    %409 = vector.load %arg9[%c3_258, %c0_259, %c0_260] : memref<16x16x128xf32, #tpu.memory_space<vmem>>, vector<1x16x128xf32>
    %410 = vector.shape_cast %409 : vector<1x16x128xf32> to vector<16x128xf32>
    %411 = arith.maximumf %408, %410 : vector<16x128xf32>
    %412 = vector.extract_strided_slice %411 {offsets = [0, 0], sizes = [15, 128], strides = [1, 1]} : vector<16x128xf32> to vector<15x128xf32>
    %413 = vector.extract_strided_slice %411 {offsets = [1, 0], sizes = [15, 128], strides = [1, 1]} : vector<16x128xf32> to vector<15x128xf32>
    %414 = arith.maximumf %412, %413 : vector<15x128xf32>
    %cst_261 = arith.constant dense<0.000000e+00> : vector<8x128xf32>
    %415 = tpu.matmul %394, %414, %cst_261 {dimension_numbers = #tpu.dot_dimension_numbers<[1], [0], [0], [1], [0, 0, 1, 1], [], []>} : vector<8x15xf32>, vector<15x128xf32>, vector<8x128xf32> -> vector<8x128xf32>
    %c1_262 = arith.constant 1 : index
    %c0_263 = arith.constant 0 : index
    %c0_264 = arith.constant 0 : index
    %416 = vector.load %arg8[%c1_262, %c0_263, %c0_264] : memref<16x16x128xf32, #tpu.memory_space<vmem>>, vector<1x8x128xf32>
    %417 = vector.shape_cast %416 : vector<1x8x128xf32> to vector<8x128xf32>
    %418 = vector.shape_cast %415 : vector<8x128xf32> to vector<1x8x128xf32>
    tpu.vector_store %arg8[%c1_262, %c0_263, %c0_264], %418 {strides = array<i32>} : memref<16x16x128xf32, #tpu.memory_space<vmem>>, vector<1x8x128xf32>,
    %c4_265 = arith.constant 4 : index
    %c0_266 = arith.constant 0 : index
    %c0_267 = arith.constant 0 : index
    %419 = vector.load %arg9[%c4_265, %c0_266, %c0_267] : memref<16x16x128xf32, #tpu.memory_space<vmem>>, vector<1x16x128xf32>
    %420 = vector.shape_cast %419 : vector<1x16x128xf32> to vector<16x128xf32>
    %c5_268 = arith.constant 5 : index
    %c0_269 = arith.constant 0 : index
    %c0_270 = arith.constant 0 : index
    %421 = vector.load %arg9[%c5_268, %c0_269, %c0_270] : memref<16x16x128xf32, #tpu.memory_space<vmem>>, vector<1x16x128xf32>
    %422 = vector.shape_cast %421 : vector<1x16x128xf32> to vector<16x128xf32>
    %423 = arith.maximumf %420, %422 : vector<16x128xf32>
    %424 = vector.extract_strided_slice %423 {offsets = [0, 0], sizes = [15, 128], strides = [1, 1]} : vector<16x128xf32> to vector<15x128xf32>
    %425 = vector.extract_strided_slice %423 {offsets = [1, 0], sizes = [15, 128], strides = [1, 1]} : vector<16x128xf32> to vector<15x128xf32>
    %426 = arith.maximumf %424, %425 : vector<15x128xf32>
    %cst_271 = arith.constant dense<0.000000e+00> : vector<8x128xf32>
    %427 = tpu.matmul %394, %426, %cst_271 {dimension_numbers = #tpu.dot_dimension_numbers<[1], [0], [0], [1], [0, 0, 1, 1], [], []>} : vector<8x15xf32>, vector<15x128xf32>, vector<8x128xf32> -> vector<8x128xf32>
    %c2_272 = arith.constant 2 : index
    %c0_273 = arith.constant 0 : index
    %c0_274 = arith.constant 0 : index
    %428 = vector.load %arg8[%c2_272, %c0_273, %c0_274] : memref<16x16x128xf32, #tpu.memory_space<vmem>>, vector<1x8x128xf32>
    %429 = vector.shape_cast %428 : vector<1x8x128xf32> to vector<8x128xf32>
    %430 = vector.shape_cast %427 : vector<8x128xf32> to vector<1x8x128xf32>
    tpu.vector_store %arg8[%c2_272, %c0_273, %c0_274], %430 {strides = array<i32>} : memref<16x16x128xf32, #tpu.memory_space<vmem>>, vector<1x8x128xf32>,
    %c6_275 = arith.constant 6 : index
    %c0_276 = arith.constant 0 : index
    %c0_277 = arith.constant 0 : index
    %431 = vector.load %arg9[%c6_275, %c0_276, %c0_277] : memref<16x16x128xf32, #tpu.memory_space<vmem>>, vector<1x16x128xf32>
    %432 = vector.shape_cast %431 : vector<1x16x128xf32> to vector<16x128xf32>
    %c7_278 = arith.constant 7 : index
    %c0_279 = arith.constant 0 : index
    %c0_280 = arith.constant 0 : index
    %433 = vector.load %arg9[%c7_278, %c0_279, %c0_280] : memref<16x16x128xf32, #tpu.memory_space<vmem>>, vector<1x16x128xf32>
    %434 = vector.shape_cast %433 : vector<1x16x128xf32> to vector<16x128xf32>
    %435 = arith.maximumf %432, %434 : vector<16x128xf32>
    %436 = vector.extract_strided_slice %435 {offsets = [0, 0], sizes = [15, 128], strides = [1, 1]} : vector<16x128xf32> to vector<15x128xf32>
    %437 = vector.extract_strided_slice %435 {offsets = [1, 0], sizes = [15, 128], strides = [1, 1]} : vector<16x128xf32> to vector<15x128xf32>
    %438 = arith.maximumf %436, %437 : vector<15x128xf32>
    %cst_281 = arith.constant dense<0.000000e+00> : vector<8x128xf32>
    %439 = tpu.matmul %394, %438, %cst_281 {dimension_numbers = #tpu.dot_dimension_numbers<[1], [0], [0], [1], [0, 0, 1, 1], [], []>} : vector<8x15xf32>, vector<15x128xf32>, vector<8x128xf32> -> vector<8x128xf32>
    %c3_282 = arith.constant 3 : index
    %c0_283 = arith.constant 0 : index
    %c0_284 = arith.constant 0 : index
    %440 = vector.load %arg8[%c3_282, %c0_283, %c0_284] : memref<16x16x128xf32, #tpu.memory_space<vmem>>, vector<1x8x128xf32>
    %441 = vector.shape_cast %440 : vector<1x8x128xf32> to vector<8x128xf32>
    %442 = vector.shape_cast %439 : vector<8x128xf32> to vector<1x8x128xf32>
    tpu.vector_store %arg8[%c3_282, %c0_283, %c0_284], %442 {strides = array<i32>} : memref<16x16x128xf32, #tpu.memory_space<vmem>>, vector<1x8x128xf32>,
    %c8_285 = arith.constant 8 : index
    %c0_286 = arith.constant 0 : index
    %c0_287 = arith.constant 0 : index
    %443 = vector.load %arg9[%c8_285, %c0_286, %c0_287] : memref<16x16x128xf32, #tpu.memory_space<vmem>>, vector<1x16x128xf32>
    %444 = vector.shape_cast %443 : vector<1x16x128xf32> to vector<16x128xf32>
    %c9_288 = arith.constant 9 : index
    %c0_289 = arith.constant 0 : index
    %c0_290 = arith.constant 0 : index
    %445 = vector.load %arg9[%c9_288, %c0_289, %c0_290] : memref<16x16x128xf32, #tpu.memory_space<vmem>>, vector<1x16x128xf32>
    %446 = vector.shape_cast %445 : vector<1x16x128xf32> to vector<16x128xf32>
    %447 = arith.maximumf %444, %446 : vector<16x128xf32>
    %448 = vector.extract_strided_slice %447 {offsets = [0, 0], sizes = [15, 128], strides = [1, 1]} : vector<16x128xf32> to vector<15x128xf32>
    %449 = vector.extract_strided_slice %447 {offsets = [1, 0], sizes = [15, 128], strides = [1, 1]} : vector<16x128xf32> to vector<15x128xf32>
    %450 = arith.maximumf %448, %449 : vector<15x128xf32>
    %cst_291 = arith.constant dense<0.000000e+00> : vector<8x128xf32>
    %451 = tpu.matmul %394, %450, %cst_291 {dimension_numbers = #tpu.dot_dimension_numbers<[1], [0], [0], [1], [0, 0, 1, 1], [], []>} : vector<8x15xf32>, vector<15x128xf32>, vector<8x128xf32> -> vector<8x128xf32>
    %c4_292 = arith.constant 4 : index
    %c0_293 = arith.constant 0 : index
    %c0_294 = arith.constant 0 : index
    %452 = vector.load %arg8[%c4_292, %c0_293, %c0_294] : memref<16x16x128xf32, #tpu.memory_space<vmem>>, vector<1x8x128xf32>
    %453 = vector.shape_cast %452 : vector<1x8x128xf32> to vector<8x128xf32>
    %454 = vector.shape_cast %451 : vector<8x128xf32> to vector<1x8x128xf32>
    tpu.vector_store %arg8[%c4_292, %c0_293, %c0_294], %454 {strides = array<i32>} : memref<16x16x128xf32, #tpu.memory_space<vmem>>, vector<1x8x128xf32>,
    %c10_295 = arith.constant 10 : index
    %c0_296 = arith.constant 0 : index
    %c0_297 = arith.constant 0 : index
    %455 = vector.load %arg9[%c10_295, %c0_296, %c0_297] : memref<16x16x128xf32, #tpu.memory_space<vmem>>, vector<1x16x128xf32>
    %456 = vector.shape_cast %455 : vector<1x16x128xf32> to vector<16x128xf32>
    %c11_298 = arith.constant 11 : index
    %c0_299 = arith.constant 0 : index
    %c0_300 = arith.constant 0 : index
    %457 = vector.load %arg9[%c11_298, %c0_299, %c0_300] : memref<16x16x128xf32, #tpu.memory_space<vmem>>, vector<1x16x128xf32>
    %458 = vector.shape_cast %457 : vector<1x16x128xf32> to vector<16x128xf32>
    %459 = arith.maximumf %456, %458 : vector<16x128xf32>
    %460 = vector.extract_strided_slice %459 {offsets = [0, 0], sizes = [15, 128], strides = [1, 1]} : vector<16x128xf32> to vector<15x128xf32>
    %461 = vector.extract_strided_slice %459 {offsets = [1, 0], sizes = [15, 128], strides = [1, 1]} : vector<16x128xf32> to vector<15x128xf32>
    %462 = arith.maximumf %460, %461 : vector<15x128xf32>
    %cst_301 = arith.constant dense<0.000000e+00> : vector<8x128xf32>
    %463 = tpu.matmul %394, %462, %cst_301 {dimension_numbers = #tpu.dot_dimension_numbers<[1], [0], [0], [1], [0, 0, 1, 1], [], []>} : vector<8x15xf32>, vector<15x128xf32>, vector<8x128xf32> -> vector<8x128xf32>
    %c5_302 = arith.constant 5 : index
    %c0_303 = arith.constant 0 : index
    %c0_304 = arith.constant 0 : index
    %464 = vector.load %arg8[%c5_302, %c0_303, %c0_304] : memref<16x16x128xf32, #tpu.memory_space<vmem>>, vector<1x8x128xf32>
    %465 = vector.shape_cast %464 : vector<1x8x128xf32> to vector<8x128xf32>
    %466 = vector.shape_cast %463 : vector<8x128xf32> to vector<1x8x128xf32>
    tpu.vector_store %arg8[%c5_302, %c0_303, %c0_304], %466 {strides = array<i32>} : memref<16x16x128xf32, #tpu.memory_space<vmem>>, vector<1x8x128xf32>,
    %c12_305 = arith.constant 12 : index
    %c0_306 = arith.constant 0 : index
    %c0_307 = arith.constant 0 : index
    %467 = vector.load %arg9[%c12_305, %c0_306, %c0_307] : memref<16x16x128xf32, #tpu.memory_space<vmem>>, vector<1x16x128xf32>
    %468 = vector.shape_cast %467 : vector<1x16x128xf32> to vector<16x128xf32>
    %c13_308 = arith.constant 13 : index
    %c0_309 = arith.constant 0 : index
    %c0_310 = arith.constant 0 : index
    %469 = vector.load %arg9[%c13_308, %c0_309, %c0_310] : memref<16x16x128xf32, #tpu.memory_space<vmem>>, vector<1x16x128xf32>
    %470 = vector.shape_cast %469 : vector<1x16x128xf32> to vector<16x128xf32>
    %471 = arith.maximumf %468, %470 : vector<16x128xf32>
    %472 = vector.extract_strided_slice %471 {offsets = [0, 0], sizes = [15, 128], strides = [1, 1]} : vector<16x128xf32> to vector<15x128xf32>
    %473 = vector.extract_strided_slice %471 {offsets = [1, 0], sizes = [15, 128], strides = [1, 1]} : vector<16x128xf32> to vector<15x128xf32>
    %474 = arith.maximumf %472, %473 : vector<15x128xf32>
    %cst_311 = arith.constant dense<0.000000e+00> : vector<8x128xf32>
    %475 = tpu.matmul %394, %474, %cst_311 {dimension_numbers = #tpu.dot_dimension_numbers<[1], [0], [0], [1], [0, 0, 1, 1], [], []>} : vector<8x15xf32>, vector<15x128xf32>, vector<8x128xf32> -> vector<8x128xf32>
    %c6_312 = arith.constant 6 : index
    %c0_313 = arith.constant 0 : index
    %c0_314 = arith.constant 0 : index
    %476 = vector.load %arg8[%c6_312, %c0_313, %c0_314] : memref<16x16x128xf32, #tpu.memory_space<vmem>>, vector<1x8x128xf32>
    %477 = vector.shape_cast %476 : vector<1x8x128xf32> to vector<8x128xf32>
    %478 = vector.shape_cast %475 : vector<8x128xf32> to vector<1x8x128xf32>
    tpu.vector_store %arg8[%c6_312, %c0_313, %c0_314], %478 {strides = array<i32>} : memref<16x16x128xf32, #tpu.memory_space<vmem>>, vector<1x8x128xf32>,
    %c14_315 = arith.constant 14 : index
    %c0_316 = arith.constant 0 : index
    %c0_317 = arith.constant 0 : index
    %479 = vector.load %arg9[%c14_315, %c0_316, %c0_317] : memref<16x16x128xf32, #tpu.memory_space<vmem>>, vector<1x16x128xf32>
    %480 = vector.shape_cast %479 : vector<1x16x128xf32> to vector<16x128xf32>
    %c15_318 = arith.constant 15 : index
    %c0_319 = arith.constant 0 : index
    %c0_320 = arith.constant 0 : index
    %481 = vector.load %arg9[%c15_318, %c0_319, %c0_320] : memref<16x16x128xf32, #tpu.memory_space<vmem>>, vector<1x16x128xf32>
    %482 = vector.shape_cast %481 : vector<1x16x128xf32> to vector<16x128xf32>
    %483 = arith.maximumf %480, %482 : vector<16x128xf32>
    %484 = vector.extract_strided_slice %483 {offsets = [0, 0], sizes = [15, 128], strides = [1, 1]} : vector<16x128xf32> to vector<15x128xf32>
    %485 = vector.extract_strided_slice %483 {offsets = [1, 0], sizes = [15, 128], strides = [1, 1]} : vector<16x128xf32> to vector<15x128xf32>
    %486 = arith.maximumf %484, %485 : vector<15x128xf32>
    %cst_321 = arith.constant dense<0.000000e+00> : vector<8x128xf32>
    %487 = tpu.matmul %394, %486, %cst_321 {dimension_numbers = #tpu.dot_dimension_numbers<[1], [0], [0], [1], [0, 0, 1, 1], [], []>} : vector<8x15xf32>, vector<15x128xf32>, vector<8x128xf32> -> vector<8x128xf32>
    %c7_322 = arith.constant 7 : index
    %c0_323 = arith.constant 0 : index
    %c0_324 = arith.constant 0 : index
    %488 = vector.load %arg8[%c7_322, %c0_323, %c0_324] : memref<16x16x128xf32, #tpu.memory_space<vmem>>, vector<1x8x128xf32>
    %489 = vector.shape_cast %488 : vector<1x8x128xf32> to vector<8x128xf32>
    %490 = vector.shape_cast %487 : vector<8x128xf32> to vector<1x8x128xf32>
    tpu.vector_store %arg8[%c7_322, %c0_323, %c0_324], %490 {strides = array<i32>} : memref<16x16x128xf32, #tpu.memory_space<vmem>>, vector<1x8x128xf32>,
    %c1_325 = arith.constant 1 : index
    %c0_326 = arith.constant 0 : index
    %c0_327 = arith.constant 0 : index
    %491 = vector.load %arg5[%c1_325, %c0_326, %c0_327] : memref<4x1152x128xf32, #tpu.memory_space<vmem>>, vector<1x1152x128xf32>
    %492 = vector.shape_cast %491 : vector<1x1152x128xf32> to vector<1152x128xf32>
    %cst_328 = arith.constant 0.000000e+00 : f32
    %493 = vector.broadcast %cst_328 : f32 to vector<16x16x128xf32>
    %c0_329 = arith.constant 0 : index
    %c0_330 = arith.constant 0 : index
    %c0_331 = arith.constant 0 : index
    %494 = vector.load %arg9[%c0_329, %c0_330, %c0_331] : memref<16x16x128xf32, #tpu.memory_space<vmem>>, vector<16x16x128xf32>
    tpu.vector_store %arg9[%c0_329, %c0_330, %c0_331], %493 {strides = array<i32>} : memref<16x16x128xf32, #tpu.memory_space<vmem>>, vector<16x16x128xf32>,
    %c0_332 = arith.constant 0 : index
    %c0_333 = arith.constant 0 : index
    %c0_334 = arith.constant 0 : index
    %495 = vector.load %arg8[%c0_332, %c0_333, %c0_334] : memref<16x16x128xf32, #tpu.memory_space<vmem>>, vector<1x8x128xf32>
    %496 = vector.shape_cast %495 : vector<1x8x128xf32> to vector<8x128xf32>
    %c1_335 = arith.constant 1 : index
    %c0_336 = arith.constant 0 : index
    %c0_337 = arith.constant 0 : index
    %497 = vector.load %arg8[%c1_335, %c0_336, %c0_337] : memref<16x16x128xf32, #tpu.memory_space<vmem>>, vector<1x8x128xf32>
    %498 = vector.shape_cast %497 : vector<1x8x128xf32> to vector<8x128xf32>
    %c2_338 = arith.constant 2 : index
    %c0_339 = arith.constant 0 : index
    %c0_340 = arith.constant 0 : index
    %499 = vector.load %arg8[%c2_338, %c0_339, %c0_340] : memref<16x16x128xf32, #tpu.memory_space<vmem>>, vector<1x8x128xf32>
    %500 = vector.shape_cast %499 : vector<1x8x128xf32> to vector<8x128xf32>
    %501 = vector.extract_strided_slice %496 {offsets = [0, 0], sizes = [6, 128], strides = [1, 1]} : vector<8x128xf32> to vector<6x128xf32>
    %502 = vector.extract_strided_slice %496 {offsets = [1, 0], sizes = [6, 128], strides = [1, 1]} : vector<8x128xf32> to vector<6x128xf32>
    %503 = vector.extract_strided_slice %496 {offsets = [2, 0], sizes = [6, 128], strides = [1, 1]} : vector<8x128xf32> to vector<6x128xf32>
    %504 = vector.extract_strided_slice %498 {offsets = [0, 0], sizes = [6, 128], strides = [1, 1]} : vector<8x128xf32> to vector<6x128xf32>
    %505 = vector.extract_strided_slice %498 {offsets = [1, 0], sizes = [6, 128], strides = [1, 1]} : vector<8x128xf32> to vector<6x128xf32>
    %506 = vector.extract_strided_slice %498 {offsets = [2, 0], sizes = [6, 128], strides = [1, 1]} : vector<8x128xf32> to vector<6x128xf32>
    %507 = vector.extract_strided_slice %500 {offsets = [0, 0], sizes = [6, 128], strides = [1, 1]} : vector<8x128xf32> to vector<6x128xf32>
    %508 = vector.extract_strided_slice %500 {offsets = [1, 0], sizes = [6, 128], strides = [1, 1]} : vector<8x128xf32> to vector<6x128xf32>
    %509 = vector.extract_strided_slice %500 {offsets = [2, 0], sizes = [6, 128], strides = [1, 1]} : vector<8x128xf32> to vector<6x128xf32>
    %510 = tpu.concatenate %501, %502, %503, %504, %505, %506, %507, %508, %509 in 1 : vector<6x128xf32>, vector<6x128xf32>, vector<6x128xf32>, vector<6x128xf32>, vector<6x128xf32>, vector<6x128xf32>, vector<6x128xf32>, vector<6x128xf32>, vector<6x128xf32> -> vector<6x1152xf32>
    %cst_341 = arith.constant dense<0.000000e+00> : vector<6x128xf32>
    %511 = tpu.matmul %510, %492, %cst_341 {dimension_numbers = #tpu.dot_dimension_numbers<[1], [0], [0], [1], [0, 0, 1, 1], [], []>} : vector<6x1152xf32>, vector<1152x128xf32>, vector<6x128xf32> -> vector<6x128xf32>
    %cst_342 = arith.constant 0.000000e+00 : f32
    %512 = vector.broadcast %cst_342 : f32 to vector<6x128xf32>
    %513 = arith.maximumf %511, %512 : vector<6x128xf32>
    %c1_343 = arith.constant 1 : index
    %c1_344 = arith.constant 1 : index
    %c0_345 = arith.constant 0 : index
    %514 = vector.load %arg9[%c1_343, %c1_344, %c0_345] : memref<16x16x128xf32, #tpu.memory_space<vmem>>, vector<1x6x128xf32>
    %515 = vector.shape_cast %514 : vector<1x6x128xf32> to vector<6x128xf32>
    %516 = vector.shape_cast %513 : vector<6x128xf32> to vector<1x6x128xf32>
    tpu.vector_store %arg9[%c1_343, %c1_344, %c0_345], %516 {strides = array<i32>} : memref<16x16x128xf32, #tpu.memory_space<vmem>>, vector<1x6x128xf32>,
    %c1_346 = arith.constant 1 : index
    %c0_347 = arith.constant 0 : index
    %c0_348 = arith.constant 0 : index
    %517 = vector.load %arg8[%c1_346, %c0_347, %c0_348] : memref<16x16x128xf32, #tpu.memory_space<vmem>>, vector<1x8x128xf32>
    %518 = vector.shape_cast %517 : vector<1x8x128xf32> to vector<8x128xf32>
    %c2_349 = arith.constant 2 : index
    %c0_350 = arith.constant 0 : index
    %c0_351 = arith.constant 0 : index
    %519 = vector.load %arg8[%c2_349, %c0_350, %c0_351] : memref<16x16x128xf32, #tpu.memory_space<vmem>>, vector<1x8x128xf32>
    %520 = vector.shape_cast %519 : vector<1x8x128xf32> to vector<8x128xf32>
    %c3_352 = arith.constant 3 : index
    %c0_353 = arith.constant 0 : index
    %c0_354 = arith.constant 0 : index
    %521 = vector.load %arg8[%c3_352, %c0_353, %c0_354] : memref<16x16x128xf32, #tpu.memory_space<vmem>>, vector<1x8x128xf32>
    %522 = vector.shape_cast %521 : vector<1x8x128xf32> to vector<8x128xf32>
    %523 = vector.extract_strided_slice %518 {offsets = [0, 0], sizes = [6, 128], strides = [1, 1]} : vector<8x128xf32> to vector<6x128xf32>
    %524 = vector.extract_strided_slice %518 {offsets = [1, 0], sizes = [6, 128], strides = [1, 1]} : vector<8x128xf32> to vector<6x128xf32>
    %525 = vector.extract_strided_slice %518 {offsets = [2, 0], sizes = [6, 128], strides = [1, 1]} : vector<8x128xf32> to vector<6x128xf32>
    %526 = vector.extract_strided_slice %520 {offsets = [0, 0], sizes = [6, 128], strides = [1, 1]} : vector<8x128xf32> to vector<6x128xf32>
    %527 = vector.extract_strided_slice %520 {offsets = [1, 0], sizes = [6, 128], strides = [1, 1]} : vector<8x128xf32> to vector<6x128xf32>
    %528 = vector.extract_strided_slice %520 {offsets = [2, 0], sizes = [6, 128], strides = [1, 1]} : vector<8x128xf32> to vector<6x128xf32>
    %529 = vector.extract_strided_slice %522 {offsets = [0, 0], sizes = [6, 128], strides = [1, 1]} : vector<8x128xf32> to vector<6x128xf32>
    %530 = vector.extract_strided_slice %522 {offsets = [1, 0], sizes = [6, 128], strides = [1, 1]} : vector<8x128xf32> to vector<6x128xf32>
    %531 = vector.extract_strided_slice %522 {offsets = [2, 0], sizes = [6, 128], strides = [1, 1]} : vector<8x128xf32> to vector<6x128xf32>
    %532 = tpu.concatenate %523, %524, %525, %526, %527, %528, %529, %530, %531 in 1 : vector<6x128xf32>, vector<6x128xf32>, vector<6x128xf32>, vector<6x128xf32>, vector<6x128xf32>, vector<6x128xf32>, vector<6x128xf32>, vector<6x128xf32>, vector<6x128xf32> -> vector<6x1152xf32>
    %cst_355 = arith.constant dense<0.000000e+00> : vector<6x128xf32>
    %533 = tpu.matmul %532, %492, %cst_355 {dimension_numbers = #tpu.dot_dimension_numbers<[1], [0], [0], [1], [0, 0, 1, 1], [], []>} : vector<6x1152xf32>, vector<1152x128xf32>, vector<6x128xf32> -> vector<6x128xf32>
    %cst_356 = arith.constant 0.000000e+00 : f32
    %534 = vector.broadcast %cst_356 : f32 to vector<6x128xf32>
    %535 = arith.maximumf %533, %534 : vector<6x128xf32>
    %c2_357 = arith.constant 2 : index
    %c1_358 = arith.constant 1 : index
    %c0_359 = arith.constant 0 : index
    %536 = vector.load %arg9[%c2_357, %c1_358, %c0_359] : memref<16x16x128xf32, #tpu.memory_space<vmem>>, vector<1x6x128xf32>
    %537 = vector.shape_cast %536 : vector<1x6x128xf32> to vector<6x128xf32>
    %538 = vector.shape_cast %535 : vector<6x128xf32> to vector<1x6x128xf32>
    tpu.vector_store %arg9[%c2_357, %c1_358, %c0_359], %538 {strides = array<i32>} : memref<16x16x128xf32, #tpu.memory_space<vmem>>, vector<1x6x128xf32>,
    %c2_360 = arith.constant 2 : index
    %c0_361 = arith.constant 0 : index
    %c0_362 = arith.constant 0 : index
    %539 = vector.load %arg8[%c2_360, %c0_361, %c0_362] : memref<16x16x128xf32, #tpu.memory_space<vmem>>, vector<1x8x128xf32>
    %540 = vector.shape_cast %539 : vector<1x8x128xf32> to vector<8x128xf32>
    %c3_363 = arith.constant 3 : index
    %c0_364 = arith.constant 0 : index
    %c0_365 = arith.constant 0 : index
    %541 = vector.load %arg8[%c3_363, %c0_364, %c0_365] : memref<16x16x128xf32, #tpu.memory_space<vmem>>, vector<1x8x128xf32>
    %542 = vector.shape_cast %541 : vector<1x8x128xf32> to vector<8x128xf32>
    %c4_366 = arith.constant 4 : index
    %c0_367 = arith.constant 0 : index
    %c0_368 = arith.constant 0 : index
    %543 = vector.load %arg8[%c4_366, %c0_367, %c0_368] : memref<16x16x128xf32, #tpu.memory_space<vmem>>, vector<1x8x128xf32>
    %544 = vector.shape_cast %543 : vector<1x8x128xf32> to vector<8x128xf32>
    %545 = vector.extract_strided_slice %540 {offsets = [0, 0], sizes = [6, 128], strides = [1, 1]} : vector<8x128xf32> to vector<6x128xf32>
    %546 = vector.extract_strided_slice %540 {offsets = [1, 0], sizes = [6, 128], strides = [1, 1]} : vector<8x128xf32> to vector<6x128xf32>
    %547 = vector.extract_strided_slice %540 {offsets = [2, 0], sizes = [6, 128], strides = [1, 1]} : vector<8x128xf32> to vector<6x128xf32>
    %548 = vector.extract_strided_slice %542 {offsets = [0, 0], sizes = [6, 128], strides = [1, 1]} : vector<8x128xf32> to vector<6x128xf32>
    %549 = vector.extract_strided_slice %542 {offsets = [1, 0], sizes = [6, 128], strides = [1, 1]} : vector<8x128xf32> to vector<6x128xf32>
    %550 = vector.extract_strided_slice %542 {offsets = [2, 0], sizes = [6, 128], strides = [1, 1]} : vector<8x128xf32> to vector<6x128xf32>
    %551 = vector.extract_strided_slice %544 {offsets = [0, 0], sizes = [6, 128], strides = [1, 1]} : vector<8x128xf32> to vector<6x128xf32>
    %552 = vector.extract_strided_slice %544 {offsets = [1, 0], sizes = [6, 128], strides = [1, 1]} : vector<8x128xf32> to vector<6x128xf32>
    %553 = vector.extract_strided_slice %544 {offsets = [2, 0], sizes = [6, 128], strides = [1, 1]} : vector<8x128xf32> to vector<6x128xf32>
    %554 = tpu.concatenate %545, %546, %547, %548, %549, %550, %551, %552, %553 in 1 : vector<6x128xf32>, vector<6x128xf32>, vector<6x128xf32>, vector<6x128xf32>, vector<6x128xf32>, vector<6x128xf32>, vector<6x128xf32>, vector<6x128xf32>, vector<6x128xf32> -> vector<6x1152xf32>
    %cst_369 = arith.constant dense<0.000000e+00> : vector<6x128xf32>
    %555 = tpu.matmul %554, %492, %cst_369 {dimension_numbers = #tpu.dot_dimension_numbers<[1], [0], [0], [1], [0, 0, 1, 1], [], []>} : vector<6x1152xf32>, vector<1152x128xf32>, vector<6x128xf32> -> vector<6x128xf32>
    %cst_370 = arith.constant 0.000000e+00 : f32
    %556 = vector.broadcast %cst_370 : f32 to vector<6x128xf32>
    %557 = arith.maximumf %555, %556 : vector<6x128xf32>
    %c3_371 = arith.constant 3 : index
    %c1_372 = arith.constant 1 : index
    %c0_373 = arith.constant 0 : index
    %558 = vector.load %arg9[%c3_371, %c1_372, %c0_373] : memref<16x16x128xf32, #tpu.memory_space<vmem>>, vector<1x6x128xf32>
    %559 = vector.shape_cast %558 : vector<1x6x128xf32> to vector<6x128xf32>
    %560 = vector.shape_cast %557 : vector<6x128xf32> to vector<1x6x128xf32>
    tpu.vector_store %arg9[%c3_371, %c1_372, %c0_373], %560 {strides = array<i32>} : memref<16x16x128xf32, #tpu.memory_space<vmem>>, vector<1x6x128xf32>,
    %c3_374 = arith.constant 3 : index
    %c0_375 = arith.constant 0 : index
    %c0_376 = arith.constant 0 : index
    %561 = vector.load %arg8[%c3_374, %c0_375, %c0_376] : memref<16x16x128xf32, #tpu.memory_space<vmem>>, vector<1x8x128xf32>
    %562 = vector.shape_cast %561 : vector<1x8x128xf32> to vector<8x128xf32>
    %c4_377 = arith.constant 4 : index
    %c0_378 = arith.constant 0 : index
    %c0_379 = arith.constant 0 : index
    %563 = vector.load %arg8[%c4_377, %c0_378, %c0_379] : memref<16x16x128xf32, #tpu.memory_space<vmem>>, vector<1x8x128xf32>
    %564 = vector.shape_cast %563 : vector<1x8x128xf32> to vector<8x128xf32>
    %c5_380 = arith.constant 5 : index
    %c0_381 = arith.constant 0 : index
    %c0_382 = arith.constant 0 : index
    %565 = vector.load %arg8[%c5_380, %c0_381, %c0_382] : memref<16x16x128xf32, #tpu.memory_space<vmem>>, vector<1x8x128xf32>
    %566 = vector.shape_cast %565 : vector<1x8x128xf32> to vector<8x128xf32>
    %567 = vector.extract_strided_slice %562 {offsets = [0, 0], sizes = [6, 128], strides = [1, 1]} : vector<8x128xf32> to vector<6x128xf32>
    %568 = vector.extract_strided_slice %562 {offsets = [1, 0], sizes = [6, 128], strides = [1, 1]} : vector<8x128xf32> to vector<6x128xf32>
    %569 = vector.extract_strided_slice %562 {offsets = [2, 0], sizes = [6, 128], strides = [1, 1]} : vector<8x128xf32> to vector<6x128xf32>
    %570 = vector.extract_strided_slice %564 {offsets = [0, 0], sizes = [6, 128], strides = [1, 1]} : vector<8x128xf32> to vector<6x128xf32>
    %571 = vector.extract_strided_slice %564 {offsets = [1, 0], sizes = [6, 128], strides = [1, 1]} : vector<8x128xf32> to vector<6x128xf32>
    %572 = vector.extract_strided_slice %564 {offsets = [2, 0], sizes = [6, 128], strides = [1, 1]} : vector<8x128xf32> to vector<6x128xf32>
    %573 = vector.extract_strided_slice %566 {offsets = [0, 0], sizes = [6, 128], strides = [1, 1]} : vector<8x128xf32> to vector<6x128xf32>
    %574 = vector.extract_strided_slice %566 {offsets = [1, 0], sizes = [6, 128], strides = [1, 1]} : vector<8x128xf32> to vector<6x128xf32>
    %575 = vector.extract_strided_slice %566 {offsets = [2, 0], sizes = [6, 128], strides = [1, 1]} : vector<8x128xf32> to vector<6x128xf32>
    %576 = tpu.concatenate %567, %568, %569, %570, %571, %572, %573, %574, %575 in 1 : vector<6x128xf32>, vector<6x128xf32>, vector<6x128xf32>, vector<6x128xf32>, vector<6x128xf32>, vector<6x128xf32>, vector<6x128xf32>, vector<6x128xf32>, vector<6x128xf32> -> vector<6x1152xf32>
    %cst_383 = arith.constant dense<0.000000e+00> : vector<6x128xf32>
    %577 = tpu.matmul %576, %492, %cst_383 {dimension_numbers = #tpu.dot_dimension_numbers<[1], [0], [0], [1], [0, 0, 1, 1], [], []>} : vector<6x1152xf32>, vector<1152x128xf32>, vector<6x128xf32> -> vector<6x128xf32>
    %cst_384 = arith.constant 0.000000e+00 : f32
    %578 = vector.broadcast %cst_384 : f32 to vector<6x128xf32>
    %579 = arith.maximumf %577, %578 : vector<6x128xf32>
    %c4_385 = arith.constant 4 : index
    %c1_386 = arith.constant 1 : index
    %c0_387 = arith.constant 0 : index
    %580 = vector.load %arg9[%c4_385, %c1_386, %c0_387] : memref<16x16x128xf32, #tpu.memory_space<vmem>>, vector<1x6x128xf32>
    %581 = vector.shape_cast %580 : vector<1x6x128xf32> to vector<6x128xf32>
    %582 = vector.shape_cast %579 : vector<6x128xf32> to vector<1x6x128xf32>
    tpu.vector_store %arg9[%c4_385, %c1_386, %c0_387], %582 {strides = array<i32>} : memref<16x16x128xf32, #tpu.memory_space<vmem>>, vector<1x6x128xf32>,
    %c4_388 = arith.constant 4 : index
    %c0_389 = arith.constant 0 : index
    %c0_390 = arith.constant 0 : index
    %583 = vector.load %arg8[%c4_388, %c0_389, %c0_390] : memref<16x16x128xf32, #tpu.memory_space<vmem>>, vector<1x8x128xf32>
    %584 = vector.shape_cast %583 : vector<1x8x128xf32> to vector<8x128xf32>
    %c5_391 = arith.constant 5 : index
    %c0_392 = arith.constant 0 : index
    %c0_393 = arith.constant 0 : index
    %585 = vector.load %arg8[%c5_391, %c0_392, %c0_393] : memref<16x16x128xf32, #tpu.memory_space<vmem>>, vector<1x8x128xf32>
    %586 = vector.shape_cast %585 : vector<1x8x128xf32> to vector<8x128xf32>
    %c6_394 = arith.constant 6 : index
    %c0_395 = arith.constant 0 : index
    %c0_396 = arith.constant 0 : index
    %587 = vector.load %arg8[%c6_394, %c0_395, %c0_396] : memref<16x16x128xf32, #tpu.memory_space<vmem>>, vector<1x8x128xf32>
    %588 = vector.shape_cast %587 : vector<1x8x128xf32> to vector<8x128xf32>
    %589 = vector.extract_strided_slice %584 {offsets = [0, 0], sizes = [6, 128], strides = [1, 1]} : vector<8x128xf32> to vector<6x128xf32>
    %590 = vector.extract_strided_slice %584 {offsets = [1, 0], sizes = [6, 128], strides = [1, 1]} : vector<8x128xf32> to vector<6x128xf32>
    %591 = vector.extract_strided_slice %584 {offsets = [2, 0], sizes = [6, 128], strides = [1, 1]} : vector<8x128xf32> to vector<6x128xf32>
    %592 = vector.extract_strided_slice %586 {offsets = [0, 0], sizes = [6, 128], strides = [1, 1]} : vector<8x128xf32> to vector<6x128xf32>
    %593 = vector.extract_strided_slice %586 {offsets = [1, 0], sizes = [6, 128], strides = [1, 1]} : vector<8x128xf32> to vector<6x128xf32>
    %594 = vector.extract_strided_slice %586 {offsets = [2, 0], sizes = [6, 128], strides = [1, 1]} : vector<8x128xf32> to vector<6x128xf32>
    %595 = vector.extract_strided_slice %588 {offsets = [0, 0], sizes = [6, 128], strides = [1, 1]} : vector<8x128xf32> to vector<6x128xf32>
    %596 = vector.extract_strided_slice %588 {offsets = [1, 0], sizes = [6, 128], strides = [1, 1]} : vector<8x128xf32> to vector<6x128xf32>
    %597 = vector.extract_strided_slice %588 {offsets = [2, 0], sizes = [6, 128], strides = [1, 1]} : vector<8x128xf32> to vector<6x128xf32>
    %598 = tpu.concatenate %589, %590, %591, %592, %593, %594, %595, %596, %597 in 1 : vector<6x128xf32>, vector<6x128xf32>, vector<6x128xf32>, vector<6x128xf32>, vector<6x128xf32>, vector<6x128xf32>, vector<6x128xf32>, vector<6x128xf32>, vector<6x128xf32> -> vector<6x1152xf32>
    %cst_397 = arith.constant dense<0.000000e+00> : vector<6x128xf32>
    %599 = tpu.matmul %598, %492, %cst_397 {dimension_numbers = #tpu.dot_dimension_numbers<[1], [0], [0], [1], [0, 0, 1, 1], [], []>} : vector<6x1152xf32>, vector<1152x128xf32>, vector<6x128xf32> -> vector<6x128xf32>
    %cst_398 = arith.constant 0.000000e+00 : f32
    %600 = vector.broadcast %cst_398 : f32 to vector<6x128xf32>
    %601 = arith.maximumf %599, %600 : vector<6x128xf32>
    %c5_399 = arith.constant 5 : index
    %c1_400 = arith.constant 1 : index
    %c0_401 = arith.constant 0 : index
    %602 = vector.load %arg9[%c5_399, %c1_400, %c0_401] : memref<16x16x128xf32, #tpu.memory_space<vmem>>, vector<1x6x128xf32>
    %603 = vector.shape_cast %602 : vector<1x6x128xf32> to vector<6x128xf32>
    %604 = vector.shape_cast %601 : vector<6x128xf32> to vector<1x6x128xf32>
    tpu.vector_store %arg9[%c5_399, %c1_400, %c0_401], %604 {strides = array<i32>} : memref<16x16x128xf32, #tpu.memory_space<vmem>>, vector<1x6x128xf32>,
    %c5_402 = arith.constant 5 : index
    %c0_403 = arith.constant 0 : index
    %c0_404 = arith.constant 0 : index
    %605 = vector.load %arg8[%c5_402, %c0_403, %c0_404] : memref<16x16x128xf32, #tpu.memory_space<vmem>>, vector<1x8x128xf32>
    %606 = vector.shape_cast %605 : vector<1x8x128xf32> to vector<8x128xf32>
    %c6_405 = arith.constant 6 : index
    %c0_406 = arith.constant 0 : index
    %c0_407 = arith.constant 0 : index
    %607 = vector.load %arg8[%c6_405, %c0_406, %c0_407] : memref<16x16x128xf32, #tpu.memory_space<vmem>>, vector<1x8x128xf32>
    %608 = vector.shape_cast %607 : vector<1x8x128xf32> to vector<8x128xf32>
    %c7_408 = arith.constant 7 : index
    %c0_409 = arith.constant 0 : index
    %c0_410 = arith.constant 0 : index
    %609 = vector.load %arg8[%c7_408, %c0_409, %c0_410] : memref<16x16x128xf32, #tpu.memory_space<vmem>>, vector<1x8x128xf32>
    %610 = vector.shape_cast %609 : vector<1x8x128xf32> to vector<8x128xf32>
    %611 = vector.extract_strided_slice %606 {offsets = [0, 0], sizes = [6, 128], strides = [1, 1]} : vector<8x128xf32> to vector<6x128xf32>
    %612 = vector.extract_strided_slice %606 {offsets = [1, 0], sizes = [6, 128], strides = [1, 1]} : vector<8x128xf32> to vector<6x128xf32>
    %613 = vector.extract_strided_slice %606 {offsets = [2, 0], sizes = [6, 128], strides = [1, 1]} : vector<8x128xf32> to vector<6x128xf32>
    %614 = vector.extract_strided_slice %608 {offsets = [0, 0], sizes = [6, 128], strides = [1, 1]} : vector<8x128xf32> to vector<6x128xf32>
    %615 = vector.extract_strided_slice %608 {offsets = [1, 0], sizes = [6, 128], strides = [1, 1]} : vector<8x128xf32> to vector<6x128xf32>
    %616 = vector.extract_strided_slice %608 {offsets = [2, 0], sizes = [6, 128], strides = [1, 1]} : vector<8x128xf32> to vector<6x128xf32>
    %617 = vector.extract_strided_slice %610 {offsets = [0, 0], sizes = [6, 128], strides = [1, 1]} : vector<8x128xf32> to vector<6x128xf32>
    %618 = vector.extract_strided_slice %610 {offsets = [1, 0], sizes = [6, 128], strides = [1, 1]} : vector<8x128xf32> to vector<6x128xf32>
    %619 = vector.extract_strided_slice %610 {offsets = [2, 0], sizes = [6, 128], strides = [1, 1]} : vector<8x128xf32> to vector<6x128xf32>
    %620 = tpu.concatenate %611, %612, %613, %614, %615, %616, %617, %618, %619 in 1 : vector<6x128xf32>, vector<6x128xf32>, vector<6x128xf32>, vector<6x128xf32>, vector<6x128xf32>, vector<6x128xf32>, vector<6x128xf32>, vector<6x128xf32>, vector<6x128xf32> -> vector<6x1152xf32>
    %cst_411 = arith.constant dense<0.000000e+00> : vector<6x128xf32>
    %621 = tpu.matmul %620, %492, %cst_411 {dimension_numbers = #tpu.dot_dimension_numbers<[1], [0], [0], [1], [0, 0, 1, 1], [], []>} : vector<6x1152xf32>, vector<1152x128xf32>, vector<6x128xf32> -> vector<6x128xf32>
    %cst_412 = arith.constant 0.000000e+00 : f32
    %622 = vector.broadcast %cst_412 : f32 to vector<6x128xf32>
    %623 = arith.maximumf %621, %622 : vector<6x128xf32>
    %c6_413 = arith.constant 6 : index
    %c1_414 = arith.constant 1 : index
    %c0_415 = arith.constant 0 : index
    %624 = vector.load %arg9[%c6_413, %c1_414, %c0_415] : memref<16x16x128xf32, #tpu.memory_space<vmem>>, vector<1x6x128xf32>
    %625 = vector.shape_cast %624 : vector<1x6x128xf32> to vector<6x128xf32>
    %626 = vector.shape_cast %623 : vector<6x128xf32> to vector<1x6x128xf32>
    tpu.vector_store %arg9[%c6_413, %c1_414, %c0_415], %626 {strides = array<i32>} : memref<16x16x128xf32, #tpu.memory_space<vmem>>, vector<1x6x128xf32>,
    %c0_416 = arith.constant 0 : index
    %c0_417 = arith.constant 0 : index
    %c0_418 = arith.constant 0 : index
    %627 = vector.load %arg9[%c0_416, %c0_417, %c0_418] : memref<16x16x128xf32, #tpu.memory_space<vmem>>, vector<1x8x128xf32>
    %628 = vector.shape_cast %627 : vector<1x8x128xf32> to vector<8x128xf32>
    %c1_419 = arith.constant 1 : index
    %c0_420 = arith.constant 0 : index
    %c0_421 = arith.constant 0 : index
    %629 = vector.load %arg9[%c1_419, %c0_420, %c0_421] : memref<16x16x128xf32, #tpu.memory_space<vmem>>, vector<1x8x128xf32>
    %630 = vector.shape_cast %629 : vector<1x8x128xf32> to vector<8x128xf32>
    %631 = arith.maximumf %628, %630 : vector<8x128xf32>
    %632 = vector.extract_strided_slice %631 {offsets = [0, 0], sizes = [7, 128], strides = [1, 1]} : vector<8x128xf32> to vector<7x128xf32>
    %633 = vector.extract_strided_slice %631 {offsets = [1, 0], sizes = [7, 128], strides = [1, 1]} : vector<8x128xf32> to vector<7x128xf32>
    %634 = arith.maximumf %632, %633 : vector<7x128xf32>
    %c0_422 = arith.constant 0 : index
    %c0_423 = arith.constant 0 : index
    %c0_424 = arith.constant 0 : index
    %635 = vector.load %arg8[%c0_422, %c0_423, %c0_424] : memref<16x16x128xf32, #tpu.memory_space<vmem>>, vector<1x7x128xf32>
    %636 = vector.shape_cast %635 : vector<1x7x128xf32> to vector<7x128xf32>
    %637 = vector.shape_cast %634 : vector<7x128xf32> to vector<1x7x128xf32>
    tpu.vector_store %arg8[%c0_422, %c0_423, %c0_424], %637 {strides = array<i32>} : memref<16x16x128xf32, #tpu.memory_space<vmem>>, vector<1x7x128xf32>,
    %c1_425 = arith.constant 1 : index
    %c0_426 = arith.constant 0 : index
    %c0_427 = arith.constant 0 : index
    %638 = vector.load %arg9[%c1_425, %c0_426, %c0_427] : memref<16x16x128xf32, #tpu.memory_space<vmem>>, vector<1x8x128xf32>
    %639 = vector.shape_cast %638 : vector<1x8x128xf32> to vector<8x128xf32>
    %c2_428 = arith.constant 2 : index
    %c0_429 = arith.constant 0 : index
    %c0_430 = arith.constant 0 : index
    %640 = vector.load %arg9[%c2_428, %c0_429, %c0_430] : memref<16x16x128xf32, #tpu.memory_space<vmem>>, vector<1x8x128xf32>
    %641 = vector.shape_cast %640 : vector<1x8x128xf32> to vector<8x128xf32>
    %642 = arith.maximumf %639, %641 : vector<8x128xf32>
    %643 = vector.extract_strided_slice %642 {offsets = [0, 0], sizes = [7, 128], strides = [1, 1]} : vector<8x128xf32> to vector<7x128xf32>
    %644 = vector.extract_strided_slice %642 {offsets = [1, 0], sizes = [7, 128], strides = [1, 1]} : vector<8x128xf32> to vector<7x128xf32>
    %645 = arith.maximumf %643, %644 : vector<7x128xf32>
    %c1_431 = arith.constant 1 : index
    %c0_432 = arith.constant 0 : index
    %c0_433 = arith.constant 0 : index
    %646 = vector.load %arg8[%c1_431, %c0_432, %c0_433] : memref<16x16x128xf32, #tpu.memory_space<vmem>>, vector<1x7x128xf32>
    %647 = vector.shape_cast %646 : vector<1x7x128xf32> to vector<7x128xf32>
    %648 = vector.shape_cast %645 : vector<7x128xf32> to vector<1x7x128xf32>
    tpu.vector_store %arg8[%c1_431, %c0_432, %c0_433], %648 {strides = array<i32>} : memref<16x16x128xf32, #tpu.memory_space<vmem>>, vector<1x7x128xf32>,
    %c2_434 = arith.constant 2 : index
    %c0_435 = arith.constant 0 : index
    %c0_436 = arith.constant 0 : index
    %649 = vector.load %arg9[%c2_434, %c0_435, %c0_436] : memref<16x16x128xf32, #tpu.memory_space<vmem>>, vector<1x8x128xf32>
    %650 = vector.shape_cast %649 : vector<1x8x128xf32> to vector<8x128xf32>
    %c3_437 = arith.constant 3 : index
    %c0_438 = arith.constant 0 : index
    %c0_439 = arith.constant 0 : index
    %651 = vector.load %arg9[%c3_437, %c0_438, %c0_439] : memref<16x16x128xf32, #tpu.memory_space<vmem>>, vector<1x8x128xf32>
    %652 = vector.shape_cast %651 : vector<1x8x128xf32> to vector<8x128xf32>
    %653 = arith.maximumf %650, %652 : vector<8x128xf32>
    %654 = vector.extract_strided_slice %653 {offsets = [0, 0], sizes = [7, 128], strides = [1, 1]} : vector<8x128xf32> to vector<7x128xf32>
    %655 = vector.extract_strided_slice %653 {offsets = [1, 0], sizes = [7, 128], strides = [1, 1]} : vector<8x128xf32> to vector<7x128xf32>
    %656 = arith.maximumf %654, %655 : vector<7x128xf32>
    %c2_440 = arith.constant 2 : index
    %c0_441 = arith.constant 0 : index
    %c0_442 = arith.constant 0 : index
    %657 = vector.load %arg8[%c2_440, %c0_441, %c0_442] : memref<16x16x128xf32, #tpu.memory_space<vmem>>, vector<1x7x128xf32>
    %658 = vector.shape_cast %657 : vector<1x7x128xf32> to vector<7x128xf32>
    %659 = vector.shape_cast %656 : vector<7x128xf32> to vector<1x7x128xf32>
    tpu.vector_store %arg8[%c2_440, %c0_441, %c0_442], %659 {strides = array<i32>} : memref<16x16x128xf32, #tpu.memory_space<vmem>>, vector<1x7x128xf32>,
    %c3_443 = arith.constant 3 : index
    %c0_444 = arith.constant 0 : index
    %c0_445 = arith.constant 0 : index
    %660 = vector.load %arg9[%c3_443, %c0_444, %c0_445] : memref<16x16x128xf32, #tpu.memory_space<vmem>>, vector<1x8x128xf32>
    %661 = vector.shape_cast %660 : vector<1x8x128xf32> to vector<8x128xf32>
    %c4_446 = arith.constant 4 : index
    %c0_447 = arith.constant 0 : index
    %c0_448 = arith.constant 0 : index
    %662 = vector.load %arg9[%c4_446, %c0_447, %c0_448] : memref<16x16x128xf32, #tpu.memory_space<vmem>>, vector<1x8x128xf32>
    %663 = vector.shape_cast %662 : vector<1x8x128xf32> to vector<8x128xf32>
    %664 = arith.maximumf %661, %663 : vector<8x128xf32>
    %665 = vector.extract_strided_slice %664 {offsets = [0, 0], sizes = [7, 128], strides = [1, 1]} : vector<8x128xf32> to vector<7x128xf32>
    %666 = vector.extract_strided_slice %664 {offsets = [1, 0], sizes = [7, 128], strides = [1, 1]} : vector<8x128xf32> to vector<7x128xf32>
    %667 = arith.maximumf %665, %666 : vector<7x128xf32>
    %c3_449 = arith.constant 3 : index
    %c0_450 = arith.constant 0 : index
    %c0_451 = arith.constant 0 : index
    %668 = vector.load %arg8[%c3_449, %c0_450, %c0_451] : memref<16x16x128xf32, #tpu.memory_space<vmem>>, vector<1x7x128xf32>
    %669 = vector.shape_cast %668 : vector<1x7x128xf32> to vector<7x128xf32>
    %670 = vector.shape_cast %667 : vector<7x128xf32> to vector<1x7x128xf32>
    tpu.vector_store %arg8[%c3_449, %c0_450, %c0_451], %670 {strides = array<i32>} : memref<16x16x128xf32, #tpu.memory_space<vmem>>, vector<1x7x128xf32>,
    %c4_452 = arith.constant 4 : index
    %c0_453 = arith.constant 0 : index
    %c0_454 = arith.constant 0 : index
    %671 = vector.load %arg9[%c4_452, %c0_453, %c0_454] : memref<16x16x128xf32, #tpu.memory_space<vmem>>, vector<1x8x128xf32>
    %672 = vector.shape_cast %671 : vector<1x8x128xf32> to vector<8x128xf32>
    %c5_455 = arith.constant 5 : index
    %c0_456 = arith.constant 0 : index
    %c0_457 = arith.constant 0 : index
    %673 = vector.load %arg9[%c5_455, %c0_456, %c0_457] : memref<16x16x128xf32, #tpu.memory_space<vmem>>, vector<1x8x128xf32>
    %674 = vector.shape_cast %673 : vector<1x8x128xf32> to vector<8x128xf32>
    %675 = arith.maximumf %672, %674 : vector<8x128xf32>
    %676 = vector.extract_strided_slice %675 {offsets = [0, 0], sizes = [7, 128], strides = [1, 1]} : vector<8x128xf32> to vector<7x128xf32>
    %677 = vector.extract_strided_slice %675 {offsets = [1, 0], sizes = [7, 128], strides = [1, 1]} : vector<8x128xf32> to vector<7x128xf32>
    %678 = arith.maximumf %676, %677 : vector<7x128xf32>
    %c4_458 = arith.constant 4 : index
    %c0_459 = arith.constant 0 : index
    %c0_460 = arith.constant 0 : index
    %679 = vector.load %arg8[%c4_458, %c0_459, %c0_460] : memref<16x16x128xf32, #tpu.memory_space<vmem>>, vector<1x7x128xf32>
    %680 = vector.shape_cast %679 : vector<1x7x128xf32> to vector<7x128xf32>
    %681 = vector.shape_cast %678 : vector<7x128xf32> to vector<1x7x128xf32>
    tpu.vector_store %arg8[%c4_458, %c0_459, %c0_460], %681 {strides = array<i32>} : memref<16x16x128xf32, #tpu.memory_space<vmem>>, vector<1x7x128xf32>,
    %c5_461 = arith.constant 5 : index
    %c0_462 = arith.constant 0 : index
    %c0_463 = arith.constant 0 : index
    %682 = vector.load %arg9[%c5_461, %c0_462, %c0_463] : memref<16x16x128xf32, #tpu.memory_space<vmem>>, vector<1x8x128xf32>
    %683 = vector.shape_cast %682 : vector<1x8x128xf32> to vector<8x128xf32>
    %c6_464 = arith.constant 6 : index
    %c0_465 = arith.constant 0 : index
    %c0_466 = arith.constant 0 : index
    %684 = vector.load %arg9[%c6_464, %c0_465, %c0_466] : memref<16x16x128xf32, #tpu.memory_space<vmem>>, vector<1x8x128xf32>
    %685 = vector.shape_cast %684 : vector<1x8x128xf32> to vector<8x128xf32>
    %686 = arith.maximumf %683, %685 : vector<8x128xf32>
    %687 = vector.extract_strided_slice %686 {offsets = [0, 0], sizes = [7, 128], strides = [1, 1]} : vector<8x128xf32> to vector<7x128xf32>
    %688 = vector.extract_strided_slice %686 {offsets = [1, 0], sizes = [7, 128], strides = [1, 1]} : vector<8x128xf32> to vector<7x128xf32>
    %689 = arith.maximumf %687, %688 : vector<7x128xf32>
    %c5_467 = arith.constant 5 : index
    %c0_468 = arith.constant 0 : index
    %c0_469 = arith.constant 0 : index
    %690 = vector.load %arg8[%c5_467, %c0_468, %c0_469] : memref<16x16x128xf32, #tpu.memory_space<vmem>>, vector<1x7x128xf32>
    %691 = vector.shape_cast %690 : vector<1x7x128xf32> to vector<7x128xf32>
    %692 = vector.shape_cast %689 : vector<7x128xf32> to vector<1x7x128xf32>
    tpu.vector_store %arg8[%c5_467, %c0_468, %c0_469], %692 {strides = array<i32>} : memref<16x16x128xf32, #tpu.memory_space<vmem>>, vector<1x7x128xf32>,
    %c6_470 = arith.constant 6 : index
    %c0_471 = arith.constant 0 : index
    %c0_472 = arith.constant 0 : index
    %693 = vector.load %arg9[%c6_470, %c0_471, %c0_472] : memref<16x16x128xf32, #tpu.memory_space<vmem>>, vector<1x8x128xf32>
    %694 = vector.shape_cast %693 : vector<1x8x128xf32> to vector<8x128xf32>
    %c7_473 = arith.constant 7 : index
    %c0_474 = arith.constant 0 : index
    %c0_475 = arith.constant 0 : index
    %695 = vector.load %arg9[%c7_473, %c0_474, %c0_475] : memref<16x16x128xf32, #tpu.memory_space<vmem>>, vector<1x8x128xf32>
    %696 = vector.shape_cast %695 : vector<1x8x128xf32> to vector<8x128xf32>
    %697 = arith.maximumf %694, %696 : vector<8x128xf32>
    %698 = vector.extract_strided_slice %697 {offsets = [0, 0], sizes = [7, 128], strides = [1, 1]} : vector<8x128xf32> to vector<7x128xf32>
    %699 = vector.extract_strided_slice %697 {offsets = [1, 0], sizes = [7, 128], strides = [1, 1]} : vector<8x128xf32> to vector<7x128xf32>
    %700 = arith.maximumf %698, %699 : vector<7x128xf32>
    %c6_476 = arith.constant 6 : index
    %c0_477 = arith.constant 0 : index
    %c0_478 = arith.constant 0 : index
    %701 = vector.load %arg8[%c6_476, %c0_477, %c0_478] : memref<16x16x128xf32, #tpu.memory_space<vmem>>, vector<1x7x128xf32>
    %702 = vector.shape_cast %701 : vector<1x7x128xf32> to vector<7x128xf32>
    %703 = vector.shape_cast %700 : vector<7x128xf32> to vector<1x7x128xf32>
    tpu.vector_store %arg8[%c6_476, %c0_477, %c0_478], %703 {strides = array<i32>} : memref<16x16x128xf32, #tpu.memory_space<vmem>>, vector<1x7x128xf32>,
    %c2_479 = arith.constant 2 : index
    %c0_480 = arith.constant 0 : index
    %c0_481 = arith.constant 0 : index
    %704 = vector.load %arg5[%c2_479, %c0_480, %c0_481] : memref<4x1152x128xf32, #tpu.memory_space<vmem>>, vector<1x1152x128xf32>
    %705 = vector.shape_cast %704 : vector<1x1152x128xf32> to vector<1152x128xf32>
    %cst_482 = arith.constant 0.000000e+00 : f32
    %706 = vector.broadcast %cst_482 : f32 to vector<16x16x128xf32>
    %c0_483 = arith.constant 0 : index
    %c0_484 = arith.constant 0 : index
    %c0_485 = arith.constant 0 : index
    %707 = vector.load %arg9[%c0_483, %c0_484, %c0_485] : memref<16x16x128xf32, #tpu.memory_space<vmem>>, vector<16x16x128xf32>
    tpu.vector_store %arg9[%c0_483, %c0_484, %c0_485], %706 {strides = array<i32>} : memref<16x16x128xf32, #tpu.memory_space<vmem>>, vector<16x16x128xf32>,
    %c0_486 = arith.constant 0 : index
    %c0_487 = arith.constant 0 : index
    %c0_488 = arith.constant 0 : index
    %708 = vector.load %arg8[%c0_486, %c0_487, %c0_488] : memref<16x16x128xf32, #tpu.memory_space<vmem>>, vector<1x7x128xf32>
    %709 = vector.shape_cast %708 : vector<1x7x128xf32> to vector<7x128xf32>
    %c1_489 = arith.constant 1 : index
    %c0_490 = arith.constant 0 : index
    %c0_491 = arith.constant 0 : index
    %710 = vector.load %arg8[%c1_489, %c0_490, %c0_491] : memref<16x16x128xf32, #tpu.memory_space<vmem>>, vector<1x7x128xf32>
    %711 = vector.shape_cast %710 : vector<1x7x128xf32> to vector<7x128xf32>
    %c2_492 = arith.constant 2 : index
    %c0_493 = arith.constant 0 : index
    %c0_494 = arith.constant 0 : index
    %712 = vector.load %arg8[%c2_492, %c0_493, %c0_494] : memref<16x16x128xf32, #tpu.memory_space<vmem>>, vector<1x7x128xf32>
    %713 = vector.shape_cast %712 : vector<1x7x128xf32> to vector<7x128xf32>
    %714 = vector.extract_strided_slice %709 {offsets = [0, 0], sizes = [5, 128], strides = [1, 1]} : vector<7x128xf32> to vector<5x128xf32>
    %715 = vector.extract_strided_slice %709 {offsets = [1, 0], sizes = [5, 128], strides = [1, 1]} : vector<7x128xf32> to vector<5x128xf32>
    %716 = vector.extract_strided_slice %709 {offsets = [2, 0], sizes = [5, 128], strides = [1, 1]} : vector<7x128xf32> to vector<5x128xf32>
    %717 = vector.extract_strided_slice %711 {offsets = [0, 0], sizes = [5, 128], strides = [1, 1]} : vector<7x128xf32> to vector<5x128xf32>
    %718 = vector.extract_strided_slice %711 {offsets = [1, 0], sizes = [5, 128], strides = [1, 1]} : vector<7x128xf32> to vector<5x128xf32>
    %719 = vector.extract_strided_slice %711 {offsets = [2, 0], sizes = [5, 128], strides = [1, 1]} : vector<7x128xf32> to vector<5x128xf32>
    %720 = vector.extract_strided_slice %713 {offsets = [0, 0], sizes = [5, 128], strides = [1, 1]} : vector<7x128xf32> to vector<5x128xf32>
    %721 = vector.extract_strided_slice %713 {offsets = [1, 0], sizes = [5, 128], strides = [1, 1]} : vector<7x128xf32> to vector<5x128xf32>
    %722 = vector.extract_strided_slice %713 {offsets = [2, 0], sizes = [5, 128], strides = [1, 1]} : vector<7x128xf32> to vector<5x128xf32>
    %723 = tpu.concatenate %714, %715, %716, %717, %718, %719, %720, %721, %722 in 1 : vector<5x128xf32>, vector<5x128xf32>, vector<5x128xf32>, vector<5x128xf32>, vector<5x128xf32>, vector<5x128xf32>, vector<5x128xf32>, vector<5x128xf32>, vector<5x128xf32> -> vector<5x1152xf32>
    %cst_495 = arith.constant dense<0.000000e+00> : vector<5x128xf32>
    %724 = tpu.matmul %723, %705, %cst_495 {dimension_numbers = #tpu.dot_dimension_numbers<[1], [0], [0], [1], [0, 0, 1, 1], [], []>} : vector<5x1152xf32>, vector<1152x128xf32>, vector<5x128xf32> -> vector<5x128xf32>
    %cst_496 = arith.constant 0.000000e+00 : f32
    %725 = vector.broadcast %cst_496 : f32 to vector<5x128xf32>
    %726 = arith.maximumf %724, %725 : vector<5x128xf32>
    %c1_497 = arith.constant 1 : index
    %c1_498 = arith.constant 1 : index
    %c0_499 = arith.constant 0 : index
    %727 = vector.load %arg9[%c1_497, %c1_498, %c0_499] : memref<16x16x128xf32, #tpu.memory_space<vmem>>, vector<1x5x128xf32>
    %728 = vector.shape_cast %727 : vector<1x5x128xf32> to vector<5x128xf32>
    %729 = vector.shape_cast %726 : vector<5x128xf32> to vector<1x5x128xf32>
    tpu.vector_store %arg9[%c1_497, %c1_498, %c0_499], %729 {strides = array<i32>} : memref<16x16x128xf32, #tpu.memory_space<vmem>>, vector<1x5x128xf32>,
    %c1_500 = arith.constant 1 : index
    %c0_501 = arith.constant 0 : index
    %c0_502 = arith.constant 0 : index
    %730 = vector.load %arg8[%c1_500, %c0_501, %c0_502] : memref<16x16x128xf32, #tpu.memory_space<vmem>>, vector<1x7x128xf32>
    %731 = vector.shape_cast %730 : vector<1x7x128xf32> to vector<7x128xf32>
    %c2_503 = arith.constant 2 : index
    %c0_504 = arith.constant 0 : index
    %c0_505 = arith.constant 0 : index
    %732 = vector.load %arg8[%c2_503, %c0_504, %c0_505] : memref<16x16x128xf32, #tpu.memory_space<vmem>>, vector<1x7x128xf32>
    %733 = vector.shape_cast %732 : vector<1x7x128xf32> to vector<7x128xf32>
    %c3_506 = arith.constant 3 : index
    %c0_507 = arith.constant 0 : index
    %c0_508 = arith.constant 0 : index
    %734 = vector.load %arg8[%c3_506, %c0_507, %c0_508] : memref<16x16x128xf32, #tpu.memory_space<vmem>>, vector<1x7x128xf32>
    %735 = vector.shape_cast %734 : vector<1x7x128xf32> to vector<7x128xf32>
    %736 = vector.extract_strided_slice %731 {offsets = [0, 0], sizes = [5, 128], strides = [1, 1]} : vector<7x128xf32> to vector<5x128xf32>
    %737 = vector.extract_strided_slice %731 {offsets = [1, 0], sizes = [5, 128], strides = [1, 1]} : vector<7x128xf32> to vector<5x128xf32>
    %738 = vector.extract_strided_slice %731 {offsets = [2, 0], sizes = [5, 128], strides = [1, 1]} : vector<7x128xf32> to vector<5x128xf32>
    %739 = vector.extract_strided_slice %733 {offsets = [0, 0], sizes = [5, 128], strides = [1, 1]} : vector<7x128xf32> to vector<5x128xf32>
    %740 = vector.extract_strided_slice %733 {offsets = [1, 0], sizes = [5, 128], strides = [1, 1]} : vector<7x128xf32> to vector<5x128xf32>
    %741 = vector.extract_strided_slice %733 {offsets = [2, 0], sizes = [5, 128], strides = [1, 1]} : vector<7x128xf32> to vector<5x128xf32>
    %742 = vector.extract_strided_slice %735 {offsets = [0, 0], sizes = [5, 128], strides = [1, 1]} : vector<7x128xf32> to vector<5x128xf32>
    %743 = vector.extract_strided_slice %735 {offsets = [1, 0], sizes = [5, 128], strides = [1, 1]} : vector<7x128xf32> to vector<5x128xf32>
    %744 = vector.extract_strided_slice %735 {offsets = [2, 0], sizes = [5, 128], strides = [1, 1]} : vector<7x128xf32> to vector<5x128xf32>
    %745 = tpu.concatenate %736, %737, %738, %739, %740, %741, %742, %743, %744 in 1 : vector<5x128xf32>, vector<5x128xf32>, vector<5x128xf32>, vector<5x128xf32>, vector<5x128xf32>, vector<5x128xf32>, vector<5x128xf32>, vector<5x128xf32>, vector<5x128xf32> -> vector<5x1152xf32>
    %cst_509 = arith.constant dense<0.000000e+00> : vector<5x128xf32>
    %746 = tpu.matmul %745, %705, %cst_509 {dimension_numbers = #tpu.dot_dimension_numbers<[1], [0], [0], [1], [0, 0, 1, 1], [], []>} : vector<5x1152xf32>, vector<1152x128xf32>, vector<5x128xf32> -> vector<5x128xf32>
    %cst_510 = arith.constant 0.000000e+00 : f32
    %747 = vector.broadcast %cst_510 : f32 to vector<5x128xf32>
    %748 = arith.maximumf %746, %747 : vector<5x128xf32>
    %c2_511 = arith.constant 2 : index
    %c1_512 = arith.constant 1 : index
    %c0_513 = arith.constant 0 : index
    %749 = vector.load %arg9[%c2_511, %c1_512, %c0_513] : memref<16x16x128xf32, #tpu.memory_space<vmem>>, vector<1x5x128xf32>
    %750 = vector.shape_cast %749 : vector<1x5x128xf32> to vector<5x128xf32>
    %751 = vector.shape_cast %748 : vector<5x128xf32> to vector<1x5x128xf32>
    tpu.vector_store %arg9[%c2_511, %c1_512, %c0_513], %751 {strides = array<i32>} : memref<16x16x128xf32, #tpu.memory_space<vmem>>, vector<1x5x128xf32>,
    %c2_514 = arith.constant 2 : index
    %c0_515 = arith.constant 0 : index
    %c0_516 = arith.constant 0 : index
    %752 = vector.load %arg8[%c2_514, %c0_515, %c0_516] : memref<16x16x128xf32, #tpu.memory_space<vmem>>, vector<1x7x128xf32>
    %753 = vector.shape_cast %752 : vector<1x7x128xf32> to vector<7x128xf32>
    %c3_517 = arith.constant 3 : index
    %c0_518 = arith.constant 0 : index
    %c0_519 = arith.constant 0 : index
    %754 = vector.load %arg8[%c3_517, %c0_518, %c0_519] : memref<16x16x128xf32, #tpu.memory_space<vmem>>, vector<1x7x128xf32>
    %755 = vector.shape_cast %754 : vector<1x7x128xf32> to vector<7x128xf32>
    %c4_520 = arith.constant 4 : index
    %c0_521 = arith.constant 0 : index
    %c0_522 = arith.constant 0 : index
    %756 = vector.load %arg8[%c4_520, %c0_521, %c0_522] : memref<16x16x128xf32, #tpu.memory_space<vmem>>, vector<1x7x128xf32>
    %757 = vector.shape_cast %756 : vector<1x7x128xf32> to vector<7x128xf32>
    %758 = vector.extract_strided_slice %753 {offsets = [0, 0], sizes = [5, 128], strides = [1, 1]} : vector<7x128xf32> to vector<5x128xf32>
    %759 = vector.extract_strided_slice %753 {offsets = [1, 0], sizes = [5, 128], strides = [1, 1]} : vector<7x128xf32> to vector<5x128xf32>
    %760 = vector.extract_strided_slice %753 {offsets = [2, 0], sizes = [5, 128], strides = [1, 1]} : vector<7x128xf32> to vector<5x128xf32>
    %761 = vector.extract_strided_slice %755 {offsets = [0, 0], sizes = [5, 128], strides = [1, 1]} : vector<7x128xf32> to vector<5x128xf32>
    %762 = vector.extract_strided_slice %755 {offsets = [1, 0], sizes = [5, 128], strides = [1, 1]} : vector<7x128xf32> to vector<5x128xf32>
    %763 = vector.extract_strided_slice %755 {offsets = [2, 0], sizes = [5, 128], strides = [1, 1]} : vector<7x128xf32> to vector<5x128xf32>
    %764 = vector.extract_strided_slice %757 {offsets = [0, 0], sizes = [5, 128], strides = [1, 1]} : vector<7x128xf32> to vector<5x128xf32>
    %765 = vector.extract_strided_slice %757 {offsets = [1, 0], sizes = [5, 128], strides = [1, 1]} : vector<7x128xf32> to vector<5x128xf32>
    %766 = vector.extract_strided_slice %757 {offsets = [2, 0], sizes = [5, 128], strides = [1, 1]} : vector<7x128xf32> to vector<5x128xf32>
    %767 = tpu.concatenate %758, %759, %760, %761, %762, %763, %764, %765, %766 in 1 : vector<5x128xf32>, vector<5x128xf32>, vector<5x128xf32>, vector<5x128xf32>, vector<5x128xf32>, vector<5x128xf32>, vector<5x128xf32>, vector<5x128xf32>, vector<5x128xf32> -> vector<5x1152xf32>
    %cst_523 = arith.constant dense<0.000000e+00> : vector<5x128xf32>
    %768 = tpu.matmul %767, %705, %cst_523 {dimension_numbers = #tpu.dot_dimension_numbers<[1], [0], [0], [1], [0, 0, 1, 1], [], []>} : vector<5x1152xf32>, vector<1152x128xf32>, vector<5x128xf32> -> vector<5x128xf32>
    %cst_524 = arith.constant 0.000000e+00 : f32
    %769 = vector.broadcast %cst_524 : f32 to vector<5x128xf32>
    %770 = arith.maximumf %768, %769 : vector<5x128xf32>
    %c3_525 = arith.constant 3 : index
    %c1_526 = arith.constant 1 : index
    %c0_527 = arith.constant 0 : index
    %771 = vector.load %arg9[%c3_525, %c1_526, %c0_527] : memref<16x16x128xf32, #tpu.memory_space<vmem>>, vector<1x5x128xf32>
    %772 = vector.shape_cast %771 : vector<1x5x128xf32> to vector<5x128xf32>
    %773 = vector.shape_cast %770 : vector<5x128xf32> to vector<1x5x128xf32>
    tpu.vector_store %arg9[%c3_525, %c1_526, %c0_527], %773 {strides = array<i32>} : memref<16x16x128xf32, #tpu.memory_space<vmem>>, vector<1x5x128xf32>,
    %c3_528 = arith.constant 3 : index
    %c0_529 = arith.constant 0 : index
    %c0_530 = arith.constant 0 : index
    %774 = vector.load %arg8[%c3_528, %c0_529, %c0_530] : memref<16x16x128xf32, #tpu.memory_space<vmem>>, vector<1x7x128xf32>
    %775 = vector.shape_cast %774 : vector<1x7x128xf32> to vector<7x128xf32>
    %c4_531 = arith.constant 4 : index
    %c0_532 = arith.constant 0 : index
    %c0_533 = arith.constant 0 : index
    %776 = vector.load %arg8[%c4_531, %c0_532, %c0_533] : memref<16x16x128xf32, #tpu.memory_space<vmem>>, vector<1x7x128xf32>
    %777 = vector.shape_cast %776 : vector<1x7x128xf32> to vector<7x128xf32>
    %c5_534 = arith.constant 5 : index
    %c0_535 = arith.constant 0 : index
    %c0_536 = arith.constant 0 : index
    %778 = vector.load %arg8[%c5_534, %c0_535, %c0_536] : memref<16x16x128xf32, #tpu.memory_space<vmem>>, vector<1x7x128xf32>
    %779 = vector.shape_cast %778 : vector<1x7x128xf32> to vector<7x128xf32>
    %780 = vector.extract_strided_slice %775 {offsets = [0, 0], sizes = [5, 128], strides = [1, 1]} : vector<7x128xf32> to vector<5x128xf32>
    %781 = vector.extract_strided_slice %775 {offsets = [1, 0], sizes = [5, 128], strides = [1, 1]} : vector<7x128xf32> to vector<5x128xf32>
    %782 = vector.extract_strided_slice %775 {offsets = [2, 0], sizes = [5, 128], strides = [1, 1]} : vector<7x128xf32> to vector<5x128xf32>
    %783 = vector.extract_strided_slice %777 {offsets = [0, 0], sizes = [5, 128], strides = [1, 1]} : vector<7x128xf32> to vector<5x128xf32>
    %784 = vector.extract_strided_slice %777 {offsets = [1, 0], sizes = [5, 128], strides = [1, 1]} : vector<7x128xf32> to vector<5x128xf32>
    %785 = vector.extract_strided_slice %777 {offsets = [2, 0], sizes = [5, 128], strides = [1, 1]} : vector<7x128xf32> to vector<5x128xf32>
    %786 = vector.extract_strided_slice %779 {offsets = [0, 0], sizes = [5, 128], strides = [1, 1]} : vector<7x128xf32> to vector<5x128xf32>
    %787 = vector.extract_strided_slice %779 {offsets = [1, 0], sizes = [5, 128], strides = [1, 1]} : vector<7x128xf32> to vector<5x128xf32>
    %788 = vector.extract_strided_slice %779 {offsets = [2, 0], sizes = [5, 128], strides = [1, 1]} : vector<7x128xf32> to vector<5x128xf32>
    %789 = tpu.concatenate %780, %781, %782, %783, %784, %785, %786, %787, %788 in 1 : vector<5x128xf32>, vector<5x128xf32>, vector<5x128xf32>, vector<5x128xf32>, vector<5x128xf32>, vector<5x128xf32>, vector<5x128xf32>, vector<5x128xf32>, vector<5x128xf32> -> vector<5x1152xf32>
    %cst_537 = arith.constant dense<0.000000e+00> : vector<5x128xf32>
    %790 = tpu.matmul %789, %705, %cst_537 {dimension_numbers = #tpu.dot_dimension_numbers<[1], [0], [0], [1], [0, 0, 1, 1], [], []>} : vector<5x1152xf32>, vector<1152x128xf32>, vector<5x128xf32> -> vector<5x128xf32>
    %cst_538 = arith.constant 0.000000e+00 : f32
    %791 = vector.broadcast %cst_538 : f32 to vector<5x128xf32>
    %792 = arith.maximumf %790, %791 : vector<5x128xf32>
    %c4_539 = arith.constant 4 : index
    %c1_540 = arith.constant 1 : index
    %c0_541 = arith.constant 0 : index
    %793 = vector.load %arg9[%c4_539, %c1_540, %c0_541] : memref<16x16x128xf32, #tpu.memory_space<vmem>>, vector<1x5x128xf32>
    %794 = vector.shape_cast %793 : vector<1x5x128xf32> to vector<5x128xf32>
    %795 = vector.shape_cast %792 : vector<5x128xf32> to vector<1x5x128xf32>
    tpu.vector_store %arg9[%c4_539, %c1_540, %c0_541], %795 {strides = array<i32>} : memref<16x16x128xf32, #tpu.memory_space<vmem>>, vector<1x5x128xf32>,
    %c4_542 = arith.constant 4 : index
    %c0_543 = arith.constant 0 : index
    %c0_544 = arith.constant 0 : index
    %796 = vector.load %arg8[%c4_542, %c0_543, %c0_544] : memref<16x16x128xf32, #tpu.memory_space<vmem>>, vector<1x7x128xf32>
    %797 = vector.shape_cast %796 : vector<1x7x128xf32> to vector<7x128xf32>
    %c5_545 = arith.constant 5 : index
    %c0_546 = arith.constant 0 : index
    %c0_547 = arith.constant 0 : index
    %798 = vector.load %arg8[%c5_545, %c0_546, %c0_547] : memref<16x16x128xf32, #tpu.memory_space<vmem>>, vector<1x7x128xf32>
    %799 = vector.shape_cast %798 : vector<1x7x128xf32> to vector<7x128xf32>
    %c6_548 = arith.constant 6 : index
    %c0_549 = arith.constant 0 : index
    %c0_550 = arith.constant 0 : index
    %800 = vector.load %arg8[%c6_548, %c0_549, %c0_550] : memref<16x16x128xf32, #tpu.memory_space<vmem>>, vector<1x7x128xf32>
    %801 = vector.shape_cast %800 : vector<1x7x128xf32> to vector<7x128xf32>
    %802 = vector.extract_strided_slice %797 {offsets = [0, 0], sizes = [5, 128], strides = [1, 1]} : vector<7x128xf32> to vector<5x128xf32>
    %803 = vector.extract_strided_slice %797 {offsets = [1, 0], sizes = [5, 128], strides = [1, 1]} : vector<7x128xf32> to vector<5x128xf32>
    %804 = vector.extract_strided_slice %797 {offsets = [2, 0], sizes = [5, 128], strides = [1, 1]} : vector<7x128xf32> to vector<5x128xf32>
    %805 = vector.extract_strided_slice %799 {offsets = [0, 0], sizes = [5, 128], strides = [1, 1]} : vector<7x128xf32> to vector<5x128xf32>
    %806 = vector.extract_strided_slice %799 {offsets = [1, 0], sizes = [5, 128], strides = [1, 1]} : vector<7x128xf32> to vector<5x128xf32>
    %807 = vector.extract_strided_slice %799 {offsets = [2, 0], sizes = [5, 128], strides = [1, 1]} : vector<7x128xf32> to vector<5x128xf32>
    %808 = vector.extract_strided_slice %801 {offsets = [0, 0], sizes = [5, 128], strides = [1, 1]} : vector<7x128xf32> to vector<5x128xf32>
    %809 = vector.extract_strided_slice %801 {offsets = [1, 0], sizes = [5, 128], strides = [1, 1]} : vector<7x128xf32> to vector<5x128xf32>
    %810 = vector.extract_strided_slice %801 {offsets = [2, 0], sizes = [5, 128], strides = [1, 1]} : vector<7x128xf32> to vector<5x128xf32>
    %811 = tpu.concatenate %802, %803, %804, %805, %806, %807, %808, %809, %810 in 1 : vector<5x128xf32>, vector<5x128xf32>, vector<5x128xf32>, vector<5x128xf32>, vector<5x128xf32>, vector<5x128xf32>, vector<5x128xf32>, vector<5x128xf32>, vector<5x128xf32> -> vector<5x1152xf32>
    %cst_551 = arith.constant dense<0.000000e+00> : vector<5x128xf32>
    %812 = tpu.matmul %811, %705, %cst_551 {dimension_numbers = #tpu.dot_dimension_numbers<[1], [0], [0], [1], [0, 0, 1, 1], [], []>} : vector<5x1152xf32>, vector<1152x128xf32>, vector<5x128xf32> -> vector<5x128xf32>
    %cst_552 = arith.constant 0.000000e+00 : f32
    %813 = vector.broadcast %cst_552 : f32 to vector<5x128xf32>
    %814 = arith.maximumf %812, %813 : vector<5x128xf32>
    %c5_553 = arith.constant 5 : index
    %c1_554 = arith.constant 1 : index
    %c0_555 = arith.constant 0 : index
    %815 = vector.load %arg9[%c5_553, %c1_554, %c0_555] : memref<16x16x128xf32, #tpu.memory_space<vmem>>, vector<1x5x128xf32>
    %816 = vector.shape_cast %815 : vector<1x5x128xf32> to vector<5x128xf32>
    %817 = vector.shape_cast %814 : vector<5x128xf32> to vector<1x5x128xf32>
    tpu.vector_store %arg9[%c5_553, %c1_554, %c0_555], %817 {strides = array<i32>} : memref<16x16x128xf32, #tpu.memory_space<vmem>>, vector<1x5x128xf32>,
    %818 = tpu.iota {dimensions = array<i32: 0>} : vector<3x6xi32>
    %819 = tpu.iota {dimensions = array<i32: 1>} : vector<3x6xi32>
    %c2_i32_556 = arith.constant 2 : i32
    %820 = vector.broadcast %c2_i32_556 : i32 to vector<3x6xi32>
    %821 = arith.muli %820, %818 : vector<3x6xi32>
    %822 = arith.cmpi eq, %819, %821 : vector<3x6xi32>
    %823 = arith.extui %822 : vector<3x6xi1> to vector<3x6xi32>
    %824 = arith.sitofp %823 : vector<3x6xi32> to vector<3x6xf32>
    %c0_557 = arith.constant 0 : index
    %c0_558 = arith.constant 0 : index
    %c0_559 = arith.constant 0 : index
    %825 = vector.load %arg9[%c0_557, %c0_558, %c0_559] : memref<16x16x128xf32, #tpu.memory_space<vmem>>, vector<1x7x128xf32>
    %826 = vector.shape_cast %825 : vector<1x7x128xf32> to vector<7x128xf32>
    %c1_560 = arith.constant 1 : index
    %c0_561 = arith.constant 0 : index
    %c0_562 = arith.constant 0 : index
    %827 = vector.load %arg9[%c1_560, %c0_561, %c0_562] : memref<16x16x128xf32, #tpu.memory_space<vmem>>, vector<1x7x128xf32>
    %828 = vector.shape_cast %827 : vector<1x7x128xf32> to vector<7x128xf32>
    %829 = arith.maximumf %826, %828 : vector<7x128xf32>
    %830 = vector.extract_strided_slice %829 {offsets = [0, 0], sizes = [6, 128], strides = [1, 1]} : vector<7x128xf32> to vector<6x128xf32>
    %831 = vector.extract_strided_slice %829 {offsets = [1, 0], sizes = [6, 128], strides = [1, 1]} : vector<7x128xf32> to vector<6x128xf32>
    %832 = arith.maximumf %830, %831 : vector<6x128xf32>
    %cst_563 = arith.constant dense<0.000000e+00> : vector<3x128xf32>
    %833 = tpu.matmul %824, %832, %cst_563 {dimension_numbers = #tpu.dot_dimension_numbers<[1], [0], [0], [1], [0, 0, 1, 1], [], []>} : vector<3x6xf32>, vector<6x128xf32>, vector<3x128xf32> -> vector<3x128xf32>
    %c0_564 = arith.constant 0 : index
    %c0_565 = arith.constant 0 : index
    %c0_566 = arith.constant 0 : index
    %834 = vector.load %arg8[%c0_564, %c0_565, %c0_566] : memref<16x16x128xf32, #tpu.memory_space<vmem>>, vector<1x3x128xf32>
    %835 = vector.shape_cast %834 : vector<1x3x128xf32> to vector<3x128xf32>
    %836 = vector.shape_cast %833 : vector<3x128xf32> to vector<1x3x128xf32>
    tpu.vector_store %arg8[%c0_564, %c0_565, %c0_566], %836 {strides = array<i32>} : memref<16x16x128xf32, #tpu.memory_space<vmem>>, vector<1x3x128xf32>,
    %c2_567 = arith.constant 2 : index
    %c0_568 = arith.constant 0 : index
    %c0_569 = arith.constant 0 : index
    %837 = vector.load %arg9[%c2_567, %c0_568, %c0_569] : memref<16x16x128xf32, #tpu.memory_space<vmem>>, vector<1x7x128xf32>
    %838 = vector.shape_cast %837 : vector<1x7x128xf32> to vector<7x128xf32>
    %c3_570 = arith.constant 3 : index
    %c0_571 = arith.constant 0 : index
    %c0_572 = arith.constant 0 : index
    %839 = vector.load %arg9[%c3_570, %c0_571, %c0_572] : memref<16x16x128xf32, #tpu.memory_space<vmem>>, vector<1x7x128xf32>
    %840 = vector.shape_cast %839 : vector<1x7x128xf32> to vector<7x128xf32>
    %841 = arith.maximumf %838, %840 : vector<7x128xf32>
    %842 = vector.extract_strided_slice %841 {offsets = [0, 0], sizes = [6, 128], strides = [1, 1]} : vector<7x128xf32> to vector<6x128xf32>
    %843 = vector.extract_strided_slice %841 {offsets = [1, 0], sizes = [6, 128], strides = [1, 1]} : vector<7x128xf32> to vector<6x128xf32>
    %844 = arith.maximumf %842, %843 : vector<6x128xf32>
    %cst_573 = arith.constant dense<0.000000e+00> : vector<3x128xf32>
    %845 = tpu.matmul %824, %844, %cst_573 {dimension_numbers = #tpu.dot_dimension_numbers<[1], [0], [0], [1], [0, 0, 1, 1], [], []>} : vector<3x6xf32>, vector<6x128xf32>, vector<3x128xf32> -> vector<3x128xf32>
    %c1_574 = arith.constant 1 : index
    %c0_575 = arith.constant 0 : index
    %c0_576 = arith.constant 0 : index
    %846 = vector.load %arg8[%c1_574, %c0_575, %c0_576] : memref<16x16x128xf32, #tpu.memory_space<vmem>>, vector<1x3x128xf32>
    %847 = vector.shape_cast %846 : vector<1x3x128xf32> to vector<3x128xf32>
    %848 = vector.shape_cast %845 : vector<3x128xf32> to vector<1x3x128xf32>
    tpu.vector_store %arg8[%c1_574, %c0_575, %c0_576], %848 {strides = array<i32>} : memref<16x16x128xf32, #tpu.memory_space<vmem>>, vector<1x3x128xf32>,
    %c4_577 = arith.constant 4 : index
    %c0_578 = arith.constant 0 : index
    %c0_579 = arith.constant 0 : index
    %849 = vector.load %arg9[%c4_577, %c0_578, %c0_579] : memref<16x16x128xf32, #tpu.memory_space<vmem>>, vector<1x7x128xf32>
    %850 = vector.shape_cast %849 : vector<1x7x128xf32> to vector<7x128xf32>
    %c5_580 = arith.constant 5 : index
    %c0_581 = arith.constant 0 : index
    %c0_582 = arith.constant 0 : index
    %851 = vector.load %arg9[%c5_580, %c0_581, %c0_582] : memref<16x16x128xf32, #tpu.memory_space<vmem>>, vector<1x7x128xf32>
    %852 = vector.shape_cast %851 : vector<1x7x128xf32> to vector<7x128xf32>
    %853 = arith.maximumf %850, %852 : vector<7x128xf32>
    %854 = vector.extract_strided_slice %853 {offsets = [0, 0], sizes = [6, 128], strides = [1, 1]} : vector<7x128xf32> to vector<6x128xf32>
    %855 = vector.extract_strided_slice %853 {offsets = [1, 0], sizes = [6, 128], strides = [1, 1]} : vector<7x128xf32> to vector<6x128xf32>
    %856 = arith.maximumf %854, %855 : vector<6x128xf32>
    %cst_583 = arith.constant dense<0.000000e+00> : vector<3x128xf32>
    %857 = tpu.matmul %824, %856, %cst_583 {dimension_numbers = #tpu.dot_dimension_numbers<[1], [0], [0], [1], [0, 0, 1, 1], [], []>} : vector<3x6xf32>, vector<6x128xf32>, vector<3x128xf32> -> vector<3x128xf32>
    %c2_584 = arith.constant 2 : index
    %c0_585 = arith.constant 0 : index
    %c0_586 = arith.constant 0 : index
    %858 = vector.load %arg8[%c2_584, %c0_585, %c0_586] : memref<16x16x128xf32, #tpu.memory_space<vmem>>, vector<1x3x128xf32>
    %859 = vector.shape_cast %858 : vector<1x3x128xf32> to vector<3x128xf32>
    %860 = vector.shape_cast %857 : vector<3x128xf32> to vector<1x3x128xf32>
    tpu.vector_store %arg8[%c2_584, %c0_585, %c0_586], %860 {strides = array<i32>} : memref<16x16x128xf32, #tpu.memory_space<vmem>>, vector<1x3x128xf32>,
    %c0_587 = arith.constant 0 : index
    %c0_588 = arith.constant 0 : index
    %c0_589 = arith.constant 0 : index
    %861 = vector.load %arg8[%c0_587, %c0_588, %c0_589] : memref<16x16x128xf32, #tpu.memory_space<vmem>>, vector<1x3x128xf32>
    %862 = vector.shape_cast %861 : vector<1x3x128xf32> to vector<3x128xf32>
    %c0_590 = arith.constant 0 : index
    %c0_591 = arith.constant 0 : index
    %c0_592 = arith.constant 0 : index
    %c0_593 = arith.constant 0 : index
    %863 = vector.load %arg6[%c0_590, %c0_591, %c0_592, %c0_593] : memref<1x3x3x128xf32, #tpu.memory_space<vmem>>, vector<1x1x3x128xf32>
    %864 = vector.shape_cast %863 : vector<1x1x3x128xf32> to vector<3x128xf32>
    %865 = vector.shape_cast %862 : vector<3x128xf32> to vector<1x1x3x128xf32>
    tpu.vector_store %arg6[%c0_590, %c0_591, %c0_592, %c0_593], %865 {strides = array<i32>} : memref<1x3x3x128xf32, #tpu.memory_space<vmem>>, vector<1x1x3x128xf32>,
    %c1_594 = arith.constant 1 : index
    %c0_595 = arith.constant 0 : index
    %c0_596 = arith.constant 0 : index
    %866 = vector.load %arg8[%c1_594, %c0_595, %c0_596] : memref<16x16x128xf32, #tpu.memory_space<vmem>>, vector<1x3x128xf32>
    %867 = vector.shape_cast %866 : vector<1x3x128xf32> to vector<3x128xf32>
    %c0_597 = arith.constant 0 : index
    %c1_598 = arith.constant 1 : index
    %c0_599 = arith.constant 0 : index
    %c0_600 = arith.constant 0 : index
    %868 = vector.load %arg6[%c0_597, %c1_598, %c0_599, %c0_600] : memref<1x3x3x128xf32, #tpu.memory_space<vmem>>, vector<1x1x3x128xf32>
    %869 = vector.shape_cast %868 : vector<1x1x3x128xf32> to vector<3x128xf32>
    %870 = vector.shape_cast %867 : vector<3x128xf32> to vector<1x1x3x128xf32>
    tpu.vector_store %arg6[%c0_597, %c1_598, %c0_599, %c0_600], %870 {strides = array<i32>} : memref<1x3x3x128xf32, #tpu.memory_space<vmem>>, vector<1x1x3x128xf32>,
    %c2_601 = arith.constant 2 : index
    %c0_602 = arith.constant 0 : index
    %c0_603 = arith.constant 0 : index
    %871 = vector.load %arg8[%c2_601, %c0_602, %c0_603] : memref<16x16x128xf32, #tpu.memory_space<vmem>>, vector<1x3x128xf32>
    %872 = vector.shape_cast %871 : vector<1x3x128xf32> to vector<3x128xf32>
    %c0_604 = arith.constant 0 : index
    %c2_605 = arith.constant 2 : index
    %c0_606 = arith.constant 0 : index
    %c0_607 = arith.constant 0 : index
    %873 = vector.load %arg6[%c0_604, %c2_605, %c0_606, %c0_607] : memref<1x3x3x128xf32, #tpu.memory_space<vmem>>, vector<1x1x3x128xf32>
    %874 = vector.shape_cast %873 : vector<1x1x3x128xf32> to vector<3x128xf32>
    %875 = vector.shape_cast %872 : vector<3x128xf32> to vector<1x1x3x128xf32>
    tpu.vector_store %arg6[%c0_604, %c2_605, %c0_606, %c0_607], %875 {strides = array<i32>} : memref<1x3x3x128xf32, #tpu.memory_space<vmem>>, vector<1x1x3x128xf32>,
    %c3_608 = arith.constant 3 : index
    %c0_609 = arith.constant 0 : index
    %c0_610 = arith.constant 0 : index
    %876 = vector.load %arg5[%c3_608, %c0_609, %c0_610] : memref<4x1152x128xf32, #tpu.memory_space<vmem>>, vector<1x1152x128xf32>
    %877 = vector.shape_cast %876 : vector<1x1152x128xf32> to vector<1152x128xf32>
    %cst_611 = arith.constant 0.000000e+00 : f32
    %878 = vector.broadcast %cst_611 : f32 to vector<16x16x128xf32>
    %c0_612 = arith.constant 0 : index
    %c0_613 = arith.constant 0 : index
    %c0_614 = arith.constant 0 : index
    %879 = vector.load %arg9[%c0_612, %c0_613, %c0_614] : memref<16x16x128xf32, #tpu.memory_space<vmem>>, vector<16x16x128xf32>
    tpu.vector_store %arg9[%c0_612, %c0_613, %c0_614], %878 {strides = array<i32>} : memref<16x16x128xf32, #tpu.memory_space<vmem>>, vector<16x16x128xf32>,
    %c0_615 = arith.constant 0 : index
    %c0_616 = arith.constant 0 : index
    %c0_617 = arith.constant 0 : index
    %880 = vector.load %arg8[%c0_615, %c0_616, %c0_617] : memref<16x16x128xf32, #tpu.memory_space<vmem>>, vector<1x3x128xf32>
    %881 = vector.shape_cast %880 : vector<1x3x128xf32> to vector<3x128xf32>
    %c1_618 = arith.constant 1 : index
    %c0_619 = arith.constant 0 : index
    %c0_620 = arith.constant 0 : index
    %882 = vector.load %arg8[%c1_618, %c0_619, %c0_620] : memref<16x16x128xf32, #tpu.memory_space<vmem>>, vector<1x3x128xf32>
    %883 = vector.shape_cast %882 : vector<1x3x128xf32> to vector<3x128xf32>
    %c2_621 = arith.constant 2 : index
    %c0_622 = arith.constant 0 : index
    %c0_623 = arith.constant 0 : index
    %884 = vector.load %arg8[%c2_621, %c0_622, %c0_623] : memref<16x16x128xf32, #tpu.memory_space<vmem>>, vector<1x3x128xf32>
    %885 = vector.shape_cast %884 : vector<1x3x128xf32> to vector<3x128xf32>
    %886 = vector.extract_strided_slice %881 {offsets = [0, 0], sizes = [1, 128], strides = [1, 1]} : vector<3x128xf32> to vector<1x128xf32>
    %887 = vector.extract_strided_slice %881 {offsets = [1, 0], sizes = [1, 128], strides = [1, 1]} : vector<3x128xf32> to vector<1x128xf32>
    %888 = vector.extract_strided_slice %881 {offsets = [2, 0], sizes = [1, 128], strides = [1, 1]} : vector<3x128xf32> to vector<1x128xf32>
    %889 = vector.extract_strided_slice %883 {offsets = [0, 0], sizes = [1, 128], strides = [1, 1]} : vector<3x128xf32> to vector<1x128xf32>
    %890 = vector.extract_strided_slice %883 {offsets = [1, 0], sizes = [1, 128], strides = [1, 1]} : vector<3x128xf32> to vector<1x128xf32>
    %891 = vector.extract_strided_slice %883 {offsets = [2, 0], sizes = [1, 128], strides = [1, 1]} : vector<3x128xf32> to vector<1x128xf32>
    %892 = vector.extract_strided_slice %885 {offsets = [0, 0], sizes = [1, 128], strides = [1, 1]} : vector<3x128xf32> to vector<1x128xf32>
    %893 = vector.extract_strided_slice %885 {offsets = [1, 0], sizes = [1, 128], strides = [1, 1]} : vector<3x128xf32> to vector<1x128xf32>
    %894 = vector.extract_strided_slice %885 {offsets = [2, 0], sizes = [1, 128], strides = [1, 1]} : vector<3x128xf32> to vector<1x128xf32>
    %895 = tpu.concatenate %886, %887, %888, %889, %890, %891, %892, %893, %894 in 1 : vector<1x128xf32>, vector<1x128xf32>, vector<1x128xf32>, vector<1x128xf32>, vector<1x128xf32>, vector<1x128xf32>, vector<1x128xf32>, vector<1x128xf32>, vector<1x128xf32> -> vector<1x1152xf32>
    %cst_624 = arith.constant dense<0.000000e+00> : vector<1x128xf32>
    %896 = tpu.matmul %895, %877, %cst_624 {dimension_numbers = #tpu.dot_dimension_numbers<[1], [0], [0], [1], [0, 0, 1, 1], [], []>} : vector<1x1152xf32>, vector<1152x128xf32>, vector<1x128xf32> -> vector<1x128xf32>
    %cst_625 = arith.constant 0.000000e+00 : f32
    %897 = vector.broadcast %cst_625 : f32 to vector<1x128xf32>
    %898 = arith.maximumf %896, %897 : vector<1x128xf32>
    %c1_626 = arith.constant 1 : index
    %c1_627 = arith.constant 1 : index
    %c0_628 = arith.constant 0 : index
    %899 = vector.load %arg9[%c1_626, %c1_627, %c0_628] : memref<16x16x128xf32, #tpu.memory_space<vmem>>, vector<1x1x128xf32>
    %900 = vector.shape_cast %899 : vector<1x1x128xf32> to vector<1x128xf32>
    %901 = vector.shape_cast %898 : vector<1x128xf32> to vector<1x1x128xf32>
    tpu.vector_store %arg9[%c1_626, %c1_627, %c0_628], %901 {strides = array<i32>} : memref<16x16x128xf32, #tpu.memory_space<vmem>>, vector<1x1x128xf32>,
    %902 = tpu.iota {dimensions = array<i32: 0>} : vector<1x2xi32>
    %903 = tpu.iota {dimensions = array<i32: 1>} : vector<1x2xi32>
    %c2_i32_629 = arith.constant 2 : i32
    %904 = vector.broadcast %c2_i32_629 : i32 to vector<1x2xi32>
    %905 = arith.muli %904, %902 : vector<1x2xi32>
    %906 = arith.cmpi eq, %903, %905 : vector<1x2xi32>
    %907 = arith.extui %906 : vector<1x2xi1> to vector<1x2xi32>
    %908 = arith.sitofp %907 : vector<1x2xi32> to vector<1x2xf32>
    %c0_630 = arith.constant 0 : index
    %c0_631 = arith.constant 0 : index
    %c0_632 = arith.constant 0 : index
    %909 = vector.load %arg9[%c0_630, %c0_631, %c0_632] : memref<16x16x128xf32, #tpu.memory_space<vmem>>, vector<1x3x128xf32>
    %910 = vector.shape_cast %909 : vector<1x3x128xf32> to vector<3x128xf32>
    %c1_633 = arith.constant 1 : index
    %c0_634 = arith.constant 0 : index
    %c0_635 = arith.constant 0 : index
    %911 = vector.load %arg9[%c1_633, %c0_634, %c0_635] : memref<16x16x128xf32, #tpu.memory_space<vmem>>, vector<1x3x128xf32>
    %912 = vector.shape_cast %911 : vector<1x3x128xf32> to vector<3x128xf32>
    %913 = arith.maximumf %910, %912 : vector<3x128xf32>
    %914 = vector.extract_strided_slice %913 {offsets = [0, 0], sizes = [2, 128], strides = [1, 1]} : vector<3x128xf32> to vector<2x128xf32>
    %915 = vector.extract_strided_slice %913 {offsets = [1, 0], sizes = [2, 128], strides = [1, 1]} : vector<3x128xf32> to vector<2x128xf32>
    %916 = arith.maximumf %914, %915 : vector<2x128xf32>
    %cst_636 = arith.constant dense<0.000000e+00> : vector<1x128xf32>
    %917 = tpu.matmul %908, %916, %cst_636 {dimension_numbers = #tpu.dot_dimension_numbers<[1], [0], [0], [1], [0, 0, 1, 1], [], []>} : vector<1x2xf32>, vector<2x128xf32>, vector<1x128xf32> -> vector<1x128xf32>
    %c0_637 = arith.constant 0 : index
    %c0_638 = arith.constant 0 : index
    %c0_639 = arith.constant 0 : index
    %918 = vector.load %arg8[%c0_637, %c0_638, %c0_639] : memref<16x16x128xf32, #tpu.memory_space<vmem>>, vector<1x1x128xf32>
    %919 = vector.shape_cast %918 : vector<1x1x128xf32> to vector<1x128xf32>
    %920 = vector.shape_cast %917 : vector<1x128xf32> to vector<1x1x128xf32>
    tpu.vector_store %arg8[%c0_637, %c0_638, %c0_639], %920 {strides = array<i32>} : memref<16x16x128xf32, #tpu.memory_space<vmem>>, vector<1x1x128xf32>,
    %c0_640 = arith.constant 0 : index
    %c0_641 = arith.constant 0 : index
    %c0_642 = arith.constant 0 : index
    %921 = vector.load %arg8[%c0_640, %c0_641, %c0_642] : memref<16x16x128xf32, #tpu.memory_space<vmem>>, vector<1x1x128xf32>
    %922 = vector.shape_cast %921 : vector<1x1x128xf32> to vector<1x128xf32>
    %c0_643 = arith.constant 0 : index
    %c0_644 = arith.constant 0 : index
    %c0_645 = arith.constant 0 : index
    %c0_646 = arith.constant 0 : index
    %923 = vector.load %arg7[%c0_643, %c0_644, %c0_645, %c0_646] : memref<1x1x1x128xf32, #tpu.memory_space<vmem>>, vector<1x1x1x128xf32>
    %924 = vector.shape_cast %923 : vector<1x1x1x128xf32> to vector<1x128xf32>
    %925 = vector.shape_cast %922 : vector<1x128xf32> to vector<1x1x1x128xf32>
    tpu.vector_store %arg7[%c0_643, %c0_644, %c0_645, %c0_646], %925 {strides = array<i32>} : memref<1x1x1x128xf32, #tpu.memory_space<vmem>>, vector<1x1x1x128xf32>,
    return
  }
  func.func @transform_0(%arg0: i32) -> (i32, i32, i32) {
    %c0_i32 = arith.constant 0 : i32
    %c0_i32_0 = arith.constant 0 : i32
    %c0_i32_1 = arith.constant 0 : i32
    return %arg0, %c0_i32, %c0_i32_0 : i32, i32, i32
  }
  func.func @transform_1(%arg0: i32) -> (i32, i32) {
    %c0_i32 = arith.constant 0 : i32
    %c0_i32_0 = arith.constant 0 : i32
    %c0_i32_1 = arith.constant 0 : i32
    return %c0_i32, %c0_i32_0 : i32, i32
  }
  func.func @transform_2(%arg0: i32) -> (i32, i32) {
    %c0_i32 = arith.constant 0 : i32
    %c0_i32_0 = arith.constant 0 : i32
    %c0_i32_1 = arith.constant 0 : i32
    return %c0_i32, %c0_i32_0 : i32, i32
  }
  func.func @transform_3(%arg0: i32) -> (i32, i32) {
    %c0_i32 = arith.constant 0 : i32
    %c0_i32_0 = arith.constant 0 : i32
    %c0_i32_1 = arith.constant 0 : i32
    return %c0_i32, %c0_i32_0 : i32, i32
  }
  func.func @transform_4(%arg0: i32) -> (i32, i32, i32) {
    %c0_i32 = arith.constant 0 : i32
    %c0_i32_0 = arith.constant 0 : i32
    %c0_i32_1 = arith.constant 0 : i32
    %c0_i32_2 = arith.constant 0 : i32
    return %c0_i32, %c0_i32_0, %c0_i32_1 : i32, i32, i32
  }
  func.func @transform_5(%arg0: i32) -> (i32, i32, i32, i32) {
    %c0_i32 = arith.constant 0 : i32
    %c0_i32_0 = arith.constant 0 : i32
    %c0_i32_1 = arith.constant 0 : i32
    %c0_i32_2 = arith.constant 0 : i32
    return %arg0, %c0_i32, %c0_i32_0, %c0_i32_1 : i32, i32, i32, i32
  }
  func.func @transform_6(%arg0: i32) -> (i32, i32, i32, i32) {
    %c0_i32 = arith.constant 0 : i32
    %c0_i32_0 = arith.constant 0 : i32
    %c0_i32_1 = arith.constant 0 : i32
    %c0_i32_2 = arith.constant 0 : i32
    return %arg0, %c0_i32, %c0_i32_0, %c0_i32_1 : i32, i32, i32, i32
  }
}

</mosaic_0001>

<llo_original>
// kernel: tpu_custom_call.1
$region0: #{tpu_custom_call.1}
  #allocation0 [shape = 'u32[]', space=smem, size = 0x4, offset = 0x4, fixed_abs, tag = 'smem constant byte address 0x4 - core index']
  #allocation1 [shape = 'u32[72,128]{1,0:T(1,128)}', space=vmem, size = 0x9000, scoped, tag = 'internal scratch']
  #allocation2 [shape = 'f32[16,16,128]{2,1,0:T(8,128)}', space=vmem, size = 0x20000, scoped, tag = 'scratch operand']
  #allocation3 [shape = 'f32[16,16,128]{2,1,0:T(8,128)}', space=vmem, size = 0x20000, scoped, tag = 'scratch operand']
  %s0 = inlined_call_operand.vmem [shape: f32[2,256,32], index: 0, kind: input, shape index: {}]
  %s1 = inlined_call_operand.hbm [shape: f32[32,128], index: 1, kind: input, shape index: {}]
  %s2 = inlined_call_operand.hbm [shape: f32[1,128], index: 2, kind: input, shape index: {}]
  %s3 = inlined_call_operand.hbm [shape: f32[1,128], index: 3, kind: input, shape index: {}]
  %s4 = inlined_call_operand.hbm [shape: f32[4,1152,128], index: 4, kind: input, shape index: {}]
  %s5 = inlined_call_operand.vmem [shape: f32[2,3,3,128], index: 5, kind: output, shape index: {0}]
  %s6 = inlined_call_operand.hbm [shape: f32[2,1,1,128], index: 6, kind: output, shape index: {1}]
  %7 = xla_tuple %s5, %s6
  %s8 = sld [smem:[#allocation0]]
  $region77: #{tpu_custom_call.1} parent=0
    _
  %s10 = ssub.s32 1, %s8
  %s11 = scalar_select 0, %s10, %s8
  $region1: #{tpu_custom_call.1} parent=0
    #allocation4 [shape = 'u8[16384]{0}', space=vmem, size = 0x4000, scoped, tag = 'input window, operand 1, single buffered']
    #allocation5 [shape = 's32[2]{0}', space=sflag, size = 0x8, scoped, tag = 'scoped memory for tpu_custom_call.1']
    #allocation6 [shape = 's32[2]{0}', space=sflag, size = 0x8, scoped, tag = 'scoped memory for tpu_custom_call.1']
    #allocation7 [shape = 'u8[512]{0}', space=vmem, size = 0x400, scoped, tag = 'input window, operand 2, single buffered']
    #allocation8 [shape = 's32[1]{0}', space=sflag, size = 0x4, scoped, tag = 'scoped memory for tpu_custom_call.1']
    #allocation9 [shape = 'u8[512]{0}', space=vmem, size = 0x400, scoped, tag = 'input window, operand 3, single buffered']
    #allocation10 [shape = 'u8[2359296]{0}', space=vmem, size = 0x240000, scoped, tag = 'input window, operand 4, single buffered']
    #allocation11 [shape = 's32[1]{0}', space=sflag, size = 0x4, scoped, tag = 'scoped memory for tpu_custom_call.1']
    #allocation12 [shape = 'u8[1024]{0}', space=vmem, size = 0x400, scoped, tag = 'output window, operand 1']
    %12 = vsyncpa [#allocation5], 0
    %13 = vsyncpa [#allocation8], 0
    %14 = vsyncpa [#allocation11], 0
    %15 = vsyncpa [#allocation6], 0
    %s16 = scalar_lea.sflag [#allocation6], 1
    %17 = vsyncpa %s16, 0
    loop: start=0, step=1, limit=4
    $region2: #{tpu_custom_call.1} parent=1 // loop_pre_header
      _
    $region3: #{tpu_custom_call.1} parent=1 // loop_header
      %s19 = sphi 0, %s23
      %p20 = scmp.ge.s32.totalorder %s19, 4
      %s29 = sphi 0, %s31
      %s32 = sphi 0, %s29
      %s33 = sphi 0, %s32
      %s49 = sphi 0, %s33
      %s53 = sphi 0, %s53
      %s55 = sphi 0, %s53
      %s56 = sphi 0, %s55
      %s70 = sphi 0, %s56
      %s74 = sphi 0, %s74
      %s76 = sphi 0, %s74
      %s77 = sphi 0, %s76
      %s91 = sphi 0, %s77
      %s95 = sphi 0, %s95
      %s97 = sphi 0, %s95
      %s98 = sphi 0, %s97
      %s112 = sphi 0, %s98
      %s116 = sphi 0, %s116
      %s118 = sphi 0, %s116
      %s119 = sphi 0, %s118
      %s133 = sphi 0, %s119
      %s139 = sphi 0, %s141
      %s142 = sphi 0, %s139
      %s143 = sphi 0, %s142
      %s159 = sphi 0, %s143
      %s165 = sphi 0, %s167
      %s168 = sphi 0, %s165
      %s169 = sphi 0, %s168
      %s185 = sphi 0, %s169
    $region4: #{tpu_custom_call.1} parent=1 // loop_header_branch
      %22 = sbr.rel (%p20) target = $region8
    $region5: #{tpu_custom_call.1} parent=1 // loop_body
      %s24 = ssub.s32 %s19, 1
      %s25 = ssub.s32 %s19, 2
      %s26 = sadd.s32 %s19, 1
      %s27 = ssub.s32 %s19, %s26
      %p28 = scmp.eq.s32.totalorder %s27, 0
      %s30 = sadd.s32 %s29, 1
      %s31 = scalar_select %p28, %s29, %s30
      %p34 = pneg %p28
      %p35 = scmp.eq.s32.totalorder %s19, 1
      %p36 = por %p34, %p35
      %p37 = scmp.ne.s32.totalorder %s29, %s32
      %p38 = scmp.eq.s32.totalorder %s19, 0
      %p39 = por %p37, %p38
      %p40 = scmp.ne.s32.totalorder %s29, %s32
      %p41 = scmp.eq.s32.totalorder %s24, 1
      %p42 = por %p40, %p41
      %p43 = scmp.ne.s32.totalorder %s32, %s33
      %p44 = scmp.eq.s32.totalorder %s24, 0
      %p45 = por %p43, %p44
      %p46 = scmp.ne.s32.totalorder %s32, %s33
      %p47 = scmp.eq.s32.totalorder %s25, 1
      %p48 = por %p46, %p47
      %p50 = scmp.ne.s32.totalorder %s33, %s49
      %p51 = scmp.eq.s32.totalorder %s25, 0
      %p52 = por %p50, %p51
      %s54 = sadd.s32 %s53, 1
      %p57 = scmp.eq.s32.totalorder %s19, 1
      %p58 = scmp.ne.s32.totalorder %s53, %s55
      %p59 = scmp.eq.s32.totalorder %s19, 0
      %p60 = por %p58, %p59
      %p61 = scmp.ne.s32.totalorder %s53, %s55
      %p62 = scmp.eq.s32.totalorder %s24, 1
      %p63 = por %p61, %p62
      %p64 = scmp.ne.s32.totalorder %s55, %s56
      %p65 = scmp.eq.s32.totalorder %s24, 0
      %p66 = por %p64, %p65
      %p67 = scmp.ne.s32.totalorder %s55, %s56
      %p68 = scmp.eq.s32.totalorder %s25, 1
      %p69 = por %p67, %p68
      %p71 = scmp.ne.s32.totalorder %s56, %s70
      %p72 = scmp.eq.s32.totalorder %s25, 0
      %p73 = por %p71, %p72
      %s75 = sadd.s32 %s74, 1
      %p78 = scmp.eq.s32.totalorder %s19, 1
      %p79 = scmp.ne.s32.totalorder %s74, %s76
      %p80 = scmp.eq.s32.totalorder %s19, 0
      %p81 = por %p79, %p80
      %p82 = scmp.ne.s32.totalorder %s74, %s76
      %p83 = scmp.eq.s32.totalorder %s24, 1
      %p84 = por %p82, %p83
      %p85 = scmp.ne.s32.totalorder %s76, %s77
      %p86 = scmp.eq.s32.totalorder %s24, 0
      %p87 = por %p85, %p86
      %p88 = scmp.ne.s32.totalorder %s76, %s77
      %p89 = scmp.eq.s32.totalorder %s25, 1
      %p90 = por %p88, %p89
      %p92 = scmp.ne.s32.totalorder %s77, %s91
      %p93 = scmp.eq.s32.totalorder %s25, 0
      %p94 = por %p92, %p93
      %s96 = sadd.s32 %s95, 1
      %p99 = scmp.eq.s32.totalorder %s19, 1
      %p100 = scmp.ne.s32.totalorder %s95, %s97
      %p101 = scmp.eq.s32.totalorder %s19, 0
      %p102 = por %p100, %p101
      %p103 = scmp.ne.s32.totalorder %s95, %s97
      %p104 = scmp.eq.s32.totalorder %s24, 1
      %p105 = por %p103, %p104
      %p106 = scmp.ne.s32.totalorder %s97, %s98
      %p107 = scmp.eq.s32.totalorder %s24, 0
      %p108 = por %p106, %p107
      %p109 = scmp.ne.s32.totalorder %s97, %s98
      %p110 = scmp.eq.s32.totalorder %s25, 1
      %p111 = por %p109, %p110
      %p113 = scmp.ne.s32.totalorder %s98, %s112
      %p114 = scmp.eq.s32.totalorder %s25, 0
      %p115 = por %p113, %p114
      %s117 = sadd.s32 %s116, 1
      %p120 = scmp.eq.s32.totalorder %s19, 1
      %p121 = scmp.ne.s32.totalorder %s116, %s118
      %p122 = scmp.eq.s32.totalorder %s19, 0
      %p123 = por %p121, %p122
      %p124 = scmp.ne.s32.totalorder %s116, %s118
      %p125 = scmp.eq.s32.totalorder %s24, 1
      %p126 = por %p124, %p125
      %p127 = scmp.ne.s32.totalorder %s118, %s119
      %p128 = scmp.eq.s32.totalorder %s24, 0
      %p129 = por %p127, %p128
      %p130 = scmp.ne.s32.totalorder %s118, %s119
      %p131 = scmp.eq.s32.totalorder %s25, 1
      %p132 = por %p130, %p131
      %p134 = scmp.ne.s32.totalorder %s119, %s133
      %p135 = scmp.eq.s32.totalorder %s25, 0
      %p136 = por %p134, %p135
      %s137 = ssub.s32 %s19, %s26
      %p138 = scmp.eq.s32.totalorder %s137, 0
      %s140 = sadd.s32 %s139, 1
      %s141 = scalar_select %p138, %s139, %s140
      %p144 = pneg %p138
      %p145 = scmp.eq.s32.totalorder %s19, 1
      %p146 = por %p144, %p145
      %p147 = scmp.ne.s32.totalorder %s139, %s142
      %p148 = scmp.eq.s32.totalorder %s19, 0
      %p149 = por %p147, %p148
      %p150 = scmp.ne.s32.totalorder %s139, %s142
      %p151 = scmp.eq.s32.totalorder %s24, 1
      %p152 = por %p150, %p151
      %p153 = scmp.ne.s32.totalorder %s142, %s143
      %p154 = scmp.eq.s32.totalorder %s24, 0
      %p155 = por %p153, %p154
      %p156 = scmp.ne.s32.totalorder %s142, %s143
      %p157 = scmp.eq.s32.totalorder %s25, 1
      %p158 = por %p156, %p157
      %p160 = scmp.ne.s32.totalorder %s143, %s159
      %p161 = scmp.eq.s32.totalorder %s25, 0
      %p162 = por %p160, %p161
      %s163 = ssub.s32 %s19, %s26
      %p164 = scmp.eq.s32.totalorder %s163, 0
      %s166 = sadd.s32 %s165, 1
      %s167 = scalar_select %p164, %s165, %s166
      %p170 = pneg %p164
      %p171 = scmp.eq.s32.totalorder %s19, 1
      %p172 = por %p170, %p171
      %p173 = scmp.ne.s32.totalorder %s165, %s168
      %p174 = scmp.eq.s32.totalorder %s19, 0
      %p175 = por %p173, %p174
      %p176 = scmp.ne.s32.totalorder %s165, %s168
      %p177 = scmp.eq.s32.totalorder %s24, 1
      %p178 = por %p176, %p177
      %p179 = scmp.ne.s32.totalorder %s168, %s169
      %p180 = scmp.eq.s32.totalorder %s24, 0
      %p181 = por %p179, %p180
      %p182 = scmp.ne.s32.totalorder %s168, %s169
      %p183 = scmp.eq.s32.totalorder %s25, 1
      %p184 = por %p182, %p183
      %p186 = scmp.ne.s32.totalorder %s169, %s185
      %p187 = scmp.eq.s32.totalorder %s25, 0
      %p188 = por %p186, %p187
      %p189 = scmp.le.s32.totalorder 1, %s19
      %p190 = scmp.lt.s32.totalorder %s19, 3
      %p191 = pnand %p189, %p190
      %p192 = pneg %p191
      // Predicated region
      $region9: #{tpu_custom_call.1} parent=5 // pred_check
        _
      $region10: #{tpu_custom_call.1} parent=5 // pred_check_branch
        %194 = sbr.rel (%p191) target = $region12
      $region11: #{tpu_custom_call.1} parent=5 // pred_region
        %s195 = ssub.s32 %s19, 1
        // Predicated region
        $region13: #{tpu_custom_call.1} parent=11 // pred_check
          %p196 = pneg %p66
        $region14: #{tpu_custom_call.1} parent=11 // pred_check_branch
          %198 = sbr.rel (%p196) target = $region16
        $region15: #{tpu_custom_call.1} parent=11 // pred_region
          %200 = vsyncadd [#allocation5], 0
          %s201 = sshll.u32 %s1, 4
          %s202 = int_to_ptr.hbm [resolvable:$true] %s201
          %s203 = sshll.u32 [#allocation4], 4
          %s204 = int_to_ptr.vmem [resolvable:$true] %s203
          %209 = dma.hbm_to_vmem [thread:$0]  %s202, 512, %s204, [#allocation5], 128, 128, 8
        $region16: #{tpu_custom_call.1} parent=11 // pred_fallthru
          _
        // Predicated region
        $region17: #{tpu_custom_call.1} parent=11 // pred_check
          %p210 = pneg %p87
        $region18: #{tpu_custom_call.1} parent=11 // pred_check_branch
          %212 = sbr.rel (%p210) target = $region20
        $region19: #{tpu_custom_call.1} parent=11 // pred_region
          %214 = vsyncadd [#allocation8], 0
          %s216 = sshll.u32 %s2, 4
          %s217 = int_to_ptr.hbm [resolvable:$true] %s216
          %s218 = sshll.u32 [#allocation7], 4
          %s219 = int_to_ptr.vmem [resolvable:$true] %s218
          %221 = dma.hbm_to_vmem [thread:$0]  %s217, 16, %s219, [#allocation8]
        $region20: #{tpu_custom_call.1} parent=11 // pred_fallthru
          _
        // Predicated region
        $region21: #{tpu_custom_call.1} parent=11 // pred_check
          %p222 = pneg %p108
        $region22: #{tpu_custom_call.1} parent=11 // pred_check_branch
          %224 = sbr.rel (%p222) target = $region24
        $region23: #{tpu_custom_call.1} parent=11 // pred_region
          %226 = vsyncadd [#allocation8], 0
          %s228 = sshll.u32 %s3, 4
          %s229 = int_to_ptr.hbm [resolvable:$true] %s228
          %s230 = sshll.u32 [#allocation9], 4
          %s231 = int_to_ptr.vmem [resolvable:$true] %s230
          %233 = dma.hbm_to_vmem [thread:$0]  %s229, 16, %s231, [#allocation8]
        $region24: #{tpu_custom_call.1} parent=11 // pred_fallthru
          _
        // Predicated region
        $region25: #{tpu_custom_call.1} parent=11 // pred_check
          %p234 = pneg %p129
        $region26: #{tpu_custom_call.1} parent=11 // pred_check_branch
          %236 = sbr.rel (%p234) target = $region28
        $region27: #{tpu_custom_call.1} parent=11 // pred_region
          %238 = vsyncadd [#allocation11], 0
          %s239 = sshll.u32 %s4, 4
          %s240 = int_to_ptr.hbm [resolvable:$true] %s239
          %s241 = sshll.u32 [#allocation10], 4
          %s242 = int_to_ptr.vmem [resolvable:$true] %s241
          %247 = dma.hbm_to_vmem [thread:$0]  %s240, 73728, %s242, [#allocation11], 128, 128, 8
        $region28: #{tpu_custom_call.1} parent=11 // pred_fallthru
          _
      $region12: #{tpu_custom_call.1} parent=5 // pred_fallthru
        _
      %p248 = scmp.lt.s32.totalorder %s19, 2
      // Predicated region
      $region29: #{tpu_custom_call.1} parent=5 // pred_check
        %p249 = pneg %p248
      $region30: #{tpu_custom_call.1} parent=5 // pred_check_branch
        %251 = sbr.rel (%p249) target = $region32
      $region31: #{tpu_custom_call.1} parent=5 // pred_region
        // Predicated region
        $region33: #{tpu_custom_call.1} parent=31 // pred_check
          %p252 = pneg %p39
        $region34: #{tpu_custom_call.1} parent=31 // pred_check_branch
          %254 = sbr.rel (%p252) target = $region36
        $region35: #{tpu_custom_call.1} parent=31 // pred_region
          %p255 = scmp.lt.s32.totalorder %s19, 1
          %s256 = scalar_select %p255, %s19, 1
          %s257 = smul.addr %s256, 32
          %s258 = smul.addr %s257, 8
          %s259 = scalar_lea.vmem %s0, %s258
        $region36: #{tpu_custom_call.1} parent=31 // pred_fallthru
          _
      $region32: #{tpu_custom_call.1} parent=5 // pred_fallthru
        _
      %p260 = scmp.le.s32.totalorder 1, %s19
      %p261 = scmp.lt.s32.totalorder %s19, 3
      %p262 = pnand %p260, %p261
      %p263 = pneg %p262
      // Predicated region
      $region37: #{tpu_custom_call.1} parent=5 // pred_check
        _
      $region38: #{tpu_custom_call.1} parent=5 // pred_check_branch
        %265 = sbr.rel (%p262) target = $region40
      $region39: #{tpu_custom_call.1} parent=5 // pred_region
        %s266 = ssub.s32 %s19, 1
        // Predicated region
        $region41: #{tpu_custom_call.1} parent=39 // pred_check
          %p267 = pneg %p66
        $region42: #{tpu_custom_call.1} parent=39 // pred_check_branch
          %269 = sbr.rel (%p267) target = $region44
        $region43: #{tpu_custom_call.1} parent=39 // pred_region
          %271 = dma.done [#allocation5], 512
        $region44: #{tpu_custom_call.1} parent=39 // pred_fallthru
          _
        // Predicated region
        $region45: #{tpu_custom_call.1} parent=39 // pred_check
          %p272 = pneg %p87
        $region46: #{tpu_custom_call.1} parent=39 // pred_check_branch
          %274 = sbr.rel (%p272) target = $region48
        $region47: #{tpu_custom_call.1} parent=39 // pred_region
          %276 = dma.done [#allocation8], 16
        $region48: #{tpu_custom_call.1} parent=39 // pred_fallthru
          _
        // Predicated region
        $region49: #{tpu_custom_call.1} parent=39 // pred_check
          %p277 = pneg %p108
        $region50: #{tpu_custom_call.1} parent=39 // pred_check_branch
          %279 = sbr.rel (%p277) target = $region52
        $region51: #{tpu_custom_call.1} parent=39 // pred_region
          %281 = dma.done [#allocation8], 16
        $region52: #{tpu_custom_call.1} parent=39 // pred_fallthru
          _
        // Predicated region
        $region53: #{tpu_custom_call.1} parent=39 // pred_check
          %p282 = pneg %p129
        $region54: #{tpu_custom_call.1} parent=39 // pred_check_branch
          %284 = sbr.rel (%p282) target = $region56
        $region55: #{tpu_custom_call.1} parent=39 // pred_region
          %286 = dma.done [#allocation11], 73728
        $region56: #{tpu_custom_call.1} parent=39 // pred_fallthru
          _
        %p287 = scmp.lt.s32.totalorder %s24, 1
        %s288 = scalar_select %p287, %s24, 1
        %s289 = smul.addr %s288, 32
        %s290 = smul.addr %s289, 8
        %s291 = scalar_lea.vmem %s0, %s290
        %p292 = pneg %p45
        %p293 = pneg %p42
        %p294 = pneg %p66
        %p295 = pneg %p63
        %p296 = pneg %p87
        %p297 = pneg %p84
        %p298 = pneg %p108
        %p299 = pneg %p105
        %p300 = pneg %p129
        %p301 = pneg %p126
        %p302 = pneg %p155
        %p303 = pneg %p152
        %p304 = scmp.lt.s32.totalorder %s24, 1
        %s305 = scalar_select %p304, %s24, 1
        %s306 = smul.addr %s305, 3
        %s307 = smul.addr %s306, 4
        %s308 = scalar_lea.vmem %s5, %s307
        %p309 = pneg %p181
        %p310 = pneg %p178
        %s311 = sand.u32 %s168, 1
        %s312 = scalar_lea.sflag [#allocation6], %s311
        %s313 = sand.u32 %s168, 1
        %s314 = scalar_lea.vmem [#allocation12], %s313
        %p315 = scmp.lt.s32.totalorder %s24, 1
        %s316 = scalar_select %p315, %s24, 1
        %s317 = smul.addr %s316, 32
        %s318 = smul.addr %s317, 8
        %s319 = scalar_lea.vmem %s0, %s318
        %p320 = scmp.lt.s32.totalorder %s24, 1
        %s321 = scalar_select %p320, %s24, 1
        %s322 = smul.addr %s321, 3
        %s323 = smul.addr %s322, 4
        %s324 = scalar_lea.vmem %s5, %s323
        %v325 = vld [vmem:[%s319] sm:$0xff]
        %v326 = vld [vmem:[%s319 + $0x8] sm:$0xff]
        %v327 = vld [vmem:[%s319 + $0x10] sm:$0xff]
        %v328 = vld [vmem:[%s319 + $0x18] sm:$0xff]
        %v329 = vld [vmem:[%s319 + $0x20] sm:$0xff]
        %v330 = vld [vmem:[%s319 + $0x28] sm:$0xff]
        %v331 = vld [vmem:[%s319 + $0x30] sm:$0xff]
        %v332 = vld [vmem:[%s319 + $0x38] sm:$0xff]
        %v333 = vld [vmem:[%s319 + $0x40] sm:$0xff]
        %v334 = vld [vmem:[%s319 + $0x48] sm:$0xff]
        %v335 = vld [vmem:[%s319 + $0x50] sm:$0xff]
        %v336 = vld [vmem:[%s319 + $0x58] sm:$0xff]
        %v337 = vld [vmem:[%s319 + $0x60] sm:$0xff]
        %v338 = vld [vmem:[%s319 + $0x68] sm:$0xff]
        %v339 = vld [vmem:[%s319 + $0x70] sm:$0xff]
        %v340 = vld [vmem:[%s319 + $0x78] sm:$0xff]
        %v341 = vld [vmem:[%s319 + $0x80] sm:$0xff]
        %v342 = vld [vmem:[%s319 + $0x88] sm:$0xff]
        %v343 = vld [vmem:[%s319 + $0x90] sm:$0xff]
        %v344 = vld [vmem:[%s319 + $0x98] sm:$0xff]
        %v345 = vld [vmem:[%s319 + $0xa0] sm:$0xff]
        %v346 = vld [vmem:[%s319 + $0xa8] sm:$0xff]
        %v347 = vld [vmem:[%s319 + $0xb0] sm:$0xff]
        %v348 = vld [vmem:[%s319 + $0xb8] sm:$0xff]
        %v349 = vld [vmem:[%s319 + $0xc0] sm:$0xff]
        %v350 = vld [vmem:[%s319 + $0xc8] sm:$0xff]
        %v351 = vld [vmem:[%s319 + $0xd0] sm:$0xff]
        %v352 = vld [vmem:[%s319 + $0xd8] sm:$0xff]
        %v353 = vld [vmem:[%s319 + $0xe0] sm:$0xff]
        %v354 = vld [vmem:[%s319 + $0xe8] sm:$0xff]
        %v355 = vld [vmem:[%s319 + $0xf0] sm:$0xff]
        %v356 = vld [vmem:[%s319 + $0xf8] sm:$0xff]
        %v357 = vld [vmem:[#allocation4] sm:$0xff]
        %v358 = vld [vmem:[#allocation4 + $0x8] sm:$0xff]
        %v359 = vld [vmem:[#allocation4 + $0x10] sm:$0xff]
        %v360 = vld [vmem:[#allocation4 + $0x18] sm:$0xff]
        %vm361 = vcmask 261120
        %v363 = vsel %vm361, %v325, 0
        %v366 = vsel %vm361, %v326, 0
        %v369 = vsel %vm361, %v327, 0
        %v372 = vsel %vm361, %v328, 0
        %v375 = vsel %vm361, %v329, 0
        %v378 = vsel %vm361, %v330, 0
        %v381 = vsel %vm361, %v331, 0
        %v384 = vsel %vm361, %v332, 0
        %v387 = vsel %vm361, %v333, 0
        %v390 = vsel %vm361, %v334, 0
        %v393 = vsel %vm361, %v335, 0
        %v396 = vsel %vm361, %v336, 0
        %v399 = vsel %vm361, %v337, 0
        %v402 = vsel %vm361, %v338, 0
        %v405 = vsel %vm361, %v339, 0
        %v408 = vsel %vm361, %v340, 0
        %v411 = vsel %vm361, %v341, 0
        %v414 = vsel %vm361, %v342, 0
        %v417 = vsel %vm361, %v343, 0
        %v420 = vsel %vm361, %v344, 0
        %v423 = vsel %vm361, %v345, 0
        %v426 = vsel %vm361, %v346, 0
        %v429 = vsel %vm361, %v347, 0
        %v432 = vsel %vm361, %v348, 0
        %v435 = vsel %vm361, %v349, 0
        %v438 = vsel %vm361, %v350, 0
        %v441 = vsel %vm361, %v351, 0
        %v444 = vsel %vm361, %v352, 0
        %v447 = vsel %vm361, %v353, 0
        %v450 = vsel %vm361, %v354, 0
        %v453 = vsel %vm361, %v355, 0
        %v456 = vsel %vm361, %v356, 0
        %458 = vmatpush.msra.mxu0 0.0
        %459 = vmatpush.msra.mxu0 0.0
        %460 = vmatpush.msra.mxu0 0.0
        %461 = vmatpush.msra.mxu0 0.0
        %462 = vmatpush.msra.mxu0 0.0
        %463 = vmatpush.msra.mxu0 0.0
        %464 = vmatpush.msra.mxu0 0.0
        %465 = vmatpush.msra.mxu0 0.0
        %466 = vmatpush.msra.mxu0 0.0
        %467 = vmatpush.msra.mxu0 0.0
        %468 = vmatpush.msra.mxu0 0.0
        %469 = vmatpush.msra.mxu0 0.0
        %470 = vmatpush.msra.mxu0 %v360
        %471 = vmatpush.msra.mxu0 %v359
        %472 = vmatpush.msra.mxu0 %v358
        %473 = vmatpush.msra.mxu0 %v357
        %474 = vmatmul.f32.gmra.mxu0 %v363
        %v475 = vpop.f32.mrf.mxu0
        %v476 = vadd.f32 0.0, %v475
        %477 = vmatmul.f32.gmra.mxu0 %v366
        %v478 = vpop.f32.mrf.mxu0
        %v479 = vadd.f32 0.0, %v478
        %480 = vmatmul.f32.gmra.mxu0 %v369
        %v481 = vpop.f32.mrf.mxu0
        %v482 = vadd.f32 0.0, %v481
        %483 = vmatmul.f32.gmra.mxu0 %v372
        %v484 = vpop.f32.mrf.mxu0
        %v485 = vadd.f32 0.0, %v484
        %486 = vmatmul.f32.gmra.mxu0 %v375
        %v487 = vpop.f32.mrf.mxu0
        %v488 = vadd.f32 0.0, %v487
        %489 = vmatmul.f32.gmra.mxu0 %v378
        %v490 = vpop.f32.mrf.mxu0
        %v491 = vadd.f32 0.0, %v490
        %492 = vmatmul.f32.gmra.mxu0 %v381
        %v493 = vpop.f32.mrf.mxu0
        %v494 = vadd.f32 0.0, %v493
        %495 = vmatmul.f32.gmra.mxu0 %v384
        %v496 = vpop.f32.mrf.mxu0
        %v497 = vadd.f32 0.0, %v496
        %498 = vmatmul.f32.gmra.mxu0 %v387
        %v499 = vpop.f32.mrf.mxu0
        %v500 = vadd.f32 0.0, %v499
        %501 = vmatmul.f32.gmra.mxu0 %v390
        %v502 = vpop.f32.mrf.mxu0
        %v503 = vadd.f32 0.0, %v502
        %504 = vmatmul.f32.gmra.mxu0 %v393
        %v505 = vpop.f32.mrf.mxu0
        %v506 = vadd.f32 0.0, %v505
        %507 = vmatmul.f32.gmra.mxu0 %v396
        %v508 = vpop.f32.mrf.mxu0
        %v509 = vadd.f32 0.0, %v508
        %510 = vmatmul.f32.gmra.mxu0 %v399
        %v511 = vpop.f32.mrf.mxu0
        %v512 = vadd.f32 0.0, %v511
        %513 = vmatmul.f32.gmra.mxu0 %v402
        %v514 = vpop.f32.mrf.mxu0
        %v515 = vadd.f32 0.0, %v514
        %516 = vmatmul.f32.gmra.mxu0 %v405
        %v517 = vpop.f32.mrf.mxu0
        %v518 = vadd.f32 0.0, %v517
        %519 = vmatmul.f32.gmra.mxu0 %v408
        %v520 = vpop.f32.mrf.mxu0
        %v521 = vadd.f32 0.0, %v520
        %522 = vmatmul.f32.gmra.mxu0 %v411
        %v523 = vpop.f32.mrf.mxu0
        %v524 = vadd.f32 0.0, %v523
        %525 = vmatmul.f32.gmra.mxu0 %v414
        %v526 = vpop.f32.mrf.mxu0
        %v527 = vadd.f32 0.0, %v526
        %528 = vmatmul.f32.gmra.mxu0 %v417
        %v529 = vpop.f32.mrf.mxu0
        %v530 = vadd.f32 0.0, %v529
        %531 = vmatmul.f32.gmra.mxu0 %v420
        %v532 = vpop.f32.mrf.mxu0
        %v533 = vadd.f32 0.0, %v532
        %534 = vmatmul.f32.gmra.mxu0 %v423
        %v535 = vpop.f32.mrf.mxu0
        %v536 = vadd.f32 0.0, %v535
        %537 = vmatmul.f32.gmra.mxu0 %v426
        %v538 = vpop.f32.mrf.mxu0
        %v539 = vadd.f32 0.0, %v538
        %540 = vmatmul.f32.gmra.mxu0 %v429
        %v541 = vpop.f32.mrf.mxu0
        %v542 = vadd.f32 0.0, %v541
        %543 = vmatmul.f32.gmra.mxu0 %v432
        %v544 = vpop.f32.mrf.mxu0
        %v545 = vadd.f32 0.0, %v544
        %546 = vmatmul.f32.gmra.mxu0 %v435
        %v547 = vpop.f32.mrf.mxu0
        %v548 = vadd.f32 0.0, %v547
        %549 = vmatmul.f32.gmra.mxu0 %v438
        %v550 = vpop.f32.mrf.mxu0
        %v551 = vadd.f32 0.0, %v550
        %552 = vmatmul.f32.gmra.mxu0 %v441
        %v553 = vpop.f32.mrf.mxu0
        %v554 = vadd.f32 0.0, %v553
        %555 = vmatmul.f32.gmra.mxu0 %v444
        %v556 = vpop.f32.mrf.mxu0
        %v557 = vadd.f32 0.0, %v556
        %558 = vmatmul.f32.gmra.mxu0 %v447
        %v559 = vpop.f32.mrf.mxu0
        %v560 = vadd.f32 0.0, %v559
        %561 = vmatmul.f32.gmra.mxu0 %v450
        %v562 = vpop.f32.mrf.mxu0
        %v563 = vadd.f32 0.0, %v562
        %564 = vmatmul.f32.gmra.mxu0 %v453
        %v565 = vpop.f32.mrf.mxu0
        %v566 = vadd.f32 0.0, %v565
        %567 = vmatmul.f32.gmra.mxu0 %v456
        %v568 = vpop.f32.mrf.mxu0
        %v569 = vadd.f32 0.0, %v568
        %570 = vdwg.mxu0
        %v571 = vld [vmem:[#allocation7] sm:$0x1]
        %v573 = vperm.slane %v571, 0
        %v575 = vmul.f32 %v476, %v573
        %v576 = vmul.f32 %v479, %v573
        %v577 = vmul.f32 %v482, %v573
        %v578 = vmul.f32 %v485, %v573
        %v579 = vmul.f32 %v488, %v573
        %v580 = vmul.f32 %v491, %v573
        %v581 = vmul.f32 %v494, %v573
        %v582 = vmul.f32 %v497, %v573
        %v583 = vmul.f32 %v500, %v573
        %v584 = vmul.f32 %v503, %v573
        %v585 = vmul.f32 %v506, %v573
        %v586 = vmul.f32 %v509, %v573
        %v587 = vmul.f32 %v512, %v573
        %v588 = vmul.f32 %v515, %v573
        %v589 = vmul.f32 %v518, %v573
        %v590 = vmul.f32 %v521, %v573
        %v591 = vmul.f32 %v524, %v573
        %v592 = vmul.f32 %v527, %v573
        %v593 = vmul.f32 %v530, %v573
        %v594 = vmul.f32 %v533, %v573
        %v595 = vmul.f32 %v536, %v573
        %v596 = vmul.f32 %v539, %v573
        %v597 = vmul.f32 %v542, %v573
        %v598 = vmul.f32 %v545, %v573
        %v599 = vmul.f32 %v548, %v573
        %v600 = vmul.f32 %v551, %v573
        %v601 = vmul.f32 %v554, %v573
        %v602 = vmul.f32 %v557, %v573
        %v603 = vmul.f32 %v560, %v573
        %v604 = vmul.f32 %v563, %v573
        %v605 = vmul.f32 %v566, %v573
        %v606 = vmul.f32 %v569, %v573
        %v607 = vld [vmem:[#allocation9] sm:$0x1]
        %v609 = vperm.slane %v607, 0
        %v611 = vadd.f32 %v575, %v609
        %v612 = vadd.f32 %v576, %v609
        %v613 = vadd.f32 %v577, %v609
        %v614 = vadd.f32 %v578, %v609
        %v615 = vadd.f32 %v579, %v609
        %v616 = vadd.f32 %v580, %v609
        %v617 = vadd.f32 %v581, %v609
        %v618 = vadd.f32 %v582, %v609
        %v619 = vadd.f32 %v583, %v609
        %v620 = vadd.f32 %v584, %v609
        %v621 = vadd.f32 %v585, %v609
        %v622 = vadd.f32 %v586, %v609
        %v623 = vadd.f32 %v587, %v609
        %v624 = vadd.f32 %v588, %v609
        %v625 = vadd.f32 %v589, %v609
        %v626 = vadd.f32 %v590, %v609
        %v627 = vadd.f32 %v591, %v609
        %v628 = vadd.f32 %v592, %v609
        %v629 = vadd.f32 %v593, %v609
        %v630 = vadd.f32 %v594, %v609
        %v631 = vadd.f32 %v595, %v609
        %v632 = vadd.f32 %v596, %v609
        %v633 = vadd.f32 %v597, %v609
        %v634 = vadd.f32 %v598, %v609
        %v635 = vadd.f32 %v599, %v609
        %v636 = vadd.f32 %v600, %v609
        %v637 = vadd.f32 %v601, %v609
        %v638 = vadd.f32 %v602, %v609
        %v639 = vadd.f32 %v603, %v609
        %v640 = vadd.f32 %v604, %v609
        %v641 = vadd.f32 %v605, %v609
        %v642 = vadd.f32 %v606, %v609
        %v643 = vmax.f32 %v611, 0.0
        %v644 = vmax.f32 %v612, 0.0
        %v645 = vmax.f32 %v613, 0.0
        %v646 = vmax.f32 %v614, 0.0
        %v647 = vmax.f32 %v615, 0.0
        %v648 = vmax.f32 %v616, 0.0
        %v649 = vmax.f32 %v617, 0.0
        %v650 = vmax.f32 %v618, 0.0
        %v651 = vmax.f32 %v619, 0.0
        %v652 = vmax.f32 %v620, 0.0
        %v653 = vmax.f32 %v621, 0.0
        %v654 = vmax.f32 %v622, 0.0
        %v655 = vmax.f32 %v623, 0.0
        %v656 = vmax.f32 %v624, 0.0
        %v657 = vmax.f32 %v625, 0.0
        %v658 = vmax.f32 %v626, 0.0
        %v659 = vmax.f32 %v627, 0.0
        %v660 = vmax.f32 %v628, 0.0
        %v661 = vmax.f32 %v629, 0.0
        %v662 = vmax.f32 %v630, 0.0
        %v663 = vmax.f32 %v631, 0.0
        %v664 = vmax.f32 %v632, 0.0
        %v665 = vmax.f32 %v633, 0.0
        %v666 = vmax.f32 %v634, 0.0
        %v667 = vmax.f32 %v635, 0.0
        %v668 = vmax.f32 %v636, 0.0
        %v669 = vmax.f32 %v637, 0.0
        %v670 = vmax.f32 %v638, 0.0
        %v671 = vmax.f32 %v639, 0.0
        %v672 = vmax.f32 %v640, 0.0
        %v673 = vmax.f32 %v641, 0.0
        %v674 = vmax.f32 %v642, 0.0
        %675 = vst [vmem:[#allocation2] sm:$0xff] %v643
        %676 = vst [vmem:[#allocation2 + $0x8] sm:$0xff] %v644
        %s677 = scalar_lea.vmem [#allocation2], 16
        %678 = vst [vmem:[%s677] sm:$0xff] %v645
        %679 = vst [vmem:[%s677 + $0x8] sm:$0xff] %v646
        %s680 = scalar_lea.vmem [#allocation2], 32
        %681 = vst [vmem:[%s680] sm:$0xff] %v647
        %682 = vst [vmem:[%s680 + $0x8] sm:$0xff] %v648
        %s683 = scalar_lea.vmem [#allocation2], 48
        %684 = vst [vmem:[%s683] sm:$0xff] %v649
        %685 = vst [vmem:[%s683 + $0x8] sm:$0xff] %v650
        %s686 = scalar_lea.vmem [#allocation2], 64
        %687 = vst [vmem:[%s686] sm:$0xff] %v651
        %688 = vst [vmem:[%s686 + $0x8] sm:$0xff] %v652
        %s689 = scalar_lea.vmem [#allocation2], 80
        %690 = vst [vmem:[%s689] sm:$0xff] %v653
        %691 = vst [vmem:[%s689 + $0x8] sm:$0xff] %v654
        %s692 = scalar_lea.vmem [#allocation2], 96
        %693 = vst [vmem:[%s692] sm:$0xff] %v655
        %694 = vst [vmem:[%s692 + $0x8] sm:$0xff] %v656
        %s695 = scalar_lea.vmem [#allocation2], 112
        %696 = vst [vmem:[%s695] sm:$0xff] %v657
        %697 = vst [vmem:[%s695 + $0x8] sm:$0xff] %v658
        %s698 = scalar_lea.vmem [#allocation2], 128
        %699 = vst [vmem:[%s698] sm:$0xff] %v659
        %700 = vst [vmem:[%s698 + $0x8] sm:$0xff] %v660
        %s701 = scalar_lea.vmem [#allocation2], 144
        %702 = vst [vmem:[%s701] sm:$0xff] %v661
        %703 = vst [vmem:[%s701 + $0x8] sm:$0xff] %v662
        %s704 = scalar_lea.vmem [#allocation2], 160
        %705 = vst [vmem:[%s704] sm:$0xff] %v663
        %706 = vst [vmem:[%s704 + $0x8] sm:$0xff] %v664
        %s707 = scalar_lea.vmem [#allocation2], 176
        %708 = vst [vmem:[%s707] sm:$0xff] %v665
        %709 = vst [vmem:[%s707 + $0x8] sm:$0xff] %v666
        %s710 = scalar_lea.vmem [#allocation2], 192
        %711 = vst [vmem:[%s710] sm:$0xff] %v667
        %712 = vst [vmem:[%s710 + $0x8] sm:$0xff] %v668
        %s713 = scalar_lea.vmem [#allocation2], 208
        %714 = vst [vmem:[%s713] sm:$0xff] %v669
        %715 = vst [vmem:[%s713 + $0x8] sm:$0xff] %v670
        %s716 = scalar_lea.vmem [#allocation2], 224
        %717 = vst [vmem:[%s716] sm:$0xff] %v671
        %718 = vst [vmem:[%s716 + $0x8] sm:$0xff] %v672
        %s719 = scalar_lea.vmem [#allocation2], 240
        %720 = vst [vmem:[%s719] sm:$0xff] %v673
        %721 = vst [vmem:[%s719 + $0x8] sm:$0xff] %v674
        %v722 = vld [vmem:[#allocation10] sm:$0xff]
        %v723 = vld [vmem:[#allocation10 + $0x8] sm:$0xff]
        %v724 = vld [vmem:[#allocation10 + $0x10] sm:$0xff]
        %v725 = vld [vmem:[#allocation10 + $0x18] sm:$0xff]
        %v726 = vld [vmem:[#allocation10 + $0x20] sm:$0xff]
        %v727 = vld [vmem:[#allocation10 + $0x28] sm:$0xff]
        %v728 = vld [vmem:[#allocation10 + $0x30] sm:$0xff]
        %v729 = vld [vmem:[#allocation10 + $0x38] sm:$0xff]
        %v730 = vld [vmem:[#allocation10 + $0x40] sm:$0xff]
        %v731 = vld [vmem:[#allocation10 + $0x48] sm:$0xff]
        %v732 = vld [vmem:[#allocation10 + $0x50] sm:$0xff]
        %v733 = vld [vmem:[#allocation10 + $0x58] sm:$0xff]
        %v734 = vld [vmem:[#allocation10 + $0x60] sm:$0xff]
        %v735 = vld [vmem:[#allocation10 + $0x68] sm:$0xff]
        %v736 = vld [vmem:[#allocation10 + $0x70] sm:$0xff]
        %v737 = vld [vmem:[#allocation10 + $0x78] sm:$0xff]
        %v738 = vld [vmem:[#allocation10 + $0x80] sm:$0xff]
        %v739 = vld [vmem:[#allocation10 + $0x88] sm:$0xff]
        %v740 = vld [vmem:[#allocation10 + $0x90] sm:$0xff]
        %v741 = vld [vmem:[#allocation10 + $0x98] sm:$0xff]
        %v742 = vld [vmem:[#allocation10 + $0xa0] sm:$0xff]
        %v743 = vld [vmem:[#allocation10 + $0xa8] sm:$0xff]
        %v744 = vld [vmem:[#allocation10 + $0xb0] sm:$0xff]
        %v745 = vld [vmem:[#allocation10 + $0xb8] sm:$0xff]
        %v746 = vld [vmem:[#allocation10 + $0xc0] sm:$0xff]
        %v747 = vld [vmem:[#allocation10 + $0xc8] sm:$0xff]
        %v748 = vld [vmem:[#allocation10 + $0xd0] sm:$0xff]
        %v749 = vld [vmem:[#allocation10 + $0xd8] sm:$0xff]
        %v750 = vld [vmem:[#allocation10 + $0xe0] sm:$0xff]
        %v751 = vld [vmem:[#allocation10 + $0xe8] sm:$0xff]
        %v752 = vld [vmem:[#allocation10 + $0xf0] sm:$0xff]
        %v753 = vld [vmem:[#allocation10 + $0xf8] sm:$0xff]
        %v754 = vld [vmem:[#allocation10 + $0x100] sm:$0xff]
        %v755 = vld [vmem:[#allocation10 + $0x108] sm:$0xff]
        %v756 = vld [vmem:[#allocation10 + $0x110] sm:$0xff]
        %v757 = vld [vmem:[#allocation10 + $0x118] sm:$0xff]
        %v758 = vld [vmem:[#allocation10 + $0x120] sm:$0xff]
        %v759 = vld [vmem:[#allocation10 + $0x128] sm:$0xff]
        %v760 = vld [vmem:[#allocation10 + $0x130] sm:$0xff]
        %v761 = vld [vmem:[#allocation10 + $0x138] sm:$0xff]
        %v762 = vld [vmem:[#allocation10 + $0x140] sm:$0xff]
        %v763 = vld [vmem:[#allocation10 + $0x148] sm:$0xff]
        %v764 = vld [vmem:[#allocation10 + $0x150] sm:$0xff]
        %v765 = vld [vmem:[#allocation10 + $0x158] sm:$0xff]
        %v766 = vld [vmem:[#allocation10 + $0x160] sm:$0xff]
        %v767 = vld [vmem:[#allocation10 + $0x168] sm:$0xff]
        %v768 = vld [vmem:[#allocation10 + $0x170] sm:$0xff]
        %v769 = vld [vmem:[#allocation10 + $0x178] sm:$0xff]
        %v770 = vld [vmem:[#allocation10 + $0x180] sm:$0xff]
        %v771 = vld [vmem:[#allocation10 + $0x188] sm:$0xff]
        %v772 = vld [vmem:[#allocation10 + $0x190] sm:$0xff]
        %v773 = vld [vmem:[#allocation10 + $0x198] sm:$0xff]
        %v774 = vld [vmem:[#allocation10 + $0x1a0] sm:$0xff]
        %v775 = vld [vmem:[#allocation10 + $0x1a8] sm:$0xff]
        %v776 = vld [vmem:[#allocation10 + $0x1b0] sm:$0xff]
        %v777 = vld [vmem:[#allocation10 + $0x1b8] sm:$0xff]
        %v778 = vld [vmem:[#allocation10 + $0x1c0] sm:$0xff]
        %v779 = vld [vmem:[#allocation10 + $0x1c8] sm:$0xff]
        %v780 = vld [vmem:[#allocation10 + $0x1d0] sm:$0xff]
        %v781 = vld [vmem:[#allocation10 + $0x1d8] sm:$0xff]
        %v782 = vld [vmem:[#allocation10 + $0x1e0] sm:$0xff]
        %v783 = vld [vmem:[#allocation10 + $0x1e8] sm:$0xff]
        %v784 = vld [vmem:[#allocation10 + $0x1f0] sm:$0xff]
        %v785 = vld [vmem:[#allocation10 + $0x1f8] sm:$0xff]
        %v786 = vld [vmem:[#allocation10 + $0x200] sm:$0xff]
        %v787 = vld [vmem:[#allocation10 + $0x208] sm:$0xff]
        %v788 = vld [vmem:[#allocation10 + $0x210] sm:$0xff]
        %v789 = vld [vmem:[#allocation10 + $0x218] sm:$0xff]
        %v790 = vld [vmem:[#allocation10 + $0x220] sm:$0xff]
        %v791 = vld [vmem:[#allocation10 + $0x228] sm:$0xff]
        %v792 = vld [vmem:[#allocation10 + $0x230] sm:$0xff]
        %v793 = vld [vmem:[#allocation10 + $0x238] sm:$0xff]
        %v794 = vld [vmem:[#allocation10 + $0x240] sm:$0xff]
        %v795 = vld [vmem:[#allocation10 + $0x248] sm:$0xff]
        %v796 = vld [vmem:[#allocation10 + $0x250] sm:$0xff]
        %v797 = vld [vmem:[#allocation10 + $0x258] sm:$0xff]
        %v798 = vld [vmem:[#allocation10 + $0x260] sm:$0xff]
        %v799 = vld [vmem:[#allocation10 + $0x268] sm:$0xff]
        %v800 = vld [vmem:[#allocation10 + $0x270] sm:$0xff]
        %v801 = vld [vmem:[#allocation10 + $0x278] sm:$0xff]
        %v802 = vld [vmem:[#allocation10 + $0x280] sm:$0xff]
        %v803 = vld [vmem:[#allocation10 + $0x288] sm:$0xff]
        %v804 = vld [vmem:[#allocation10 + $0x290] sm:$0xff]
        %v805 = vld [vmem:[#allocation10 + $0x298] sm:$0xff]
        %v806 = vld [vmem:[#allocation10 + $0x2a0] sm:$0xff]
        %v807 = vld [vmem:[#allocation10 + $0x2a8] sm:$0xff]
        %v808 = vld [vmem:[#allocation10 + $0x2b0] sm:$0xff]
        %v809 = vld [vmem:[#allocation10 + $0x2b8] sm:$0xff]
        %v810 = vld [vmem:[#allocation10 + $0x2c0] sm:$0xff]
        %v811 = vld [vmem:[#allocation10 + $0x2c8] sm:$0xff]
        %v812 = vld [vmem:[#allocation10 + $0x2d0] sm:$0xff]
        %v813 = vld [vmem:[#allocation10 + $0x2d8] sm:$0xff]
        %v814 = vld [vmem:[#allocation10 + $0x2e0] sm:$0xff]
        %v815 = vld [vmem:[#allocation10 + $0x2e8] sm:$0xff]
        %v816 = vld [vmem:[#allocation10 + $0x2f0] sm:$0xff]
        %v817 = vld [vmem:[#allocation10 + $0x2f8] sm:$0xff]
        %v818 = vld [vmem:[#allocation10 + $0x300] sm:$0xff]
        %v819 = vld [vmem:[#allocation10 + $0x308] sm:$0xff]
        %v820 = vld [vmem:[#allocation10 + $0x310] sm:$0xff]
        %v821 = vld [vmem:[#allocation10 + $0x318] sm:$0xff]
        %v822 = vld [vmem:[#allocation10 + $0x320] sm:$0xff]
        %v823 = vld [vmem:[#allocation10 + $0x328] sm:$0xff]
        %v824 = vld [vmem:[#allocation10 + $0x330] sm:$0xff]
        %v825 = vld [vmem:[#allocation10 + $0x338] sm:$0xff]
        %v826 = vld [vmem:[#allocation10 + $0x340] sm:$0xff]
        %v827 = vld [vmem:[#allocation10 + $0x348] sm:$0xff]
        %v828 = vld [vmem:[#allocation10 + $0x350] sm:$0xff]
        %v829 = vld [vmem:[#allocation10 + $0x358] sm:$0xff]
        %v830 = vld [vmem:[#allocation10 + $0x360] sm:$0xff]
        %v831 = vld [vmem:[#allocation10 + $0x368] sm:$0xff]
        %v832 = vld [vmem:[#allocation10 + $0x370] sm:$0xff]
        %v833 = vld [vmem:[#allocation10 + $0x378] sm:$0xff]
        %v834 = vld [vmem:[#allocation10 + $0x380] sm:$0xff]
        %v835 = vld [vmem:[#allocation10 + $0x388] sm:$0xff]
        %v836 = vld [vmem:[#allocation10 + $0x390] sm:$0xff]
        %v837 = vld [vmem:[#allocation10 + $0x398] sm:$0xff]
        %v838 = vld [vmem:[#allocation10 + $0x3a0] sm:$0xff]
        %v839 = vld [vmem:[#allocation10 + $0x3a8] sm:$0xff]
        %v840 = vld [vmem:[#allocation10 + $0x3b0] sm:$0xff]
        %v841 = vld [vmem:[#allocation10 + $0x3b8] sm:$0xff]
        %v842 = vld [vmem:[#allocation10 + $0x3c0] sm:$0xff]
        %v843 = vld [vmem:[#allocation10 + $0x3c8] sm:$0xff]
        %v844 = vld [vmem:[#allocation10 + $0x3d0] sm:$0xff]
        %v845 = vld [vmem:[#allocation10 + $0x3d8] sm:$0xff]
        %v846 = vld [vmem:[#allocation10 + $0x3e0] sm:$0xff]
        %v847 = vld [vmem:[#allocation10 + $0x3e8] sm:$0xff]
        %v848 = vld [vmem:[#allocation10 + $0x3f0] sm:$0xff]
        %v849 = vld [vmem:[#allocation10 + $0x3f8] sm:$0xff]
        %v850 = vld [vmem:[#allocation10 + $0x400] sm:$0xff]
        %v851 = vld [vmem:[#allocation10 + $0x408] sm:$0xff]
        %v852 = vld [vmem:[#allocation10 + $0x410] sm:$0xff]
        %v853 = vld [vmem:[#allocation10 + $0x418] sm:$0xff]
        %v854 = vld [vmem:[#allocation10 + $0x420] sm:$0xff]
        %v855 = vld [vmem:[#allocation10 + $0x428] sm:$0xff]
        %v856 = vld [vmem:[#allocation10 + $0x430] sm:$0xff]
        %v857 = vld [vmem:[#allocation10 + $0x438] sm:$0xff]
        %v858 = vld [vmem:[#allocation10 + $0x440] sm:$0xff]
        %v859 = vld [vmem:[#allocation10 + $0x448] sm:$0xff]
        %v860 = vld [vmem:[#allocation10 + $0x450] sm:$0xff]
        %v861 = vld [vmem:[#allocation10 + $0x458] sm:$0xff]
        %v862 = vld [vmem:[#allocation10 + $0x460] sm:$0xff]
        %v863 = vld [vmem:[#allocation10 + $0x468] sm:$0xff]
        %v864 = vld [vmem:[#allocation10 + $0x470] sm:$0xff]
        %v865 = vld [vmem:[#allocation10 + $0x478] sm:$0xff]
        %866 = vst [vmem:[#allocation3] sm:$0xff] 0.0
        %867 = vst [vmem:[#allocation3 + $0x8] sm:$0xff] 0.0
        %868 = vst [vmem:[#allocation3 + $0x10] sm:$0xff] 0.0
        %869 = vst [vmem:[#allocation3 + $0x18] sm:$0xff] 0.0
        %870 = vst [vmem:[#allocation3 + $0x20] sm:$0xff] 0.0
        %871 = vst [vmem:[#allocation3 + $0x28] sm:$0xff] 0.0
        %872 = vst [vmem:[#allocation3 + $0x30] sm:$0xff] 0.0
        %873 = vst [vmem:[#allocation3 + $0x38] sm:$0xff] 0.0
        %874 = vst [vmem:[#allocation3 + $0x40] sm:$0xff] 0.0
        %875 = vst [vmem:[#allocation3 + $0x48] sm:$0xff] 0.0
        %876 = vst [vmem:[#allocation3 + $0x50] sm:$0xff] 0.0
        %877 = vst [vmem:[#allocation3 + $0x58] sm:$0xff] 0.0
        %878 = vst [vmem:[#allocation3 + $0x60] sm:$0xff] 0.0
        %879 = vst [vmem:[#allocation3 + $0x68] sm:$0xff] 0.0
        %880 = vst [vmem:[#allocation3 + $0x70] sm:$0xff] 0.0
        %881 = vst [vmem:[#allocation3 + $0x78] sm:$0xff] 0.0
        %882 = vst [vmem:[#allocation3 + $0x80] sm:$0xff] 0.0
        %883 = vst [vmem:[#allocation3 + $0x88] sm:$0xff] 0.0
        %884 = vst [vmem:[#allocation3 + $0x90] sm:$0xff] 0.0
        %885 = vst [vmem:[#allocation3 + $0x98] sm:$0xff] 0.0
        %886 = vst [vmem:[#allocation3 + $0xa0] sm:$0xff] 0.0
        %887 = vst [vmem:[#allocation3 + $0xa8] sm:$0xff] 0.0
        %888 = vst [vmem:[#allocation3 + $0xb0] sm:$0xff] 0.0
        %889 = vst [vmem:[#allocation3 + $0xb8] sm:$0xff] 0.0
        %890 = vst [vmem:[#allocation3 + $0xc0] sm:$0xff] 0.0
        %891 = vst [vmem:[#allocation3 + $0xc8] sm:$0xff] 0.0
        %892 = vst [vmem:[#allocation3 + $0xd0] sm:$0xff] 0.0
        %893 = vst [vmem:[#allocation3 + $0xd8] sm:$0xff] 0.0
        %894 = vst [vmem:[#allocation3 + $0xe0] sm:$0xff] 0.0
        %895 = vst [vmem:[#allocation3 + $0xe8] sm:$0xff] 0.0
        %896 = vst [vmem:[#allocation3 + $0xf0] sm:$0xff] 0.0
        %897 = vst [vmem:[#allocation3 + $0xf8] sm:$0xff] 0.0
        %v898 = vld [vmem:[#allocation2] sm:$0xff]
        %v899 = vld [vmem:[#allocation2 + $0x8] sm:$0xff]
        %v900 = vld [vmem:[%s677] sm:$0xff]
        %v901 = vld [vmem:[%s677 + $0x8] sm:$0xff]
        %v902 = vld [vmem:[%s680] sm:$0xff]
        %v903 = vld [vmem:[%s680 + $0x8] sm:$0xff]
        %vm906 = vcmask 1046528
        %v907 = vrot.slane %v898, 1
        %v908 = vrot.slane %v899, 1
        %v909 = vsel %vm906, %v907, %v908
        %vm912 = vcmask 1045504
        %v913 = vrot.slane %v898, 2
        %v914 = vrot.slane %v899, 2
        %v915 = vsel %vm912, %v913, %v914
        %v920 = vrot.slane %v900, 1
        %v921 = vrot.slane %v901, 1
        %v922 = vsel %vm906, %v920, %v921
        %v925 = vrot.slane %v900, 2
        %v926 = vrot.slane %v901, 2
        %v927 = vsel %vm912, %v925, %v926
        %v932 = vrot.slane %v902, 1
        %v933 = vrot.slane %v903, 1
        %v934 = vsel %vm906, %v932, %v933
        %v937 = vrot.slane %v902, 2
        %v938 = vrot.slane %v903, 2
        %v939 = vsel %vm912, %v937, %v938
        %942 = vmatpush.msra.mxu0 %v737
        %943 = vmatpush.msra.mxu0 %v736
        %944 = vmatpush.msra.mxu0 %v735
        %945 = vmatpush.msra.mxu0 %v734
        %946 = vmatpush.msra.mxu0 %v733
        %947 = vmatpush.msra.mxu0 %v732
        %948 = vmatpush.msra.mxu0 %v731
        %949 = vmatpush.msra.mxu0 %v730
        %950 = vmatpush.msra.mxu0 %v729
        %951 = vmatpush.msra.mxu0 %v728
        %952 = vmatpush.msra.mxu0 %v727
        %953 = vmatpush.msra.mxu0 %v726
        %954 = vmatpush.msra.mxu0 %v725
        %955 = vmatpush.msra.mxu0 %v724
        %956 = vmatpush.msra.mxu0 %v723
        %957 = vmatpush.msra.mxu0 %v722
        %958 = vmatmul.f32.gmra.mxu0 %v898
        %v959 = vpop.f32.mrf.mxu0
        %v960 = vadd.f32 0.0, %v959
        %961 = vmatmul.f32.gmra.mxu0 %v899
        %v962 = vpop.f32.mrf.mxu0
        %v963 = vadd.f32 0.0, %v962
        %964 = vdwg.mxu0
        %965 = vmatpush.msra.mxu0 %v753
        %966 = vmatpush.msra.mxu0 %v752
        %967 = vmatpush.msra.mxu0 %v751
        %968 = vmatpush.msra.mxu0 %v750
        %969 = vmatpush.msra.mxu0 %v749
        %970 = vmatpush.msra.mxu0 %v748
        %971 = vmatpush.msra.mxu0 %v747
        %972 = vmatpush.msra.mxu0 %v746
        %973 = vmatpush.msra.mxu0 %v745
        %974 = vmatpush.msra.mxu0 %v744
        %975 = vmatpush.msra.mxu0 %v743
        %976 = vmatpush.msra.mxu0 %v742
        %977 = vmatpush.msra.mxu0 %v741
        %978 = vmatpush.msra.mxu0 %v740
        %979 = vmatpush.msra.mxu0 %v739
        %980 = vmatpush.msra.mxu0 %v738
        %981 = vmatmul.f32.gmra.mxu0 %v909
        %v982 = vpop.f32.mrf.mxu0
        %v983 = vadd.f32 %v960, %v982
        %984 = vmatmul.f32.gmra.mxu0 %v908
        %v985 = vpop.f32.mrf.mxu0
        %v986 = vadd.f32 %v963, %v985
        %987 = vdwg.mxu0
        %988 = vmatpush.msra.mxu0 %v769
        %989 = vmatpush.msra.mxu0 %v768
        %990 = vmatpush.msra.mxu0 %v767
        %991 = vmatpush.msra.mxu0 %v766
        %992 = vmatpush.msra.mxu0 %v765
        %993 = vmatpush.msra.mxu0 %v764
        %994 = vmatpush.msra.mxu0 %v763
        %995 = vmatpush.msra.mxu0 %v762
        %996 = vmatpush.msra.mxu0 %v761
        %997 = vmatpush.msra.mxu0 %v760
        %998 = vmatpush.msra.mxu0 %v759
        %999 = vmatpush.msra.mxu0 %v758
        %1000 = vmatpush.msra.mxu0 %v757
        %1001 = vmatpush.msra.mxu0 %v756
        %1002 = vmatpush.msra.mxu0 %v755
        %1003 = vmatpush.msra.mxu0 %v754
        %1004 = vmatmul.f32.gmra.mxu0 %v915
        %v1005 = vpop.f32.mrf.mxu0
        %v1006 = vadd.f32 %v983, %v1005
        %1007 = vmatmul.f32.gmra.mxu0 %v914
        %v1008 = vpop.f32.mrf.mxu0
        %v1009 = vadd.f32 %v986, %v1008
        %1010 = vdwg.mxu0
        %1011 = vmatpush.msra.mxu0 %v785
        %1012 = vmatpush.msra.mxu0 %v784
        %1013 = vmatpush.msra.mxu0 %v783
        %1014 = vmatpush.msra.mxu0 %v782
        %1015 = vmatpush.msra.mxu0 %v781
        %1016 = vmatpush.msra.mxu0 %v780
        %1017 = vmatpush.msra.mxu0 %v779
        %1018 = vmatpush.msra.mxu0 %v778
        %1019 = vmatpush.msra.mxu0 %v777
        %1020 = vmatpush.msra.mxu0 %v776
        %1021 = vmatpush.msra.mxu0 %v775
        %1022 = vmatpush.msra.mxu0 %v774
        %1023 = vmatpush.msra.mxu0 %v773
        %1024 = vmatpush.msra.mxu0 %v772
        %1025 = vmatpush.msra.mxu0 %v771
        %1026 = vmatpush.msra.mxu0 %v770
        %1027 = vmatmul.f32.gmra.mxu0 %v900
        %v1028 = vpop.f32.mrf.mxu0
        %v1029 = vadd.f32 %v1006, %v1028
        %1030 = vmatmul.f32.gmra.mxu0 %v901
        %v1031 = vpop.f32.mrf.mxu0
        %v1032 = vadd.f32 %v1009, %v1031
        %1033 = vdwg.mxu0
        %1034 = vmatpush.msra.mxu0 %v801
        %1035 = vmatpush.msra.mxu0 %v800
        %1036 = vmatpush.msra.mxu0 %v799
        %1037 = vmatpush.msra.mxu0 %v798
        %1038 = vmatpush.msra.mxu0 %v797
        %1039 = vmatpush.msra.mxu0 %v796
        %1040 = vmatpush.msra.mxu0 %v795
        %1041 = vmatpush.msra.mxu0 %v794
        %1042 = vmatpush.msra.mxu0 %v793
        %1043 = vmatpush.msra.mxu0 %v792
        %1044 = vmatpush.msra.mxu0 %v791
        %1045 = vmatpush.msra.mxu0 %v790
        %1046 = vmatpush.msra.mxu0 %v789
        %1047 = vmatpush.msra.mxu0 %v788
        %1048 = vmatpush.msra.mxu0 %v787
        %1049 = vmatpush.msra.mxu0 %v786
        %1050 = vmatmul.f32.gmra.mxu0 %v922
        %v1051 = vpop.f32.mrf.mxu0
        %v1052 = vadd.f32 %v1029, %v1051
        %1053 = vmatmul.f32.gmra.mxu0 %v921
        %v1054 = vpop.f32.mrf.mxu0
        %v1055 = vadd.f32 %v1032, %v1054
        %1056 = vdwg.mxu0
        %1057 = vmatpush.msra.mxu0 %v817
        %1058 = vmatpush.msra.mxu0 %v816
        %1059 = vmatpush.msra.mxu0 %v815
        %1060 = vmatpush.msra.mxu0 %v814
        %1061 = vmatpush.msra.mxu0 %v813
        %1062 = vmatpush.msra.mxu0 %v812
        %1063 = vmatpush.msra.mxu0 %v811
        %1064 = vmatpush.msra.mxu0 %v810
        %1065 = vmatpush.msra.mxu0 %v809
        %1066 = vmatpush.msra.mxu0 %v808
        %1067 = vmatpush.msra.mxu0 %v807
        %1068 = vmatpush.msra.mxu0 %v806
        %1069 = vmatpush.msra.mxu0 %v805
        %1070 = vmatpush.msra.mxu0 %v804
        %1071 = vmatpush.msra.mxu0 %v803
        %1072 = vmatpush.msra.mxu0 %v802
        %1073 = vmatmul.f32.gmra.mxu0 %v927
        %v1074 = vpop.f32.mrf.mxu0
        %v1075 = vadd.f32 %v1052, %v1074
        %1076 = vmatmul.f32.gmra.mxu0 %v926
        %v1077 = vpop.f32.mrf.mxu0
        %v1078 = vadd.f32 %v1055, %v1077
        %1079 = vdwg.mxu0
        %1080 = vmatpush.msra.mxu0 %v833
        %1081 = vmatpush.msra.mxu0 %v832
        %1082 = vmatpush.msra.mxu0 %v831
        %1083 = vmatpush.msra.mxu0 %v830
        %1084 = vmatpush.msra.mxu0 %v829
        %1085 = vmatpush.msra.mxu0 %v828
        %1086 = vmatpush.msra.mxu0 %v827
        %1087 = vmatpush.msra.mxu0 %v826
        %1088 = vmatpush.msra.mxu0 %v825
        %1089 = vmatpush.msra.mxu0 %v824
        %1090 = vmatpush.msra.mxu0 %v823
        %1091 = vmatpush.msra.mxu0 %v822
        %1092 = vmatpush.msra.mxu0 %v821
        %1093 = vmatpush.msra.mxu0 %v820
        %1094 = vmatpush.msra.mxu0 %v819
        %1095 = vmatpush.msra.mxu0 %v818
        %1096 = vmatmul.f32.gmra.mxu0 %v902
        %v1097 = vpop.f32.mrf.mxu0
        %v1098 = vadd.f32 %v1075, %v1097
        %1099 = vmatmul.f32.gmra.mxu0 %v903
        %v1100 = vpop.f32.mrf.mxu0
        %v1101 = vadd.f32 %v1078, %v1100
        %1102 = vdwg.mxu0
        %1103 = vmatpush.msra.mxu0 %v849
        %1104 = vmatpush.msra.mxu0 %v848
        %1105 = vmatpush.msra.mxu0 %v847
        %1106 = vmatpush.msra.mxu0 %v846
        %1107 = vmatpush.msra.mxu0 %v845
        %1108 = vmatpush.msra.mxu0 %v844
        %1109 = vmatpush.msra.mxu0 %v843
        %1110 = vmatpush.msra.mxu0 %v842
        %1111 = vmatpush.msra.mxu0 %v841
        %1112 = vmatpush.msra.mxu0 %v840
        %1113 = vmatpush.msra.mxu0 %v839
        %1114 = vmatpush.msra.mxu0 %v838
        %1115 = vmatpush.msra.mxu0 %v837
        %1116 = vmatpush.msra.mxu0 %v836
        %1117 = vmatpush.msra.mxu0 %v835
        %1118 = vmatpush.msra.mxu0 %v834
        %1119 = vmatmul.f32.gmra.mxu0 %v934
        %v1120 = vpop.f32.mrf.mxu0
        %v1121 = vadd.f32 %v1098, %v1120
        %1122 = vmatmul.f32.gmra.mxu0 %v933
        %v1123 = vpop.f32.mrf.mxu0
        %v1124 = vadd.f32 %v1101, %v1123
        %1125 = vdwg.mxu0
        %1126 = vmatpush.msra.mxu0 %v865
        %1127 = vmatpush.msra.mxu0 %v864
        %1128 = vmatpush.msra.mxu0 %v863
        %1129 = vmatpush.msra.mxu0 %v862
        %1130 = vmatpush.msra.mxu0 %v861
        %1131 = vmatpush.msra.mxu0 %v860
        %1132 = vmatpush.msra.mxu0 %v859
        %1133 = vmatpush.msra.mxu0 %v858
        %1134 = vmatpush.msra.mxu0 %v857
        %1135 = vmatpush.msra.mxu0 %v856
        %1136 = vmatpush.msra.mxu0 %v855
        %1137 = vmatpush.msra.mxu0 %v854
        %1138 = vmatpush.msra.mxu0 %v853
        %1139 = vmatpush.msra.mxu0 %v852
        %1140 = vmatpush.msra.mxu0 %v851
        %1141 = vmatpush.msra.mxu0 %v850
        %1142 = vmatmul.f32.gmra.mxu0 %v939
        %v1143 = vpop.f32.mrf.mxu0
        %v1144 = vadd.f32 %v1121, %v1143
        %1145 = vmatmul.f32.gmra.mxu0 %v938
        %v1146 = vpop.f32.mrf.mxu0
        %v1147 = vadd.f32 %v1124, %v1146
        %1148 = vdwg.mxu0
        %v1149 = vmax.f32 %v1144, 0.0
        %v1150 = vmax.f32 %v1147, 0.0
        %s1151 = scalar_lea.vmem [#allocation3], 16
        %1152 = vst [vmem:[%s1151 + $0x1] sm:$0xff] %v1149
        %1153 = vst [vmem:[%s1151 + $0x9] sm:$0x3f] %v1150
        %v1154 = vld [vmem:[%s677] sm:$0xff]
        %v1155 = vld [vmem:[%s677 + $0x8] sm:$0xff]
        %v1156 = vld [vmem:[%s680] sm:$0xff]
        %v1157 = vld [vmem:[%s680 + $0x8] sm:$0xff]
        %v1158 = vld [vmem:[%s683] sm:$0xff]
        %v1159 = vld [vmem:[%s683 + $0x8] sm:$0xff]
        %v1162 = vrot.slane %v1154, 1
        %v1163 = vrot.slane %v1155, 1
        %v1164 = vsel %vm906, %v1162, %v1163
        %v1167 = vrot.slane %v1154, 2
        %v1168 = vrot.slane %v1155, 2
        %v1169 = vsel %vm912, %v1167, %v1168
        %v1174 = vrot.slane %v1156, 1
        %v1175 = vrot.slane %v1157, 1
        %v1176 = vsel %vm906, %v1174, %v1175
        %v1179 = vrot.slane %v1156, 2
        %v1180 = vrot.slane %v1157, 2
        %v1181 = vsel %vm912, %v1179, %v1180
        %v1186 = vrot.slane %v1158, 1
        %v1187 = vrot.slane %v1159, 1
        %v1188 = vsel %vm906, %v1186, %v1187
        %v1191 = vrot.slane %v1158, 2
        %v1192 = vrot.slane %v1159, 2
        %v1193 = vsel %vm912, %v1191, %v1192
        %1196 = vmatpush.msra.mxu0 %v737
        %1197 = vmatpush.msra.mxu0 %v736
        %1198 = vmatpush.msra.mxu0 %v735
        %1199 = vmatpush.msra.mxu0 %v734
        %1200 = vmatpush.msra.mxu0 %v733
        %1201 = vmatpush.msra.mxu0 %v732
        %1202 = vmatpush.msra.mxu0 %v731
        %1203 = vmatpush.msra.mxu0 %v730
        %1204 = vmatpush.msra.mxu0 %v729
        %1205 = vmatpush.msra.mxu0 %v728
        %1206 = vmatpush.msra.mxu0 %v727
        %1207 = vmatpush.msra.mxu0 %v726
        %1208 = vmatpush.msra.mxu0 %v725
        %1209 = vmatpush.msra.mxu0 %v724
        %1210 = vmatpush.msra.mxu0 %v723
        %1211 = vmatpush.msra.mxu0 %v722
        %1212 = vmatmul.f32.gmra.mxu0 %v1154
        %v1213 = vpop.f32.mrf.mxu0
        %v1214 = vadd.f32 0.0, %v1213
        %1215 = vmatmul.f32.gmra.mxu0 %v1155
        %v1216 = vpop.f32.mrf.mxu0
        %v1217 = vadd.f32 0.0, %v1216
        %1218 = vdwg.mxu0
        %1219 = vmatpush.msra.mxu0 %v753
        %1220 = vmatpush.msra.mxu0 %v752
        %1221 = vmatpush.msra.mxu0 %v751
        %1222 = vmatpush.msra.mxu0 %v750
        %1223 = vmatpush.msra.mxu0 %v749
        %1224 = vmatpush.msra.mxu0 %v748
        %1225 = vmatpush.msra.mxu0 %v747
        %1226 = vmatpush.msra.mxu0 %v746
        %1227 = vmatpush.msra.mxu0 %v745
        %1228 = vmatpush.msra.mxu0 %v744
        %1229 = vmatpush.msra.mxu0 %v743
        %1230 = vmatpush.msra.mxu0 %v742
        %1231 = vmatpush.msra.mxu0 %v741
        %1232 = vmatpush.msra.mxu0 %v740
        %1233 = vmatpush.msra.mxu0 %v739
        %1234 = vmatpush.msra.mxu0 %v738
        %1235 = vmatmul.f32.gmra.mxu0 %v1164
        %v1236 = vpop.f32.mrf.mxu0
        %v1237 = vadd.f32 %v1214, %v1236
        %1238 = vmatmul.f32.gmra.mxu0 %v1163
        %v1239 = vpop.f32.mrf.mxu0
        %v1240 = vadd.f32 %v1217, %v1239
        %1241 = vdwg.mxu0
        %1242 = vmatpush.msra.mxu0 %v769
        %1243 = vmatpush.msra.mxu0 %v768
        %1244 = vmatpush.msra.mxu0 %v767
        %1245 = vmatpush.msra.mxu0 %v766
        %1246 = vmatpush.msra.mxu0 %v765
        %1247 = vmatpush.msra.mxu0 %v764
        %1248 = vmatpush.msra.mxu0 %v763
        %1249 = vmatpush.msra.mxu0 %v762
        %1250 = vmatpush.msra.mxu0 %v761
        %1251 = vmatpush.msra.mxu0 %v760
        %1252 = vmatpush.msra.mxu0 %v759
        %1253 = vmatpush.msra.mxu0 %v758
        %1254 = vmatpush.msra.mxu0 %v757
        %1255 = vmatpush.msra.mxu0 %v756
        %1256 = vmatpush.msra.mxu0 %v755
        %1257 = vmatpush.msra.mxu0 %v754
        %1258 = vmatmul.f32.gmra.mxu0 %v1169
        %v1259 = vpop.f32.mrf.mxu0
        %v1260 = vadd.f32 %v1237, %v1259
        %1261 = vmatmul.f32.gmra.mxu0 %v1168
        %v1262 = vpop.f32.mrf.mxu0
        %v1263 = vadd.f32 %v1240, %v1262
        %1264 = vdwg.mxu0
        %1265 = vmatpush.msra.mxu0 %v785
        %1266 = vmatpush.msra.mxu0 %v784
        %1267 = vmatpush.msra.mxu0 %v783
        %1268 = vmatpush.msra.mxu0 %v782
        %1269 = vmatpush.msra.mxu0 %v781
        %1270 = vmatpush.msra.mxu0 %v780
        %1271 = vmatpush.msra.mxu0 %v779
        %1272 = vmatpush.msra.mxu0 %v778
        %1273 = vmatpush.msra.mxu0 %v777
        %1274 = vmatpush.msra.mxu0 %v776
        %1275 = vmatpush.msra.mxu0 %v775
        %1276 = vmatpush.msra.mxu0 %v774
        %1277 = vmatpush.msra.mxu0 %v773
        %1278 = vmatpush.msra.mxu0 %v772
        %1279 = vmatpush.msra.mxu0 %v771
        %1280 = vmatpush.msra.mxu0 %v770
        %1281 = vmatmul.f32.gmra.mxu0 %v1156
        %v1282 = vpop.f32.mrf.mxu0
        %v1283 = vadd.f32 %v1260, %v1282
        %1284 = vmatmul.f32.gmra.mxu0 %v1157
        %v1285 = vpop.f32.mrf.mxu0
        %v1286 = vadd.f32 %v1263, %v1285
        %1287 = vdwg.mxu0
        %1288 = vmatpush.msra.mxu0 %v801
        %1289 = vmatpush.msra.mxu0 %v800
        %1290 = vmatpush.msra.mxu0 %v799
        %1291 = vmatpush.msra.mxu0 %v798
        %1292 = vmatpush.msra.mxu0 %v797
        %1293 = vmatpush.msra.mxu0 %v796
        %1294 = vmatpush.msra.mxu0 %v795
        %1295 = vmatpush.msra.mxu0 %v794
        %1296 = vmatpush.msra.mxu0 %v793
        %1297 = vmatpush.msra.mxu0 %v792
        %1298 = vmatpush.msra.mxu0 %v791
        %1299 = vmatpush.msra.mxu0 %v790
        %1300 = vmatpush.msra.mxu0 %v789
        %1301 = vmatpush.msra.mxu0 %v788
        %1302 = vmatpush.msra.mxu0 %v787
        %1303 = vmatpush.msra.mxu0 %v786
        %1304 = vmatmul.f32.gmra.mxu0 %v1176
        %v1305 = vpop.f32.mrf.mxu0
        %v1306 = vadd.f32 %v1283, %v1305
        %1307 = vmatmul.f32.gmra.mxu0 %v1175
        %v1308 = vpop.f32.mrf.mxu0
        %v1309 = vadd.f32 %v1286, %v1308
        %1310 = vdwg.mxu0
        %1311 = vmatpush.msra.mxu0 %v817
        %1312 = vmatpush.msra.mxu0 %v816
        %1313 = vmatpush.msra.mxu0 %v815
        %1314 = vmatpush.msra.mxu0 %v814
        %1315 = vmatpush.msra.mxu0 %v813
        %1316 = vmatpush.msra.mxu0 %v812
        %1317 = vmatpush.msra.mxu0 %v811
        %1318 = vmatpush.msra.mxu0 %v810
        %1319 = vmatpush.msra.mxu0 %v809
        %1320 = vmatpush.msra.mxu0 %v808
        %1321 = vmatpush.msra.mxu0 %v807
        %1322 = vmatpush.msra.mxu0 %v806
        %1323 = vmatpush.msra.mxu0 %v805
        %1324 = vmatpush.msra.mxu0 %v804
        %1325 = vmatpush.msra.mxu0 %v803
        %1326 = vmatpush.msra.mxu0 %v802
        %1327 = vmatmul.f32.gmra.mxu0 %v1181
        %v1328 = vpop.f32.mrf.mxu0
        %v1329 = vadd.f32 %v1306, %v1328
        %1330 = vmatmul.f32.gmra.mxu0 %v1180
        %v1331 = vpop.f32.mrf.mxu0
        %v1332 = vadd.f32 %v1309, %v1331
        %1333 = vdwg.mxu0
        %1334 = vmatpush.msra.mxu0 %v833
        %1335 = vmatpush.msra.mxu0 %v832
        %1336 = vmatpush.msra.mxu0 %v831
        %1337 = vmatpush.msra.mxu0 %v830
        %1338 = vmatpush.msra.mxu0 %v829
        %1339 = vmatpush.msra.mxu0 %v828
        %1340 = vmatpush.msra.mxu0 %v827
        %1341 = vmatpush.msra.mxu0 %v826
        %1342 = vmatpush.msra.mxu0 %v825
        %1343 = vmatpush.msra.mxu0 %v824
        %1344 = vmatpush.msra.mxu0 %v823
        %1345 = vmatpush.msra.mxu0 %v822
        %1346 = vmatpush.msra.mxu0 %v821
        %1347 = vmatpush.msra.mxu0 %v820
        %1348 = vmatpush.msra.mxu0 %v819
        %1349 = vmatpush.msra.mxu0 %v818
        %1350 = vmatmul.f32.gmra.mxu0 %v1158
        %v1351 = vpop.f32.mrf.mxu0
        %v1352 = vadd.f32 %v1329, %v1351
        %1353 = vmatmul.f32.gmra.mxu0 %v1159
        %v1354 = vpop.f32.mrf.mxu0
        %v1355 = vadd.f32 %v1332, %v1354
        %1356 = vdwg.mxu0
        %1357 = vmatpush.msra.mxu0 %v849
        %1358 = vmatpush.msra.mxu0 %v848
        %1359 = vmatpush.msra.mxu0 %v847
        %1360 = vmatpush.msra.mxu0 %v846
        %1361 = vmatpush.msra.mxu0 %v845
        %1362 = vmatpush.msra.mxu0 %v844
        %1363 = vmatpush.msra.mxu0 %v843
        %1364 = vmatpush.msra.mxu0 %v842
        %1365 = vmatpush.msra.mxu0 %v841
        %1366 = vmatpush.msra.mxu0 %v840
        %1367 = vmatpush.msra.mxu0 %v839
        %1368 = vmatpush.msra.mxu0 %v838
        %1369 = vmatpush.msra.mxu0 %v837
        %1370 = vmatpush.msra.mxu0 %v836
        %1371 = vmatpush.msra.mxu0 %v835
        %1372 = vmatpush.msra.mxu0 %v834
        %1373 = vmatmul.f32.gmra.mxu0 %v1188
        %v1374 = vpop.f32.mrf.mxu0
        %v1375 = vadd.f32 %v1352, %v1374
        %1376 = vmatmul.f32.gmra.mxu0 %v1187
        %v1377 = vpop.f32.mrf.mxu0
        %v1378 = vadd.f32 %v1355, %v1377
        %1379 = vdwg.mxu0
        %1380 = vmatpush.msra.mxu0 %v865
        %1381 = vmatpush.msra.mxu0 %v864
        %1382 = vmatpush.msra.mxu0 %v863
        %1383 = vmatpush.msra.mxu0 %v862
        %1384 = vmatpush.msra.mxu0 %v861
        %1385 = vmatpush.msra.mxu0 %v860
        %1386 = vmatpush.msra.mxu0 %v859
        %1387 = vmatpush.msra.mxu0 %v858
        %1388 = vmatpush.msra.mxu0 %v857
        %1389 = vmatpush.msra.mxu0 %v856
        %1390 = vmatpush.msra.mxu0 %v855
        %1391 = vmatpush.msra.mxu0 %v854
        %1392 = vmatpush.msra.mxu0 %v853
        %1393 = vmatpush.msra.mxu0 %v852
        %1394 = vmatpush.msra.mxu0 %v851
        %1395 = vmatpush.msra.mxu0 %v850
        %1396 = vmatmul.f32.gmra.mxu0 %v1193
        %v1397 = vpop.f32.mrf.mxu0
        %v1398 = vadd.f32 %v1375, %v1397
        %1399 = vmatmul.f32.gmra.mxu0 %v1192
        %v1400 = vpop.f32.mrf.mxu0
        %v1401 = vadd.f32 %v1378, %v1400
        %1402 = vdwg.mxu0
        %v1403 = vmax.f32 %v1398, 0.0
        %v1404 = vmax.f32 %v1401, 0.0
        %s1405 = scalar_lea.vmem [#allocation3], 32
        %1406 = vst [vmem:[%s1405 + $0x1] sm:$0xff] %v1403
        %1407 = vst [vmem:[%s1405 + $0x9] sm:$0x3f] %v1404
        %v1408 = vld [vmem:[%s680] sm:$0xff]
        %v1409 = vld [vmem:[%s680 + $0x8] sm:$0xff]
        %v1410 = vld [vmem:[%s683] sm:$0xff]
        %v1411 = vld [vmem:[%s683 + $0x8] sm:$0xff]
        %v1412 = vld [vmem:[%s686] sm:$0xff]
        %v1413 = vld [vmem:[%s686 + $0x8] sm:$0xff]
        %v1416 = vrot.slane %v1408, 1
        %v1417 = vrot.slane %v1409, 1
        %v1418 = vsel %vm906, %v1416, %v1417
        %v1421 = vrot.slane %v1408, 2
        %v1422 = vrot.slane %v1409, 2
        %v1423 = vsel %vm912, %v1421, %v1422
        %v1428 = vrot.slane %v1410, 1
        %v1429 = vrot.slane %v1411, 1
        %v1430 = vsel %vm906, %v1428, %v1429
        %v1433 = vrot.slane %v1410, 2
        %v1434 = vrot.slane %v1411, 2
        %v1435 = vsel %vm912, %v1433, %v1434
        %v1440 = vrot.slane %v1412, 1
        %v1441 = vrot.slane %v1413, 1
        %v1442 = vsel %vm906, %v1440, %v1441
        %v1445 = vrot.slane %v1412, 2
        %v1446 = vrot.slane %v1413, 2
        %v1447 = vsel %vm912, %v1445, %v1446
        %1450 = vmatpush.msra.mxu0 %v737
        %1451 = vmatpush.msra.mxu0 %v736
        %1452 = vmatpush.msra.mxu0 %v735
        %1453 = vmatpush.msra.mxu0 %v734
        %1454 = vmatpush.msra.mxu0 %v733
        %1455 = vmatpush.msra.mxu0 %v732
        %1456 = vmatpush.msra.mxu0 %v731
        %1457 = vmatpush.msra.mxu0 %v730
        %1458 = vmatpush.msra.mxu0 %v729
        %1459 = vmatpush.msra.mxu0 %v728
        %1460 = vmatpush.msra.mxu0 %v727
        %1461 = vmatpush.msra.mxu0 %v726
        %1462 = vmatpush.msra.mxu0 %v725
        %1463 = vmatpush.msra.mxu0 %v724
        %1464 = vmatpush.msra.mxu0 %v723
        %1465 = vmatpush.msra.mxu0 %v722
        %1466 = vmatmul.f32.gmra.mxu0 %v1408
        %v1467 = vpop.f32.mrf.mxu0
        %v1468 = vadd.f32 0.0, %v1467
        %1469 = vmatmul.f32.gmra.mxu0 %v1409
        %v1470 = vpop.f32.mrf.mxu0
        %v1471 = vadd.f32 0.0, %v1470
        %1472 = vdwg.mxu0
        %1473 = vmatpush.msra.mxu0 %v753
        %1474 = vmatpush.msra.mxu0 %v752
        %1475 = vmatpush.msra.mxu0 %v751
        %1476 = vmatpush.msra.mxu0 %v750
        %1477 = vmatpush.msra.mxu0 %v749
        %1478 = vmatpush.msra.mxu0 %v748
        %1479 = vmatpush.msra.mxu0 %v747
        %1480 = vmatpush.msra.mxu0 %v746
        %1481 = vmatpush.msra.mxu0 %v745
        %1482 = vmatpush.msra.mxu0 %v744
        %1483 = vmatpush.msra.mxu0 %v743
        %1484 = vmatpush.msra.mxu0 %v742
        %1485 = vmatpush.msra.mxu0 %v741
        %1486 = vmatpush.msra.mxu0 %v740
        %1487 = vmatpush.msra.mxu0 %v739
        %1488 = vmatpush.msra.mxu0 %v738
        %1489 = vmatmul.f32.gmra.mxu0 %v1418
        %v1490 = vpop.f32.mrf.mxu0
        %v1491 = vadd.f32 %v1468, %v1490
        %1492 = vmatmul.f32.gmra.mxu0 %v1417
        %v1493 = vpop.f32.mrf.mxu0
        %v1494 = vadd.f32 %v1471, %v1493
        %1495 = vdwg.mxu0
        %1496 = vmatpush.msra.mxu0 %v769
        %1497 = vmatpush.msra.mxu0 %v768
        %1498 = vmatpush.msra.mxu0 %v767
        %1499 = vmatpush.msra.mxu0 %v766
        %1500 = vmatpush.msra.mxu0 %v765
        %1501 = vmatpush.msra.mxu0 %v764
        %1502 = vmatpush.msra.mxu0 %v763
        %1503 = vmatpush.msra.mxu0 %v762
        %1504 = vmatpush.msra.mxu0 %v761
        %1505 = vmatpush.msra.mxu0 %v760
        %1506 = vmatpush.msra.mxu0 %v759
        %1507 = vmatpush.msra.mxu0 %v758
        %1508 = vmatpush.msra.mxu0 %v757
        %1509 = vmatpush.msra.mxu0 %v756
        %1510 = vmatpush.msra.mxu0 %v755
        %1511 = vmatpush.msra.mxu0 %v754
        %1512 = vmatmul.f32.gmra.mxu0 %v1423
        %v1513 = vpop.f32.mrf.mxu0
        %v1514 = vadd.f32 %v1491, %v1513
        %1515 = vmatmul.f32.gmra.mxu0 %v1422
        %v1516 = vpop.f32.mrf.mxu0
        %v1517 = vadd.f32 %v1494, %v1516
        %1518 = vdwg.mxu0
        %1519 = vmatpush.msra.mxu0 %v785
        %1520 = vmatpush.msra.mxu0 %v784
        %1521 = vmatpush.msra.mxu0 %v783
        %1522 = vmatpush.msra.mxu0 %v782
        %1523 = vmatpush.msra.mxu0 %v781
        %1524 = vmatpush.msra.mxu0 %v780
        %1525 = vmatpush.msra.mxu0 %v779
        %1526 = vmatpush.msra.mxu0 %v778
        %1527 = vmatpush.msra.mxu0 %v777
        %1528 = vmatpush.msra.mxu0 %v776
        %1529 = vmatpush.msra.mxu0 %v775
        %1530 = vmatpush.msra.mxu0 %v774
        %1531 = vmatpush.msra.mxu0 %v773
        %1532 = vmatpush.msra.mxu0 %v772
        %1533 = vmatpush.msra.mxu0 %v771
        %1534 = vmatpush.msra.mxu0 %v770
        %1535 = vmatmul.f32.gmra.mxu0 %v1410
        %v1536 = vpop.f32.mrf.mxu0
        %v1537 = vadd.f32 %v1514, %v1536
        %1538 = vmatmul.f32.gmra.mxu0 %v1411
        %v1539 = vpop.f32.mrf.mxu0
        %v1540 = vadd.f32 %v1517, %v1539
        %1541 = vdwg.mxu0
        %1542 = vmatpush.msra.mxu0 %v801
        %1543 = vmatpush.msra.mxu0 %v800
        %1544 = vmatpush.msra.mxu0 %v799
        %1545 = vmatpush.msra.mxu0 %v798
        %1546 = vmatpush.msra.mxu0 %v797
        %1547 = vmatpush.msra.mxu0 %v796
        %1548 = vmatpush.msra.mxu0 %v795
        %1549 = vmatpush.msra.mxu0 %v794
        %1550 = vmatpush.msra.mxu0 %v793
        %1551 = vmatpush.msra.mxu0 %v792
        %1552 = vmatpush.msra.mxu0 %v791
        %1553 = vmatpush.msra.mxu0 %v790
        %1554 = vmatpush.msra.mxu0 %v789
        %1555 = vmatpush.msra.mxu0 %v788
        %1556 = vmatpush.msra.mxu0 %v787
        %1557 = vmatpush.msra.mxu0 %v786
        %1558 = vmatmul.f32.gmra.mxu0 %v1430
        %v1559 = vpop.f32.mrf.mxu0
        %v1560 = vadd.f32 %v1537, %v1559
        %1561 = vmatmul.f32.gmra.mxu0 %v1429
        %v1562 = vpop.f32.mrf.mxu0
        %v1563 = vadd.f32 %v1540, %v1562
        %1564 = vdwg.mxu0
        %1565 = vmatpush.msra.mxu0 %v817
        %1566 = vmatpush.msra.mxu0 %v816
        %1567 = vmatpush.msra.mxu0 %v815
        %1568 = vmatpush.msra.mxu0 %v814
        %1569 = vmatpush.msra.mxu0 %v813
        %1570 = vmatpush.msra.mxu0 %v812
        %1571 = vmatpush.msra.mxu0 %v811
        %1572 = vmatpush.msra.mxu0 %v810
        %1573 = vmatpush.msra.mxu0 %v809
        %1574 = vmatpush.msra.mxu0 %v808
        %1575 = vmatpush.msra.mxu0 %v807
        %1576 = vmatpush.msra.mxu0 %v806
        %1577 = vmatpush.msra.mxu0 %v805
        %1578 = vmatpush.msra.mxu0 %v804
        %1579 = vmatpush.msra.mxu0 %v803
        %1580 = vmatpush.msra.mxu0 %v802
        %1581 = vmatmul.f32.gmra.mxu0 %v1435
        %v1582 = vpop.f32.mrf.mxu0
        %v1583 = vadd.f32 %v1560, %v1582
        %1584 = vmatmul.f32.gmra.mxu0 %v1434
        %v1585 = vpop.f32.mrf.mxu0
        %v1586 = vadd.f32 %v1563, %v1585
        %1587 = vdwg.mxu0
        %1588 = vmatpush.msra.mxu0 %v833
        %1589 = vmatpush.msra.mxu0 %v832
        %1590 = vmatpush.msra.mxu0 %v831
        %1591 = vmatpush.msra.mxu0 %v830
        %1592 = vmatpush.msra.mxu0 %v829
        %1593 = vmatpush.msra.mxu0 %v828
        %1594 = vmatpush.msra.mxu0 %v827
        %1595 = vmatpush.msra.mxu0 %v826
        %1596 = vmatpush.msra.mxu0 %v825
        %1597 = vmatpush.msra.mxu0 %v824
        %1598 = vmatpush.msra.mxu0 %v823
        %1599 = vmatpush.msra.mxu0 %v822
        %1600 = vmatpush.msra.mxu0 %v821
        %1601 = vmatpush.msra.mxu0 %v820
        %1602 = vmatpush.msra.mxu0 %v819
        %1603 = vmatpush.msra.mxu0 %v818
        %1604 = vmatmul.f32.gmra.mxu0 %v1412
        %v1605 = vpop.f32.mrf.mxu0
        %v1606 = vadd.f32 %v1583, %v1605
        %1607 = vmatmul.f32.gmra.mxu0 %v1413
        %v1608 = vpop.f32.mrf.mxu0
        %v1609 = vadd.f32 %v1586, %v1608
        %1610 = vdwg.mxu0
        %1611 = vmatpush.msra.mxu0 %v849
        %1612 = vmatpush.msra.mxu0 %v848
        %1613 = vmatpush.msra.mxu0 %v847
        %1614 = vmatpush.msra.mxu0 %v846
        %1615 = vmatpush.msra.mxu0 %v845
        %1616 = vmatpush.msra.mxu0 %v844
        %1617 = vmatpush.msra.mxu0 %v843
        %1618 = vmatpush.msra.mxu0 %v842
        %1619 = vmatpush.msra.mxu0 %v841
        %1620 = vmatpush.msra.mxu0 %v840
        %1621 = vmatpush.msra.mxu0 %v839
        %1622 = vmatpush.msra.mxu0 %v838
        %1623 = vmatpush.msra.mxu0 %v837
        %1624 = vmatpush.msra.mxu0 %v836
        %1625 = vmatpush.msra.mxu0 %v835
        %1626 = vmatpush.msra.mxu0 %v834
        %1627 = vmatmul.f32.gmra.mxu0 %v1442
        %v1628 = vpop.f32.mrf.mxu0
        %v1629 = vadd.f32 %v1606, %v1628
        %1630 = vmatmul.f32.gmra.mxu0 %v1441
        %v1631 = vpop.f32.mrf.mxu0
        %v1632 = vadd.f32 %v1609, %v1631
        %1633 = vdwg.mxu0
        %1634 = vmatpush.msra.mxu0 %v865
        %1635 = vmatpush.msra.mxu0 %v864
        %1636 = vmatpush.msra.mxu0 %v863
        %1637 = vmatpush.msra.mxu0 %v862
        %1638 = vmatpush.msra.mxu0 %v861
        %1639 = vmatpush.msra.mxu0 %v860
        %1640 = vmatpush.msra.mxu0 %v859
        %1641 = vmatpush.msra.mxu0 %v858
        %1642 = vmatpush.msra.mxu0 %v857
        %1643 = vmatpush.msra.mxu0 %v856
        %1644 = vmatpush.msra.mxu0 %v855
        %1645 = vmatpush.msra.mxu0 %v854
        %1646 = vmatpush.msra.mxu0 %v853
        %1647 = vmatpush.msra.mxu0 %v852
        %1648 = vmatpush.msra.mxu0 %v851
        %1649 = vmatpush.msra.mxu0 %v850
        %1650 = vmatmul.f32.gmra.mxu0 %v1447
        %v1651 = vpop.f32.mrf.mxu0
        %v1652 = vadd.f32 %v1629, %v1651
        %1653 = vmatmul.f32.gmra.mxu0 %v1446
        %v1654 = vpop.f32.mrf.mxu0
        %v1655 = vadd.f32 %v1632, %v1654
        %1656 = vdwg.mxu0
        %v1657 = vmax.f32 %v1652, 0.0
        %v1658 = vmax.f32 %v1655, 0.0
        %s1659 = scalar_lea.vmem [#allocation3], 48
        %1660 = vst [vmem:[%s1659 + $0x1] sm:$0xff] %v1657
        %1661 = vst [vmem:[%s1659 + $0x9] sm:$0x3f] %v1658
        %v1662 = vld [vmem:[%s683] sm:$0xff]
        %v1663 = vld [vmem:[%s683 + $0x8] sm:$0xff]
        %v1664 = vld [vmem:[%s686] sm:$0xff]
        %v1665 = vld [vmem:[%s686 + $0x8] sm:$0xff]
        %v1666 = vld [vmem:[%s689] sm:$0xff]
        %v1667 = vld [vmem:[%s689 + $0x8] sm:$0xff]
        %v1670 = vrot.slane %v1662, 1
        %v1671 = vrot.slane %v1663, 1
        %v1672 = vsel %vm906, %v1670, %v1671
        %v1675 = vrot.slane %v1662, 2
        %v1676 = vrot.slane %v1663, 2
        %v1677 = vsel %vm912, %v1675, %v1676
        %v1682 = vrot.slane %v1664, 1
        %v1683 = vrot.slane %v1665, 1
        %v1684 = vsel %vm906, %v1682, %v1683
        %v1687 = vrot.slane %v1664, 2
        %v1688 = vrot.slane %v1665, 2
        %v1689 = vsel %vm912, %v1687, %v1688
        %v1694 = vrot.slane %v1666, 1
        %v1695 = vrot.slane %v1667, 1
        %v1696 = vsel %vm906, %v1694, %v1695
        %v1699 = vrot.slane %v1666, 2
        %v1700 = vrot.slane %v1667, 2
        %v1701 = vsel %vm912, %v1699, %v1700
        %1704 = vmatpush.msra.mxu0 %v737
        %1705 = vmatpush.msra.mxu0 %v736
        %1706 = vmatpush.msra.mxu0 %v735
        %1707 = vmatpush.msra.mxu0 %v734
        %1708 = vmatpush.msra.mxu0 %v733
        %1709 = vmatpush.msra.mxu0 %v732
        %1710 = vmatpush.msra.mxu0 %v731
        %1711 = vmatpush.msra.mxu0 %v730
        %1712 = vmatpush.msra.mxu0 %v729
        %1713 = vmatpush.msra.mxu0 %v728
        %1714 = vmatpush.msra.mxu0 %v727
        %1715 = vmatpush.msra.mxu0 %v726
        %1716 = vmatpush.msra.mxu0 %v725
        %1717 = vmatpush.msra.mxu0 %v724
        %1718 = vmatpush.msra.mxu0 %v723
        %1719 = vmatpush.msra.mxu0 %v722
        %1720 = vmatmul.f32.gmra.mxu0 %v1662
        %v1721 = vpop.f32.mrf.mxu0
        %v1722 = vadd.f32 0.0, %v1721
        %1723 = vmatmul.f32.gmra.mxu0 %v1663
        %v1724 = vpop.f32.mrf.mxu0
        %v1725 = vadd.f32 0.0, %v1724
        %1726 = vdwg.mxu0
        %1727 = vmatpush.msra.mxu0 %v753
        %1728 = vmatpush.msra.mxu0 %v752
        %1729 = vmatpush.msra.mxu0 %v751
        %1730 = vmatpush.msra.mxu0 %v750
        %1731 = vmatpush.msra.mxu0 %v749
        %1732 = vmatpush.msra.mxu0 %v748
        %1733 = vmatpush.msra.mxu0 %v747
        %1734 = vmatpush.msra.mxu0 %v746
        %1735 = vmatpush.msra.mxu0 %v745
        %1736 = vmatpush.msra.mxu0 %v744
        %1737 = vmatpush.msra.mxu0 %v743
        %1738 = vmatpush.msra.mxu0 %v742
        %1739 = vmatpush.msra.mxu0 %v741
        %1740 = vmatpush.msra.mxu0 %v740
        %1741 = vmatpush.msra.mxu0 %v739
        %1742 = vmatpush.msra.mxu0 %v738
        %1743 = vmatmul.f32.gmra.mxu0 %v1672
        %v1744 = vpop.f32.mrf.mxu0
        %v1745 = vadd.f32 %v1722, %v1744
        %1746 = vmatmul.f32.gmra.mxu0 %v1671
        %v1747 = vpop.f32.mrf.mxu0
        %v1748 = vadd.f32 %v1725, %v1747
        %1749 = vdwg.mxu0
        %1750 = vmatpush.msra.mxu0 %v769
        %1751 = vmatpush.msra.mxu0 %v768
        %1752 = vmatpush.msra.mxu0 %v767
        %1753 = vmatpush.msra.mxu0 %v766
        %1754 = vmatpush.msra.mxu0 %v765
        %1755 = vmatpush.msra.mxu0 %v764
        %1756 = vmatpush.msra.mxu0 %v763
        %1757 = vmatpush.msra.mxu0 %v762
        %1758 = vmatpush.msra.mxu0 %v761
        %1759 = vmatpush.msra.mxu0 %v760
        %1760 = vmatpush.msra.mxu0 %v759
        %1761 = vmatpush.msra.mxu0 %v758
        %1762 = vmatpush.msra.mxu0 %v757
        %1763 = vmatpush.msra.mxu0 %v756
        %1764 = vmatpush.msra.mxu0 %v755
        %1765 = vmatpush.msra.mxu0 %v754
        %1766 = vmatmul.f32.gmra.mxu0 %v1677
        %v1767 = vpop.f32.mrf.mxu0
        %v1768 = vadd.f32 %v1745, %v1767
        %1769 = vmatmul.f32.gmra.mxu0 %v1676
        %v1770 = vpop.f32.mrf.mxu0
        %v1771 = vadd.f32 %v1748, %v1770
        %1772 = vdwg.mxu0
        %1773 = vmatpush.msra.mxu0 %v785
        %1774 = vmatpush.msra.mxu0 %v784
        %1775 = vmatpush.msra.mxu0 %v783
        %1776 = vmatpush.msra.mxu0 %v782
        %1777 = vmatpush.msra.mxu0 %v781
        %1778 = vmatpush.msra.mxu0 %v780
        %1779 = vmatpush.msra.mxu0 %v779
        %1780 = vmatpush.msra.mxu0 %v778
        %1781 = vmatpush.msra.mxu0 %v777
        %1782 = vmatpush.msra.mxu0 %v776
        %1783 = vmatpush.msra.mxu0 %v775
        %1784 = vmatpush.msra.mxu0 %v774
        %1785 = vmatpush.msra.mxu0 %v773
        %1786 = vmatpush.msra.mxu0 %v772
        %1787 = vmatpush.msra.mxu0 %v771
        %1788 = vmatpush.msra.mxu0 %v770
        %1789 = vmatmul.f32.gmra.mxu0 %v1664
        %v1790 = vpop.f32.mrf.mxu0
        %v1791 = vadd.f32 %v1768, %v1790
        %1792 = vmatmul.f32.gmra.mxu0 %v1665
        %v1793 = vpop.f32.mrf.mxu0
        %v1794 = vadd.f32 %v1771, %v1793
        %1795 = vdwg.mxu0
        %1796 = vmatpush.msra.mxu0 %v801
        %1797 = vmatpush.msra.mxu0 %v800
        %1798 = vmatpush.msra.mxu0 %v799
        %1799 = vmatpush.msra.mxu0 %v798
        %1800 = vmatpush.msra.mxu0 %v797
        %1801 = vmatpush.msra.mxu0 %v796
        %1802 = vmatpush.msra.mxu0 %v795
        %1803 = vmatpush.msra.mxu0 %v794
        %1804 = vmatpush.msra.mxu0 %v793
        %1805 = vmatpush.msra.mxu0 %v792
        %1806 = vmatpush.msra.mxu0 %v791
        %1807 = vmatpush.msra.mxu0 %v790
        %1808 = vmatpush.msra.mxu0 %v789
        %1809 = vmatpush.msra.mxu0 %v788
        %1810 = vmatpush.msra.mxu0 %v787
        %1811 = vmatpush.msra.mxu0 %v786
        %1812 = vmatmul.f32.gmra.mxu0 %v1684
        %v1813 = vpop.f32.mrf.mxu0
        %v1814 = vadd.f32 %v1791, %v1813
        %1815 = vmatmul.f32.gmra.mxu0 %v1683
        %v1816 = vpop.f32.mrf.mxu0
        %v1817 = vadd.f32 %v1794, %v1816
        %1818 = vdwg.mxu0
        %1819 = vmatpush.msra.mxu0 %v817
        %1820 = vmatpush.msra.mxu0 %v816
        %1821 = vmatpush.msra.mxu0 %v815
        %1822 = vmatpush.msra.mxu0 %v814
        %1823 = vmatpush.msra.mxu0 %v813
        %1824 = vmatpush.msra.mxu0 %v812
        %1825 = vmatpush.msra.mxu0 %v811
        %1826 = vmatpush.msra.mxu0 %v810
        %1827 = vmatpush.msra.mxu0 %v809
        %1828 = vmatpush.msra.mxu0 %v808
        %1829 = vmatpush.msra.mxu0 %v807
        %1830 = vmatpush.msra.mxu0 %v806
        %1831 = vmatpush.msra.mxu0 %v805
        %1832 = vmatpush.msra.mxu0 %v804
        %1833 = vmatpush.msra.mxu0 %v803
        %1834 = vmatpush.msra.mxu0 %v802
        %1835 = vmatmul.f32.gmra.mxu0 %v1689
        %v1836 = vpop.f32.mrf.mxu0
        %v1837 = vadd.f32 %v1814, %v1836
        %1838 = vmatmul.f32.gmra.mxu0 %v1688
        %v1839 = vpop.f32.mrf.mxu0
        %v1840 = vadd.f32 %v1817, %v1839
        %1841 = vdwg.mxu0
        %1842 = vmatpush.msra.mxu0 %v833
        %1843 = vmatpush.msra.mxu0 %v832
        %1844 = vmatpush.msra.mxu0 %v831
        %1845 = vmatpush.msra.mxu0 %v830
        %1846 = vmatpush.msra.mxu0 %v829
        %1847 = vmatpush.msra.mxu0 %v828
        %1848 = vmatpush.msra.mxu0 %v827
        %1849 = vmatpush.msra.mxu0 %v826
        %1850 = vmatpush.msra.mxu0 %v825
        %1851 = vmatpush.msra.mxu0 %v824
        %1852 = vmatpush.msra.mxu0 %v823
        %1853 = vmatpush.msra.mxu0 %v822
        %1854 = vmatpush.msra.mxu0 %v821
        %1855 = vmatpush.msra.mxu0 %v820
        %1856 = vmatpush.msra.mxu0 %v819
        %1857 = vmatpush.msra.mxu0 %v818
        %1858 = vmatmul.f32.gmra.mxu0 %v1666
        %v1859 = vpop.f32.mrf.mxu0
        %v1860 = vadd.f32 %v1837, %v1859
        %1861 = vmatmul.f32.gmra.mxu0 %v1667
        %v1862 = vpop.f32.mrf.mxu0
        %v1863 = vadd.f32 %v1840, %v1862
        %1864 = vdwg.mxu0
        %1865 = vmatpush.msra.mxu0 %v849
        %1866 = vmatpush.msra.mxu0 %v848
        %1867 = vmatpush.msra.mxu0 %v847
        %1868 = vmatpush.msra.mxu0 %v846
        %1869 = vmatpush.msra.mxu0 %v845
        %1870 = vmatpush.msra.mxu0 %v844
        %1871 = vmatpush.msra.mxu0 %v843
        %1872 = vmatpush.msra.mxu0 %v842
        %1873 = vmatpush.msra.mxu0 %v841
        %1874 = vmatpush.msra.mxu0 %v840
        %1875 = vmatpush.msra.mxu0 %v839
        %1876 = vmatpush.msra.mxu0 %v838
        %1877 = vmatpush.msra.mxu0 %v837
        %1878 = vmatpush.msra.mxu0 %v836
        %1879 = vmatpush.msra.mxu0 %v835
        %1880 = vmatpush.msra.mxu0 %v834
        %1881 = vmatmul.f32.gmra.mxu0 %v1696
        %v1882 = vpop.f32.mrf.mxu0
        %v1883 = vadd.f32 %v1860, %v1882
        %1884 = vmatmul.f32.gmra.mxu0 %v1695
        %v1885 = vpop.f32.mrf.mxu0
        %v1886 = vadd.f32 %v1863, %v1885
        %1887 = vdwg.mxu0
        %1888 = vmatpush.msra.mxu0 %v865
        %1889 = vmatpush.msra.mxu0 %v864
        %1890 = vmatpush.msra.mxu0 %v863
        %1891 = vmatpush.msra.mxu0 %v862
        %1892 = vmatpush.msra.mxu0 %v861
        %1893 = vmatpush.msra.mxu0 %v860
        %1894 = vmatpush.msra.mxu0 %v859
        %1895 = vmatpush.msra.mxu0 %v858
        %1896 = vmatpush.msra.mxu0 %v857
        %1897 = vmatpush.msra.mxu0 %v856
        %1898 = vmatpush.msra.mxu0 %v855
        %1899 = vmatpush.msra.mxu0 %v854
        %1900 = vmatpush.msra.mxu0 %v853
        %1901 = vmatpush.msra.mxu0 %v852
        %1902 = vmatpush.msra.mxu0 %v851
        %1903 = vmatpush.msra.mxu0 %v850
        %1904 = vmatmul.f32.gmra.mxu0 %v1701
        %v1905 = vpop.f32.mrf.mxu0
        %v1906 = vadd.f32 %v1883, %v1905
        %1907 = vmatmul.f32.gmra.mxu0 %v1700
        %v1908 = vpop.f32.mrf.mxu0
        %v1909 = vadd.f32 %v1886, %v1908
        %1910 = vdwg.mxu0
        %v1911 = vmax.f32 %v1906, 0.0
        %v1912 = vmax.f32 %v1909, 0.0
        %s1913 = scalar_lea.vmem [#allocation3], 64
        %1914 = vst [vmem:[%s1913 + $0x1] sm:$0xff] %v1911
        %1915 = vst [vmem:[%s1913 + $0x9] sm:$0x3f] %v1912
        %v1916 = vld [vmem:[%s686] sm:$0xff]
        %v1917 = vld [vmem:[%s686 + $0x8] sm:$0xff]
        %v1918 = vld [vmem:[%s689] sm:$0xff]
        %v1919 = vld [vmem:[%s689 + $0x8] sm:$0xff]
        %v1920 = vld [vmem:[%s692] sm:$0xff]
        %v1921 = vld [vmem:[%s692 + $0x8] sm:$0xff]
        %v1924 = vrot.slane %v1916, 1
        %v1925 = vrot.slane %v1917, 1
        %v1926 = vsel %vm906, %v1924, %v1925
        %v1929 = vrot.slane %v1916, 2
        %v1930 = vrot.slane %v1917, 2
        %v1931 = vsel %vm912, %v1929, %v1930
        %v1936 = vrot.slane %v1918, 1
        %v1937 = vrot.slane %v1919, 1
        %v1938 = vsel %vm906, %v1936, %v1937
        %v1941 = vrot.slane %v1918, 2
        %v1942 = vrot.slane %v1919, 2
        %v1943 = vsel %vm912, %v1941, %v1942
        %v1948 = vrot.slane %v1920, 1
        %v1949 = vrot.slane %v1921, 1
        %v1950 = vsel %vm906, %v1948, %v1949
        %v1953 = vrot.slane %v1920, 2
        %v1954 = vrot.slane %v1921, 2
        %v1955 = vsel %vm912, %v1953, %v1954
        %1958 = vmatpush.msra.mxu0 %v737
        %1959 = vmatpush.msra.mxu0 %v736
        %1960 = vmatpush.msra.mxu0 %v735
        %1961 = vmatpush.msra.mxu0 %v734
        %1962 = vmatpush.msra.mxu0 %v733
        %1963 = vmatpush.msra.mxu0 %v732
        %1964 = vmatpush.msra.mxu0 %v731
        %1965 = vmatpush.msra.mxu0 %v730
        %1966 = vmatpush.msra.mxu0 %v729
        %1967 = vmatpush.msra.mxu0 %v728
        %1968 = vmatpush.msra.mxu0 %v727
        %1969 = vmatpush.msra.mxu0 %v726
        %1970 = vmatpush.msra.mxu0 %v725
        %1971 = vmatpush.msra.mxu0 %v724
        %1972 = vmatpush.msra.mxu0 %v723
        %1973 = vmatpush.msra.mxu0 %v722
        %1974 = vmatmul.f32.gmra.mxu0 %v1916
        %v1975 = vpop.f32.mrf.mxu0
        %v1976 = vadd.f32 0.0, %v1975
        %1977 = vmatmul.f32.gmra.mxu0 %v1917
        %v1978 = vpop.f32.mrf.mxu0
        %v1979 = vadd.f32 0.0, %v1978
        %1980 = vdwg.mxu0
        %1981 = vmatpush.msra.mxu0 %v753
        %1982 = vmatpush.msra.mxu0 %v752
        %1983 = vmatpush.msra.mxu0 %v751
        %1984 = vmatpush.msra.mxu0 %v750
        %1985 = vmatpush.msra.mxu0 %v749
        %1986 = vmatpush.msra.mxu0 %v748
        %1987 = vmatpush.msra.mxu0 %v747
        %1988 = vmatpush.msra.mxu0 %v746
        %1989 = vmatpush.msra.mxu0 %v745
        %1990 = vmatpush.msra.mxu0 %v744
        %1991 = vmatpush.msra.mxu0 %v743
        %1992 = vmatpush.msra.mxu0 %v742
        %1993 = vmatpush.msra.mxu0 %v741
        %1994 = vmatpush.msra.mxu0 %v740
        %1995 = vmatpush.msra.mxu0 %v739
        %1996 = vmatpush.msra.mxu0 %v738
        %1997 = vmatmul.f32.gmra.mxu0 %v1926
        %v1998 = vpop.f32.mrf.mxu0
        %v1999 = vadd.f32 %v1976, %v1998
        %2000 = vmatmul.f32.gmra.mxu0 %v1925
        %v2001 = vpop.f32.mrf.mxu0
        %v2002 = vadd.f32 %v1979, %v2001
        %2003 = vdwg.mxu0
        %2004 = vmatpush.msra.mxu0 %v769
        %2005 = vmatpush.msra.mxu0 %v768
        %2006 = vmatpush.msra.mxu0 %v767
        %2007 = vmatpush.msra.mxu0 %v766
        %2008 = vmatpush.msra.mxu0 %v765
        %2009 = vmatpush.msra.mxu0 %v764
        %2010 = vmatpush.msra.mxu0 %v763
        %2011 = vmatpush.msra.mxu0 %v762
        %2012 = vmatpush.msra.mxu0 %v761
        %2013 = vmatpush.msra.mxu0 %v760
        %2014 = vmatpush.msra.mxu0 %v759
        %2015 = vmatpush.msra.mxu0 %v758
        %2016 = vmatpush.msra.mxu0 %v757
        %2017 = vmatpush.msra.mxu0 %v756
        %2018 = vmatpush.msra.mxu0 %v755
        %2019 = vmatpush.msra.mxu0 %v754
        %2020 = vmatmul.f32.gmra.mxu0 %v1931
        %v2021 = vpop.f32.mrf.mxu0
        %v2022 = vadd.f32 %v1999, %v2021
        %2023 = vmatmul.f32.gmra.mxu0 %v1930
        %v2024 = vpop.f32.mrf.mxu0
        %v2025 = vadd.f32 %v2002, %v2024
        %2026 = vdwg.mxu0
        %2027 = vmatpush.msra.mxu0 %v785
        %2028 = vmatpush.msra.mxu0 %v784
        %2029 = vmatpush.msra.mxu0 %v783
        %2030 = vmatpush.msra.mxu0 %v782
        %2031 = vmatpush.msra.mxu0 %v781
        %2032 = vmatpush.msra.mxu0 %v780
        %2033 = vmatpush.msra.mxu0 %v779
        %2034 = vmatpush.msra.mxu0 %v778
        %2035 = vmatpush.msra.mxu0 %v777
        %2036 = vmatpush.msra.mxu0 %v776
        %2037 = vmatpush.msra.mxu0 %v775
        %2038 = vmatpush.msra.mxu0 %v774
        %2039 = vmatpush.msra.mxu0 %v773
        %2040 = vmatpush.msra.mxu0 %v772
        %2041 = vmatpush.msra.mxu0 %v771
        %2042 = vmatpush.msra.mxu0 %v770
        %2043 = vmatmul.f32.gmra.mxu0 %v1918
        %v2044 = vpop.f32.mrf.mxu0
        %v2045 = vadd.f32 %v2022, %v2044
        %2046 = vmatmul.f32.gmra.mxu0 %v1919
        %v2047 = vpop.f32.mrf.mxu0
        %v2048 = vadd.f32 %v2025, %v2047
        %2049 = vdwg.mxu0
        %2050 = vmatpush.msra.mxu0 %v801
        %2051 = vmatpush.msra.mxu0 %v800
        %2052 = vmatpush.msra.mxu0 %v799
        %2053 = vmatpush.msra.mxu0 %v798
        %2054 = vmatpush.msra.mxu0 %v797
        %2055 = vmatpush.msra.mxu0 %v796
        %2056 = vmatpush.msra.mxu0 %v795
        %2057 = vmatpush.msra.mxu0 %v794
        %2058 = vmatpush.msra.mxu0 %v793
        %2059 = vmatpush.msra.mxu0 %v792
        %2060 = vmatpush.msra.mxu0 %v791
        %2061 = vmatpush.msra.mxu0 %v790
        %2062 = vmatpush.msra.mxu0 %v789
        %2063 = vmatpush.msra.mxu0 %v788
        %2064 = vmatpush.msra.mxu0 %v787
        %2065 = vmatpush.msra.mxu0 %v786
        %2066 = vmatmul.f32.gmra.mxu0 %v1938
        %v2067 = vpop.f32.mrf.mxu0
        %v2068 = vadd.f32 %v2045, %v2067
        %2069 = vmatmul.f32.gmra.mxu0 %v1937
        %v2070 = vpop.f32.mrf.mxu0
        %v2071 = vadd.f32 %v2048, %v2070
        %2072 = vdwg.mxu0
        %2073 = vmatpush.msra.mxu0 %v817
        %2074 = vmatpush.msra.mxu0 %v816
        %2075 = vmatpush.msra.mxu0 %v815
        %2076 = vmatpush.msra.mxu0 %v814
        %2077 = vmatpush.msra.mxu0 %v813
        %2078 = vmatpush.msra.mxu0 %v812
        %2079 = vmatpush.msra.mxu0 %v811
        %2080 = vmatpush.msra.mxu0 %v810
        %2081 = vmatpush.msra.mxu0 %v809
        %2082 = vmatpush.msra.mxu0 %v808
        %2083 = vmatpush.msra.mxu0 %v807
        %2084 = vmatpush.msra.mxu0 %v806
        %2085 = vmatpush.msra.mxu0 %v805
        %2086 = vmatpush.msra.mxu0 %v804
        %2087 = vmatpush.msra.mxu0 %v803
        %2088 = vmatpush.msra.mxu0 %v802
        %2089 = vmatmul.f32.gmra.mxu0 %v1943
        %v2090 = vpop.f32.mrf.mxu0
        %v2091 = vadd.f32 %v2068, %v2090
        %2092 = vmatmul.f32.gmra.mxu0 %v1942
        %v2093 = vpop.f32.mrf.mxu0
        %v2094 = vadd.f32 %v2071, %v2093
        %2095 = vdwg.mxu0
        %2096 = vmatpush.msra.mxu0 %v833
        %2097 = vmatpush.msra.mxu0 %v832
        %2098 = vmatpush.msra.mxu0 %v831
        %2099 = vmatpush.msra.mxu0 %v830
        %2100 = vmatpush.msra.mxu0 %v829
        %2101 = vmatpush.msra.mxu0 %v828
        %2102 = vmatpush.msra.mxu0 %v827
        %2103 = vmatpush.msra.mxu0 %v826
        %2104 = vmatpush.msra.mxu0 %v825
        %2105 = vmatpush.msra.mxu0 %v824
        %2106 = vmatpush.msra.mxu0 %v823
        %2107 = vmatpush.msra.mxu0 %v822
        %2108 = vmatpush.msra.mxu0 %v821
        %2109 = vmatpush.msra.mxu0 %v820
        %2110 = vmatpush.msra.mxu0 %v819
        %2111 = vmatpush.msra.mxu0 %v818
        %2112 = vmatmul.f32.gmra.mxu0 %v1920
        %v2113 = vpop.f32.mrf.mxu0
        %v2114 = vadd.f32 %v2091, %v2113
        %2115 = vmatmul.f32.gmra.mxu0 %v1921
        %v2116 = vpop.f32.mrf.mxu0
        %v2117 = vadd.f32 %v2094, %v2116
        %2118 = vdwg.mxu0
        %2119 = vmatpush.msra.mxu0 %v849
        %2120 = vmatpush.msra.mxu0 %v848
        %2121 = vmatpush.msra.mxu0 %v847
        %2122 = vmatpush.msra.mxu0 %v846
        %2123 = vmatpush.msra.mxu0 %v845
        %2124 = vmatpush.msra.mxu0 %v844
        %2125 = vmatpush.msra.mxu0 %v843
        %2126 = vmatpush.msra.mxu0 %v842
        %2127 = vmatpush.msra.mxu0 %v841
        %2128 = vmatpush.msra.mxu0 %v840
        %2129 = vmatpush.msra.mxu0 %v839
        %2130 = vmatpush.msra.mxu0 %v838
        %2131 = vmatpush.msra.mxu0 %v837
        %2132 = vmatpush.msra.mxu0 %v836
        %2133 = vmatpush.msra.mxu0 %v835
        %2134 = vmatpush.msra.mxu0 %v834
        %2135 = vmatmul.f32.gmra.mxu0 %v1950
        %v2136 = vpop.f32.mrf.mxu0
        %v2137 = vadd.f32 %v2114, %v2136
        %2138 = vmatmul.f32.gmra.mxu0 %v1949
        %v2139 = vpop.f32.mrf.mxu0
        %v2140 = vadd.f32 %v2117, %v2139
        %2141 = vdwg.mxu0
        %2142 = vmatpush.msra.mxu0 %v865
        %2143 = vmatpush.msra.mxu0 %v864
        %2144 = vmatpush.msra.mxu0 %v863
        %2145 = vmatpush.msra.mxu0 %v862
        %2146 = vmatpush.msra.mxu0 %v861
        %2147 = vmatpush.msra.mxu0 %v860
        %2148 = vmatpush.msra.mxu0 %v859
        %2149 = vmatpush.msra.mxu0 %v858
        %2150 = vmatpush.msra.mxu0 %v857
        %2151 = vmatpush.msra.mxu0 %v856
        %2152 = vmatpush.msra.mxu0 %v855
        %2153 = vmatpush.msra.mxu0 %v854
        %2154 = vmatpush.msra.mxu0 %v853
        %2155 = vmatpush.msra.mxu0 %v852
        %2156 = vmatpush.msra.mxu0 %v851
        %2157 = vmatpush.msra.mxu0 %v850
        %2158 = vmatmul.f32.gmra.mxu0 %v1955
        %v2159 = vpop.f32.mrf.mxu0
        %v2160 = vadd.f32 %v2137, %v2159
        %2161 = vmatmul.f32.gmra.mxu0 %v1954
        %v2162 = vpop.f32.mrf.mxu0
        %v2163 = vadd.f32 %v2140, %v2162
        %2164 = vdwg.mxu0
        %v2165 = vmax.f32 %v2160, 0.0
        %v2166 = vmax.f32 %v2163, 0.0
        %s2167 = scalar_lea.vmem [#allocation3], 80
        %2168 = vst [vmem:[%s2167 + $0x1] sm:$0xff] %v2165
        %2169 = vst [vmem:[%s2167 + $0x9] sm:$0x3f] %v2166
        %v2170 = vld [vmem:[%s689] sm:$0xff]
        %v2171 = vld [vmem:[%s689 + $0x8] sm:$0xff]
        %v2172 = vld [vmem:[%s692] sm:$0xff]
        %v2173 = vld [vmem:[%s692 + $0x8] sm:$0xff]
        %v2174 = vld [vmem:[%s695] sm:$0xff]
        %v2175 = vld [vmem:[%s695 + $0x8] sm:$0xff]
        %v2178 = vrot.slane %v2170, 1
        %v2179 = vrot.slane %v2171, 1
        %v2180 = vsel %vm906, %v2178, %v2179
        %v2183 = vrot.slane %v2170, 2
        %v2184 = vrot.slane %v2171, 2
        %v2185 = vsel %vm912, %v2183, %v2184
        %v2190 = vrot.slane %v2172, 1
        %v2191 = vrot.slane %v2173, 1
        %v2192 = vsel %vm906, %v2190, %v2191
        %v2195 = vrot.slane %v2172, 2
        %v2196 = vrot.slane %v2173, 2
        %v2197 = vsel %vm912, %v2195, %v2196
        %v2202 = vrot.slane %v2174, 1
        %v2203 = vrot.slane %v2175, 1
        %v2204 = vsel %vm906, %v2202, %v2203
        %v2207 = vrot.slane %v2174, 2
        %v2208 = vrot.slane %v2175, 2
        %v2209 = vsel %vm912, %v2207, %v2208
        %2212 = vmatpush.msra.mxu0 %v737
        %2213 = vmatpush.msra.mxu0 %v736
        %2214 = vmatpush.msra.mxu0 %v735
        %2215 = vmatpush.msra.mxu0 %v734
        %2216 = vmatpush.msra.mxu0 %v733
        %2217 = vmatpush.msra.mxu0 %v732
        %2218 = vmatpush.msra.mxu0 %v731
        %2219 = vmatpush.msra.mxu0 %v730
        %2220 = vmatpush.msra.mxu0 %v729
        %2221 = vmatpush.msra.mxu0 %v728
        %2222 = vmatpush.msra.mxu0 %v727
        %2223 = vmatpush.msra.mxu0 %v726
        %2224 = vmatpush.msra.mxu0 %v725
        %2225 = vmatpush.msra.mxu0 %v724
        %2226 = vmatpush.msra.mxu0 %v723
        %2227 = vmatpush.msra.mxu0 %v722
        %2228 = vmatmul.f32.gmra.mxu0 %v2170
        %v2229 = vpop.f32.mrf.mxu0
        %v2230 = vadd.f32 0.0, %v2229
        %2231 = vmatmul.f32.gmra.mxu0 %v2171
        %v2232 = vpop.f32.mrf.mxu0
        %v2233 = vadd.f32 0.0, %v2232
        %2234 = vdwg.mxu0
        %2235 = vmatpush.msra.mxu0 %v753
        %2236 = vmatpush.msra.mxu0 %v752
        %2237 = vmatpush.msra.mxu0 %v751
        %2238 = vmatpush.msra.mxu0 %v750
        %2239 = vmatpush.msra.mxu0 %v749
        %2240 = vmatpush.msra.mxu0 %v748
        %2241 = vmatpush.msra.mxu0 %v747
        %2242 = vmatpush.msra.mxu0 %v746
        %2243 = vmatpush.msra.mxu0 %v745
        %2244 = vmatpush.msra.mxu0 %v744
        %2245 = vmatpush.msra.mxu0 %v743
        %2246 = vmatpush.msra.mxu0 %v742
        %2247 = vmatpush.msra.mxu0 %v741
        %2248 = vmatpush.msra.mxu0 %v740
        %2249 = vmatpush.msra.mxu0 %v739
        %2250 = vmatpush.msra.mxu0 %v738
        %2251 = vmatmul.f32.gmra.mxu0 %v2180
        %v2252 = vpop.f32.mrf.mxu0
        %v2253 = vadd.f32 %v2230, %v2252
        %2254 = vmatmul.f32.gmra.mxu0 %v2179
        %v2255 = vpop.f32.mrf.mxu0
        %v2256 = vadd.f32 %v2233, %v2255
        %2257 = vdwg.mxu0
        %2258 = vmatpush.msra.mxu0 %v769
        %2259 = vmatpush.msra.mxu0 %v768
        %2260 = vmatpush.msra.mxu0 %v767
        %2261 = vmatpush.msra.mxu0 %v766
        %2262 = vmatpush.msra.mxu0 %v765
        %2263 = vmatpush.msra.mxu0 %v764
        %2264 = vmatpush.msra.mxu0 %v763
        %2265 = vmatpush.msra.mxu0 %v762
        %2266 = vmatpush.msra.mxu0 %v761
        %2267 = vmatpush.msra.mxu0 %v760
        %2268 = vmatpush.msra.mxu0 %v759
        %2269 = vmatpush.msra.mxu0 %v758
        %2270 = vmatpush.msra.mxu0 %v757
        %2271 = vmatpush.msra.mxu0 %v756
        %2272 = vmatpush.msra.mxu0 %v755
        %2273 = vmatpush.msra.mxu0 %v754
        %2274 = vmatmul.f32.gmra.mxu0 %v2185
        %v2275 = vpop.f32.mrf.mxu0
        %v2276 = vadd.f32 %v2253, %v2275
        %2277 = vmatmul.f32.gmra.mxu0 %v2184
        %v2278 = vpop.f32.mrf.mxu0
        %v2279 = vadd.f32 %v2256, %v2278
        %2280 = vdwg.mxu0
        %2281 = vmatpush.msra.mxu0 %v785
        %2282 = vmatpush.msra.mxu0 %v784
        %2283 = vmatpush.msra.mxu0 %v783
        %2284 = vmatpush.msra.mxu0 %v782
        %2285 = vmatpush.msra.mxu0 %v781
        %2286 = vmatpush.msra.mxu0 %v780
        %2287 = vmatpush.msra.mxu0 %v779
        %2288 = vmatpush.msra.mxu0 %v778
        %2289 = vmatpush.msra.mxu0 %v777
        %2290 = vmatpush.msra.mxu0 %v776
        %2291 = vmatpush.msra.mxu0 %v775
        %2292 = vmatpush.msra.mxu0 %v774
        %2293 = vmatpush.msra.mxu0 %v773
        %2294 = vmatpush.msra.mxu0 %v772
        %2295 = vmatpush.msra.mxu0 %v771
        %2296 = vmatpush.msra.mxu0 %v770
        %2297 = vmatmul.f32.gmra.mxu0 %v2172
        %v2298 = vpop.f32.mrf.mxu0
        %v2299 = vadd.f32 %v2276, %v2298
        %2300 = vmatmul.f32.gmra.mxu0 %v2173
        %v2301 = vpop.f32.mrf.mxu0
        %v2302 = vadd.f32 %v2279, %v2301
        %2303 = vdwg.mxu0
        %2304 = vmatpush.msra.mxu0 %v801
        %2305 = vmatpush.msra.mxu0 %v800
        %2306 = vmatpush.msra.mxu0 %v799
        %2307 = vmatpush.msra.mxu0 %v798
        %2308 = vmatpush.msra.mxu0 %v797
        %2309 = vmatpush.msra.mxu0 %v796
        %2310 = vmatpush.msra.mxu0 %v795
        %2311 = vmatpush.msra.mxu0 %v794
        %2312 = vmatpush.msra.mxu0 %v793
        %2313 = vmatpush.msra.mxu0 %v792
        %2314 = vmatpush.msra.mxu0 %v791
        %2315 = vmatpush.msra.mxu0 %v790
        %2316 = vmatpush.msra.mxu0 %v789
        %2317 = vmatpush.msra.mxu0 %v788
        %2318 = vmatpush.msra.mxu0 %v787
        %2319 = vmatpush.msra.mxu0 %v786
        %2320 = vmatmul.f32.gmra.mxu0 %v2192
        %v2321 = vpop.f32.mrf.mxu0
        %v2322 = vadd.f32 %v2299, %v2321
        %2323 = vmatmul.f32.gmra.mxu0 %v2191
        %v2324 = vpop.f32.mrf.mxu0
        %v2325 = vadd.f32 %v2302, %v2324
        %2326 = vdwg.mxu0
        %2327 = vmatpush.msra.mxu0 %v817
        %2328 = vmatpush.msra.mxu0 %v816
        %2329 = vmatpush.msra.mxu0 %v815
        %2330 = vmatpush.msra.mxu0 %v814
        %2331 = vmatpush.msra.mxu0 %v813
        %2332 = vmatpush.msra.mxu0 %v812
        %2333 = vmatpush.msra.mxu0 %v811
        %2334 = vmatpush.msra.mxu0 %v810
        %2335 = vmatpush.msra.mxu0 %v809
        %2336 = vmatpush.msra.mxu0 %v808
        %2337 = vmatpush.msra.mxu0 %v807
        %2338 = vmatpush.msra.mxu0 %v806
        %2339 = vmatpush.msra.mxu0 %v805
        %2340 = vmatpush.msra.mxu0 %v804
        %2341 = vmatpush.msra.mxu0 %v803
        %2342 = vmatpush.msra.mxu0 %v802
        %2343 = vmatmul.f32.gmra.mxu0 %v2197
        %v2344 = vpop.f32.mrf.mxu0
        %v2345 = vadd.f32 %v2322, %v2344
        %2346 = vmatmul.f32.gmra.mxu0 %v2196
        %v2347 = vpop.f32.mrf.mxu0
        %v2348 = vadd.f32 %v2325, %v2347
        %2349 = vdwg.mxu0
        %2350 = vmatpush.msra.mxu0 %v833
        %2351 = vmatpush.msra.mxu0 %v832
        %2352 = vmatpush.msra.mxu0 %v831
        %2353 = vmatpush.msra.mxu0 %v830
        %2354 = vmatpush.msra.mxu0 %v829
        %2355 = vmatpush.msra.mxu0 %v828
        %2356 = vmatpush.msra.mxu0 %v827
        %2357 = vmatpush.msra.mxu0 %v826
        %2358 = vmatpush.msra.mxu0 %v825
        %2359 = vmatpush.msra.mxu0 %v824
        %2360 = vmatpush.msra.mxu0 %v823
        %2361 = vmatpush.msra.mxu0 %v822
        %2362 = vmatpush.msra.mxu0 %v821
        %2363 = vmatpush.msra.mxu0 %v820
        %2364 = vmatpush.msra.mxu0 %v819
        %2365 = vmatpush.msra.mxu0 %v818
        %2366 = vmatmul.f32.gmra.mxu0 %v2174
        %v2367 = vpop.f32.mrf.mxu0
        %v2368 = vadd.f32 %v2345, %v2367
        %2369 = vmatmul.f32.gmra.mxu0 %v2175
        %v2370 = vpop.f32.mrf.mxu0
        %v2371 = vadd.f32 %v2348, %v2370
        %2372 = vdwg.mxu0
        %2373 = vmatpush.msra.mxu0 %v849
        %2374 = vmatpush.msra.mxu0 %v848
        %2375 = vmatpush.msra.mxu0 %v847
        %2376 = vmatpush.msra.mxu0 %v846
        %2377 = vmatpush.msra.mxu0 %v845
        %2378 = vmatpush.msra.mxu0 %v844
        %2379 = vmatpush.msra.mxu0 %v843
        %2380 = vmatpush.msra.mxu0 %v842
        %2381 = vmatpush.msra.mxu0 %v841
        %2382 = vmatpush.msra.mxu0 %v840
        %2383 = vmatpush.msra.mxu0 %v839
        %2384 = vmatpush.msra.mxu0 %v838
        %2385 = vmatpush.msra.mxu0 %v837
        %2386 = vmatpush.msra.mxu0 %v836
        %2387 = vmatpush.msra.mxu0 %v835
        %2388 = vmatpush.msra.mxu0 %v834
        %2389 = vmatmul.f32.gmra.mxu0 %v2204
        %v2390 = vpop.f32.mrf.mxu0
        %v2391 = vadd.f32 %v2368, %v2390
        %2392 = vmatmul.f32.gmra.mxu0 %v2203
        %v2393 = vpop.f32.mrf.mxu0
        %v2394 = vadd.f32 %v2371, %v2393
        %2395 = vdwg.mxu0
        %2396 = vmatpush.msra.mxu0 %v865
        %2397 = vmatpush.msra.mxu0 %v864
        %2398 = vmatpush.msra.mxu0 %v863
        %2399 = vmatpush.msra.mxu0 %v862
        %2400 = vmatpush.msra.mxu0 %v861
        %2401 = vmatpush.msra.mxu0 %v860
        %2402 = vmatpush.msra.mxu0 %v859
        %2403 = vmatpush.msra.mxu0 %v858
        %2404 = vmatpush.msra.mxu0 %v857
        %2405 = vmatpush.msra.mxu0 %v856
        %2406 = vmatpush.msra.mxu0 %v855
        %2407 = vmatpush.msra.mxu0 %v854
        %2408 = vmatpush.msra.mxu0 %v853
        %2409 = vmatpush.msra.mxu0 %v852
        %2410 = vmatpush.msra.mxu0 %v851
        %2411 = vmatpush.msra.mxu0 %v850
        %2412 = vmatmul.f32.gmra.mxu0 %v2209
        %v2413 = vpop.f32.mrf.mxu0
        %v2414 = vadd.f32 %v2391, %v2413
        %2415 = vmatmul.f32.gmra.mxu0 %v2208
        %v2416 = vpop.f32.mrf.mxu0
        %v2417 = vadd.f32 %v2394, %v2416
        %2418 = vdwg.mxu0
        %v2419 = vmax.f32 %v2414, 0.0
        %v2420 = vmax.f32 %v2417, 0.0
        %s2421 = scalar_lea.vmem [#allocation3], 96
        %2422 = vst [vmem:[%s2421 + $0x1] sm:$0xff] %v2419
        %2423 = vst [vmem:[%s2421 + $0x9] sm:$0x3f] %v2420
        %v2424 = vld [vmem:[%s692] sm:$0xff]
        %v2425 = vld [vmem:[%s692 + $0x8] sm:$0xff]
        %v2426 = vld [vmem:[%s695] sm:$0xff]
        %v2427 = vld [vmem:[%s695 + $0x8] sm:$0xff]
        %v2428 = vld [vmem:[%s698] sm:$0xff]
        %v2429 = vld [vmem:[%s698 + $0x8] sm:$0xff]
        %v2432 = vrot.slane %v2424, 1
        %v2433 = vrot.slane %v2425, 1
        %v2434 = vsel %vm906, %v2432, %v2433
        %v2437 = vrot.slane %v2424, 2
        %v2438 = vrot.slane %v2425, 2
        %v2439 = vsel %vm912, %v2437, %v2438
        %v2444 = vrot.slane %v2426, 1
        %v2445 = vrot.slane %v2427, 1
        %v2446 = vsel %vm906, %v2444, %v2445
        %v2449 = vrot.slane %v2426, 2
        %v2450 = vrot.slane %v2427, 2
        %v2451 = vsel %vm912, %v2449, %v2450
        %v2456 = vrot.slane %v2428, 1
        %v2457 = vrot.slane %v2429, 1
        %v2458 = vsel %vm906, %v2456, %v2457
        %v2461 = vrot.slane %v2428, 2
        %v2462 = vrot.slane %v2429, 2
        %v2463 = vsel %vm912, %v2461, %v2462
        %2466 = vmatpush.msra.mxu0 %v737
        %2467 = vmatpush.msra.mxu0 %v736
        %2468 = vmatpush.msra.mxu0 %v735
        %2469 = vmatpush.msra.mxu0 %v734
        %2470 = vmatpush.msra.mxu0 %v733
        %2471 = vmatpush.msra.mxu0 %v732
        %2472 = vmatpush.msra.mxu0 %v731
        %2473 = vmatpush.msra.mxu0 %v730
        %2474 = vmatpush.msra.mxu0 %v729
        %2475 = vmatpush.msra.mxu0 %v728
        %2476 = vmatpush.msra.mxu0 %v727
        %2477 = vmatpush.msra.mxu0 %v726
        %2478 = vmatpush.msra.mxu0 %v725
        %2479 = vmatpush.msra.mxu0 %v724
        %2480 = vmatpush.msra.mxu0 %v723
        %2481 = vmatpush.msra.mxu0 %v722
        %2482 = vmatmul.f32.gmra.mxu0 %v2424
        %v2483 = vpop.f32.mrf.mxu0
        %v2484 = vadd.f32 0.0, %v2483
        %2485 = vmatmul.f32.gmra.mxu0 %v2425
        %v2486 = vpop.f32.mrf.mxu0
        %v2487 = vadd.f32 0.0, %v2486
        %2488 = vdwg.mxu0
        %2489 = vmatpush.msra.mxu0 %v753
        %2490 = vmatpush.msra.mxu0 %v752
        %2491 = vmatpush.msra.mxu0 %v751
        %2492 = vmatpush.msra.mxu0 %v750
        %2493 = vmatpush.msra.mxu0 %v749
        %2494 = vmatpush.msra.mxu0 %v748
        %2495 = vmatpush.msra.mxu0 %v747
        %2496 = vmatpush.msra.mxu0 %v746
        %2497 = vmatpush.msra.mxu0 %v745
        %2498 = vmatpush.msra.mxu0 %v744
        %2499 = vmatpush.msra.mxu0 %v743
        %2500 = vmatpush.msra.mxu0 %v742
        %2501 = vmatpush.msra.mxu0 %v741
        %2502 = vmatpush.msra.mxu0 %v740
        %2503 = vmatpush.msra.mxu0 %v739
        %2504 = vmatpush.msra.mxu0 %v738
        %2505 = vmatmul.f32.gmra.mxu0 %v2434
        %v2506 = vpop.f32.mrf.mxu0
        %v2507 = vadd.f32 %v2484, %v2506
        %2508 = vmatmul.f32.gmra.mxu0 %v2433
        %v2509 = vpop.f32.mrf.mxu0
        %v2510 = vadd.f32 %v2487, %v2509
        %2511 = vdwg.mxu0
        %2512 = vmatpush.msra.mxu0 %v769
        %2513 = vmatpush.msra.mxu0 %v768
        %2514 = vmatpush.msra.mxu0 %v767
        %2515 = vmatpush.msra.mxu0 %v766
        %2516 = vmatpush.msra.mxu0 %v765
        %2517 = vmatpush.msra.mxu0 %v764
        %2518 = vmatpush.msra.mxu0 %v763
        %2519 = vmatpush.msra.mxu0 %v762
        %2520 = vmatpush.msra.mxu0 %v761
        %2521 = vmatpush.msra.mxu0 %v760
        %2522 = vmatpush.msra.mxu0 %v759
        %2523 = vmatpush.msra.mxu0 %v758
        %2524 = vmatpush.msra.mxu0 %v757
        %2525 = vmatpush.msra.mxu0 %v756
        %2526 = vmatpush.msra.mxu0 %v755
        %2527 = vmatpush.msra.mxu0 %v754
        %2528 = vmatmul.f32.gmra.mxu0 %v2439
        %v2529 = vpop.f32.mrf.mxu0
        %v2530 = vadd.f32 %v2507, %v2529
        %2531 = vmatmul.f32.gmra.mxu0 %v2438
        %v2532 = vpop.f32.mrf.mxu0
        %v2533 = vadd.f32 %v2510, %v2532
        %2534 = vdwg.mxu0
        %2535 = vmatpush.msra.mxu0 %v785
        %2536 = vmatpush.msra.mxu0 %v784
        %2537 = vmatpush.msra.mxu0 %v783
        %2538 = vmatpush.msra.mxu0 %v782
        %2539 = vmatpush.msra.mxu0 %v781
        %2540 = vmatpush.msra.mxu0 %v780
        %2541 = vmatpush.msra.mxu0 %v779
        %2542 = vmatpush.msra.mxu0 %v778
        %2543 = vmatpush.msra.mxu0 %v777
        %2544 = vmatpush.msra.mxu0 %v776
        %2545 = vmatpush.msra.mxu0 %v775
        %2546 = vmatpush.msra.mxu0 %v774
        %2547 = vmatpush.msra.mxu0 %v773
        %2548 = vmatpush.msra.mxu0 %v772
        %2549 = vmatpush.msra.mxu0 %v771
        %2550 = vmatpush.msra.mxu0 %v770
        %2551 = vmatmul.f32.gmra.mxu0 %v2426
        %v2552 = vpop.f32.mrf.mxu0
        %v2553 = vadd.f32 %v2530, %v2552
        %2554 = vmatmul.f32.gmra.mxu0 %v2427
        %v2555 = vpop.f32.mrf.mxu0
        %v2556 = vadd.f32 %v2533, %v2555
        %2557 = vdwg.mxu0
        %2558 = vmatpush.msra.mxu0 %v801
        %2559 = vmatpush.msra.mxu0 %v800
        %2560 = vmatpush.msra.mxu0 %v799
        %2561 = vmatpush.msra.mxu0 %v798
        %2562 = vmatpush.msra.mxu0 %v797
        %2563 = vmatpush.msra.mxu0 %v796
        %2564 = vmatpush.msra.mxu0 %v795
        %2565 = vmatpush.msra.mxu0 %v794
        %2566 = vmatpush.msra.mxu0 %v793
        %2567 = vmatpush.msra.mxu0 %v792
        %2568 = vmatpush.msra.mxu0 %v791
        %2569 = vmatpush.msra.mxu0 %v790
        %2570 = vmatpush.msra.mxu0 %v789
        %2571 = vmatpush.msra.mxu0 %v788
        %2572 = vmatpush.msra.mxu0 %v787
        %2573 = vmatpush.msra.mxu0 %v786
        %2574 = vmatmul.f32.gmra.mxu0 %v2446
        %v2575 = vpop.f32.mrf.mxu0
        %v2576 = vadd.f32 %v2553, %v2575
        %2577 = vmatmul.f32.gmra.mxu0 %v2445
        %v2578 = vpop.f32.mrf.mxu0
        %v2579 = vadd.f32 %v2556, %v2578
        %2580 = vdwg.mxu0
        %2581 = vmatpush.msra.mxu0 %v817
        %2582 = vmatpush.msra.mxu0 %v816
        %2583 = vmatpush.msra.mxu0 %v815
        %2584 = vmatpush.msra.mxu0 %v814
        %2585 = vmatpush.msra.mxu0 %v813
        %2586 = vmatpush.msra.mxu0 %v812
        %2587 = vmatpush.msra.mxu0 %v811
        %2588 = vmatpush.msra.mxu0 %v810
        %2589 = vmatpush.msra.mxu0 %v809
        %2590 = vmatpush.msra.mxu0 %v808
        %2591 = vmatpush.msra.mxu0 %v807
        %2592 = vmatpush.msra.mxu0 %v806
        %2593 = vmatpush.msra.mxu0 %v805
        %2594 = vmatpush.msra.mxu0 %v804
        %2595 = vmatpush.msra.mxu0 %v803
        %2596 = vmatpush.msra.mxu0 %v802
        %2597 = vmatmul.f32.gmra.mxu0 %v2451
        %v2598 = vpop.f32.mrf.mxu0
        %v2599 = vadd.f32 %v2576, %v2598
        %2600 = vmatmul.f32.gmra.mxu0 %v2450
        %v2601 = vpop.f32.mrf.mxu0
        %v2602 = vadd.f32 %v2579, %v2601
        %2603 = vdwg.mxu0
        %2604 = vmatpush.msra.mxu0 %v833
        %2605 = vmatpush.msra.mxu0 %v832
        %2606 = vmatpush.msra.mxu0 %v831
        %2607 = vmatpush.msra.mxu0 %v830
        %2608 = vmatpush.msra.mxu0 %v829
        %2609 = vmatpush.msra.mxu0 %v828
        %2610 = vmatpush.msra.mxu0 %v827
        %2611 = vmatpush.msra.mxu0 %v826
        %2612 = vmatpush.msra.mxu0 %v825
        %2613 = vmatpush.msra.mxu0 %v824
        %2614 = vmatpush.msra.mxu0 %v823
        %2615 = vmatpush.msra.mxu0 %v822
        %2616 = vmatpush.msra.mxu0 %v821
        %2617 = vmatpush.msra.mxu0 %v820
        %2618 = vmatpush.msra.mxu0 %v819
        %2619 = vmatpush.msra.mxu0 %v818
        %2620 = vmatmul.f32.gmra.mxu0 %v2428
        %v2621 = vpop.f32.mrf.mxu0
        %v2622 = vadd.f32 %v2599, %v2621
        %2623 = vmatmul.f32.gmra.mxu0 %v2429
        %v2624 = vpop.f32.mrf.mxu0
        %v2625 = vadd.f32 %v2602, %v2624
        %2626 = vdwg.mxu0
        %2627 = vmatpush.msra.mxu0 %v849
        %2628 = vmatpush.msra.mxu0 %v848
        %2629 = vmatpush.msra.mxu0 %v847
        %2630 = vmatpush.msra.mxu0 %v846
        %2631 = vmatpush.msra.mxu0 %v845
        %2632 = vmatpush.msra.mxu0 %v844
        %2633 = vmatpush.msra.mxu0 %v843
        %2634 = vmatpush.msra.mxu0 %v842
        %2635 = vmatpush.msra.mxu0 %v841
        %2636 = vmatpush.msra.mxu0 %v840
        %2637 = vmatpush.msra.mxu0 %v839
        %2638 = vmatpush.msra.mxu0 %v838
        %2639 = vmatpush.msra.mxu0 %v837
        %2640 = vmatpush.msra.mxu0 %v836
        %2641 = vmatpush.msra.mxu0 %v835
        %2642 = vmatpush.msra.mxu0 %v834
        %2643 = vmatmul.f32.gmra.mxu0 %v2458
        %v2644 = vpop.f32.mrf.mxu0
        %v2645 = vadd.f32 %v2622, %v2644
        %2646 = vmatmul.f32.gmra.mxu0 %v2457
        %v2647 = vpop.f32.mrf.mxu0
        %v2648 = vadd.f32 %v2625, %v2647
        %2649 = vdwg.mxu0
        %2650 = vmatpush.msra.mxu0 %v865
        %2651 = vmatpush.msra.mxu0 %v864
        %2652 = vmatpush.msra.mxu0 %v863
        %2653 = vmatpush.msra.mxu0 %v862
        %2654 = vmatpush.msra.mxu0 %v861
        %2655 = vmatpush.msra.mxu0 %v860
        %2656 = vmatpush.msra.mxu0 %v859
        %2657 = vmatpush.msra.mxu0 %v858
        %2658 = vmatpush.msra.mxu0 %v857
        %2659 = vmatpush.msra.mxu0 %v856
        %2660 = vmatpush.msra.mxu0 %v855
        %2661 = vmatpush.msra.mxu0 %v854
        %2662 = vmatpush.msra.mxu0 %v853
        %2663 = vmatpush.msra.mxu0 %v852
        %2664 = vmatpush.msra.mxu0 %v851
        %2665 = vmatpush.msra.mxu0 %v850
        %2666 = vmatmul.f32.gmra.mxu0 %v2463
        %v2667 = vpop.f32.mrf.mxu0
        %v2668 = vadd.f32 %v2645, %v2667
        %2669 = vmatmul.f32.gmra.mxu0 %v2462
        %v2670 = vpop.f32.mrf.mxu0
        %v2671 = vadd.f32 %v2648, %v2670
        %2672 = vdwg.mxu0
        %v2673 = vmax.f32 %v2668, 0.0
        %v2674 = vmax.f32 %v2671, 0.0
        %s2675 = scalar_lea.vmem [#allocation3], 112
        %2676 = vst [vmem:[%s2675 + $0x1] sm:$0xff] %v2673
        %2677 = vst [vmem:[%s2675 + $0x9] sm:$0x3f] %v2674
        %v2678 = vld [vmem:[%s695] sm:$0xff]
        %v2679 = vld [vmem:[%s695 + $0x8] sm:$0xff]
        %v2680 = vld [vmem:[%s698] sm:$0xff]
        %v2681 = vld [vmem:[%s698 + $0x8] sm:$0xff]
        %v2682 = vld [vmem:[%s701] sm:$0xff]
        %v2683 = vld [vmem:[%s701 + $0x8] sm:$0xff]
        %v2686 = vrot.slane %v2678, 1
        %v2687 = vrot.slane %v2679, 1
        %v2688 = vsel %vm906, %v2686, %v2687
        %v2691 = vrot.slane %v2678, 2
        %v2692 = vrot.slane %v2679, 2
        %v2693 = vsel %vm912, %v2691, %v2692
        %v2698 = vrot.slane %v2680, 1
        %v2699 = vrot.slane %v2681, 1
        %v2700 = vsel %vm906, %v2698, %v2699
        %v2703 = vrot.slane %v2680, 2
        %v2704 = vrot.slane %v2681, 2
        %v2705 = vsel %vm912, %v2703, %v2704
        %v2710 = vrot.slane %v2682, 1
        %v2711 = vrot.slane %v2683, 1
        %v2712 = vsel %vm906, %v2710, %v2711
        %v2715 = vrot.slane %v2682, 2
        %v2716 = vrot.slane %v2683, 2
        %v2717 = vsel %vm912, %v2715, %v2716
        %2720 = vmatpush.msra.mxu0 %v737
        %2721 = vmatpush.msra.mxu0 %v736
        %2722 = vmatpush.msra.mxu0 %v735
        %2723 = vmatpush.msra.mxu0 %v734
        %2724 = vmatpush.msra.mxu0 %v733
        %2725 = vmatpush.msra.mxu0 %v732
        %2726 = vmatpush.msra.mxu0 %v731
        %2727 = vmatpush.msra.mxu0 %v730
        %2728 = vmatpush.msra.mxu0 %v729
        %2729 = vmatpush.msra.mxu0 %v728
        %2730 = vmatpush.msra.mxu0 %v727
        %2731 = vmatpush.msra.mxu0 %v726
        %2732 = vmatpush.msra.mxu0 %v725
        %2733 = vmatpush.msra.mxu0 %v724
        %2734 = vmatpush.msra.mxu0 %v723
        %2735 = vmatpush.msra.mxu0 %v722
        %2736 = vmatmul.f32.gmra.mxu0 %v2678
        %v2737 = vpop.f32.mrf.mxu0
        %v2738 = vadd.f32 0.0, %v2737
        %2739 = vmatmul.f32.gmra.mxu0 %v2679
        %v2740 = vpop.f32.mrf.mxu0
        %v2741 = vadd.f32 0.0, %v2740
        %2742 = vdwg.mxu0
        %2743 = vmatpush.msra.mxu0 %v753
        %2744 = vmatpush.msra.mxu0 %v752
        %2745 = vmatpush.msra.mxu0 %v751
        %2746 = vmatpush.msra.mxu0 %v750
        %2747 = vmatpush.msra.mxu0 %v749
        %2748 = vmatpush.msra.mxu0 %v748
        %2749 = vmatpush.msra.mxu0 %v747
        %2750 = vmatpush.msra.mxu0 %v746
        %2751 = vmatpush.msra.mxu0 %v745
        %2752 = vmatpush.msra.mxu0 %v744
        %2753 = vmatpush.msra.mxu0 %v743
        %2754 = vmatpush.msra.mxu0 %v742
        %2755 = vmatpush.msra.mxu0 %v741
        %2756 = vmatpush.msra.mxu0 %v740
        %2757 = vmatpush.msra.mxu0 %v739
        %2758 = vmatpush.msra.mxu0 %v738
        %2759 = vmatmul.f32.gmra.mxu0 %v2688
        %v2760 = vpop.f32.mrf.mxu0
        %v2761 = vadd.f32 %v2738, %v2760
        %2762 = vmatmul.f32.gmra.mxu0 %v2687
        %v2763 = vpop.f32.mrf.mxu0
        %v2764 = vadd.f32 %v2741, %v2763
        %2765 = vdwg.mxu0
        %2766 = vmatpush.msra.mxu0 %v769
        %2767 = vmatpush.msra.mxu0 %v768
        %2768 = vmatpush.msra.mxu0 %v767
        %2769 = vmatpush.msra.mxu0 %v766
        %2770 = vmatpush.msra.mxu0 %v765
        %2771 = vmatpush.msra.mxu0 %v764
        %2772 = vmatpush.msra.mxu0 %v763
        %2773 = vmatpush.msra.mxu0 %v762
        %2774 = vmatpush.msra.mxu0 %v761
        %2775 = vmatpush.msra.mxu0 %v760
        %2776 = vmatpush.msra.mxu0 %v759
        %2777 = vmatpush.msra.mxu0 %v758
        %2778 = vmatpush.msra.mxu0 %v757
        %2779 = vmatpush.msra.mxu0 %v756
        %2780 = vmatpush.msra.mxu0 %v755
        %2781 = vmatpush.msra.mxu0 %v754
        %2782 = vmatmul.f32.gmra.mxu0 %v2693
        %v2783 = vpop.f32.mrf.mxu0
        %v2784 = vadd.f32 %v2761, %v2783
        %2785 = vmatmul.f32.gmra.mxu0 %v2692
        %v2786 = vpop.f32.mrf.mxu0
        %v2787 = vadd.f32 %v2764, %v2786
        %2788 = vdwg.mxu0
        %2789 = vmatpush.msra.mxu0 %v785
        %2790 = vmatpush.msra.mxu0 %v784
        %2791 = vmatpush.msra.mxu0 %v783
        %2792 = vmatpush.msra.mxu0 %v782
        %2793 = vmatpush.msra.mxu0 %v781
        %2794 = vmatpush.msra.mxu0 %v780
        %2795 = vmatpush.msra.mxu0 %v779
        %2796 = vmatpush.msra.mxu0 %v778
        %2797 = vmatpush.msra.mxu0 %v777
        %2798 = vmatpush.msra.mxu0 %v776
        %2799 = vmatpush.msra.mxu0 %v775
        %2800 = vmatpush.msra.mxu0 %v774
        %2801 = vmatpush.msra.mxu0 %v773
        %2802 = vmatpush.msra.mxu0 %v772
        %2803 = vmatpush.msra.mxu0 %v771
        %2804 = vmatpush.msra.mxu0 %v770
        %2805 = vmatmul.f32.gmra.mxu0 %v2680
        %v2806 = vpop.f32.mrf.mxu0
        %v2807 = vadd.f32 %v2784, %v2806
        %2808 = vmatmul.f32.gmra.mxu0 %v2681
        %v2809 = vpop.f32.mrf.mxu0
        %v2810 = vadd.f32 %v2787, %v2809
        %2811 = vdwg.mxu0
        %2812 = vmatpush.msra.mxu0 %v801
        %2813 = vmatpush.msra.mxu0 %v800
        %2814 = vmatpush.msra.mxu0 %v799
        %2815 = vmatpush.msra.mxu0 %v798
        %2816 = vmatpush.msra.mxu0 %v797
        %2817 = vmatpush.msra.mxu0 %v796
        %2818 = vmatpush.msra.mxu0 %v795
        %2819 = vmatpush.msra.mxu0 %v794
        %2820 = vmatpush.msra.mxu0 %v793
        %2821 = vmatpush.msra.mxu0 %v792
        %2822 = vmatpush.msra.mxu0 %v791
        %2823 = vmatpush.msra.mxu0 %v790
        %2824 = vmatpush.msra.mxu0 %v789
        %2825 = vmatpush.msra.mxu0 %v788
        %2826 = vmatpush.msra.mxu0 %v787
        %2827 = vmatpush.msra.mxu0 %v786
        %2828 = vmatmul.f32.gmra.mxu0 %v2700
        %v2829 = vpop.f32.mrf.mxu0
        %v2830 = vadd.f32 %v2807, %v2829
        %2831 = vmatmul.f32.gmra.mxu0 %v2699
        %v2832 = vpop.f32.mrf.mxu0
        %v2833 = vadd.f32 %v2810, %v2832
        %2834 = vdwg.mxu0
        %2835 = vmatpush.msra.mxu0 %v817
        %2836 = vmatpush.msra.mxu0 %v816
        %2837 = vmatpush.msra.mxu0 %v815
        %2838 = vmatpush.msra.mxu0 %v814
        %2839 = vmatpush.msra.mxu0 %v813
        %2840 = vmatpush.msra.mxu0 %v812
        %2841 = vmatpush.msra.mxu0 %v811
        %2842 = vmatpush.msra.mxu0 %v810
        %2843 = vmatpush.msra.mxu0 %v809
        %2844 = vmatpush.msra.mxu0 %v808
        %2845 = vmatpush.msra.mxu0 %v807
        %2846 = vmatpush.msra.mxu0 %v806
        %2847 = vmatpush.msra.mxu0 %v805
        %2848 = vmatpush.msra.mxu0 %v804
        %2849 = vmatpush.msra.mxu0 %v803
        %2850 = vmatpush.msra.mxu0 %v802
        %2851 = vmatmul.f32.gmra.mxu0 %v2705
        %v2852 = vpop.f32.mrf.mxu0
        %v2853 = vadd.f32 %v2830, %v2852
        %2854 = vmatmul.f32.gmra.mxu0 %v2704
        %v2855 = vpop.f32.mrf.mxu0
        %v2856 = vadd.f32 %v2833, %v2855
        %2857 = vdwg.mxu0
        %2858 = vmatpush.msra.mxu0 %v833
        %2859 = vmatpush.msra.mxu0 %v832
        %2860 = vmatpush.msra.mxu0 %v831
        %2861 = vmatpush.msra.mxu0 %v830
        %2862 = vmatpush.msra.mxu0 %v829
        %2863 = vmatpush.msra.mxu0 %v828
        %2864 = vmatpush.msra.mxu0 %v827
        %2865 = vmatpush.msra.mxu0 %v826
        %2866 = vmatpush.msra.mxu0 %v825
        %2867 = vmatpush.msra.mxu0 %v824
        %2868 = vmatpush.msra.mxu0 %v823
        %2869 = vmatpush.msra.mxu0 %v822
        %2870 = vmatpush.msra.mxu0 %v821
        %2871 = vmatpush.msra.mxu0 %v820
        %2872 = vmatpush.msra.mxu0 %v819
        %2873 = vmatpush.msra.mxu0 %v818
        %2874 = vmatmul.f32.gmra.mxu0 %v2682
        %v2875 = vpop.f32.mrf.mxu0
        %v2876 = vadd.f32 %v2853, %v2875
        %2877 = vmatmul.f32.gmra.mxu0 %v2683
        %v2878 = vpop.f32.mrf.mxu0
        %v2879 = vadd.f32 %v2856, %v2878
        %2880 = vdwg.mxu0
        %2881 = vmatpush.msra.mxu0 %v849
        %2882 = vmatpush.msra.mxu0 %v848
        %2883 = vmatpush.msra.mxu0 %v847
        %2884 = vmatpush.msra.mxu0 %v846
        %2885 = vmatpush.msra.mxu0 %v845
        %2886 = vmatpush.msra.mxu0 %v844
        %2887 = vmatpush.msra.mxu0 %v843
        %2888 = vmatpush.msra.mxu0 %v842
        %2889 = vmatpush.msra.mxu0 %v841
        %2890 = vmatpush.msra.mxu0 %v840
        %2891 = vmatpush.msra.mxu0 %v839
        %2892 = vmatpush.msra.mxu0 %v838
        %2893 = vmatpush.msra.mxu0 %v837
        %2894 = vmatpush.msra.mxu0 %v836
        %2895 = vmatpush.msra.mxu0 %v835
        %2896 = vmatpush.msra.mxu0 %v834
        %2897 = vmatmul.f32.gmra.mxu0 %v2712
        %v2898 = vpop.f32.mrf.mxu0
        %v2899 = vadd.f32 %v2876, %v2898
        %2900 = vmatmul.f32.gmra.mxu0 %v2711
        %v2901 = vpop.f32.mrf.mxu0
        %v2902 = vadd.f32 %v2879, %v2901
        %2903 = vdwg.mxu0
        %2904 = vmatpush.msra.mxu0 %v865
        %2905 = vmatpush.msra.mxu0 %v864
        %2906 = vmatpush.msra.mxu0 %v863
        %2907 = vmatpush.msra.mxu0 %v862
        %2908 = vmatpush.msra.mxu0 %v861
        %2909 = vmatpush.msra.mxu0 %v860
        %2910 = vmatpush.msra.mxu0 %v859
        %2911 = vmatpush.msra.mxu0 %v858
        %2912 = vmatpush.msra.mxu0 %v857
        %2913 = vmatpush.msra.mxu0 %v856
        %2914 = vmatpush.msra.mxu0 %v855
        %2915 = vmatpush.msra.mxu0 %v854
        %2916 = vmatpush.msra.mxu0 %v853
        %2917 = vmatpush.msra.mxu0 %v852
        %2918 = vmatpush.msra.mxu0 %v851
        %2919 = vmatpush.msra.mxu0 %v850
        %2920 = vmatmul.f32.gmra.mxu0 %v2717
        %v2921 = vpop.f32.mrf.mxu0
        %v2922 = vadd.f32 %v2899, %v2921
        %2923 = vmatmul.f32.gmra.mxu0 %v2716
        %v2924 = vpop.f32.mrf.mxu0
        %v2925 = vadd.f32 %v2902, %v2924
        %2926 = vdwg.mxu0
        %v2927 = vmax.f32 %v2922, 0.0
        %v2928 = vmax.f32 %v2925, 0.0
        %s2929 = scalar_lea.vmem [#allocation3], 128
        %2930 = vst [vmem:[%s2929 + $0x1] sm:$0xff] %v2927
        %2931 = vst [vmem:[%s2929 + $0x9] sm:$0x3f] %v2928
        %v2932 = vld [vmem:[%s698] sm:$0xff]
        %v2933 = vld [vmem:[%s698 + $0x8] sm:$0xff]
        %v2934 = vld [vmem:[%s701] sm:$0xff]
        %v2935 = vld [vmem:[%s701 + $0x8] sm:$0xff]
        %v2936 = vld [vmem:[%s704] sm:$0xff]
        %v2937 = vld [vmem:[%s704 + $0x8] sm:$0xff]
        %v2940 = vrot.slane %v2932, 1
        %v2941 = vrot.slane %v2933, 1
        %v2942 = vsel %vm906, %v2940, %v2941
        %v2945 = vrot.slane %v2932, 2
        %v2946 = vrot.slane %v2933, 2
        %v2947 = vsel %vm912, %v2945, %v2946
        %v2952 = vrot.slane %v2934, 1
        %v2953 = vrot.slane %v2935, 1
        %v2954 = vsel %vm906, %v2952, %v2953
        %v2957 = vrot.slane %v2934, 2
        %v2958 = vrot.slane %v2935, 2
        %v2959 = vsel %vm912, %v2957, %v2958
        %v2964 = vrot.slane %v2936, 1
        %v2965 = vrot.slane %v2937, 1
        %v2966 = vsel %vm906, %v2964, %v2965
        %v2969 = vrot.slane %v2936, 2
        %v2970 = vrot.slane %v2937, 2
        %v2971 = vsel %vm912, %v2969, %v2970
        %2974 = vmatpush.msra.mxu0 %v737
        %2975 = vmatpush.msra.mxu0 %v736
        %2976 = vmatpush.msra.mxu0 %v735
        %2977 = vmatpush.msra.mxu0 %v734
        %2978 = vmatpush.msra.mxu0 %v733
        %2979 = vmatpush.msra.mxu0 %v732
        %2980 = vmatpush.msra.mxu0 %v731
        %2981 = vmatpush.msra.mxu0 %v730
        %2982 = vmatpush.msra.mxu0 %v729
        %2983 = vmatpush.msra.mxu0 %v728
        %2984 = vmatpush.msra.mxu0 %v727
        %2985 = vmatpush.msra.mxu0 %v726
        %2986 = vmatpush.msra.mxu0 %v725
        %2987 = vmatpush.msra.mxu0 %v724
        %2988 = vmatpush.msra.mxu0 %v723
        %2989 = vmatpush.msra.mxu0 %v722
        %2990 = vmatmul.f32.gmra.mxu0 %v2932
        %v2991 = vpop.f32.mrf.mxu0
        %v2992 = vadd.f32 0.0, %v2991
        %2993 = vmatmul.f32.gmra.mxu0 %v2933
        %v2994 = vpop.f32.mrf.mxu0
        %v2995 = vadd.f32 0.0, %v2994
        %2996 = vdwg.mxu0
        %2997 = vmatpush.msra.mxu0 %v753
        %2998 = vmatpush.msra.mxu0 %v752
        %2999 = vmatpush.msra.mxu0 %v751
        %3000 = vmatpush.msra.mxu0 %v750
        %3001 = vmatpush.msra.mxu0 %v749
        %3002 = vmatpush.msra.mxu0 %v748
        %3003 = vmatpush.msra.mxu0 %v747
        %3004 = vmatpush.msra.mxu0 %v746
        %3005 = vmatpush.msra.mxu0 %v745
        %3006 = vmatpush.msra.mxu0 %v744
        %3007 = vmatpush.msra.mxu0 %v743
        %3008 = vmatpush.msra.mxu0 %v742
        %3009 = vmatpush.msra.mxu0 %v741
        %3010 = vmatpush.msra.mxu0 %v740
        %3011 = vmatpush.msra.mxu0 %v739
        %3012 = vmatpush.msra.mxu0 %v738
        %3013 = vmatmul.f32.gmra.mxu0 %v2942
        %v3014 = vpop.f32.mrf.mxu0
        %v3015 = vadd.f32 %v2992, %v3014
        %3016 = vmatmul.f32.gmra.mxu0 %v2941
        %v3017 = vpop.f32.mrf.mxu0
        %v3018 = vadd.f32 %v2995, %v3017
        %3019 = vdwg.mxu0
        %3020 = vmatpush.msra.mxu0 %v769
        %3021 = vmatpush.msra.mxu0 %v768
        %3022 = vmatpush.msra.mxu0 %v767
        %3023 = vmatpush.msra.mxu0 %v766
        %3024 = vmatpush.msra.mxu0 %v765
        %3025 = vmatpush.msra.mxu0 %v764
        %3026 = vmatpush.msra.mxu0 %v763
        %3027 = vmatpush.msra.mxu0 %v762
        %3028 = vmatpush.msra.mxu0 %v761
        %3029 = vmatpush.msra.mxu0 %v760
        %3030 = vmatpush.msra.mxu0 %v759
        %3031 = vmatpush.msra.mxu0 %v758
        %3032 = vmatpush.msra.mxu0 %v757
        %3033 = vmatpush.msra.mxu0 %v756
        %3034 = vmatpush.msra.mxu0 %v755
        %3035 = vmatpush.msra.mxu0 %v754
        %3036 = vmatmul.f32.gmra.mxu0 %v2947
        %v3037 = vpop.f32.mrf.mxu0
        %v3038 = vadd.f32 %v3015, %v3037
        %3039 = vmatmul.f32.gmra.mxu0 %v2946
        %v3040 = vpop.f32.mrf.mxu0
        %v3041 = vadd.f32 %v3018, %v3040
        %3042 = vdwg.mxu0
        %3043 = vmatpush.msra.mxu0 %v785
        %3044 = vmatpush.msra.mxu0 %v784
        %3045 = vmatpush.msra.mxu0 %v783
        %3046 = vmatpush.msra.mxu0 %v782
        %3047 = vmatpush.msra.mxu0 %v781
        %3048 = vmatpush.msra.mxu0 %v780
        %3049 = vmatpush.msra.mxu0 %v779
        %3050 = vmatpush.msra.mxu0 %v778
        %3051 = vmatpush.msra.mxu0 %v777
        %3052 = vmatpush.msra.mxu0 %v776
        %3053 = vmatpush.msra.mxu0 %v775
        %3054 = vmatpush.msra.mxu0 %v774
        %3055 = vmatpush.msra.mxu0 %v773
        %3056 = vmatpush.msra.mxu0 %v772
        %3057 = vmatpush.msra.mxu0 %v771
        %3058 = vmatpush.msra.mxu0 %v770
        %3059 = vmatmul.f32.gmra.mxu0 %v2934
        %v3060 = vpop.f32.mrf.mxu0
        %v3061 = vadd.f32 %v3038, %v3060
        %3062 = vmatmul.f32.gmra.mxu0 %v2935
        %v3063 = vpop.f32.mrf.mxu0
        %v3064 = vadd.f32 %v3041, %v3063
        %3065 = vdwg.mxu0
        %3066 = vmatpush.msra.mxu0 %v801
        %3067 = vmatpush.msra.mxu0 %v800
        %3068 = vmatpush.msra.mxu0 %v799
        %3069 = vmatpush.msra.mxu0 %v798
        %3070 = vmatpush.msra.mxu0 %v797
        %3071 = vmatpush.msra.mxu0 %v796
        %3072 = vmatpush.msra.mxu0 %v795
        %3073 = vmatpush.msra.mxu0 %v794
        %3074 = vmatpush.msra.mxu0 %v793
        %3075 = vmatpush.msra.mxu0 %v792
        %3076 = vmatpush.msra.mxu0 %v791
        %3077 = vmatpush.msra.mxu0 %v790
        %3078 = vmatpush.msra.mxu0 %v789
        %3079 = vmatpush.msra.mxu0 %v788
        %3080 = vmatpush.msra.mxu0 %v787
        %3081 = vmatpush.msra.mxu0 %v786
        %3082 = vmatmul.f32.gmra.mxu0 %v2954
        %v3083 = vpop.f32.mrf.mxu0
        %v3084 = vadd.f32 %v3061, %v3083
        %3085 = vmatmul.f32.gmra.mxu0 %v2953
        %v3086 = vpop.f32.mrf.mxu0
        %v3087 = vadd.f32 %v3064, %v3086
        %3088 = vdwg.mxu0
        %3089 = vmatpush.msra.mxu0 %v817
        %3090 = vmatpush.msra.mxu0 %v816
        %3091 = vmatpush.msra.mxu0 %v815
        %3092 = vmatpush.msra.mxu0 %v814
        %3093 = vmatpush.msra.mxu0 %v813
        %3094 = vmatpush.msra.mxu0 %v812
        %3095 = vmatpush.msra.mxu0 %v811
        %3096 = vmatpush.msra.mxu0 %v810
        %3097 = vmatpush.msra.mxu0 %v809
        %3098 = vmatpush.msra.mxu0 %v808
        %3099 = vmatpush.msra.mxu0 %v807
        %3100 = vmatpush.msra.mxu0 %v806
        %3101 = vmatpush.msra.mxu0 %v805
        %3102 = vmatpush.msra.mxu0 %v804
        %3103 = vmatpush.msra.mxu0 %v803
        %3104 = vmatpush.msra.mxu0 %v802
        %3105 = vmatmul.f32.gmra.mxu0 %v2959
        %v3106 = vpop.f32.mrf.mxu0
        %v3107 = vadd.f32 %v3084, %v3106
        %3108 = vmatmul.f32.gmra.mxu0 %v2958
        %v3109 = vpop.f32.mrf.mxu0
        %v3110 = vadd.f32 %v3087, %v3109
        %3111 = vdwg.mxu0
        %3112 = vmatpush.msra.mxu0 %v833
        %3113 = vmatpush.msra.mxu0 %v832
        %3114 = vmatpush.msra.mxu0 %v831
        %3115 = vmatpush.msra.mxu0 %v830
        %3116 = vmatpush.msra.mxu0 %v829
        %3117 = vmatpush.msra.mxu0 %v828
        %3118 = vmatpush.msra.mxu0 %v827
        %3119 = vmatpush.msra.mxu0 %v826
        %3120 = vmatpush.msra.mxu0 %v825
        %3121 = vmatpush.msra.mxu0 %v824
        %3122 = vmatpush.msra.mxu0 %v823
        %3123 = vmatpush.msra.mxu0 %v822
        %3124 = vmatpush.msra.mxu0 %v821
        %3125 = vmatpush.msra.mxu0 %v820
        %3126 = vmatpush.msra.mxu0 %v819
        %3127 = vmatpush.msra.mxu0 %v818
        %3128 = vmatmul.f32.gmra.mxu0 %v2936
        %v3129 = vpop.f32.mrf.mxu0
        %v3130 = vadd.f32 %v3107, %v3129
        %3131 = vmatmul.f32.gmra.mxu0 %v2937
        %v3132 = vpop.f32.mrf.mxu0
        %v3133 = vadd.f32 %v3110, %v3132
        %3134 = vdwg.mxu0
        %3135 = vmatpush.msra.mxu0 %v849
        %3136 = vmatpush.msra.mxu0 %v848
        %3137 = vmatpush.msra.mxu0 %v847
        %3138 = vmatpush.msra.mxu0 %v846
        %3139 = vmatpush.msra.mxu0 %v845
        %3140 = vmatpush.msra.mxu0 %v844
        %3141 = vmatpush.msra.mxu0 %v843
        %3142 = vmatpush.msra.mxu0 %v842
        %3143 = vmatpush.msra.mxu0 %v841
        %3144 = vmatpush.msra.mxu0 %v840
        %3145 = vmatpush.msra.mxu0 %v839
        %3146 = vmatpush.msra.mxu0 %v838
        %3147 = vmatpush.msra.mxu0 %v837
        %3148 = vmatpush.msra.mxu0 %v836
        %3149 = vmatpush.msra.mxu0 %v835
        %3150 = vmatpush.msra.mxu0 %v834
        %3151 = vmatmul.f32.gmra.mxu0 %v2966
        %v3152 = vpop.f32.mrf.mxu0
        %v3153 = vadd.f32 %v3130, %v3152
        %3154 = vmatmul.f32.gmra.mxu0 %v2965
        %v3155 = vpop.f32.mrf.mxu0
        %v3156 = vadd.f32 %v3133, %v3155
        %3157 = vdwg.mxu0
        %3158 = vmatpush.msra.mxu0 %v865
        %3159 = vmatpush.msra.mxu0 %v864
        %3160 = vmatpush.msra.mxu0 %v863
        %3161 = vmatpush.msra.mxu0 %v862
        %3162 = vmatpush.msra.mxu0 %v861
        %3163 = vmatpush.msra.mxu0 %v860
        %3164 = vmatpush.msra.mxu0 %v859
        %3165 = vmatpush.msra.mxu0 %v858
        %3166 = vmatpush.msra.mxu0 %v857
        %3167 = vmatpush.msra.mxu0 %v856
        %3168 = vmatpush.msra.mxu0 %v855
        %3169 = vmatpush.msra.mxu0 %v854
        %3170 = vmatpush.msra.mxu0 %v853
        %3171 = vmatpush.msra.mxu0 %v852
        %3172 = vmatpush.msra.mxu0 %v851
        %3173 = vmatpush.msra.mxu0 %v850
        %3174 = vmatmul.f32.gmra.mxu0 %v2971
        %v3175 = vpop.f32.mrf.mxu0
        %v3176 = vadd.f32 %v3153, %v3175
        %3177 = vmatmul.f32.gmra.mxu0 %v2970
        %v3178 = vpop.f32.mrf.mxu0
        %v3179 = vadd.f32 %v3156, %v3178
        %3180 = vdwg.mxu0
        %v3181 = vmax.f32 %v3176, 0.0
        %v3182 = vmax.f32 %v3179, 0.0
        %s3183 = scalar_lea.vmem [#allocation3], 144
        %3184 = vst [vmem:[%s3183 + $0x1] sm:$0xff] %v3181
        %3185 = vst [vmem:[%s3183 + $0x9] sm:$0x3f] %v3182
        %v3186 = vld [vmem:[%s701] sm:$0xff]
        %v3187 = vld [vmem:[%s701 + $0x8] sm:$0xff]
        %v3188 = vld [vmem:[%s704] sm:$0xff]
        %v3189 = vld [vmem:[%s704 + $0x8] sm:$0xff]
        %v3190 = vld [vmem:[%s707] sm:$0xff]
        %v3191 = vld [vmem:[%s707 + $0x8] sm:$0xff]
        %v3194 = vrot.slane %v3186, 1
        %v3195 = vrot.slane %v3187, 1
        %v3196 = vsel %vm906, %v3194, %v3195
        %v3199 = vrot.slane %v3186, 2
        %v3200 = vrot.slane %v3187, 2
        %v3201 = vsel %vm912, %v3199, %v3200
        %v3206 = vrot.slane %v3188, 1
        %v3207 = vrot.slane %v3189, 1
        %v3208 = vsel %vm906, %v3206, %v3207
        %v3211 = vrot.slane %v3188, 2
        %v3212 = vrot.slane %v3189, 2
        %v3213 = vsel %vm912, %v3211, %v3212
        %v3218 = vrot.slane %v3190, 1
        %v3219 = vrot.slane %v3191, 1
        %v3220 = vsel %vm906, %v3218, %v3219
        %v3223 = vrot.slane %v3190, 2
        %v3224 = vrot.slane %v3191, 2
        %v3225 = vsel %vm912, %v3223, %v3224
        %3228 = vmatpush.msra.mxu0 %v737
        %3229 = vmatpush.msra.mxu0 %v736
        %3230 = vmatpush.msra.mxu0 %v735
        %3231 = vmatpush.msra.mxu0 %v734
        %3232 = vmatpush.msra.mxu0 %v733
        %3233 = vmatpush.msra.mxu0 %v732
        %3234 = vmatpush.msra.mxu0 %v731
        %3235 = vmatpush.msra.mxu0 %v730
        %3236 = vmatpush.msra.mxu0 %v729
        %3237 = vmatpush.msra.mxu0 %v728
        %3238 = vmatpush.msra.mxu0 %v727
        %3239 = vmatpush.msra.mxu0 %v726
        %3240 = vmatpush.msra.mxu0 %v725
        %3241 = vmatpush.msra.mxu0 %v724
        %3242 = vmatpush.msra.mxu0 %v723
        %3243 = vmatpush.msra.mxu0 %v722
        %3244 = vmatmul.f32.gmra.mxu0 %v3186
        %v3245 = vpop.f32.mrf.mxu0
        %v3246 = vadd.f32 0.0, %v3245
        %3247 = vmatmul.f32.gmra.mxu0 %v3187
        %v3248 = vpop.f32.mrf.mxu0
        %v3249 = vadd.f32 0.0, %v3248
        %3250 = vdwg.mxu0
        %3251 = vmatpush.msra.mxu0 %v753
        %3252 = vmatpush.msra.mxu0 %v752
        %3253 = vmatpush.msra.mxu0 %v751
        %3254 = vmatpush.msra.mxu0 %v750
        %3255 = vmatpush.msra.mxu0 %v749
        %3256 = vmatpush.msra.mxu0 %v748
        %3257 = vmatpush.msra.mxu0 %v747
        %3258 = vmatpush.msra.mxu0 %v746
        %3259 = vmatpush.msra.mxu0 %v745
        %3260 = vmatpush.msra.mxu0 %v744
        %3261 = vmatpush.msra.mxu0 %v743
        %3262 = vmatpush.msra.mxu0 %v742
        %3263 = vmatpush.msra.mxu0 %v741
        %3264 = vmatpush.msra.mxu0 %v740
        %3265 = vmatpush.msra.mxu0 %v739
        %3266 = vmatpush.msra.mxu0 %v738
        %3267 = vmatmul.f32.gmra.mxu0 %v3196
        %v3268 = vpop.f32.mrf.mxu0
        %v3269 = vadd.f32 %v3246, %v3268
        %3270 = vmatmul.f32.gmra.mxu0 %v3195
        %v3271 = vpop.f32.mrf.mxu0
        %v3272 = vadd.f32 %v3249, %v3271
        %3273 = vdwg.mxu0
        %3274 = vmatpush.msra.mxu0 %v769
        %3275 = vmatpush.msra.mxu0 %v768
        %3276 = vmatpush.msra.mxu0 %v767
        %3277 = vmatpush.msra.mxu0 %v766
        %3278 = vmatpush.msra.mxu0 %v765
        %3279 = vmatpush.msra.mxu0 %v764
        %3280 = vmatpush.msra.mxu0 %v763
        %3281 = vmatpush.msra.mxu0 %v762
        %3282 = vmatpush.msra.mxu0 %v761
        %3283 = vmatpush.msra.mxu0 %v760
        %3284 = vmatpush.msra.mxu0 %v759
        %3285 = vmatpush.msra.mxu0 %v758
        %3286 = vmatpush.msra.mxu0 %v757
        %3287 = vmatpush.msra.mxu0 %v756
        %3288 = vmatpush.msra.mxu0 %v755
        %3289 = vmatpush.msra.mxu0 %v754
        %3290 = vmatmul.f32.gmra.mxu0 %v3201
        %v3291 = vpop.f32.mrf.mxu0
        %v3292 = vadd.f32 %v3269, %v3291
        %3293 = vmatmul.f32.gmra.mxu0 %v3200
        %v3294 = vpop.f32.mrf.mxu0
        %v3295 = vadd.f32 %v3272, %v3294
        %3296 = vdwg.mxu0
        %3297 = vmatpush.msra.mxu0 %v785
        %3298 = vmatpush.msra.mxu0 %v784
        %3299 = vmatpush.msra.mxu0 %v783
        %3300 = vmatpush.msra.mxu0 %v782
        %3301 = vmatpush.msra.mxu0 %v781
        %3302 = vmatpush.msra.mxu0 %v780
        %3303 = vmatpush.msra.mxu0 %v779
        %3304 = vmatpush.msra.mxu0 %v778
        %3305 = vmatpush.msra.mxu0 %v777
        %3306 = vmatpush.msra.mxu0 %v776
        %3307 = vmatpush.msra.mxu0 %v775
        %3308 = vmatpush.msra.mxu0 %v774
        %3309 = vmatpush.msra.mxu0 %v773
        %3310 = vmatpush.msra.mxu0 %v772
        %3311 = vmatpush.msra.mxu0 %v771
        %3312 = vmatpush.msra.mxu0 %v770
        %3313 = vmatmul.f32.gmra.mxu0 %v3188
        %v3314 = vpop.f32.mrf.mxu0
        %v3315 = vadd.f32 %v3292, %v3314
        %3316 = vmatmul.f32.gmra.mxu0 %v3189
        %v3317 = vpop.f32.mrf.mxu0
        %v3318 = vadd.f32 %v3295, %v3317
        %3319 = vdwg.mxu0
        %3320 = vmatpush.msra.mxu0 %v801
        %3321 = vmatpush.msra.mxu0 %v800
        %3322 = vmatpush.msra.mxu0 %v799
        %3323 = vmatpush.msra.mxu0 %v798
        %3324 = vmatpush.msra.mxu0 %v797
        %3325 = vmatpush.msra.mxu0 %v796
        %3326 = vmatpush.msra.mxu0 %v795
        %3327 = vmatpush.msra.mxu0 %v794
        %3328 = vmatpush.msra.mxu0 %v793
        %3329 = vmatpush.msra.mxu0 %v792
        %3330 = vmatpush.msra.mxu0 %v791
        %3331 = vmatpush.msra.mxu0 %v790
        %3332 = vmatpush.msra.mxu0 %v789
        %3333 = vmatpush.msra.mxu0 %v788
        %3334 = vmatpush.msra.mxu0 %v787
        %3335 = vmatpush.msra.mxu0 %v786
        %3336 = vmatmul.f32.gmra.mxu0 %v3208
        %v3337 = vpop.f32.mrf.mxu0
        %v3338 = vadd.f32 %v3315, %v3337
        %3339 = vmatmul.f32.gmra.mxu0 %v3207
        %v3340 = vpop.f32.mrf.mxu0
        %v3341 = vadd.f32 %v3318, %v3340
        %3342 = vdwg.mxu0
        %3343 = vmatpush.msra.mxu0 %v817
        %3344 = vmatpush.msra.mxu0 %v816
        %3345 = vmatpush.msra.mxu0 %v815
        %3346 = vmatpush.msra.mxu0 %v814
        %3347 = vmatpush.msra.mxu0 %v813
        %3348 = vmatpush.msra.mxu0 %v812
        %3349 = vmatpush.msra.mxu0 %v811
        %3350 = vmatpush.msra.mxu0 %v810
        %3351 = vmatpush.msra.mxu0 %v809
        %3352 = vmatpush.msra.mxu0 %v808
        %3353 = vmatpush.msra.mxu0 %v807
        %3354 = vmatpush.msra.mxu0 %v806
        %3355 = vmatpush.msra.mxu0 %v805
        %3356 = vmatpush.msra.mxu0 %v804
        %3357 = vmatpush.msra.mxu0 %v803
        %3358 = vmatpush.msra.mxu0 %v802
        %3359 = vmatmul.f32.gmra.mxu0 %v3213
        %v3360 = vpop.f32.mrf.mxu0
        %v3361 = vadd.f32 %v3338, %v3360
        %3362 = vmatmul.f32.gmra.mxu0 %v3212
        %v3363 = vpop.f32.mrf.mxu0
        %v3364 = vadd.f32 %v3341, %v3363
        %3365 = vdwg.mxu0
        %3366 = vmatpush.msra.mxu0 %v833
        %3367 = vmatpush.msra.mxu0 %v832
        %3368 = vmatpush.msra.mxu0 %v831
        %3369 = vmatpush.msra.mxu0 %v830
        %3370 = vmatpush.msra.mxu0 %v829
        %3371 = vmatpush.msra.mxu0 %v828
        %3372 = vmatpush.msra.mxu0 %v827
        %3373 = vmatpush.msra.mxu0 %v826
        %3374 = vmatpush.msra.mxu0 %v825
        %3375 = vmatpush.msra.mxu0 %v824
        %3376 = vmatpush.msra.mxu0 %v823
        %3377 = vmatpush.msra.mxu0 %v822
        %3378 = vmatpush.msra.mxu0 %v821
        %3379 = vmatpush.msra.mxu0 %v820
        %3380 = vmatpush.msra.mxu0 %v819
        %3381 = vmatpush.msra.mxu0 %v818
        %3382 = vmatmul.f32.gmra.mxu0 %v3190
        %v3383 = vpop.f32.mrf.mxu0
        %v3384 = vadd.f32 %v3361, %v3383
        %3385 = vmatmul.f32.gmra.mxu0 %v3191
        %v3386 = vpop.f32.mrf.mxu0
        %v3387 = vadd.f32 %v3364, %v3386
        %3388 = vdwg.mxu0
        %3389 = vmatpush.msra.mxu0 %v849
        %3390 = vmatpush.msra.mxu0 %v848
        %3391 = vmatpush.msra.mxu0 %v847
        %3392 = vmatpush.msra.mxu0 %v846
        %3393 = vmatpush.msra.mxu0 %v845
        %3394 = vmatpush.msra.mxu0 %v844
        %3395 = vmatpush.msra.mxu0 %v843
        %3396 = vmatpush.msra.mxu0 %v842
        %3397 = vmatpush.msra.mxu0 %v841
        %3398 = vmatpush.msra.mxu0 %v840
        %3399 = vmatpush.msra.mxu0 %v839
        %3400 = vmatpush.msra.mxu0 %v838
        %3401 = vmatpush.msra.mxu0 %v837
        %3402 = vmatpush.msra.mxu0 %v836
        %3403 = vmatpush.msra.mxu0 %v835
        %3404 = vmatpush.msra.mxu0 %v834
        %3405 = vmatmul.f32.gmra.mxu0 %v3220
        %v3406 = vpop.f32.mrf.mxu0
        %v3407 = vadd.f32 %v3384, %v3406
        %3408 = vmatmul.f32.gmra.mxu0 %v3219
        %v3409 = vpop.f32.mrf.mxu0
        %v3410 = vadd.f32 %v3387, %v3409
        %3411 = vdwg.mxu0
        %3412 = vmatpush.msra.mxu0 %v865
        %3413 = vmatpush.msra.mxu0 %v864
        %3414 = vmatpush.msra.mxu0 %v863
        %3415 = vmatpush.msra.mxu0 %v862
        %3416 = vmatpush.msra.mxu0 %v861
        %3417 = vmatpush.msra.mxu0 %v860
        %3418 = vmatpush.msra.mxu0 %v859
        %3419 = vmatpush.msra.mxu0 %v858
        %3420 = vmatpush.msra.mxu0 %v857
        %3421 = vmatpush.msra.mxu0 %v856
        %3422 = vmatpush.msra.mxu0 %v855
        %3423 = vmatpush.msra.mxu0 %v854
        %3424 = vmatpush.msra.mxu0 %v853
        %3425 = vmatpush.msra.mxu0 %v852
        %3426 = vmatpush.msra.mxu0 %v851
        %3427 = vmatpush.msra.mxu0 %v850
        %3428 = vmatmul.f32.gmra.mxu0 %v3225
        %v3429 = vpop.f32.mrf.mxu0
        %v3430 = vadd.f32 %v3407, %v3429
        %3431 = vmatmul.f32.gmra.mxu0 %v3224
        %v3432 = vpop.f32.mrf.mxu0
        %v3433 = vadd.f32 %v3410, %v3432
        %3434 = vdwg.mxu0
        %v3435 = vmax.f32 %v3430, 0.0
        %v3436 = vmax.f32 %v3433, 0.0
        %s3437 = scalar_lea.vmem [#allocation3], 160
        %3438 = vst [vmem:[%s3437 + $0x1] sm:$0xff] %v3435
        %3439 = vst [vmem:[%s3437 + $0x9] sm:$0x3f] %v3436
        %v3440 = vld [vmem:[%s704] sm:$0xff]
        %v3441 = vld [vmem:[%s704 + $0x8] sm:$0xff]
        %v3442 = vld [vmem:[%s707] sm:$0xff]
        %v3443 = vld [vmem:[%s707 + $0x8] sm:$0xff]
        %v3444 = vld [vmem:[%s710] sm:$0xff]
        %v3445 = vld [vmem:[%s710 + $0x8] sm:$0xff]
        %v3448 = vrot.slane %v3440, 1
        %v3449 = vrot.slane %v3441, 1
        %v3450 = vsel %vm906, %v3448, %v3449
        %v3453 = vrot.slane %v3440, 2
        %v3454 = vrot.slane %v3441, 2
        %v3455 = vsel %vm912, %v3453, %v3454
        %v3460 = vrot.slane %v3442, 1
        %v3461 = vrot.slane %v3443, 1
        %v3462 = vsel %vm906, %v3460, %v3461
        %v3465 = vrot.slane %v3442, 2
        %v3466 = vrot.slane %v3443, 2
        %v3467 = vsel %vm912, %v3465, %v3466
        %v3472 = vrot.slane %v3444, 1
        %v3473 = vrot.slane %v3445, 1
        %v3474 = vsel %vm906, %v3472, %v3473
        %v3477 = vrot.slane %v3444, 2
        %v3478 = vrot.slane %v3445, 2
        %v3479 = vsel %vm912, %v3477, %v3478
        %3482 = vmatpush.msra.mxu0 %v737
        %3483 = vmatpush.msra.mxu0 %v736
        %3484 = vmatpush.msra.mxu0 %v735
        %3485 = vmatpush.msra.mxu0 %v734
        %3486 = vmatpush.msra.mxu0 %v733
        %3487 = vmatpush.msra.mxu0 %v732
        %3488 = vmatpush.msra.mxu0 %v731
        %3489 = vmatpush.msra.mxu0 %v730
        %3490 = vmatpush.msra.mxu0 %v729
        %3491 = vmatpush.msra.mxu0 %v728
        %3492 = vmatpush.msra.mxu0 %v727
        %3493 = vmatpush.msra.mxu0 %v726
        %3494 = vmatpush.msra.mxu0 %v725
        %3495 = vmatpush.msra.mxu0 %v724
        %3496 = vmatpush.msra.mxu0 %v723
        %3497 = vmatpush.msra.mxu0 %v722
        %3498 = vmatmul.f32.gmra.mxu0 %v3440
        %v3499 = vpop.f32.mrf.mxu0
        %v3500 = vadd.f32 0.0, %v3499
        %3501 = vmatmul.f32.gmra.mxu0 %v3441
        %v3502 = vpop.f32.mrf.mxu0
        %v3503 = vadd.f32 0.0, %v3502
        %3504 = vdwg.mxu0
        %3505 = vmatpush.msra.mxu0 %v753
        %3506 = vmatpush.msra.mxu0 %v752
        %3507 = vmatpush.msra.mxu0 %v751
        %3508 = vmatpush.msra.mxu0 %v750
        %3509 = vmatpush.msra.mxu0 %v749
        %3510 = vmatpush.msra.mxu0 %v748
        %3511 = vmatpush.msra.mxu0 %v747
        %3512 = vmatpush.msra.mxu0 %v746
        %3513 = vmatpush.msra.mxu0 %v745
        %3514 = vmatpush.msra.mxu0 %v744
        %3515 = vmatpush.msra.mxu0 %v743
        %3516 = vmatpush.msra.mxu0 %v742
        %3517 = vmatpush.msra.mxu0 %v741
        %3518 = vmatpush.msra.mxu0 %v740
        %3519 = vmatpush.msra.mxu0 %v739
        %3520 = vmatpush.msra.mxu0 %v738
        %3521 = vmatmul.f32.gmra.mxu0 %v3450
        %v3522 = vpop.f32.mrf.mxu0
        %v3523 = vadd.f32 %v3500, %v3522
        %3524 = vmatmul.f32.gmra.mxu0 %v3449
        %v3525 = vpop.f32.mrf.mxu0
        %v3526 = vadd.f32 %v3503, %v3525
        %3527 = vdwg.mxu0
        %3528 = vmatpush.msra.mxu0 %v769
        %3529 = vmatpush.msra.mxu0 %v768
        %3530 = vmatpush.msra.mxu0 %v767
        %3531 = vmatpush.msra.mxu0 %v766
        %3532 = vmatpush.msra.mxu0 %v765
        %3533 = vmatpush.msra.mxu0 %v764
        %3534 = vmatpush.msra.mxu0 %v763
        %3535 = vmatpush.msra.mxu0 %v762
        %3536 = vmatpush.msra.mxu0 %v761
        %3537 = vmatpush.msra.mxu0 %v760
        %3538 = vmatpush.msra.mxu0 %v759
        %3539 = vmatpush.msra.mxu0 %v758
        %3540 = vmatpush.msra.mxu0 %v757
        %3541 = vmatpush.msra.mxu0 %v756
        %3542 = vmatpush.msra.mxu0 %v755
        %3543 = vmatpush.msra.mxu0 %v754
        %3544 = vmatmul.f32.gmra.mxu0 %v3455
        %v3545 = vpop.f32.mrf.mxu0
        %v3546 = vadd.f32 %v3523, %v3545
        %3547 = vmatmul.f32.gmra.mxu0 %v3454
        %v3548 = vpop.f32.mrf.mxu0
        %v3549 = vadd.f32 %v3526, %v3548
        %3550 = vdwg.mxu0
        %3551 = vmatpush.msra.mxu0 %v785
        %3552 = vmatpush.msra.mxu0 %v784
        %3553 = vmatpush.msra.mxu0 %v783
        %3554 = vmatpush.msra.mxu0 %v782
        %3555 = vmatpush.msra.mxu0 %v781
        %3556 = vmatpush.msra.mxu0 %v780
        %3557 = vmatpush.msra.mxu0 %v779
        %3558 = vmatpush.msra.mxu0 %v778
        %3559 = vmatpush.msra.mxu0 %v777
        %3560 = vmatpush.msra.mxu0 %v776
        %3561 = vmatpush.msra.mxu0 %v775
        %3562 = vmatpush.msra.mxu0 %v774
        %3563 = vmatpush.msra.mxu0 %v773
        %3564 = vmatpush.msra.mxu0 %v772
        %3565 = vmatpush.msra.mxu0 %v771
        %3566 = vmatpush.msra.mxu0 %v770
        %3567 = vmatmul.f32.gmra.mxu0 %v3442
        %v3568 = vpop.f32.mrf.mxu0
        %v3569 = vadd.f32 %v3546, %v3568
        %3570 = vmatmul.f32.gmra.mxu0 %v3443
        %v3571 = vpop.f32.mrf.mxu0
        %v3572 = vadd.f32 %v3549, %v3571
        %3573 = vdwg.mxu0
        %3574 = vmatpush.msra.mxu0 %v801
        %3575 = vmatpush.msra.mxu0 %v800
        %3576 = vmatpush.msra.mxu0 %v799
        %3577 = vmatpush.msra.mxu0 %v798
        %3578 = vmatpush.msra.mxu0 %v797
        %3579 = vmatpush.msra.mxu0 %v796
        %3580 = vmatpush.msra.mxu0 %v795
        %3581 = vmatpush.msra.mxu0 %v794
        %3582 = vmatpush.msra.mxu0 %v793
        %3583 = vmatpush.msra.mxu0 %v792
        %3584 = vmatpush.msra.mxu0 %v791
        %3585 = vmatpush.msra.mxu0 %v790
        %3586 = vmatpush.msra.mxu0 %v789
        %3587 = vmatpush.msra.mxu0 %v788
        %3588 = vmatpush.msra.mxu0 %v787
        %3589 = vmatpush.msra.mxu0 %v786
        %3590 = vmatmul.f32.gmra.mxu0 %v3462
        %v3591 = vpop.f32.mrf.mxu0
        %v3592 = vadd.f32 %v3569, %v3591
        %3593 = vmatmul.f32.gmra.mxu0 %v3461
        %v3594 = vpop.f32.mrf.mxu0
        %v3595 = vadd.f32 %v3572, %v3594
        %3596 = vdwg.mxu0
        %3597 = vmatpush.msra.mxu0 %v817
        %3598 = vmatpush.msra.mxu0 %v816
        %3599 = vmatpush.msra.mxu0 %v815
        %3600 = vmatpush.msra.mxu0 %v814
        %3601 = vmatpush.msra.mxu0 %v813
        %3602 = vmatpush.msra.mxu0 %v812
        %3603 = vmatpush.msra.mxu0 %v811
        %3604 = vmatpush.msra.mxu0 %v810
        %3605 = vmatpush.msra.mxu0 %v809
        %3606 = vmatpush.msra.mxu0 %v808
        %3607 = vmatpush.msra.mxu0 %v807
        %3608 = vmatpush.msra.mxu0 %v806
        %3609 = vmatpush.msra.mxu0 %v805
        %3610 = vmatpush.msra.mxu0 %v804
        %3611 = vmatpush.msra.mxu0 %v803
        %3612 = vmatpush.msra.mxu0 %v802
        %3613 = vmatmul.f32.gmra.mxu0 %v3467
        %v3614 = vpop.f32.mrf.mxu0
        %v3615 = vadd.f32 %v3592, %v3614
        %3616 = vmatmul.f32.gmra.mxu0 %v3466
        %v3617 = vpop.f32.mrf.mxu0
        %v3618 = vadd.f32 %v3595, %v3617
        %3619 = vdwg.mxu0
        %3620 = vmatpush.msra.mxu0 %v833
        %3621 = vmatpush.msra.mxu0 %v832
        %3622 = vmatpush.msra.mxu0 %v831
        %3623 = vmatpush.msra.mxu0 %v830
        %3624 = vmatpush.msra.mxu0 %v829
        %3625 = vmatpush.msra.mxu0 %v828
        %3626 = vmatpush.msra.mxu0 %v827
        %3627 = vmatpush.msra.mxu0 %v826
        %3628 = vmatpush.msra.mxu0 %v825
        %3629 = vmatpush.msra.mxu0 %v824
        %3630 = vmatpush.msra.mxu0 %v823
        %3631 = vmatpush.msra.mxu0 %v822
        %3632 = vmatpush.msra.mxu0 %v821
        %3633 = vmatpush.msra.mxu0 %v820
        %3634 = vmatpush.msra.mxu0 %v819
        %3635 = vmatpush.msra.mxu0 %v818
        %3636 = vmatmul.f32.gmra.mxu0 %v3444
        %v3637 = vpop.f32.mrf.mxu0
        %v3638 = vadd.f32 %v3615, %v3637
        %3639 = vmatmul.f32.gmra.mxu0 %v3445
        %v3640 = vpop.f32.mrf.mxu0
        %v3641 = vadd.f32 %v3618, %v3640
        %3642 = vdwg.mxu0
        %3643 = vmatpush.msra.mxu0 %v849
        %3644 = vmatpush.msra.mxu0 %v848
        %3645 = vmatpush.msra.mxu0 %v847
        %3646 = vmatpush.msra.mxu0 %v846
        %3647 = vmatpush.msra.mxu0 %v845
        %3648 = vmatpush.msra.mxu0 %v844
        %3649 = vmatpush.msra.mxu0 %v843
        %3650 = vmatpush.msra.mxu0 %v842
        %3651 = vmatpush.msra.mxu0 %v841
        %3652 = vmatpush.msra.mxu0 %v840
        %3653 = vmatpush.msra.mxu0 %v839
        %3654 = vmatpush.msra.mxu0 %v838
        %3655 = vmatpush.msra.mxu0 %v837
        %3656 = vmatpush.msra.mxu0 %v836
        %3657 = vmatpush.msra.mxu0 %v835
        %3658 = vmatpush.msra.mxu0 %v834
        %3659 = vmatmul.f32.gmra.mxu0 %v3474
        %v3660 = vpop.f32.mrf.mxu0
        %v3661 = vadd.f32 %v3638, %v3660
        %3662 = vmatmul.f32.gmra.mxu0 %v3473
        %v3663 = vpop.f32.mrf.mxu0
        %v3664 = vadd.f32 %v3641, %v3663
        %3665 = vdwg.mxu0
        %3666 = vmatpush.msra.mxu0 %v865
        %3667 = vmatpush.msra.mxu0 %v864
        %3668 = vmatpush.msra.mxu0 %v863
        %3669 = vmatpush.msra.mxu0 %v862
        %3670 = vmatpush.msra.mxu0 %v861
        %3671 = vmatpush.msra.mxu0 %v860
        %3672 = vmatpush.msra.mxu0 %v859
        %3673 = vmatpush.msra.mxu0 %v858
        %3674 = vmatpush.msra.mxu0 %v857
        %3675 = vmatpush.msra.mxu0 %v856
        %3676 = vmatpush.msra.mxu0 %v855
        %3677 = vmatpush.msra.mxu0 %v854
        %3678 = vmatpush.msra.mxu0 %v853
        %3679 = vmatpush.msra.mxu0 %v852
        %3680 = vmatpush.msra.mxu0 %v851
        %3681 = vmatpush.msra.mxu0 %v850
        %3682 = vmatmul.f32.gmra.mxu0 %v3479
        %v3683 = vpop.f32.mrf.mxu0
        %v3684 = vadd.f32 %v3661, %v3683
        %3685 = vmatmul.f32.gmra.mxu0 %v3478
        %v3686 = vpop.f32.mrf.mxu0
        %v3687 = vadd.f32 %v3664, %v3686
        %3688 = vdwg.mxu0
        %v3689 = vmax.f32 %v3684, 0.0
        %v3690 = vmax.f32 %v3687, 0.0
        %s3691 = scalar_lea.vmem [#allocation3], 176
        %3692 = vst [vmem:[%s3691 + $0x1] sm:$0xff] %v3689
        %3693 = vst [vmem:[%s3691 + $0x9] sm:$0x3f] %v3690
        %v3694 = vld [vmem:[%s707] sm:$0xff]
        %v3695 = vld [vmem:[%s707 + $0x8] sm:$0xff]
        %v3696 = vld [vmem:[%s710] sm:$0xff]
        %v3697 = vld [vmem:[%s710 + $0x8] sm:$0xff]
        %v3698 = vld [vmem:[%s713] sm:$0xff]
        %v3699 = vld [vmem:[%s713 + $0x8] sm:$0xff]
        %v3702 = vrot.slane %v3694, 1
        %v3703 = vrot.slane %v3695, 1
        %v3704 = vsel %vm906, %v3702, %v3703
        %v3707 = vrot.slane %v3694, 2
        %v3708 = vrot.slane %v3695, 2
        %v3709 = vsel %vm912, %v3707, %v3708
        %v3714 = vrot.slane %v3696, 1
        %v3715 = vrot.slane %v3697, 1
        %v3716 = vsel %vm906, %v3714, %v3715
        %v3719 = vrot.slane %v3696, 2
        %v3720 = vrot.slane %v3697, 2
        %v3721 = vsel %vm912, %v3719, %v3720
        %v3726 = vrot.slane %v3698, 1
        %v3727 = vrot.slane %v3699, 1
        %v3728 = vsel %vm906, %v3726, %v3727
        %v3731 = vrot.slane %v3698, 2
        %v3732 = vrot.slane %v3699, 2
        %v3733 = vsel %vm912, %v3731, %v3732
        %3736 = vmatpush.msra.mxu0 %v737
        %3737 = vmatpush.msra.mxu0 %v736
        %3738 = vmatpush.msra.mxu0 %v735
        %3739 = vmatpush.msra.mxu0 %v734
        %3740 = vmatpush.msra.mxu0 %v733
        %3741 = vmatpush.msra.mxu0 %v732
        %3742 = vmatpush.msra.mxu0 %v731
        %3743 = vmatpush.msra.mxu0 %v730
        %3744 = vmatpush.msra.mxu0 %v729
        %3745 = vmatpush.msra.mxu0 %v728
        %3746 = vmatpush.msra.mxu0 %v727
        %3747 = vmatpush.msra.mxu0 %v726
        %3748 = vmatpush.msra.mxu0 %v725
        %3749 = vmatpush.msra.mxu0 %v724
        %3750 = vmatpush.msra.mxu0 %v723
        %3751 = vmatpush.msra.mxu0 %v722
        %3752 = vmatmul.f32.gmra.mxu0 %v3694
        %v3753 = vpop.f32.mrf.mxu0
        %v3754 = vadd.f32 0.0, %v3753
        %3755 = vmatmul.f32.gmra.mxu0 %v3695
        %v3756 = vpop.f32.mrf.mxu0
        %v3757 = vadd.f32 0.0, %v3756
        %3758 = vdwg.mxu0
        %3759 = vmatpush.msra.mxu0 %v753
        %3760 = vmatpush.msra.mxu0 %v752
        %3761 = vmatpush.msra.mxu0 %v751
        %3762 = vmatpush.msra.mxu0 %v750
        %3763 = vmatpush.msra.mxu0 %v749
        %3764 = vmatpush.msra.mxu0 %v748
        %3765 = vmatpush.msra.mxu0 %v747
        %3766 = vmatpush.msra.mxu0 %v746
        %3767 = vmatpush.msra.mxu0 %v745
        %3768 = vmatpush.msra.mxu0 %v744
        %3769 = vmatpush.msra.mxu0 %v743
        %3770 = vmatpush.msra.mxu0 %v742
        %3771 = vmatpush.msra.mxu0 %v741
        %3772 = vmatpush.msra.mxu0 %v740
        %3773 = vmatpush.msra.mxu0 %v739
        %3774 = vmatpush.msra.mxu0 %v738
        %3775 = vmatmul.f32.gmra.mxu0 %v3704
        %v3776 = vpop.f32.mrf.mxu0
        %v3777 = vadd.f32 %v3754, %v3776
        %3778 = vmatmul.f32.gmra.mxu0 %v3703
        %v3779 = vpop.f32.mrf.mxu0
        %v3780 = vadd.f32 %v3757, %v3779
        %3781 = vdwg.mxu0
        %3782 = vmatpush.msra.mxu0 %v769
        %3783 = vmatpush.msra.mxu0 %v768
        %3784 = vmatpush.msra.mxu0 %v767
        %3785 = vmatpush.msra.mxu0 %v766
        %3786 = vmatpush.msra.mxu0 %v765
        %3787 = vmatpush.msra.mxu0 %v764
        %3788 = vmatpush.msra.mxu0 %v763
        %3789 = vmatpush.msra.mxu0 %v762
        %3790 = vmatpush.msra.mxu0 %v761
        %3791 = vmatpush.msra.mxu0 %v760
        %3792 = vmatpush.msra.mxu0 %v759
        %3793 = vmatpush.msra.mxu0 %v758
        %3794 = vmatpush.msra.mxu0 %v757
        %3795 = vmatpush.msra.mxu0 %v756
        %3796 = vmatpush.msra.mxu0 %v755
        %3797 = vmatpush.msra.mxu0 %v754
        %3798 = vmatmul.f32.gmra.mxu0 %v3709
        %v3799 = vpop.f32.mrf.mxu0
        %v3800 = vadd.f32 %v3777, %v3799
        %3801 = vmatmul.f32.gmra.mxu0 %v3708
        %v3802 = vpop.f32.mrf.mxu0
        %v3803 = vadd.f32 %v3780, %v3802
        %3804 = vdwg.mxu0
        %3805 = vmatpush.msra.mxu0 %v785
        %3806 = vmatpush.msra.mxu0 %v784
        %3807 = vmatpush.msra.mxu0 %v783
        %3808 = vmatpush.msra.mxu0 %v782
        %3809 = vmatpush.msra.mxu0 %v781
        %3810 = vmatpush.msra.mxu0 %v780
        %3811 = vmatpush.msra.mxu0 %v779
        %3812 = vmatpush.msra.mxu0 %v778
        %3813 = vmatpush.msra.mxu0 %v777
        %3814 = vmatpush.msra.mxu0 %v776
        %3815 = vmatpush.msra.mxu0 %v775
        %3816 = vmatpush.msra.mxu0 %v774
        %3817 = vmatpush.msra.mxu0 %v773
        %3818 = vmatpush.msra.mxu0 %v772
        %3819 = vmatpush.msra.mxu0 %v771
        %3820 = vmatpush.msra.mxu0 %v770
        %3821 = vmatmul.f32.gmra.mxu0 %v3696
        %v3822 = vpop.f32.mrf.mxu0
        %v3823 = vadd.f32 %v3800, %v3822
        %3824 = vmatmul.f32.gmra.mxu0 %v3697
        %v3825 = vpop.f32.mrf.mxu0
        %v3826 = vadd.f32 %v3803, %v3825
        %3827 = vdwg.mxu0
        %3828 = vmatpush.msra.mxu0 %v801
        %3829 = vmatpush.msra.mxu0 %v800
        %3830 = vmatpush.msra.mxu0 %v799
        %3831 = vmatpush.msra.mxu0 %v798
        %3832 = vmatpush.msra.mxu0 %v797
        %3833 = vmatpush.msra.mxu0 %v796
        %3834 = vmatpush.msra.mxu0 %v795
        %3835 = vmatpush.msra.mxu0 %v794
        %3836 = vmatpush.msra.mxu0 %v793
        %3837 = vmatpush.msra.mxu0 %v792
        %3838 = vmatpush.msra.mxu0 %v791
        %3839 = vmatpush.msra.mxu0 %v790
        %3840 = vmatpush.msra.mxu0 %v789
        %3841 = vmatpush.msra.mxu0 %v788
        %3842 = vmatpush.msra.mxu0 %v787
        %3843 = vmatpush.msra.mxu0 %v786
        %3844 = vmatmul.f32.gmra.mxu0 %v3716
        %v3845 = vpop.f32.mrf.mxu0
        %v3846 = vadd.f32 %v3823, %v3845
        %3847 = vmatmul.f32.gmra.mxu0 %v3715
        %v3848 = vpop.f32.mrf.mxu0
        %v3849 = vadd.f32 %v3826, %v3848
        %3850 = vdwg.mxu0
        %3851 = vmatpush.msra.mxu0 %v817
        %3852 = vmatpush.msra.mxu0 %v816
        %3853 = vmatpush.msra.mxu0 %v815
        %3854 = vmatpush.msra.mxu0 %v814
        %3855 = vmatpush.msra.mxu0 %v813
        %3856 = vmatpush.msra.mxu0 %v812
        %3857 = vmatpush.msra.mxu0 %v811
        %3858 = vmatpush.msra.mxu0 %v810
        %3859 = vmatpush.msra.mxu0 %v809
        %3860 = vmatpush.msra.mxu0 %v808
        %3861 = vmatpush.msra.mxu0 %v807
        %3862 = vmatpush.msra.mxu0 %v806
        %3863 = vmatpush.msra.mxu0 %v805
        %3864 = vmatpush.msra.mxu0 %v804
        %3865 = vmatpush.msra.mxu0 %v803
        %3866 = vmatpush.msra.mxu0 %v802
        %3867 = vmatmul.f32.gmra.mxu0 %v3721
        %v3868 = vpop.f32.mrf.mxu0
        %v3869 = vadd.f32 %v3846, %v3868
        %3870 = vmatmul.f32.gmra.mxu0 %v3720
        %v3871 = vpop.f32.mrf.mxu0
        %v3872 = vadd.f32 %v3849, %v3871
        %3873 = vdwg.mxu0
        %3874 = vmatpush.msra.mxu0 %v833
        %3875 = vmatpush.msra.mxu0 %v832
        %3876 = vmatpush.msra.mxu0 %v831
        %3877 = vmatpush.msra.mxu0 %v830
        %3878 = vmatpush.msra.mxu0 %v829
        %3879 = vmatpush.msra.mxu0 %v828
        %3880 = vmatpush.msra.mxu0 %v827
        %3881 = vmatpush.msra.mxu0 %v826
        %3882 = vmatpush.msra.mxu0 %v825
        %3883 = vmatpush.msra.mxu0 %v824
        %3884 = vmatpush.msra.mxu0 %v823
        %3885 = vmatpush.msra.mxu0 %v822
        %3886 = vmatpush.msra.mxu0 %v821
        %3887 = vmatpush.msra.mxu0 %v820
        %3888 = vmatpush.msra.mxu0 %v819
        %3889 = vmatpush.msra.mxu0 %v818
        %3890 = vmatmul.f32.gmra.mxu0 %v3698
        %v3891 = vpop.f32.mrf.mxu0
        %v3892 = vadd.f32 %v3869, %v3891
        %3893 = vmatmul.f32.gmra.mxu0 %v3699
        %v3894 = vpop.f32.mrf.mxu0
        %v3895 = vadd.f32 %v3872, %v3894
        %3896 = vdwg.mxu0
        %3897 = vmatpush.msra.mxu0 %v849
        %3898 = vmatpush.msra.mxu0 %v848
        %3899 = vmatpush.msra.mxu0 %v847
        %3900 = vmatpush.msra.mxu0 %v846
        %3901 = vmatpush.msra.mxu0 %v845
        %3902 = vmatpush.msra.mxu0 %v844
        %3903 = vmatpush.msra.mxu0 %v843
        %3904 = vmatpush.msra.mxu0 %v842
        %3905 = vmatpush.msra.mxu0 %v841
        %3906 = vmatpush.msra.mxu0 %v840
        %3907 = vmatpush.msra.mxu0 %v839
        %3908 = vmatpush.msra.mxu0 %v838
        %3909 = vmatpush.msra.mxu0 %v837
        %3910 = vmatpush.msra.mxu0 %v836
        %3911 = vmatpush.msra.mxu0 %v835
        %3912 = vmatpush.msra.mxu0 %v834
        %3913 = vmatmul.f32.gmra.mxu0 %v3728
        %v3914 = vpop.f32.mrf.mxu0
        %v3915 = vadd.f32 %v3892, %v3914
        %3916 = vmatmul.f32.gmra.mxu0 %v3727
        %v3917 = vpop.f32.mrf.mxu0
        %v3918 = vadd.f32 %v3895, %v3917
        %3919 = vdwg.mxu0
        %3920 = vmatpush.msra.mxu0 %v865
        %3921 = vmatpush.msra.mxu0 %v864
        %3922 = vmatpush.msra.mxu0 %v863
        %3923 = vmatpush.msra.mxu0 %v862
        %3924 = vmatpush.msra.mxu0 %v861
        %3925 = vmatpush.msra.mxu0 %v860
        %3926 = vmatpush.msra.mxu0 %v859
        %3927 = vmatpush.msra.mxu0 %v858
        %3928 = vmatpush.msra.mxu0 %v857
        %3929 = vmatpush.msra.mxu0 %v856
        %3930 = vmatpush.msra.mxu0 %v855
        %3931 = vmatpush.msra.mxu0 %v854
        %3932 = vmatpush.msra.mxu0 %v853
        %3933 = vmatpush.msra.mxu0 %v852
        %3934 = vmatpush.msra.mxu0 %v851
        %3935 = vmatpush.msra.mxu0 %v850
        %3936 = vmatmul.f32.gmra.mxu0 %v3733
        %v3937 = vpop.f32.mrf.mxu0
        %v3938 = vadd.f32 %v3915, %v3937
        %3939 = vmatmul.f32.gmra.mxu0 %v3732
        %v3940 = vpop.f32.mrf.mxu0
        %v3941 = vadd.f32 %v3918, %v3940
        %3942 = vdwg.mxu0
        %v3943 = vmax.f32 %v3938, 0.0
        %v3944 = vmax.f32 %v3941, 0.0
        %s3945 = scalar_lea.vmem [#allocation3], 192
        %3946 = vst [vmem:[%s3945 + $0x1] sm:$0xff] %v3943
        %3947 = vst [vmem:[%s3945 + $0x9] sm:$0x3f] %v3944
        %v3948 = vld [vmem:[%s710] sm:$0xff]
        %v3949 = vld [vmem:[%s710 + $0x8] sm:$0xff]
        %v3950 = vld [vmem:[%s713] sm:$0xff]
        %v3951 = vld [vmem:[%s713 + $0x8] sm:$0xff]
        %v3952 = vld [vmem:[%s716] sm:$0xff]
        %v3953 = vld [vmem:[%s716 + $0x8] sm:$0xff]
        %v3956 = vrot.slane %v3948, 1
        %v3957 = vrot.slane %v3949, 1
        %v3958 = vsel %vm906, %v3956, %v3957
        %v3961 = vrot.slane %v3948, 2
        %v3962 = vrot.slane %v3949, 2
        %v3963 = vsel %vm912, %v3961, %v3962
        %v3968 = vrot.slane %v3950, 1
        %v3969 = vrot.slane %v3951, 1
        %v3970 = vsel %vm906, %v3968, %v3969
        %v3973 = vrot.slane %v3950, 2
        %v3974 = vrot.slane %v3951, 2
        %v3975 = vsel %vm912, %v3973, %v3974
        %v3980 = vrot.slane %v3952, 1
        %v3981 = vrot.slane %v3953, 1
        %v3982 = vsel %vm906, %v3980, %v3981
        %v3985 = vrot.slane %v3952, 2
        %v3986 = vrot.slane %v3953, 2
        %v3987 = vsel %vm912, %v3985, %v3986
        %3990 = vmatpush.msra.mxu0 %v737
        %3991 = vmatpush.msra.mxu0 %v736
        %3992 = vmatpush.msra.mxu0 %v735
        %3993 = vmatpush.msra.mxu0 %v734
        %3994 = vmatpush.msra.mxu0 %v733
        %3995 = vmatpush.msra.mxu0 %v732
        %3996 = vmatpush.msra.mxu0 %v731
        %3997 = vmatpush.msra.mxu0 %v730
        %3998 = vmatpush.msra.mxu0 %v729
        %3999 = vmatpush.msra.mxu0 %v728
        %4000 = vmatpush.msra.mxu0 %v727
        %4001 = vmatpush.msra.mxu0 %v726
        %4002 = vmatpush.msra.mxu0 %v725
        %4003 = vmatpush.msra.mxu0 %v724
        %4004 = vmatpush.msra.mxu0 %v723
        %4005 = vmatpush.msra.mxu0 %v722
        %4006 = vmatmul.f32.gmra.mxu0 %v3948
        %v4007 = vpop.f32.mrf.mxu0
        %v4008 = vadd.f32 0.0, %v4007
        %4009 = vmatmul.f32.gmra.mxu0 %v3949
        %v4010 = vpop.f32.mrf.mxu0
        %v4011 = vadd.f32 0.0, %v4010
        %4012 = vdwg.mxu0
        %4013 = vmatpush.msra.mxu0 %v753
        %4014 = vmatpush.msra.mxu0 %v752
        %4015 = vmatpush.msra.mxu0 %v751
        %4016 = vmatpush.msra.mxu0 %v750
        %4017 = vmatpush.msra.mxu0 %v749
        %4018 = vmatpush.msra.mxu0 %v748
        %4019 = vmatpush.msra.mxu0 %v747
        %4020 = vmatpush.msra.mxu0 %v746
        %4021 = vmatpush.msra.mxu0 %v745
        %4022 = vmatpush.msra.mxu0 %v744
        %4023 = vmatpush.msra.mxu0 %v743
        %4024 = vmatpush.msra.mxu0 %v742
        %4025 = vmatpush.msra.mxu0 %v741
        %4026 = vmatpush.msra.mxu0 %v740
        %4027 = vmatpush.msra.mxu0 %v739
        %4028 = vmatpush.msra.mxu0 %v738
        %4029 = vmatmul.f32.gmra.mxu0 %v3958
        %v4030 = vpop.f32.mrf.mxu0
        %v4031 = vadd.f32 %v4008, %v4030
        %4032 = vmatmul.f32.gmra.mxu0 %v3957
        %v4033 = vpop.f32.mrf.mxu0
        %v4034 = vadd.f32 %v4011, %v4033
        %4035 = vdwg.mxu0
        %4036 = vmatpush.msra.mxu0 %v769
        %4037 = vmatpush.msra.mxu0 %v768
        %4038 = vmatpush.msra.mxu0 %v767
        %4039 = vmatpush.msra.mxu0 %v766
        %4040 = vmatpush.msra.mxu0 %v765
        %4041 = vmatpush.msra.mxu0 %v764
        %4042 = vmatpush.msra.mxu0 %v763
        %4043 = vmatpush.msra.mxu0 %v762
        %4044 = vmatpush.msra.mxu0 %v761
        %4045 = vmatpush.msra.mxu0 %v760
        %4046 = vmatpush.msra.mxu0 %v759
        %4047 = vmatpush.msra.mxu0 %v758
        %4048 = vmatpush.msra.mxu0 %v757
        %4049 = vmatpush.msra.mxu0 %v756
        %4050 = vmatpush.msra.mxu0 %v755
        %4051 = vmatpush.msra.mxu0 %v754
        %4052 = vmatmul.f32.gmra.mxu0 %v3963
        %v4053 = vpop.f32.mrf.mxu0
        %v4054 = vadd.f32 %v4031, %v4053
        %4055 = vmatmul.f32.gmra.mxu0 %v3962
        %v4056 = vpop.f32.mrf.mxu0
        %v4057 = vadd.f32 %v4034, %v4056
        %4058 = vdwg.mxu0
        %4059 = vmatpush.msra.mxu0 %v785
        %4060 = vmatpush.msra.mxu0 %v784
        %4061 = vmatpush.msra.mxu0 %v783
        %4062 = vmatpush.msra.mxu0 %v782
        %4063 = vmatpush.msra.mxu0 %v781
        %4064 = vmatpush.msra.mxu0 %v780
        %4065 = vmatpush.msra.mxu0 %v779
        %4066 = vmatpush.msra.mxu0 %v778
        %4067 = vmatpush.msra.mxu0 %v777
        %4068 = vmatpush.msra.mxu0 %v776
        %4069 = vmatpush.msra.mxu0 %v775
        %4070 = vmatpush.msra.mxu0 %v774
        %4071 = vmatpush.msra.mxu0 %v773
        %4072 = vmatpush.msra.mxu0 %v772
        %4073 = vmatpush.msra.mxu0 %v771
        %4074 = vmatpush.msra.mxu0 %v770
        %4075 = vmatmul.f32.gmra.mxu0 %v3950
        %v4076 = vpop.f32.mrf.mxu0
        %v4077 = vadd.f32 %v4054, %v4076
        %4078 = vmatmul.f32.gmra.mxu0 %v3951
        %v4079 = vpop.f32.mrf.mxu0
        %v4080 = vadd.f32 %v4057, %v4079
        %4081 = vdwg.mxu0
        %4082 = vmatpush.msra.mxu0 %v801
        %4083 = vmatpush.msra.mxu0 %v800
        %4084 = vmatpush.msra.mxu0 %v799
        %4085 = vmatpush.msra.mxu0 %v798
        %4086 = vmatpush.msra.mxu0 %v797
        %4087 = vmatpush.msra.mxu0 %v796
        %4088 = vmatpush.msra.mxu0 %v795
        %4089 = vmatpush.msra.mxu0 %v794
        %4090 = vmatpush.msra.mxu0 %v793
        %4091 = vmatpush.msra.mxu0 %v792
        %4092 = vmatpush.msra.mxu0 %v791
        %4093 = vmatpush.msra.mxu0 %v790
        %4094 = vmatpush.msra.mxu0 %v789
        %4095 = vmatpush.msra.mxu0 %v788
        %4096 = vmatpush.msra.mxu0 %v787
        %4097 = vmatpush.msra.mxu0 %v786
        %4098 = vmatmul.f32.gmra.mxu0 %v3970
        %v4099 = vpop.f32.mrf.mxu0
        %v4100 = vadd.f32 %v4077, %v4099
        %4101 = vmatmul.f32.gmra.mxu0 %v3969
        %v4102 = vpop.f32.mrf.mxu0
        %v4103 = vadd.f32 %v4080, %v4102
        %4104 = vdwg.mxu0
        %4105 = vmatpush.msra.mxu0 %v817
        %4106 = vmatpush.msra.mxu0 %v816
        %4107 = vmatpush.msra.mxu0 %v815
        %4108 = vmatpush.msra.mxu0 %v814
        %4109 = vmatpush.msra.mxu0 %v813
        %4110 = vmatpush.msra.mxu0 %v812
        %4111 = vmatpush.msra.mxu0 %v811
        %4112 = vmatpush.msra.mxu0 %v810
        %4113 = vmatpush.msra.mxu0 %v809
        %4114 = vmatpush.msra.mxu0 %v808
        %4115 = vmatpush.msra.mxu0 %v807
        %4116 = vmatpush.msra.mxu0 %v806
        %4117 = vmatpush.msra.mxu0 %v805
        %4118 = vmatpush.msra.mxu0 %v804
        %4119 = vmatpush.msra.mxu0 %v803
        %4120 = vmatpush.msra.mxu0 %v802
        %4121 = vmatmul.f32.gmra.mxu0 %v3975
        %v4122 = vpop.f32.mrf.mxu0
        %v4123 = vadd.f32 %v4100, %v4122
        %4124 = vmatmul.f32.gmra.mxu0 %v3974
        %v4125 = vpop.f32.mrf.mxu0
        %v4126 = vadd.f32 %v4103, %v4125
        %4127 = vdwg.mxu0
        %4128 = vmatpush.msra.mxu0 %v833
        %4129 = vmatpush.msra.mxu0 %v832
        %4130 = vmatpush.msra.mxu0 %v831
        %4131 = vmatpush.msra.mxu0 %v830
        %4132 = vmatpush.msra.mxu0 %v829
        %4133 = vmatpush.msra.mxu0 %v828
        %4134 = vmatpush.msra.mxu0 %v827
        %4135 = vmatpush.msra.mxu0 %v826
        %4136 = vmatpush.msra.mxu0 %v825
        %4137 = vmatpush.msra.mxu0 %v824
        %4138 = vmatpush.msra.mxu0 %v823
        %4139 = vmatpush.msra.mxu0 %v822
        %4140 = vmatpush.msra.mxu0 %v821
        %4141 = vmatpush.msra.mxu0 %v820
        %4142 = vmatpush.msra.mxu0 %v819
        %4143 = vmatpush.msra.mxu0 %v818
        %4144 = vmatmul.f32.gmra.mxu0 %v3952
        %v4145 = vpop.f32.mrf.mxu0
        %v4146 = vadd.f32 %v4123, %v4145
        %4147 = vmatmul.f32.gmra.mxu0 %v3953
        %v4148 = vpop.f32.mrf.mxu0
        %v4149 = vadd.f32 %v4126, %v4148
        %4150 = vdwg.mxu0
        %4151 = vmatpush.msra.mxu0 %v849
        %4152 = vmatpush.msra.mxu0 %v848
        %4153 = vmatpush.msra.mxu0 %v847
        %4154 = vmatpush.msra.mxu0 %v846
        %4155 = vmatpush.msra.mxu0 %v845
        %4156 = vmatpush.msra.mxu0 %v844
        %4157 = vmatpush.msra.mxu0 %v843
        %4158 = vmatpush.msra.mxu0 %v842
        %4159 = vmatpush.msra.mxu0 %v841
        %4160 = vmatpush.msra.mxu0 %v840
        %4161 = vmatpush.msra.mxu0 %v839
        %4162 = vmatpush.msra.mxu0 %v838
        %4163 = vmatpush.msra.mxu0 %v837
        %4164 = vmatpush.msra.mxu0 %v836
        %4165 = vmatpush.msra.mxu0 %v835
        %4166 = vmatpush.msra.mxu0 %v834
        %4167 = vmatmul.f32.gmra.mxu0 %v3982
        %v4168 = vpop.f32.mrf.mxu0
        %v4169 = vadd.f32 %v4146, %v4168
        %4170 = vmatmul.f32.gmra.mxu0 %v3981
        %v4171 = vpop.f32.mrf.mxu0
        %v4172 = vadd.f32 %v4149, %v4171
        %4173 = vdwg.mxu0
        %4174 = vmatpush.msra.mxu0 %v865
        %4175 = vmatpush.msra.mxu0 %v864
        %4176 = vmatpush.msra.mxu0 %v863
        %4177 = vmatpush.msra.mxu0 %v862
        %4178 = vmatpush.msra.mxu0 %v861
        %4179 = vmatpush.msra.mxu0 %v860
        %4180 = vmatpush.msra.mxu0 %v859
        %4181 = vmatpush.msra.mxu0 %v858
        %4182 = vmatpush.msra.mxu0 %v857
        %4183 = vmatpush.msra.mxu0 %v856
        %4184 = vmatpush.msra.mxu0 %v855
        %4185 = vmatpush.msra.mxu0 %v854
        %4186 = vmatpush.msra.mxu0 %v853
        %4187 = vmatpush.msra.mxu0 %v852
        %4188 = vmatpush.msra.mxu0 %v851
        %4189 = vmatpush.msra.mxu0 %v850
        %4190 = vmatmul.f32.gmra.mxu0 %v3987
        %v4191 = vpop.f32.mrf.mxu0
        %v4192 = vadd.f32 %v4169, %v4191
        %4193 = vmatmul.f32.gmra.mxu0 %v3986
        %v4194 = vpop.f32.mrf.mxu0
        %v4195 = vadd.f32 %v4172, %v4194
        %4196 = vdwg.mxu0
        %v4197 = vmax.f32 %v4192, 0.0
        %v4198 = vmax.f32 %v4195, 0.0
        %s4199 = scalar_lea.vmem [#allocation3], 208
        %4200 = vst [vmem:[%s4199 + $0x1] sm:$0xff] %v4197
        %4201 = vst [vmem:[%s4199 + $0x9] sm:$0x3f] %v4198
        %v4202 = vld [vmem:[%s713] sm:$0xff]
        %v4203 = vld [vmem:[%s713 + $0x8] sm:$0xff]
        %v4204 = vld [vmem:[%s716] sm:$0xff]
        %v4205 = vld [vmem:[%s716 + $0x8] sm:$0xff]
        %v4206 = vld [vmem:[%s719] sm:$0xff]
        %v4207 = vld [vmem:[%s719 + $0x8] sm:$0xff]
        %v4210 = vrot.slane %v4202, 1
        %v4211 = vrot.slane %v4203, 1
        %v4212 = vsel %vm906, %v4210, %v4211
        %v4215 = vrot.slane %v4202, 2
        %v4216 = vrot.slane %v4203, 2
        %v4217 = vsel %vm912, %v4215, %v4216
        %v4222 = vrot.slane %v4204, 1
        %v4223 = vrot.slane %v4205, 1
        %v4224 = vsel %vm906, %v4222, %v4223
        %v4227 = vrot.slane %v4204, 2
        %v4228 = vrot.slane %v4205, 2
        %v4229 = vsel %vm912, %v4227, %v4228
        %v4234 = vrot.slane %v4206, 1
        %v4235 = vrot.slane %v4207, 1
        %v4236 = vsel %vm906, %v4234, %v4235
        %v4239 = vrot.slane %v4206, 2
        %v4240 = vrot.slane %v4207, 2
        %v4241 = vsel %vm912, %v4239, %v4240
        %4244 = vmatpush.msra.mxu0 %v737
        %4245 = vmatpush.msra.mxu0 %v736
        %4246 = vmatpush.msra.mxu0 %v735
        %4247 = vmatpush.msra.mxu0 %v734
        %4248 = vmatpush.msra.mxu0 %v733
        %4249 = vmatpush.msra.mxu0 %v732
        %4250 = vmatpush.msra.mxu0 %v731
        %4251 = vmatpush.msra.mxu0 %v730
        %4252 = vmatpush.msra.mxu0 %v729
        %4253 = vmatpush.msra.mxu0 %v728
        %4254 = vmatpush.msra.mxu0 %v727
        %4255 = vmatpush.msra.mxu0 %v726
        %4256 = vmatpush.msra.mxu0 %v725
        %4257 = vmatpush.msra.mxu0 %v724
        %4258 = vmatpush.msra.mxu0 %v723
        %4259 = vmatpush.msra.mxu0 %v722
        %4260 = vmatmul.f32.gmra.mxu0 %v4202
        %v4261 = vpop.f32.mrf.mxu0
        %v4262 = vadd.f32 0.0, %v4261
        %4263 = vmatmul.f32.gmra.mxu0 %v4203
        %v4264 = vpop.f32.mrf.mxu0
        %v4265 = vadd.f32 0.0, %v4264
        %4266 = vdwg.mxu0
        %4267 = vmatpush.msra.mxu0 %v753
        %4268 = vmatpush.msra.mxu0 %v752
        %4269 = vmatpush.msra.mxu0 %v751
        %4270 = vmatpush.msra.mxu0 %v750
        %4271 = vmatpush.msra.mxu0 %v749
        %4272 = vmatpush.msra.mxu0 %v748
        %4273 = vmatpush.msra.mxu0 %v747
        %4274 = vmatpush.msra.mxu0 %v746
        %4275 = vmatpush.msra.mxu0 %v745
        %4276 = vmatpush.msra.mxu0 %v744
        %4277 = vmatpush.msra.mxu0 %v743
        %4278 = vmatpush.msra.mxu0 %v742
        %4279 = vmatpush.msra.mxu0 %v741
        %4280 = vmatpush.msra.mxu0 %v740
        %4281 = vmatpush.msra.mxu0 %v739
        %4282 = vmatpush.msra.mxu0 %v738
        %4283 = vmatmul.f32.gmra.mxu0 %v4212
        %v4284 = vpop.f32.mrf.mxu0
        %v4285 = vadd.f32 %v4262, %v4284
        %4286 = vmatmul.f32.gmra.mxu0 %v4211
        %v4287 = vpop.f32.mrf.mxu0
        %v4288 = vadd.f32 %v4265, %v4287
        %4289 = vdwg.mxu0
        %4290 = vmatpush.msra.mxu0 %v769
        %4291 = vmatpush.msra.mxu0 %v768
        %4292 = vmatpush.msra.mxu0 %v767
        %4293 = vmatpush.msra.mxu0 %v766
        %4294 = vmatpush.msra.mxu0 %v765
        %4295 = vmatpush.msra.mxu0 %v764
        %4296 = vmatpush.msra.mxu0 %v763
        %4297 = vmatpush.msra.mxu0 %v762
        %4298 = vmatpush.msra.mxu0 %v761
        %4299 = vmatpush.msra.mxu0 %v760
        %4300 = vmatpush.msra.mxu0 %v759
        %4301 = vmatpush.msra.mxu0 %v758
        %4302 = vmatpush.msra.mxu0 %v757
        %4303 = vmatpush.msra.mxu0 %v756
        %4304 = vmatpush.msra.mxu0 %v755
        %4305 = vmatpush.msra.mxu0 %v754
        %4306 = vmatmul.f32.gmra.mxu0 %v4217
        %v4307 = vpop.f32.mrf.mxu0
        %v4308 = vadd.f32 %v4285, %v4307
        %4309 = vmatmul.f32.gmra.mxu0 %v4216
        %v4310 = vpop.f32.mrf.mxu0
        %v4311 = vadd.f32 %v4288, %v4310
        %4312 = vdwg.mxu0
        %4313 = vmatpush.msra.mxu0 %v785
        %4314 = vmatpush.msra.mxu0 %v784
        %4315 = vmatpush.msra.mxu0 %v783
        %4316 = vmatpush.msra.mxu0 %v782
        %4317 = vmatpush.msra.mxu0 %v781
        %4318 = vmatpush.msra.mxu0 %v780
        %4319 = vmatpush.msra.mxu0 %v779
        %4320 = vmatpush.msra.mxu0 %v778
        %4321 = vmatpush.msra.mxu0 %v777
        %4322 = vmatpush.msra.mxu0 %v776
        %4323 = vmatpush.msra.mxu0 %v775
        %4324 = vmatpush.msra.mxu0 %v774
        %4325 = vmatpush.msra.mxu0 %v773
        %4326 = vmatpush.msra.mxu0 %v772
        %4327 = vmatpush.msra.mxu0 %v771
        %4328 = vmatpush.msra.mxu0 %v770
        %4329 = vmatmul.f32.gmra.mxu0 %v4204
        %v4330 = vpop.f32.mrf.mxu0
        %v4331 = vadd.f32 %v4308, %v4330
        %4332 = vmatmul.f32.gmra.mxu0 %v4205
        %v4333 = vpop.f32.mrf.mxu0
        %v4334 = vadd.f32 %v4311, %v4333
        %4335 = vdwg.mxu0
        %4336 = vmatpush.msra.mxu0 %v801
        %4337 = vmatpush.msra.mxu0 %v800
        %4338 = vmatpush.msra.mxu0 %v799
        %4339 = vmatpush.msra.mxu0 %v798
        %4340 = vmatpush.msra.mxu0 %v797
        %4341 = vmatpush.msra.mxu0 %v796
        %4342 = vmatpush.msra.mxu0 %v795
        %4343 = vmatpush.msra.mxu0 %v794
        %4344 = vmatpush.msra.mxu0 %v793
        %4345 = vmatpush.msra.mxu0 %v792
        %4346 = vmatpush.msra.mxu0 %v791
        %4347 = vmatpush.msra.mxu0 %v790
        %4348 = vmatpush.msra.mxu0 %v789
        %4349 = vmatpush.msra.mxu0 %v788
        %4350 = vmatpush.msra.mxu0 %v787
        %4351 = vmatpush.msra.mxu0 %v786
        %4352 = vmatmul.f32.gmra.mxu0 %v4224
        %v4353 = vpop.f32.mrf.mxu0
        %v4354 = vadd.f32 %v4331, %v4353
        %4355 = vmatmul.f32.gmra.mxu0 %v4223
        %v4356 = vpop.f32.mrf.mxu0
        %v4357 = vadd.f32 %v4334, %v4356
        %4358 = vdwg.mxu0
        %4359 = vmatpush.msra.mxu0 %v817
        %4360 = vmatpush.msra.mxu0 %v816
        %4361 = vmatpush.msra.mxu0 %v815
        %4362 = vmatpush.msra.mxu0 %v814
        %4363 = vmatpush.msra.mxu0 %v813
        %4364 = vmatpush.msra.mxu0 %v812
        %4365 = vmatpush.msra.mxu0 %v811
        %4366 = vmatpush.msra.mxu0 %v810
        %4367 = vmatpush.msra.mxu0 %v809
        %4368 = vmatpush.msra.mxu0 %v808
        %4369 = vmatpush.msra.mxu0 %v807
        %4370 = vmatpush.msra.mxu0 %v806
        %4371 = vmatpush.msra.mxu0 %v805
        %4372 = vmatpush.msra.mxu0 %v804
        %4373 = vmatpush.msra.mxu0 %v803
        %4374 = vmatpush.msra.mxu0 %v802
        %4375 = vmatmul.f32.gmra.mxu0 %v4229
        %v4376 = vpop.f32.mrf.mxu0
        %v4377 = vadd.f32 %v4354, %v4376
        %4378 = vmatmul.f32.gmra.mxu0 %v4228
        %v4379 = vpop.f32.mrf.mxu0
        %v4380 = vadd.f32 %v4357, %v4379
        %4381 = vdwg.mxu0
        %4382 = vmatpush.msra.mxu0 %v833
        %4383 = vmatpush.msra.mxu0 %v832
        %4384 = vmatpush.msra.mxu0 %v831
        %4385 = vmatpush.msra.mxu0 %v830
        %4386 = vmatpush.msra.mxu0 %v829
        %4387 = vmatpush.msra.mxu0 %v828
        %4388 = vmatpush.msra.mxu0 %v827
        %4389 = vmatpush.msra.mxu0 %v826
        %4390 = vmatpush.msra.mxu0 %v825
        %4391 = vmatpush.msra.mxu0 %v824
        %4392 = vmatpush.msra.mxu0 %v823
        %4393 = vmatpush.msra.mxu0 %v822
        %4394 = vmatpush.msra.mxu0 %v821
        %4395 = vmatpush.msra.mxu0 %v820
        %4396 = vmatpush.msra.mxu0 %v819
        %4397 = vmatpush.msra.mxu0 %v818
        %4398 = vmatmul.f32.gmra.mxu0 %v4206
        %v4399 = vpop.f32.mrf.mxu0
        %v4400 = vadd.f32 %v4377, %v4399
        %4401 = vmatmul.f32.gmra.mxu0 %v4207
        %v4402 = vpop.f32.mrf.mxu0
        %v4403 = vadd.f32 %v4380, %v4402
        %4404 = vdwg.mxu0
        %4405 = vmatpush.msra.mxu0 %v849
        %4406 = vmatpush.msra.mxu0 %v848
        %4407 = vmatpush.msra.mxu0 %v847
        %4408 = vmatpush.msra.mxu0 %v846
        %4409 = vmatpush.msra.mxu0 %v845
        %4410 = vmatpush.msra.mxu0 %v844
        %4411 = vmatpush.msra.mxu0 %v843
        %4412 = vmatpush.msra.mxu0 %v842
        %4413 = vmatpush.msra.mxu0 %v841
        %4414 = vmatpush.msra.mxu0 %v840
        %4415 = vmatpush.msra.mxu0 %v839
        %4416 = vmatpush.msra.mxu0 %v838
        %4417 = vmatpush.msra.mxu0 %v837
        %4418 = vmatpush.msra.mxu0 %v836
        %4419 = vmatpush.msra.mxu0 %v835
        %4420 = vmatpush.msra.mxu0 %v834
        %4421 = vmatmul.f32.gmra.mxu0 %v4236
        %v4422 = vpop.f32.mrf.mxu0
        %v4423 = vadd.f32 %v4400, %v4422
        %4424 = vmatmul.f32.gmra.mxu0 %v4235
        %v4425 = vpop.f32.mrf.mxu0
        %v4426 = vadd.f32 %v4403, %v4425
        %4427 = vdwg.mxu0
        %4428 = vmatpush.msra.mxu0 %v865
        %4429 = vmatpush.msra.mxu0 %v864
        %4430 = vmatpush.msra.mxu0 %v863
        %4431 = vmatpush.msra.mxu0 %v862
        %4432 = vmatpush.msra.mxu0 %v861
        %4433 = vmatpush.msra.mxu0 %v860
        %4434 = vmatpush.msra.mxu0 %v859
        %4435 = vmatpush.msra.mxu0 %v858
        %4436 = vmatpush.msra.mxu0 %v857
        %4437 = vmatpush.msra.mxu0 %v856
        %4438 = vmatpush.msra.mxu0 %v855
        %4439 = vmatpush.msra.mxu0 %v854
        %4440 = vmatpush.msra.mxu0 %v853
        %4441 = vmatpush.msra.mxu0 %v852
        %4442 = vmatpush.msra.mxu0 %v851
        %4443 = vmatpush.msra.mxu0 %v850
        %4444 = vmatmul.f32.gmra.mxu0 %v4241
        %v4445 = vpop.f32.mrf.mxu0
        %v4446 = vadd.f32 %v4423, %v4445
        %4447 = vmatmul.f32.gmra.mxu0 %v4240
        %v4448 = vpop.f32.mrf.mxu0
        %v4449 = vadd.f32 %v4426, %v4448
        %4450 = vdwg.mxu0
        %v4451 = vmax.f32 %v4446, 0.0
        %v4452 = vmax.f32 %v4449, 0.0
        %s4453 = scalar_lea.vmem [#allocation3], 224
        %4454 = vst [vmem:[%s4453 + $0x1] sm:$0xff] %v4451
        %4455 = vst [vmem:[%s4453 + $0x9] sm:$0x3f] %v4452
        %v4456 = vlaneseq
        %v4457 = vshrl.u32 %v4456, 7
        %v4458 = vlaneseq
        %v4459 = vand.u32 %v4458, 127
        %v4460 = vmul.u32 %v4457, 2
        %vm4461 = vcmp.eq.s32.totalorder %v4459, %v4460
        %v4462 = vsel %vm4461, 1, 0
        %v4463 = vcvt.s32.f32 %v4462
        %v4464 = vld [vmem:[#allocation3] sm:$0xff]
        %v4465 = vld [vmem:[#allocation3 + $0x8] sm:$0xff]
        %v4466 = vld [vmem:[%s1151] sm:$0xff]
        %v4467 = vld [vmem:[%s1151 + $0x8] sm:$0xff]
        %v4468 = vmax.f32 %v4464, %v4466
        %v4469 = vmax.f32 %v4465, %v4467
        %v4472 = vrot.slane %v4468, 1
        %v4473 = vrot.slane %v4469, 1
        %v4474 = vsel %vm906, %v4472, %v4473
        %v4477 = vmax.f32 %v4468, %v4474
        %v4478 = vmax.f32 %v4469, %v4473
        %vm4479 = vcmask 121856
        %v4481 = vsel %vm4479, %v4463, 0
        %v4484 = vsel %vm906, %v4478, 0
        %4486 = vmatpush.msra.mxu0 0.0
        %4487 = vmatpush.msra.mxu0 0.0
        %4488 = vmatpush.msra.mxu0 0.0
        %4489 = vmatpush.msra.mxu0 0.0
        %4490 = vmatpush.msra.mxu0 0.0
        %4491 = vmatpush.msra.mxu0 0.0
        %4492 = vmatpush.msra.mxu0 0.0
        %4493 = vmatpush.msra.mxu0 0.0
        %4494 = vmatpush.msra.mxu0 0.0
        %4495 = vmatpush.msra.mxu0 0.0
        %4496 = vmatpush.msra.mxu0 0.0
        %4497 = vmatpush.msra.mxu0 0.0
        %4498 = vmatpush.msra.mxu0 0.0
        %4499 = vmatpush.msra.mxu0 0.0
        %4500 = vmatpush.msra.mxu0 %v4484
        %4501 = vmatpush.msra.mxu0 %v4477
        %4502 = vmatmul.f32.gmra.mxu0 %v4481
        %v4503 = vpop.f32.mrf.mxu0
        %v4504 = vadd.f32 0.0, %v4503
        %4505 = vdwg.mxu0
        %4506 = vst [vmem:[#allocation2] sm:$0xff] %v4504
        %v4507 = vld [vmem:[%s1405] sm:$0xff]
        %v4508 = vld [vmem:[%s1405 + $0x8] sm:$0xff]
        %v4509 = vld [vmem:[%s1659] sm:$0xff]
        %v4510 = vld [vmem:[%s1659 + $0x8] sm:$0xff]
        %v4511 = vmax.f32 %v4507, %v4509
        %v4512 = vmax.f32 %v4508, %v4510
        %v4515 = vrot.slane %v4511, 1
        %v4516 = vrot.slane %v4512, 1
        %v4517 = vsel %vm906, %v4515, %v4516
        %v4520 = vmax.f32 %v4511, %v4517
        %v4521 = vmax.f32 %v4512, %v4516
        %v4523 = vsel %vm906, %v4521, 0
        %4525 = vmatpush.msra.mxu0 0.0
        %4526 = vmatpush.msra.mxu0 0.0
        %4527 = vmatpush.msra.mxu0 0.0
        %4528 = vmatpush.msra.mxu0 0.0
        %4529 = vmatpush.msra.mxu0 0.0
        %4530 = vmatpush.msra.mxu0 0.0
        %4531 = vmatpush.msra.mxu0 0.0
        %4532 = vmatpush.msra.mxu0 0.0
        %4533 = vmatpush.msra.mxu0 0.0
        %4534 = vmatpush.msra.mxu0 0.0
        %4535 = vmatpush.msra.mxu0 0.0
        %4536 = vmatpush.msra.mxu0 0.0
        %4537 = vmatpush.msra.mxu0 0.0
        %4538 = vmatpush.msra.mxu0 0.0
        %4539 = vmatpush.msra.mxu0 %v4523
        %4540 = vmatpush.msra.mxu0 %v4520
        %4541 = vmatmul.f32.gmra.mxu0 %v4481
        %v4542 = vpop.f32.mrf.mxu0
        %v4543 = vadd.f32 0.0, %v4542
        %4544 = vdwg.mxu0
        %4545 = vst [vmem:[%s677] sm:$0xff] %v4543
        %v4546 = vld [vmem:[%s1913] sm:$0xff]
        %v4547 = vld [vmem:[%s1913 + $0x8] sm:$0xff]
        %v4548 = vld [vmem:[%s2167] sm:$0xff]
        %v4549 = vld [vmem:[%s2167 + $0x8] sm:$0xff]
        %v4550 = vmax.f32 %v4546, %v4548
        %v4551 = vmax.f32 %v4547, %v4549
        %v4554 = vrot.slane %v4550, 1
        %v4555 = vrot.slane %v4551, 1
        %v4556 = vsel %vm906, %v4554, %v4555
        %v4559 = vmax.f32 %v4550, %v4556
        %v4560 = vmax.f32 %v4551, %v4555
        %v4562 = vsel %vm906, %v4560, 0
        %4564 = vmatpush.msra.mxu0 0.0
        %4565 = vmatpush.msra.mxu0 0.0
        %4566 = vmatpush.msra.mxu0 0.0
        %4567 = vmatpush.msra.mxu0 0.0
        %4568 = vmatpush.msra.mxu0 0.0
        %4569 = vmatpush.msra.mxu0 0.0
        %4570 = vmatpush.msra.mxu0 0.0
        %4571 = vmatpush.msra.mxu0 0.0
        %4572 = vmatpush.msra.mxu0 0.0
        %4573 = vmatpush.msra.mxu0 0.0
        %4574 = vmatpush.msra.mxu0 0.0
        %4575 = vmatpush.msra.mxu0 0.0
        %4576 = vmatpush.msra.mxu0 0.0
        %4577 = vmatpush.msra.mxu0 0.0
        %4578 = vmatpush.msra.mxu0 %v4562
        %4579 = vmatpush.msra.mxu0 %v4559
        %4580 = vmatmul.f32.gmra.mxu0 %v4481
        %v4581 = vpop.f32.mrf.mxu0
        %v4582 = vadd.f32 0.0, %v4581
        %4583 = vdwg.mxu0
        %4584 = vst [vmem:[%s680] sm:$0xff] %v4582
        %v4585 = vld [vmem:[%s2421] sm:$0xff]
        %v4586 = vld [vmem:[%s2421 + $0x8] sm:$0xff]
        %v4587 = vld [vmem:[%s2675] sm:$0xff]
        %v4588 = vld [vmem:[%s2675 + $0x8] sm:$0xff]
        %v4589 = vmax.f32 %v4585, %v4587
        %v4590 = vmax.f32 %v4586, %v4588
        %v4593 = vrot.slane %v4589, 1
        %v4594 = vrot.slane %v4590, 1
        %v4595 = vsel %vm906, %v4593, %v4594
        %v4598 = vmax.f32 %v4589, %v4595
        %v4599 = vmax.f32 %v4590, %v4594
        %v4601 = vsel %vm906, %v4599, 0
        %4603 = vmatpush.msra.mxu0 0.0
        %4604 = vmatpush.msra.mxu0 0.0
        %4605 = vmatpush.msra.mxu0 0.0
        %4606 = vmatpush.msra.mxu0 0.0
        %4607 = vmatpush.msra.mxu0 0.0
        %4608 = vmatpush.msra.mxu0 0.0
        %4609 = vmatpush.msra.mxu0 0.0
        %4610 = vmatpush.msra.mxu0 0.0
        %4611 = vmatpush.msra.mxu0 0.0
        %4612 = vmatpush.msra.mxu0 0.0
        %4613 = vmatpush.msra.mxu0 0.0
        %4614 = vmatpush.msra.mxu0 0.0
        %4615 = vmatpush.msra.mxu0 0.0
        %4616 = vmatpush.msra.mxu0 0.0
        %4617 = vmatpush.msra.mxu0 %v4601
        %4618 = vmatpush.msra.mxu0 %v4598
        %4619 = vmatmul.f32.gmra.mxu0 %v4481
        %v4620 = vpop.f32.mrf.mxu0
        %v4621 = vadd.f32 0.0, %v4620
        %4622 = vdwg.mxu0
        %4623 = vst [vmem:[%s683] sm:$0xff] %v4621
        %v4624 = vld [vmem:[%s2929] sm:$0xff]
        %v4625 = vld [vmem:[%s2929 + $0x8] sm:$0xff]
        %v4626 = vld [vmem:[%s3183] sm:$0xff]
        %v4627 = vld [vmem:[%s3183 + $0x8] sm:$0xff]
        %v4628 = vmax.f32 %v4624, %v4626
        %v4629 = vmax.f32 %v4625, %v4627
        %v4632 = vrot.slane %v4628, 1
        %v4633 = vrot.slane %v4629, 1
        %v4634 = vsel %vm906, %v4632, %v4633
        %v4637 = vmax.f32 %v4628, %v4634
        %v4638 = vmax.f32 %v4629, %v4633
        %v4640 = vsel %vm906, %v4638, 0
        %4642 = vmatpush.msra.mxu0 0.0
        %4643 = vmatpush.msra.mxu0 0.0
        %4644 = vmatpush.msra.mxu0 0.0
        %4645 = vmatpush.msra.mxu0 0.0
        %4646 = vmatpush.msra.mxu0 0.0
        %4647 = vmatpush.msra.mxu0 0.0
        %4648 = vmatpush.msra.mxu0 0.0
        %4649 = vmatpush.msra.mxu0 0.0
        %4650 = vmatpush.msra.mxu0 0.0
        %4651 = vmatpush.msra.mxu0 0.0
        %4652 = vmatpush.msra.mxu0 0.0
        %4653 = vmatpush.msra.mxu0 0.0
        %4654 = vmatpush.msra.mxu0 0.0
        %4655 = vmatpush.msra.mxu0 0.0
        %4656 = vmatpush.msra.mxu0 %v4640
        %4657 = vmatpush.msra.mxu0 %v4637
        %4658 = vmatmul.f32.gmra.mxu0 %v4481
        %v4659 = vpop.f32.mrf.mxu0
        %v4660 = vadd.f32 0.0, %v4659
        %4661 = vdwg.mxu0
        %4662 = vst [vmem:[%s686] sm:$0xff] %v4660
        %v4663 = vld [vmem:[%s3437] sm:$0xff]
        %v4664 = vld [vmem:[%s3437 + $0x8] sm:$0xff]
        %v4665 = vld [vmem:[%s3691] sm:$0xff]
        %v4666 = vld [vmem:[%s3691 + $0x8] sm:$0xff]
        %v4667 = vmax.f32 %v4663, %v4665
        %v4668 = vmax.f32 %v4664, %v4666
        %v4671 = vrot.slane %v4667, 1
        %v4672 = vrot.slane %v4668, 1
        %v4673 = vsel %vm906, %v4671, %v4672
        %v4676 = vmax.f32 %v4667, %v4673
        %v4677 = vmax.f32 %v4668, %v4672
        %v4679 = vsel %vm906, %v4677, 0
        %4681 = vmatpush.msra.mxu0 0.0
        %4682 = vmatpush.msra.mxu0 0.0
        %4683 = vmatpush.msra.mxu0 0.0
        %4684 = vmatpush.msra.mxu0 0.0
        %4685 = vmatpush.msra.mxu0 0.0
        %4686 = vmatpush.msra.mxu0 0.0
        %4687 = vmatpush.msra.mxu0 0.0
        %4688 = vmatpush.msra.mxu0 0.0
        %4689 = vmatpush.msra.mxu0 0.0
        %4690 = vmatpush.msra.mxu0 0.0
        %4691 = vmatpush.msra.mxu0 0.0
        %4692 = vmatpush.msra.mxu0 0.0
        %4693 = vmatpush.msra.mxu0 0.0
        %4694 = vmatpush.msra.mxu0 0.0
        %4695 = vmatpush.msra.mxu0 %v4679
        %4696 = vmatpush.msra.mxu0 %v4676
        %4697 = vmatmul.f32.gmra.mxu0 %v4481
        %v4698 = vpop.f32.mrf.mxu0
        %v4699 = vadd.f32 0.0, %v4698
        %4700 = vdwg.mxu0
        %4701 = vst [vmem:[%s689] sm:$0xff] %v4699
        %v4702 = vld [vmem:[%s3945] sm:$0xff]
        %v4703 = vld [vmem:[%s3945 + $0x8] sm:$0xff]
        %v4704 = vld [vmem:[%s4199] sm:$0xff]
        %v4705 = vld [vmem:[%s4199 + $0x8] sm:$0xff]
        %v4706 = vmax.f32 %v4702, %v4704
        %v4707 = vmax.f32 %v4703, %v4705
        %v4710 = vrot.slane %v4706, 1
        %v4711 = vrot.slane %v4707, 1
        %v4712 = vsel %vm906, %v4710, %v4711
        %v4715 = vmax.f32 %v4706, %v4712
        %v4716 = vmax.f32 %v4707, %v4711
        %v4718 = vsel %vm906, %v4716, 0
        %4720 = vmatpush.msra.mxu0 0.0
        %4721 = vmatpush.msra.mxu0 0.0
        %4722 = vmatpush.msra.mxu0 0.0
        %4723 = vmatpush.msra.mxu0 0.0
        %4724 = vmatpush.msra.mxu0 0.0
        %4725 = vmatpush.msra.mxu0 0.0
        %4726 = vmatpush.msra.mxu0 0.0
        %4727 = vmatpush.msra.mxu0 0.0
        %4728 = vmatpush.msra.mxu0 0.0
        %4729 = vmatpush.msra.mxu0 0.0
        %4730 = vmatpush.msra.mxu0 0.0
        %4731 = vmatpush.msra.mxu0 0.0
        %4732 = vmatpush.msra.mxu0 0.0
        %4733 = vmatpush.msra.mxu0 0.0
        %4734 = vmatpush.msra.mxu0 %v4718
        %4735 = vmatpush.msra.mxu0 %v4715
        %4736 = vmatmul.f32.gmra.mxu0 %v4481
        %v4737 = vpop.f32.mrf.mxu0
        %v4738 = vadd.f32 0.0, %v4737
        %4739 = vdwg.mxu0
        %4740 = vst [vmem:[%s692] sm:$0xff] %v4738
        %v4741 = vld [vmem:[%s4453] sm:$0xff]
        %v4742 = vld [vmem:[%s4453 + $0x8] sm:$0xff]
        %s4743 = scalar_lea.vmem [#allocation3], 240
        %v4744 = vld [vmem:[%s4743] sm:$0xff]
        %v4745 = vld [vmem:[%s4743 + $0x8] sm:$0xff]
        %v4746 = vmax.f32 %v4741, %v4744
        %v4747 = vmax.f32 %v4742, %v4745
        %v4750 = vrot.slane %v4746, 1
        %v4751 = vrot.slane %v4747, 1
        %v4752 = vsel %vm906, %v4750, %v4751
        %v4755 = vmax.f32 %v4746, %v4752
        %v4756 = vmax.f32 %v4747, %v4751
        %v4758 = vsel %vm906, %v4756, 0
        %4760 = vmatpush.msra.mxu0 0.0
        %4761 = vmatpush.msra.mxu0 0.0
        %4762 = vmatpush.msra.mxu0 0.0
        %4763 = vmatpush.msra.mxu0 0.0
        %4764 = vmatpush.msra.mxu0 0.0
        %4765 = vmatpush.msra.mxu0 0.0
        %4766 = vmatpush.msra.mxu0 0.0
        %4767 = vmatpush.msra.mxu0 0.0
        %4768 = vmatpush.msra.mxu0 0.0
        %4769 = vmatpush.msra.mxu0 0.0
        %4770 = vmatpush.msra.mxu0 0.0
        %4771 = vmatpush.msra.mxu0 0.0
        %4772 = vmatpush.msra.mxu0 0.0
        %4773 = vmatpush.msra.mxu0 0.0
        %4774 = vmatpush.msra.mxu0 %v4758
        %4775 = vmatpush.msra.mxu0 %v4755
        %4776 = vmatmul.f32.gmra.mxu0 %v4481
        %v4777 = vpop.f32.mrf.mxu0
        %v4778 = vadd.f32 0.0, %v4777
        %4779 = vdwg.mxu0
        %4780 = vst [vmem:[%s695] sm:$0xff] %v4778
        %s4781 = scalar_lea.vmem [#allocation10], 1152
        %v4782 = vld [vmem:[%s4781] sm:$0xff]
        %v4783 = vld [vmem:[%s4781 + $0x8] sm:$0xff]
        %v4784 = vld [vmem:[%s4781 + $0x10] sm:$0xff]
        %v4785 = vld [vmem:[%s4781 + $0x18] sm:$0xff]
        %v4786 = vld [vmem:[%s4781 + $0x20] sm:$0xff]
        %v4787 = vld [vmem:[%s4781 + $0x28] sm:$0xff]
        %v4788 = vld [vmem:[%s4781 + $0x30] sm:$0xff]
        %v4789 = vld [vmem:[%s4781 + $0x38] sm:$0xff]
        %v4790 = vld [vmem:[%s4781 + $0x40] sm:$0xff]
        %v4791 = vld [vmem:[%s4781 + $0x48] sm:$0xff]
        %v4792 = vld [vmem:[%s4781 + $0x50] sm:$0xff]
        %v4793 = vld [vmem:[%s4781 + $0x58] sm:$0xff]
        %v4794 = vld [vmem:[%s4781 + $0x60] sm:$0xff]
        %v4795 = vld [vmem:[%s4781 + $0x68] sm:$0xff]
        %v4796 = vld [vmem:[%s4781 + $0x70] sm:$0xff]
        %v4797 = vld [vmem:[%s4781 + $0x78] sm:$0xff]
        %v4798 = vld [vmem:[%s4781 + $0x80] sm:$0xff]
        %v4799 = vld [vmem:[%s4781 + $0x88] sm:$0xff]
        %v4800 = vld [vmem:[%s4781 + $0x90] sm:$0xff]
        %v4801 = vld [vmem:[%s4781 + $0x98] sm:$0xff]
        %v4802 = vld [vmem:[%s4781 + $0xa0] sm:$0xff]
        %v4803 = vld [vmem:[%s4781 + $0xa8] sm:$0xff]
        %v4804 = vld [vmem:[%s4781 + $0xb0] sm:$0xff]
        %v4805 = vld [vmem:[%s4781 + $0xb8] sm:$0xff]
        %v4806 = vld [vmem:[%s4781 + $0xc0] sm:$0xff]
        %v4807 = vld [vmem:[%s4781 + $0xc8] sm:$0xff]
        %v4808 = vld [vmem:[%s4781 + $0xd0] sm:$0xff]
        %v4809 = vld [vmem:[%s4781 + $0xd8] sm:$0xff]
        %v4810 = vld [vmem:[%s4781 + $0xe0] sm:$0xff]
        %v4811 = vld [vmem:[%s4781 + $0xe8] sm:$0xff]
        %v4812 = vld [vmem:[%s4781 + $0xf0] sm:$0xff]
        %v4813 = vld [vmem:[%s4781 + $0xf8] sm:$0xff]
        %v4814 = vld [vmem:[%s4781 + $0x100] sm:$0xff]
        %v4815 = vld [vmem:[%s4781 + $0x108] sm:$0xff]
        %v4816 = vld [vmem:[%s4781 + $0x110] sm:$0xff]
        %v4817 = vld [vmem:[%s4781 + $0x118] sm:$0xff]
        %v4818 = vld [vmem:[%s4781 + $0x120] sm:$0xff]
        %v4819 = vld [vmem:[%s4781 + $0x128] sm:$0xff]
        %v4820 = vld [vmem:[%s4781 + $0x130] sm:$0xff]
        %v4821 = vld [vmem:[%s4781 + $0x138] sm:$0xff]
        %v4822 = vld [vmem:[%s4781 + $0x140] sm:$0xff]
        %v4823 = vld [vmem:[%s4781 + $0x148] sm:$0xff]
        %v4824 = vld [vmem:[%s4781 + $0x150] sm:$0xff]
        %v4825 = vld [vmem:[%s4781 + $0x158] sm:$0xff]
        %v4826 = vld [vmem:[%s4781 + $0x160] sm:$0xff]
        %v4827 = vld [vmem:[%s4781 + $0x168] sm:$0xff]
        %v4828 = vld [vmem:[%s4781 + $0x170] sm:$0xff]
        %v4829 = vld [vmem:[%s4781 + $0x178] sm:$0xff]
        %v4830 = vld [vmem:[%s4781 + $0x180] sm:$0xff]
        %v4831 = vld [vmem:[%s4781 + $0x188] sm:$0xff]
        %v4832 = vld [vmem:[%s4781 + $0x190] sm:$0xff]
        %v4833 = vld [vmem:[%s4781 + $0x198] sm:$0xff]
        %v4834 = vld [vmem:[%s4781 + $0x1a0] sm:$0xff]
        %v4835 = vld [vmem:[%s4781 + $0x1a8] sm:$0xff]
        %v4836 = vld [vmem:[%s4781 + $0x1b0] sm:$0xff]
        %v4837 = vld [vmem:[%s4781 + $0x1b8] sm:$0xff]
        %v4838 = vld [vmem:[%s4781 + $0x1c0] sm:$0xff]
        %v4839 = vld [vmem:[%s4781 + $0x1c8] sm:$0xff]
        %v4840 = vld [vmem:[%s4781 + $0x1d0] sm:$0xff]
        %v4841 = vld [vmem:[%s4781 + $0x1d8] sm:$0xff]
        %v4842 = vld [vmem:[%s4781 + $0x1e0] sm:$0xff]
        %v4843 = vld [vmem:[%s4781 + $0x1e8] sm:$0xff]
        %v4844 = vld [vmem:[%s4781 + $0x1f0] sm:$0xff]
        %v4845 = vld [vmem:[%s4781 + $0x1f8] sm:$0xff]
        %v4846 = vld [vmem:[%s4781 + $0x200] sm:$0xff]
        %v4847 = vld [vmem:[%s4781 + $0x208] sm:$0xff]
        %v4848 = vld [vmem:[%s4781 + $0x210] sm:$0xff]
        %v4849 = vld [vmem:[%s4781 + $0x218] sm:$0xff]
        %v4850 = vld [vmem:[%s4781 + $0x220] sm:$0xff]
        %v4851 = vld [vmem:[%s4781 + $0x228] sm:$0xff]
        %v4852 = vld [vmem:[%s4781 + $0x230] sm:$0xff]
        %v4853 = vld [vmem:[%s4781 + $0x238] sm:$0xff]
        %v4854 = vld [vmem:[%s4781 + $0x240] sm:$0xff]
        %v4855 = vld [vmem:[%s4781 + $0x248] sm:$0xff]
        %v4856 = vld [vmem:[%s4781 + $0x250] sm:$0xff]
        %v4857 = vld [vmem:[%s4781 + $0x258] sm:$0xff]
        %v4858 = vld [vmem:[%s4781 + $0x260] sm:$0xff]
        %v4859 = vld [vmem:[%s4781 + $0x268] sm:$0xff]
        %v4860 = vld [vmem:[%s4781 + $0x270] sm:$0xff]
        %v4861 = vld [vmem:[%s4781 + $0x278] sm:$0xff]
        %v4862 = vld [vmem:[%s4781 + $0x280] sm:$0xff]
        %v4863 = vld [vmem:[%s4781 + $0x288] sm:$0xff]
        %v4864 = vld [vmem:[%s4781 + $0x290] sm:$0xff]
        %v4865 = vld [vmem:[%s4781 + $0x298] sm:$0xff]
        %v4866 = vld [vmem:[%s4781 + $0x2a0] sm:$0xff]
        %v4867 = vld [vmem:[%s4781 + $0x2a8] sm:$0xff]
        %v4868 = vld [vmem:[%s4781 + $0x2b0] sm:$0xff]
        %v4869 = vld [vmem:[%s4781 + $0x2b8] sm:$0xff]
        %v4870 = vld [vmem:[%s4781 + $0x2c0] sm:$0xff]
        %v4871 = vld [vmem:[%s4781 + $0x2c8] sm:$0xff]
        %v4872 = vld [vmem:[%s4781 + $0x2d0] sm:$0xff]
        %v4873 = vld [vmem:[%s4781 + $0x2d8] sm:$0xff]
        %v4874 = vld [vmem:[%s4781 + $0x2e0] sm:$0xff]
        %v4875 = vld [vmem:[%s4781 + $0x2e8] sm:$0xff]
        %v4876 = vld [vmem:[%s4781 + $0x2f0] sm:$0xff]
        %v4877 = vld [vmem:[%s4781 + $0x2f8] sm:$0xff]
        %v4878 = vld [vmem:[%s4781 + $0x300] sm:$0xff]
        %v4879 = vld [vmem:[%s4781 + $0x308] sm:$0xff]
        %v4880 = vld [vmem:[%s4781 + $0x310] sm:$0xff]
        %v4881 = vld [vmem:[%s4781 + $0x318] sm:$0xff]
        %v4882 = vld [vmem:[%s4781 + $0x320] sm:$0xff]
        %v4883 = vld [vmem:[%s4781 + $0x328] sm:$0xff]
        %v4884 = vld [vmem:[%s4781 + $0x330] sm:$0xff]
        %v4885 = vld [vmem:[%s4781 + $0x338] sm:$0xff]
        %v4886 = vld [vmem:[%s4781 + $0x340] sm:$0xff]
        %v4887 = vld [vmem:[%s4781 + $0x348] sm:$0xff]
        %v4888 = vld [vmem:[%s4781 + $0x350] sm:$0xff]
        %v4889 = vld [vmem:[%s4781 + $0x358] sm:$0xff]
        %v4890 = vld [vmem:[%s4781 + $0x360] sm:$0xff]
        %v4891 = vld [vmem:[%s4781 + $0x368] sm:$0xff]
        %v4892 = vld [vmem:[%s4781 + $0x370] sm:$0xff]
        %v4893 = vld [vmem:[%s4781 + $0x378] sm:$0xff]
        %v4894 = vld [vmem:[%s4781 + $0x380] sm:$0xff]
        %v4895 = vld [vmem:[%s4781 + $0x388] sm:$0xff]
        %v4896 = vld [vmem:[%s4781 + $0x390] sm:$0xff]
        %v4897 = vld [vmem:[%s4781 + $0x398] sm:$0xff]
        %v4898 = vld [vmem:[%s4781 + $0x3a0] sm:$0xff]
        %v4899 = vld [vmem:[%s4781 + $0x3a8] sm:$0xff]
        %v4900 = vld [vmem:[%s4781 + $0x3b0] sm:$0xff]
        %v4901 = vld [vmem:[%s4781 + $0x3b8] sm:$0xff]
        %v4902 = vld [vmem:[%s4781 + $0x3c0] sm:$0xff]
        %v4903 = vld [vmem:[%s4781 + $0x3c8] sm:$0xff]
        %v4904 = vld [vmem:[%s4781 + $0x3d0] sm:$0xff]
        %v4905 = vld [vmem:[%s4781 + $0x3d8] sm:$0xff]
        %v4906 = vld [vmem:[%s4781 + $0x3e0] sm:$0xff]
        %v4907 = vld [vmem:[%s4781 + $0x3e8] sm:$0xff]
        %v4908 = vld [vmem:[%s4781 + $0x3f0] sm:$0xff]
        %v4909 = vld [vmem:[%s4781 + $0x3f8] sm:$0xff]
        %v4910 = vld [vmem:[%s4781 + $0x400] sm:$0xff]
        %v4911 = vld [vmem:[%s4781 + $0x408] sm:$0xff]
        %v4912 = vld [vmem:[%s4781 + $0x410] sm:$0xff]
        %v4913 = vld [vmem:[%s4781 + $0x418] sm:$0xff]
        %v4914 = vld [vmem:[%s4781 + $0x420] sm:$0xff]
        %v4915 = vld [vmem:[%s4781 + $0x428] sm:$0xff]
        %v4916 = vld [vmem:[%s4781 + $0x430] sm:$0xff]
        %v4917 = vld [vmem:[%s4781 + $0x438] sm:$0xff]
        %v4918 = vld [vmem:[%s4781 + $0x440] sm:$0xff]
        %v4919 = vld [vmem:[%s4781 + $0x448] sm:$0xff]
        %v4920 = vld [vmem:[%s4781 + $0x450] sm:$0xff]
        %v4921 = vld [vmem:[%s4781 + $0x458] sm:$0xff]
        %v4922 = vld [vmem:[%s4781 + $0x460] sm:$0xff]
        %v4923 = vld [vmem:[%s4781 + $0x468] sm:$0xff]
        %v4924 = vld [vmem:[%s4781 + $0x470] sm:$0xff]
        %v4925 = vld [vmem:[%s4781 + $0x478] sm:$0xff]
        %4926 = vst [vmem:[#allocation3] sm:$0xff] 0.0
        %4927 = vst [vmem:[#allocation3 + $0x8] sm:$0xff] 0.0
        %4928 = vst [vmem:[#allocation3 + $0x10] sm:$0xff] 0.0
        %4929 = vst [vmem:[#allocation3 + $0x18] sm:$0xff] 0.0
        %4930 = vst [vmem:[#allocation3 + $0x20] sm:$0xff] 0.0
        %4931 = vst [vmem:[#allocation3 + $0x28] sm:$0xff] 0.0
        %4932 = vst [vmem:[#allocation3 + $0x30] sm:$0xff] 0.0
        %4933 = vst [vmem:[#allocation3 + $0x38] sm:$0xff] 0.0
        %4934 = vst [vmem:[#allocation3 + $0x40] sm:$0xff] 0.0
        %4935 = vst [vmem:[#allocation3 + $0x48] sm:$0xff] 0.0
        %4936 = vst [vmem:[#allocation3 + $0x50] sm:$0xff] 0.0
        %4937 = vst [vmem:[#allocation3 + $0x58] sm:$0xff] 0.0
        %4938 = vst [vmem:[#allocation3 + $0x60] sm:$0xff] 0.0
        %4939 = vst [vmem:[#allocation3 + $0x68] sm:$0xff] 0.0
        %4940 = vst [vmem:[#allocation3 + $0x70] sm:$0xff] 0.0
        %4941 = vst [vmem:[#allocation3 + $0x78] sm:$0xff] 0.0
        %4942 = vst [vmem:[#allocation3 + $0x80] sm:$0xff] 0.0
        %4943 = vst [vmem:[#allocation3 + $0x88] sm:$0xff] 0.0
        %4944 = vst [vmem:[#allocation3 + $0x90] sm:$0xff] 0.0
        %4945 = vst [vmem:[#allocation3 + $0x98] sm:$0xff] 0.0
        %4946 = vst [vmem:[#allocation3 + $0xa0] sm:$0xff] 0.0
        %4947 = vst [vmem:[#allocation3 + $0xa8] sm:$0xff] 0.0
        %4948 = vst [vmem:[#allocation3 + $0xb0] sm:$0xff] 0.0
        %4949 = vst [vmem:[#allocation3 + $0xb8] sm:$0xff] 0.0
        %4950 = vst [vmem:[#allocation3 + $0xc0] sm:$0xff] 0.0
        %4951 = vst [vmem:[#allocation3 + $0xc8] sm:$0xff] 0.0
        %4952 = vst [vmem:[#allocation3 + $0xd0] sm:$0xff] 0.0
        %4953 = vst [vmem:[#allocation3 + $0xd8] sm:$0xff] 0.0
        %4954 = vst [vmem:[#allocation3 + $0xe0] sm:$0xff] 0.0
        %4955 = vst [vmem:[#allocation3 + $0xe8] sm:$0xff] 0.0
        %4956 = vst [vmem:[#allocation3 + $0xf0] sm:$0xff] 0.0
        %4957 = vst [vmem:[#allocation3 + $0xf8] sm:$0xff] 0.0
        %v4958 = vld [vmem:[#allocation2] sm:$0xff]
        %v4959 = vld [vmem:[%s677] sm:$0xff]
        %v4960 = vld [vmem:[%s680] sm:$0xff]
        %v4962 = vrot.slane %v4958, 1
        %v4964 = vrot.slane %v4958, 2
        %v4967 = vrot.slane %v4959, 1
        %v4969 = vrot.slane %v4959, 2
        %v4972 = vrot.slane %v4960, 1
        %v4974 = vrot.slane %v4960, 2
        %4976 = vmatpush.msra.mxu0 %v4797
        %4977 = vmatpush.msra.mxu0 %v4796
        %4978 = vmatpush.msra.mxu0 %v4795
        %4979 = vmatpush.msra.mxu0 %v4794
        %4980 = vmatpush.msra.mxu0 %v4793
        %4981 = vmatpush.msra.mxu0 %v4792
        %4982 = vmatpush.msra.mxu0 %v4791
        %4983 = vmatpush.msra.mxu0 %v4790
        %4984 = vmatpush.msra.mxu0 %v4789
        %4985 = vmatpush.msra.mxu0 %v4788
        %4986 = vmatpush.msra.mxu0 %v4787
        %4987 = vmatpush.msra.mxu0 %v4786
        %4988 = vmatpush.msra.mxu0 %v4785
        %4989 = vmatpush.msra.mxu0 %v4784
        %4990 = vmatpush.msra.mxu0 %v4783
        %4991 = vmatpush.msra.mxu0 %v4782
        %4992 = vmatmul.f32.gmra.mxu0 %v4958
        %v4993 = vpop.f32.mrf.mxu0
        %v4994 = vadd.f32 0.0, %v4993
        %4995 = vdwg.mxu0
        %4996 = vmatpush.msra.mxu0 %v4813
        %4997 = vmatpush.msra.mxu0 %v4812
        %4998 = vmatpush.msra.mxu0 %v4811
        %4999 = vmatpush.msra.mxu0 %v4810
        %5000 = vmatpush.msra.mxu0 %v4809
        %5001 = vmatpush.msra.mxu0 %v4808
        %5002 = vmatpush.msra.mxu0 %v4807
        %5003 = vmatpush.msra.mxu0 %v4806
        %5004 = vmatpush.msra.mxu0 %v4805
        %5005 = vmatpush.msra.mxu0 %v4804
        %5006 = vmatpush.msra.mxu0 %v4803
        %5007 = vmatpush.msra.mxu0 %v4802
        %5008 = vmatpush.msra.mxu0 %v4801
        %5009 = vmatpush.msra.mxu0 %v4800
        %5010 = vmatpush.msra.mxu0 %v4799
        %5011 = vmatpush.msra.mxu0 %v4798
        %5012 = vmatmul.f32.gmra.mxu0 %v4962
        %v5013 = vpop.f32.mrf.mxu0
        %v5014 = vadd.f32 %v4994, %v5013
        %5015 = vdwg.mxu0
        %5016 = vmatpush.msra.mxu0 %v4829
        %5017 = vmatpush.msra.mxu0 %v4828
        %5018 = vmatpush.msra.mxu0 %v4827
        %5019 = vmatpush.msra.mxu0 %v4826
        %5020 = vmatpush.msra.mxu0 %v4825
        %5021 = vmatpush.msra.mxu0 %v4824
        %5022 = vmatpush.msra.mxu0 %v4823
        %5023 = vmatpush.msra.mxu0 %v4822
        %5024 = vmatpush.msra.mxu0 %v4821
        %5025 = vmatpush.msra.mxu0 %v4820
        %5026 = vmatpush.msra.mxu0 %v4819
        %5027 = vmatpush.msra.mxu0 %v4818
        %5028 = vmatpush.msra.mxu0 %v4817
        %5029 = vmatpush.msra.mxu0 %v4816
        %5030 = vmatpush.msra.mxu0 %v4815
        %5031 = vmatpush.msra.mxu0 %v4814
        %5032 = vmatmul.f32.gmra.mxu0 %v4964
        %v5033 = vpop.f32.mrf.mxu0
        %v5034 = vadd.f32 %v5014, %v5033
        %5035 = vdwg.mxu0
        %5036 = vmatpush.msra.mxu0 %v4845
        %5037 = vmatpush.msra.mxu0 %v4844
        %5038 = vmatpush.msra.mxu0 %v4843
        %5039 = vmatpush.msra.mxu0 %v4842
        %5040 = vmatpush.msra.mxu0 %v4841
        %5041 = vmatpush.msra.mxu0 %v4840
        %5042 = vmatpush.msra.mxu0 %v4839
        %5043 = vmatpush.msra.mxu0 %v4838
        %5044 = vmatpush.msra.mxu0 %v4837
        %5045 = vmatpush.msra.mxu0 %v4836
        %5046 = vmatpush.msra.mxu0 %v4835
        %5047 = vmatpush.msra.mxu0 %v4834
        %5048 = vmatpush.msra.mxu0 %v4833
        %5049 = vmatpush.msra.mxu0 %v4832
        %5050 = vmatpush.msra.mxu0 %v4831
        %5051 = vmatpush.msra.mxu0 %v4830
        %5052 = vmatmul.f32.gmra.mxu0 %v4959
        %v5053 = vpop.f32.mrf.mxu0
        %v5054 = vadd.f32 %v5034, %v5053
        %5055 = vdwg.mxu0
        %5056 = vmatpush.msra.mxu0 %v4861
        %5057 = vmatpush.msra.mxu0 %v4860
        %5058 = vmatpush.msra.mxu0 %v4859
        %5059 = vmatpush.msra.mxu0 %v4858
        %5060 = vmatpush.msra.mxu0 %v4857
        %5061 = vmatpush.msra.mxu0 %v4856
        %5062 = vmatpush.msra.mxu0 %v4855
        %5063 = vmatpush.msra.mxu0 %v4854
        %5064 = vmatpush.msra.mxu0 %v4853
        %5065 = vmatpush.msra.mxu0 %v4852
        %5066 = vmatpush.msra.mxu0 %v4851
        %5067 = vmatpush.msra.mxu0 %v4850
        %5068 = vmatpush.msra.mxu0 %v4849
        %5069 = vmatpush.msra.mxu0 %v4848
        %5070 = vmatpush.msra.mxu0 %v4847
        %5071 = vmatpush.msra.mxu0 %v4846
        %5072 = vmatmul.f32.gmra.mxu0 %v4967
        %v5073 = vpop.f32.mrf.mxu0
        %v5074 = vadd.f32 %v5054, %v5073
        %5075 = vdwg.mxu0
        %5076 = vmatpush.msra.mxu0 %v4877
        %5077 = vmatpush.msra.mxu0 %v4876
        %5078 = vmatpush.msra.mxu0 %v4875
        %5079 = vmatpush.msra.mxu0 %v4874
        %5080 = vmatpush.msra.mxu0 %v4873
        %5081 = vmatpush.msra.mxu0 %v4872
        %5082 = vmatpush.msra.mxu0 %v4871
        %5083 = vmatpush.msra.mxu0 %v4870
        %5084 = vmatpush.msra.mxu0 %v4869
        %5085 = vmatpush.msra.mxu0 %v4868
        %5086 = vmatpush.msra.mxu0 %v4867
        %5087 = vmatpush.msra.mxu0 %v4866
        %5088 = vmatpush.msra.mxu0 %v4865
        %5089 = vmatpush.msra.mxu0 %v4864
        %5090 = vmatpush.msra.mxu0 %v4863
        %5091 = vmatpush.msra.mxu0 %v4862
        %5092 = vmatmul.f32.gmra.mxu0 %v4969
        %v5093 = vpop.f32.mrf.mxu0
        %v5094 = vadd.f32 %v5074, %v5093
        %5095 = vdwg.mxu0
        %5096 = vmatpush.msra.mxu0 %v4893
        %5097 = vmatpush.msra.mxu0 %v4892
        %5098 = vmatpush.msra.mxu0 %v4891
        %5099 = vmatpush.msra.mxu0 %v4890
        %5100 = vmatpush.msra.mxu0 %v4889
        %5101 = vmatpush.msra.mxu0 %v4888
        %5102 = vmatpush.msra.mxu0 %v4887
        %5103 = vmatpush.msra.mxu0 %v4886
        %5104 = vmatpush.msra.mxu0 %v4885
        %5105 = vmatpush.msra.mxu0 %v4884
        %5106 = vmatpush.msra.mxu0 %v4883
        %5107 = vmatpush.msra.mxu0 %v4882
        %5108 = vmatpush.msra.mxu0 %v4881
        %5109 = vmatpush.msra.mxu0 %v4880
        %5110 = vmatpush.msra.mxu0 %v4879
        %5111 = vmatpush.msra.mxu0 %v4878
        %5112 = vmatmul.f32.gmra.mxu0 %v4960
        %v5113 = vpop.f32.mrf.mxu0
        %v5114 = vadd.f32 %v5094, %v5113
        %5115 = vdwg.mxu0
        %5116 = vmatpush.msra.mxu0 %v4909
        %5117 = vmatpush.msra.mxu0 %v4908
        %5118 = vmatpush.msra.mxu0 %v4907
        %5119 = vmatpush.msra.mxu0 %v4906
        %5120 = vmatpush.msra.mxu0 %v4905
        %5121 = vmatpush.msra.mxu0 %v4904
        %5122 = vmatpush.msra.mxu0 %v4903
        %5123 = vmatpush.msra.mxu0 %v4902
        %5124 = vmatpush.msra.mxu0 %v4901
        %5125 = vmatpush.msra.mxu0 %v4900
        %5126 = vmatpush.msra.mxu0 %v4899
        %5127 = vmatpush.msra.mxu0 %v4898
        %5128 = vmatpush.msra.mxu0 %v4897
        %5129 = vmatpush.msra.mxu0 %v4896
        %5130 = vmatpush.msra.mxu0 %v4895
        %5131 = vmatpush.msra.mxu0 %v4894
        %5132 = vmatmul.f32.gmra.mxu0 %v4972
        %v5133 = vpop.f32.mrf.mxu0
        %v5134 = vadd.f32 %v5114, %v5133
        %5135 = vdwg.mxu0
        %5136 = vmatpush.msra.mxu0 %v4925
        %5137 = vmatpush.msra.mxu0 %v4924
        %5138 = vmatpush.msra.mxu0 %v4923
        %5139 = vmatpush.msra.mxu0 %v4922
        %5140 = vmatpush.msra.mxu0 %v4921
        %5141 = vmatpush.msra.mxu0 %v4920
        %5142 = vmatpush.msra.mxu0 %v4919
        %5143 = vmatpush.msra.mxu0 %v4918
        %5144 = vmatpush.msra.mxu0 %v4917
        %5145 = vmatpush.msra.mxu0 %v4916
        %5146 = vmatpush.msra.mxu0 %v4915
        %5147 = vmatpush.msra.mxu0 %v4914
        %5148 = vmatpush.msra.mxu0 %v4913
        %5149 = vmatpush.msra.mxu0 %v4912
        %5150 = vmatpush.msra.mxu0 %v4911
        %5151 = vmatpush.msra.mxu0 %v4910
        %5152 = vmatmul.f32.gmra.mxu0 %v4974
        %v5153 = vpop.f32.mrf.mxu0
        %v5154 = vadd.f32 %v5134, %v5153
        %5155 = vdwg.mxu0
        %v5156 = vmax.f32 %v5154, 0.0
        %5157 = vst [vmem:[%s1151 + $0x1] sm:$0x3f] %v5156
        %v5158 = vld [vmem:[%s677] sm:$0xff]
        %v5159 = vld [vmem:[%s680] sm:$0xff]
        %v5160 = vld [vmem:[%s683] sm:$0xff]
        %v5162 = vrot.slane %v5158, 1
        %v5164 = vrot.slane %v5158, 2
        %v5167 = vrot.slane %v5159, 1
        %v5169 = vrot.slane %v5159, 2
        %v5172 = vrot.slane %v5160, 1
        %v5174 = vrot.slane %v5160, 2
        %5176 = vmatpush.msra.mxu0 %v4797
        %5177 = vmatpush.msra.mxu0 %v4796
        %5178 = vmatpush.msra.mxu0 %v4795
        %5179 = vmatpush.msra.mxu0 %v4794
        %5180 = vmatpush.msra.mxu0 %v4793
        %5181 = vmatpush.msra.mxu0 %v4792
        %5182 = vmatpush.msra.mxu0 %v4791
        %5183 = vmatpush.msra.mxu0 %v4790
        %5184 = vmatpush.msra.mxu0 %v4789
        %5185 = vmatpush.msra.mxu0 %v4788
        %5186 = vmatpush.msra.mxu0 %v4787
        %5187 = vmatpush.msra.mxu0 %v4786
        %5188 = vmatpush.msra.mxu0 %v4785
        %5189 = vmatpush.msra.mxu0 %v4784
        %5190 = vmatpush.msra.mxu0 %v4783
        %5191 = vmatpush.msra.mxu0 %v4782
        %5192 = vmatmul.f32.gmra.mxu0 %v5158
        %v5193 = vpop.f32.mrf.mxu0
        %v5194 = vadd.f32 0.0, %v5193
        %5195 = vdwg.mxu0
        %5196 = vmatpush.msra.mxu0 %v4813
        %5197 = vmatpush.msra.mxu0 %v4812
        %5198 = vmatpush.msra.mxu0 %v4811
        %5199 = vmatpush.msra.mxu0 %v4810
        %5200 = vmatpush.msra.mxu0 %v4809
        %5201 = vmatpush.msra.mxu0 %v4808
        %5202 = vmatpush.msra.mxu0 %v4807
        %5203 = vmatpush.msra.mxu0 %v4806
        %5204 = vmatpush.msra.mxu0 %v4805
        %5205 = vmatpush.msra.mxu0 %v4804
        %5206 = vmatpush.msra.mxu0 %v4803
        %5207 = vmatpush.msra.mxu0 %v4802
        %5208 = vmatpush.msra.mxu0 %v4801
        %5209 = vmatpush.msra.mxu0 %v4800
        %5210 = vmatpush.msra.mxu0 %v4799
        %5211 = vmatpush.msra.mxu0 %v4798
        %5212 = vmatmul.f32.gmra.mxu0 %v5162
        %v5213 = vpop.f32.mrf.mxu0
        %v5214 = vadd.f32 %v5194, %v5213
        %5215 = vdwg.mxu0
        %5216 = vmatpush.msra.mxu0 %v4829
        %5217 = vmatpush.msra.mxu0 %v4828
        %5218 = vmatpush.msra.mxu0 %v4827
        %5219 = vmatpush.msra.mxu0 %v4826
        %5220 = vmatpush.msra.mxu0 %v4825
        %5221 = vmatpush.msra.mxu0 %v4824
        %5222 = vmatpush.msra.mxu0 %v4823
        %5223 = vmatpush.msra.mxu0 %v4822
        %5224 = vmatpush.msra.mxu0 %v4821
        %5225 = vmatpush.msra.mxu0 %v4820
        %5226 = vmatpush.msra.mxu0 %v4819
        %5227 = vmatpush.msra.mxu0 %v4818
        %5228 = vmatpush.msra.mxu0 %v4817
        %5229 = vmatpush.msra.mxu0 %v4816
        %5230 = vmatpush.msra.mxu0 %v4815
        %5231 = vmatpush.msra.mxu0 %v4814
        %5232 = vmatmul.f32.gmra.mxu0 %v5164
        %v5233 = vpop.f32.mrf.mxu0
        %v5234 = vadd.f32 %v5214, %v5233
        %5235 = vdwg.mxu0
        %5236 = vmatpush.msra.mxu0 %v4845
        %5237 = vmatpush.msra.mxu0 %v4844
        %5238 = vmatpush.msra.mxu0 %v4843
        %5239 = vmatpush.msra.mxu0 %v4842
        %5240 = vmatpush.msra.mxu0 %v4841
        %5241 = vmatpush.msra.mxu0 %v4840
        %5242 = vmatpush.msra.mxu0 %v4839
        %5243 = vmatpush.msra.mxu0 %v4838
        %5244 = vmatpush.msra.mxu0 %v4837
        %5245 = vmatpush.msra.mxu0 %v4836
        %5246 = vmatpush.msra.mxu0 %v4835
        %5247 = vmatpush.msra.mxu0 %v4834
        %5248 = vmatpush.msra.mxu0 %v4833
        %5249 = vmatpush.msra.mxu0 %v4832
        %5250 = vmatpush.msra.mxu0 %v4831
        %5251 = vmatpush.msra.mxu0 %v4830
        %5252 = vmatmul.f32.gmra.mxu0 %v5159
        %v5253 = vpop.f32.mrf.mxu0
        %v5254 = vadd.f32 %v5234, %v5253
        %5255 = vdwg.mxu0
        %5256 = vmatpush.msra.mxu0 %v4861
        %5257 = vmatpush.msra.mxu0 %v4860
        %5258 = vmatpush.msra.mxu0 %v4859
        %5259 = vmatpush.msra.mxu0 %v4858
        %5260 = vmatpush.msra.mxu0 %v4857
        %5261 = vmatpush.msra.mxu0 %v4856
        %5262 = vmatpush.msra.mxu0 %v4855
        %5263 = vmatpush.msra.mxu0 %v4854
        %5264 = vmatpush.msra.mxu0 %v4853
        %5265 = vmatpush.msra.mxu0 %v4852
        %5266 = vmatpush.msra.mxu0 %v4851
        %5267 = vmatpush.msra.mxu0 %v4850
        %5268 = vmatpush.msra.mxu0 %v4849
        %5269 = vmatpush.msra.mxu0 %v4848
        %5270 = vmatpush.msra.mxu0 %v4847
        %5271 = vmatpush.msra.mxu0 %v4846
        %5272 = vmatmul.f32.gmra.mxu0 %v5167
        %v5273 = vpop.f32.mrf.mxu0
        %v5274 = vadd.f32 %v5254, %v5273
        %5275 = vdwg.mxu0
        %5276 = vmatpush.msra.mxu0 %v4877
        %5277 = vmatpush.msra.mxu0 %v4876
        %5278 = vmatpush.msra.mxu0 %v4875
        %5279 = vmatpush.msra.mxu0 %v4874
        %5280 = vmatpush.msra.mxu0 %v4873
        %5281 = vmatpush.msra.mxu0 %v4872
        %5282 = vmatpush.msra.mxu0 %v4871
        %5283 = vmatpush.msra.mxu0 %v4870
        %5284 = vmatpush.msra.mxu0 %v4869
        %5285 = vmatpush.msra.mxu0 %v4868
        %5286 = vmatpush.msra.mxu0 %v4867
        %5287 = vmatpush.msra.mxu0 %v4866
        %5288 = vmatpush.msra.mxu0 %v4865
        %5289 = vmatpush.msra.mxu0 %v4864
        %5290 = vmatpush.msra.mxu0 %v4863
        %5291 = vmatpush.msra.mxu0 %v4862
        %5292 = vmatmul.f32.gmra.mxu0 %v5169
        %v5293 = vpop.f32.mrf.mxu0
        %v5294 = vadd.f32 %v5274, %v5293
        %5295 = vdwg.mxu0
        %5296 = vmatpush.msra.mxu0 %v4893
        %5297 = vmatpush.msra.mxu0 %v4892
        %5298 = vmatpush.msra.mxu0 %v4891
        %5299 = vmatpush.msra.mxu0 %v4890
        %5300 = vmatpush.msra.mxu0 %v4889
        %5301 = vmatpush.msra.mxu0 %v4888
        %5302 = vmatpush.msra.mxu0 %v4887
        %5303 = vmatpush.msra.mxu0 %v4886
        %5304 = vmatpush.msra.mxu0 %v4885
        %5305 = vmatpush.msra.mxu0 %v4884
        %5306 = vmatpush.msra.mxu0 %v4883
        %5307 = vmatpush.msra.mxu0 %v4882
        %5308 = vmatpush.msra.mxu0 %v4881
        %5309 = vmatpush.msra.mxu0 %v4880
        %5310 = vmatpush.msra.mxu0 %v4879
        %5311 = vmatpush.msra.mxu0 %v4878
        %5312 = vmatmul.f32.gmra.mxu0 %v5160
        %v5313 = vpop.f32.mrf.mxu0
        %v5314 = vadd.f32 %v5294, %v5313
        %5315 = vdwg.mxu0
        %5316 = vmatpush.msra.mxu0 %v4909
        %5317 = vmatpush.msra.mxu0 %v4908
        %5318 = vmatpush.msra.mxu0 %v4907
        %5319 = vmatpush.msra.mxu0 %v4906
        %5320 = vmatpush.msra.mxu0 %v4905
        %5321 = vmatpush.msra.mxu0 %v4904
        %5322 = vmatpush.msra.mxu0 %v4903
        %5323 = vmatpush.msra.mxu0 %v4902
        %5324 = vmatpush.msra.mxu0 %v4901
        %5325 = vmatpush.msra.mxu0 %v4900
        %5326 = vmatpush.msra.mxu0 %v4899
        %5327 = vmatpush.msra.mxu0 %v4898
        %5328 = vmatpush.msra.mxu0 %v4897
        %5329 = vmatpush.msra.mxu0 %v4896
        %5330 = vmatpush.msra.mxu0 %v4895
        %5331 = vmatpush.msra.mxu0 %v4894
        %5332 = vmatmul.f32.gmra.mxu0 %v5172
        %v5333 = vpop.f32.mrf.mxu0
        %v5334 = vadd.f32 %v5314, %v5333
        %5335 = vdwg.mxu0
        %5336 = vmatpush.msra.mxu0 %v4925
        %5337 = vmatpush.msra.mxu0 %v4924
        %5338 = vmatpush.msra.mxu0 %v4923
        %5339 = vmatpush.msra.mxu0 %v4922
        %5340 = vmatpush.msra.mxu0 %v4921
        %5341 = vmatpush.msra.mxu0 %v4920
        %5342 = vmatpush.msra.mxu0 %v4919
        %5343 = vmatpush.msra.mxu0 %v4918
        %5344 = vmatpush.msra.mxu0 %v4917
        %5345 = vmatpush.msra.mxu0 %v4916
        %5346 = vmatpush.msra.mxu0 %v4915
        %5347 = vmatpush.msra.mxu0 %v4914
        %5348 = vmatpush.msra.mxu0 %v4913
        %5349 = vmatpush.msra.mxu0 %v4912
        %5350 = vmatpush.msra.mxu0 %v4911
        %5351 = vmatpush.msra.mxu0 %v4910
        %5352 = vmatmul.f32.gmra.mxu0 %v5174
        %v5353 = vpop.f32.mrf.mxu0
        %v5354 = vadd.f32 %v5334, %v5353
        %5355 = vdwg.mxu0
        %v5356 = vmax.f32 %v5354, 0.0
        %5357 = vst [vmem:[%s1405 + $0x1] sm:$0x3f] %v5356
        %v5358 = vld [vmem:[%s680] sm:$0xff]
        %v5359 = vld [vmem:[%s683] sm:$0xff]
        %v5360 = vld [vmem:[%s686] sm:$0xff]
        %v5362 = vrot.slane %v5358, 1
        %v5364 = vrot.slane %v5358, 2
        %v5367 = vrot.slane %v5359, 1
        %v5369 = vrot.slane %v5359, 2
        %v5372 = vrot.slane %v5360, 1
        %v5374 = vrot.slane %v5360, 2
        %5376 = vmatpush.msra.mxu0 %v4797
        %5377 = vmatpush.msra.mxu0 %v4796
        %5378 = vmatpush.msra.mxu0 %v4795
        %5379 = vmatpush.msra.mxu0 %v4794
        %5380 = vmatpush.msra.mxu0 %v4793
        %5381 = vmatpush.msra.mxu0 %v4792
        %5382 = vmatpush.msra.mxu0 %v4791
        %5383 = vmatpush.msra.mxu0 %v4790
        %5384 = vmatpush.msra.mxu0 %v4789
        %5385 = vmatpush.msra.mxu0 %v4788
        %5386 = vmatpush.msra.mxu0 %v4787
        %5387 = vmatpush.msra.mxu0 %v4786
        %5388 = vmatpush.msra.mxu0 %v4785
        %5389 = vmatpush.msra.mxu0 %v4784
        %5390 = vmatpush.msra.mxu0 %v4783
        %5391 = vmatpush.msra.mxu0 %v4782
        %5392 = vmatmul.f32.gmra.mxu0 %v5358
        %v5393 = vpop.f32.mrf.mxu0
        %v5394 = vadd.f32 0.0, %v5393
        %5395 = vdwg.mxu0
        %5396 = vmatpush.msra.mxu0 %v4813
        %5397 = vmatpush.msra.mxu0 %v4812
        %5398 = vmatpush.msra.mxu0 %v4811
        %5399 = vmatpush.msra.mxu0 %v4810
        %5400 = vmatpush.msra.mxu0 %v4809
        %5401 = vmatpush.msra.mxu0 %v4808
        %5402 = vmatpush.msra.mxu0 %v4807
        %5403 = vmatpush.msra.mxu0 %v4806
        %5404 = vmatpush.msra.mxu0 %v4805
        %5405 = vmatpush.msra.mxu0 %v4804
        %5406 = vmatpush.msra.mxu0 %v4803
        %5407 = vmatpush.msra.mxu0 %v4802
        %5408 = vmatpush.msra.mxu0 %v4801
        %5409 = vmatpush.msra.mxu0 %v4800
        %5410 = vmatpush.msra.mxu0 %v4799
        %5411 = vmatpush.msra.mxu0 %v4798
        %5412 = vmatmul.f32.gmra.mxu0 %v5362
        %v5413 = vpop.f32.mrf.mxu0
        %v5414 = vadd.f32 %v5394, %v5413
        %5415 = vdwg.mxu0
        %5416 = vmatpush.msra.mxu0 %v4829
        %5417 = vmatpush.msra.mxu0 %v4828
        %5418 = vmatpush.msra.mxu0 %v4827
        %5419 = vmatpush.msra.mxu0 %v4826
        %5420 = vmatpush.msra.mxu0 %v4825
        %5421 = vmatpush.msra.mxu0 %v4824
        %5422 = vmatpush.msra.mxu0 %v4823
        %5423 = vmatpush.msra.mxu0 %v4822
        %5424 = vmatpush.msra.mxu0 %v4821
        %5425 = vmatpush.msra.mxu0 %v4820
        %5426 = vmatpush.msra.mxu0 %v4819
        %5427 = vmatpush.msra.mxu0 %v4818
        %5428 = vmatpush.msra.mxu0 %v4817
        %5429 = vmatpush.msra.mxu0 %v4816
        %5430 = vmatpush.msra.mxu0 %v4815
        %5431 = vmatpush.msra.mxu0 %v4814
        %5432 = vmatmul.f32.gmra.mxu0 %v5364
        %v5433 = vpop.f32.mrf.mxu0
        %v5434 = vadd.f32 %v5414, %v5433
        %5435 = vdwg.mxu0
        %5436 = vmatpush.msra.mxu0 %v4845
        %5437 = vmatpush.msra.mxu0 %v4844
        %5438 = vmatpush.msra.mxu0 %v4843
        %5439 = vmatpush.msra.mxu0 %v4842
        %5440 = vmatpush.msra.mxu0 %v4841
        %5441 = vmatpush.msra.mxu0 %v4840
        %5442 = vmatpush.msra.mxu0 %v4839
        %5443 = vmatpush.msra.mxu0 %v4838
        %5444 = vmatpush.msra.mxu0 %v4837
        %5445 = vmatpush.msra.mxu0 %v4836
        %5446 = vmatpush.msra.mxu0 %v4835
        %5447 = vmatpush.msra.mxu0 %v4834
        %5448 = vmatpush.msra.mxu0 %v4833
        %5449 = vmatpush.msra.mxu0 %v4832
        %5450 = vmatpush.msra.mxu0 %v4831
        %5451 = vmatpush.msra.mxu0 %v4830
        %5452 = vmatmul.f32.gmra.mxu0 %v5359
        %v5453 = vpop.f32.mrf.mxu0
        %v5454 = vadd.f32 %v5434, %v5453
        %5455 = vdwg.mxu0
        %5456 = vmatpush.msra.mxu0 %v4861
        %5457 = vmatpush.msra.mxu0 %v4860
        %5458 = vmatpush.msra.mxu0 %v4859
        %5459 = vmatpush.msra.mxu0 %v4858
        %5460 = vmatpush.msra.mxu0 %v4857
        %5461 = vmatpush.msra.mxu0 %v4856
        %5462 = vmatpush.msra.mxu0 %v4855
        %5463 = vmatpush.msra.mxu0 %v4854
        %5464 = vmatpush.msra.mxu0 %v4853
        %5465 = vmatpush.msra.mxu0 %v4852
        %5466 = vmatpush.msra.mxu0 %v4851
        %5467 = vmatpush.msra.mxu0 %v4850
        %5468 = vmatpush.msra.mxu0 %v4849
        %5469 = vmatpush.msra.mxu0 %v4848
        %5470 = vmatpush.msra.mxu0 %v4847
        %5471 = vmatpush.msra.mxu0 %v4846
        %5472 = vmatmul.f32.gmra.mxu0 %v5367
        %v5473 = vpop.f32.mrf.mxu0
        %v5474 = vadd.f32 %v5454, %v5473
        %5475 = vdwg.mxu0
        %5476 = vmatpush.msra.mxu0 %v4877
        %5477 = vmatpush.msra.mxu0 %v4876
        %5478 = vmatpush.msra.mxu0 %v4875
        %5479 = vmatpush.msra.mxu0 %v4874
        %5480 = vmatpush.msra.mxu0 %v4873
        %5481 = vmatpush.msra.mxu0 %v4872
        %5482 = vmatpush.msra.mxu0 %v4871
        %5483 = vmatpush.msra.mxu0 %v4870
        %5484 = vmatpush.msra.mxu0 %v4869
        %5485 = vmatpush.msra.mxu0 %v4868
        %5486 = vmatpush.msra.mxu0 %v4867
        %5487 = vmatpush.msra.mxu0 %v4866
        %5488 = vmatpush.msra.mxu0 %v4865
        %5489 = vmatpush.msra.mxu0 %v4864
        %5490 = vmatpush.msra.mxu0 %v4863
        %5491 = vmatpush.msra.mxu0 %v4862
        %5492 = vmatmul.f32.gmra.mxu0 %v5369
        %v5493 = vpop.f32.mrf.mxu0
        %v5494 = vadd.f32 %v5474, %v5493
        %5495 = vdwg.mxu0
        %5496 = vmatpush.msra.mxu0 %v4893
        %5497 = vmatpush.msra.mxu0 %v4892
        %5498 = vmatpush.msra.mxu0 %v4891
        %5499 = vmatpush.msra.mxu0 %v4890
        %5500 = vmatpush.msra.mxu0 %v4889
        %5501 = vmatpush.msra.mxu0 %v4888
        %5502 = vmatpush.msra.mxu0 %v4887
        %5503 = vmatpush.msra.mxu0 %v4886
        %5504 = vmatpush.msra.mxu0 %v4885
        %5505 = vmatpush.msra.mxu0 %v4884
        %5506 = vmatpush.msra.mxu0 %v4883
        %5507 = vmatpush.msra.mxu0 %v4882
        %5508 = vmatpush.msra.mxu0 %v4881
        %5509 = vmatpush.msra.mxu0 %v4880
        %5510 = vmatpush.msra.mxu0 %v4879
        %5511 = vmatpush.msra.mxu0 %v4878
        %5512 = vmatmul.f32.gmra.mxu0 %v5360
        %v5513 = vpop.f32.mrf.mxu0
        %v5514 = vadd.f32 %v5494, %v5513
        %5515 = vdwg.mxu0
        %5516 = vmatpush.msra.mxu0 %v4909
        %5517 = vmatpush.msra.mxu0 %v4908
        %5518 = vmatpush.msra.mxu0 %v4907
        %5519 = vmatpush.msra.mxu0 %v4906
        %5520 = vmatpush.msra.mxu0 %v4905
        %5521 = vmatpush.msra.mxu0 %v4904
        %5522 = vmatpush.msra.mxu0 %v4903
        %5523 = vmatpush.msra.mxu0 %v4902
        %5524 = vmatpush.msra.mxu0 %v4901
        %5525 = vmatpush.msra.mxu0 %v4900
        %5526 = vmatpush.msra.mxu0 %v4899
        %5527 = vmatpush.msra.mxu0 %v4898
        %5528 = vmatpush.msra.mxu0 %v4897
        %5529 = vmatpush.msra.mxu0 %v4896
        %5530 = vmatpush.msra.mxu0 %v4895
        %5531 = vmatpush.msra.mxu0 %v4894
        %5532 = vmatmul.f32.gmra.mxu0 %v5372
        %v5533 = vpop.f32.mrf.mxu0
        %v5534 = vadd.f32 %v5514, %v5533
        %5535 = vdwg.mxu0
        %5536 = vmatpush.msra.mxu0 %v4925
        %5537 = vmatpush.msra.mxu0 %v4924
        %5538 = vmatpush.msra.mxu0 %v4923
        %5539 = vmatpush.msra.mxu0 %v4922
        %5540 = vmatpush.msra.mxu0 %v4921
        %5541 = vmatpush.msra.mxu0 %v4920
        %5542 = vmatpush.msra.mxu0 %v4919
        %5543 = vmatpush.msra.mxu0 %v4918
        %5544 = vmatpush.msra.mxu0 %v4917
        %5545 = vmatpush.msra.mxu0 %v4916
        %5546 = vmatpush.msra.mxu0 %v4915
        %5547 = vmatpush.msra.mxu0 %v4914
        %5548 = vmatpush.msra.mxu0 %v4913
        %5549 = vmatpush.msra.mxu0 %v4912
        %5550 = vmatpush.msra.mxu0 %v4911
        %5551 = vmatpush.msra.mxu0 %v4910
        %5552 = vmatmul.f32.gmra.mxu0 %v5374
        %v5553 = vpop.f32.mrf.mxu0
        %v5554 = vadd.f32 %v5534, %v5553
        %5555 = vdwg.mxu0
        %v5556 = vmax.f32 %v5554, 0.0
        %5557 = vst [vmem:[%s1659 + $0x1] sm:$0x3f] %v5556
        %v5558 = vld [vmem:[%s683] sm:$0xff]
        %v5559 = vld [vmem:[%s686] sm:$0xff]
        %v5560 = vld [vmem:[%s689] sm:$0xff]
        %v5562 = vrot.slane %v5558, 1
        %v5564 = vrot.slane %v5558, 2
        %v5567 = vrot.slane %v5559, 1
        %v5569 = vrot.slane %v5559, 2
        %v5572 = vrot.slane %v5560, 1
        %v5574 = vrot.slane %v5560, 2
        %5576 = vmatpush.msra.mxu0 %v4797
        %5577 = vmatpush.msra.mxu0 %v4796
        %5578 = vmatpush.msra.mxu0 %v4795
        %5579 = vmatpush.msra.mxu0 %v4794
        %5580 = vmatpush.msra.mxu0 %v4793
        %5581 = vmatpush.msra.mxu0 %v4792
        %5582 = vmatpush.msra.mxu0 %v4791
        %5583 = vmatpush.msra.mxu0 %v4790
        %5584 = vmatpush.msra.mxu0 %v4789
        %5585 = vmatpush.msra.mxu0 %v4788
        %5586 = vmatpush.msra.mxu0 %v4787
        %5587 = vmatpush.msra.mxu0 %v4786
        %5588 = vmatpush.msra.mxu0 %v4785
        %5589 = vmatpush.msra.mxu0 %v4784
        %5590 = vmatpush.msra.mxu0 %v4783
        %5591 = vmatpush.msra.mxu0 %v4782
        %5592 = vmatmul.f32.gmra.mxu0 %v5558
        %v5593 = vpop.f32.mrf.mxu0
        %v5594 = vadd.f32 0.0, %v5593
        %5595 = vdwg.mxu0
        %5596 = vmatpush.msra.mxu0 %v4813
        %5597 = vmatpush.msra.mxu0 %v4812
        %5598 = vmatpush.msra.mxu0 %v4811
        %5599 = vmatpush.msra.mxu0 %v4810
        %5600 = vmatpush.msra.mxu0 %v4809
        %5601 = vmatpush.msra.mxu0 %v4808
        %5602 = vmatpush.msra.mxu0 %v4807
        %5603 = vmatpush.msra.mxu0 %v4806
        %5604 = vmatpush.msra.mxu0 %v4805
        %5605 = vmatpush.msra.mxu0 %v4804
        %5606 = vmatpush.msra.mxu0 %v4803
        %5607 = vmatpush.msra.mxu0 %v4802
        %5608 = vmatpush.msra.mxu0 %v4801
        %5609 = vmatpush.msra.mxu0 %v4800
        %5610 = vmatpush.msra.mxu0 %v4799
        %5611 = vmatpush.msra.mxu0 %v4798
        %5612 = vmatmul.f32.gmra.mxu0 %v5562
        %v5613 = vpop.f32.mrf.mxu0
        %v5614 = vadd.f32 %v5594, %v5613
        %5615 = vdwg.mxu0
        %5616 = vmatpush.msra.mxu0 %v4829
        %5617 = vmatpush.msra.mxu0 %v4828
        %5618 = vmatpush.msra.mxu0 %v4827
        %5619 = vmatpush.msra.mxu0 %v4826
        %5620 = vmatpush.msra.mxu0 %v4825
        %5621 = vmatpush.msra.mxu0 %v4824
        %5622 = vmatpush.msra.mxu0 %v4823
        %5623 = vmatpush.msra.mxu0 %v4822
        %5624 = vmatpush.msra.mxu0 %v4821
        %5625 = vmatpush.msra.mxu0 %v4820
        %5626 = vmatpush.msra.mxu0 %v4819
        %5627 = vmatpush.msra.mxu0 %v4818
        %5628 = vmatpush.msra.mxu0 %v4817
        %5629 = vmatpush.msra.mxu0 %v4816
        %5630 = vmatpush.msra.mxu0 %v4815
        %5631 = vmatpush.msra.mxu0 %v4814
        %5632 = vmatmul.f32.gmra.mxu0 %v5564
        %v5633 = vpop.f32.mrf.mxu0
        %v5634 = vadd.f32 %v5614, %v5633
        %5635 = vdwg.mxu0
        %5636 = vmatpush.msra.mxu0 %v4845
        %5637 = vmatpush.msra.mxu0 %v4844
        %5638 = vmatpush.msra.mxu0 %v4843
        %5639 = vmatpush.msra.mxu0 %v4842
        %5640 = vmatpush.msra.mxu0 %v4841
        %5641 = vmatpush.msra.mxu0 %v4840
        %5642 = vmatpush.msra.mxu0 %v4839
        %5643 = vmatpush.msra.mxu0 %v4838
        %5644 = vmatpush.msra.mxu0 %v4837
        %5645 = vmatpush.msra.mxu0 %v4836
        %5646 = vmatpush.msra.mxu0 %v4835
        %5647 = vmatpush.msra.mxu0 %v4834
        %5648 = vmatpush.msra.mxu0 %v4833
        %5649 = vmatpush.msra.mxu0 %v4832
        %5650 = vmatpush.msra.mxu0 %v4831
        %5651 = vmatpush.msra.mxu0 %v4830
        %5652 = vmatmul.f32.gmra.mxu0 %v5559
        %v5653 = vpop.f32.mrf.mxu0
        %v5654 = vadd.f32 %v5634, %v5653
        %5655 = vdwg.mxu0
        %5656 = vmatpush.msra.mxu0 %v4861
        %5657 = vmatpush.msra.mxu0 %v4860
        %5658 = vmatpush.msra.mxu0 %v4859
        %5659 = vmatpush.msra.mxu0 %v4858
        %5660 = vmatpush.msra.mxu0 %v4857
        %5661 = vmatpush.msra.mxu0 %v4856
        %5662 = vmatpush.msra.mxu0 %v4855
        %5663 = vmatpush.msra.mxu0 %v4854
        %5664 = vmatpush.msra.mxu0 %v4853
        %5665 = vmatpush.msra.mxu0 %v4852
        %5666 = vmatpush.msra.mxu0 %v4851
        %5667 = vmatpush.msra.mxu0 %v4850
        %5668 = vmatpush.msra.mxu0 %v4849
        %5669 = vmatpush.msra.mxu0 %v4848
        %5670 = vmatpush.msra.mxu0 %v4847
        %5671 = vmatpush.msra.mxu0 %v4846
        %5672 = vmatmul.f32.gmra.mxu0 %v5567
        %v5673 = vpop.f32.mrf.mxu0
        %v5674 = vadd.f32 %v5654, %v5673
        %5675 = vdwg.mxu0
        %5676 = vmatpush.msra.mxu0 %v4877
        %5677 = vmatpush.msra.mxu0 %v4876
        %5678 = vmatpush.msra.mxu0 %v4875
        %5679 = vmatpush.msra.mxu0 %v4874
        %5680 = vmatpush.msra.mxu0 %v4873
        %5681 = vmatpush.msra.mxu0 %v4872
        %5682 = vmatpush.msra.mxu0 %v4871
        %5683 = vmatpush.msra.mxu0 %v4870
        %5684 = vmatpush.msra.mxu0 %v4869
        %5685 = vmatpush.msra.mxu0 %v4868
        %5686 = vmatpush.msra.mxu0 %v4867
        %5687 = vmatpush.msra.mxu0 %v4866
        %5688 = vmatpush.msra.mxu0 %v4865
        %5689 = vmatpush.msra.mxu0 %v4864
        %5690 = vmatpush.msra.mxu0 %v4863
        %5691 = vmatpush.msra.mxu0 %v4862
        %5692 = vmatmul.f32.gmra.mxu0 %v5569
        %v5693 = vpop.f32.mrf.mxu0
        %v5694 = vadd.f32 %v5674, %v5693
        %5695 = vdwg.mxu0
        %5696 = vmatpush.msra.mxu0 %v4893
        %5697 = vmatpush.msra.mxu0 %v4892
        %5698 = vmatpush.msra.mxu0 %v4891
        %5699 = vmatpush.msra.mxu0 %v4890
        %5700 = vmatpush.msra.mxu0 %v4889
        %5701 = vmatpush.msra.mxu0 %v4888
        %5702 = vmatpush.msra.mxu0 %v4887
        %5703 = vmatpush.msra.mxu0 %v4886
        %5704 = vmatpush.msra.mxu0 %v4885
        %5705 = vmatpush.msra.mxu0 %v4884
        %5706 = vmatpush.msra.mxu0 %v4883
        %5707 = vmatpush.msra.mxu0 %v4882
        %5708 = vmatpush.msra.mxu0 %v4881
        %5709 = vmatpush.msra.mxu0 %v4880
        %5710 = vmatpush.msra.mxu0 %v4879
        %5711 = vmatpush.msra.mxu0 %v4878
        %5712 = vmatmul.f32.gmra.mxu0 %v5560
        %v5713 = vpop.f32.mrf.mxu0
        %v5714 = vadd.f32 %v5694, %v5713
        %5715 = vdwg.mxu0
        %5716 = vmatpush.msra.mxu0 %v4909
        %5717 = vmatpush.msra.mxu0 %v4908
        %5718 = vmatpush.msra.mxu0 %v4907
        %5719 = vmatpush.msra.mxu0 %v4906
        %5720 = vmatpush.msra.mxu0 %v4905
        %5721 = vmatpush.msra.mxu0 %v4904
        %5722 = vmatpush.msra.mxu0 %v4903
        %5723 = vmatpush.msra.mxu0 %v4902
        %5724 = vmatpush.msra.mxu0 %v4901
        %5725 = vmatpush.msra.mxu0 %v4900
        %5726 = vmatpush.msra.mxu0 %v4899
        %5727 = vmatpush.msra.mxu0 %v4898
        %5728 = vmatpush.msra.mxu0 %v4897
        %5729 = vmatpush.msra.mxu0 %v4896
        %5730 = vmatpush.msra.mxu0 %v4895
        %5731 = vmatpush.msra.mxu0 %v4894
        %5732 = vmatmul.f32.gmra.mxu0 %v5572
        %v5733 = vpop.f32.mrf.mxu0
        %v5734 = vadd.f32 %v5714, %v5733
        %5735 = vdwg.mxu0
        %5736 = vmatpush.msra.mxu0 %v4925
        %5737 = vmatpush.msra.mxu0 %v4924
        %5738 = vmatpush.msra.mxu0 %v4923
        %5739 = vmatpush.msra.mxu0 %v4922
        %5740 = vmatpush.msra.mxu0 %v4921
        %5741 = vmatpush.msra.mxu0 %v4920
        %5742 = vmatpush.msra.mxu0 %v4919
        %5743 = vmatpush.msra.mxu0 %v4918
        %5744 = vmatpush.msra.mxu0 %v4917
        %5745 = vmatpush.msra.mxu0 %v4916
        %5746 = vmatpush.msra.mxu0 %v4915
        %5747 = vmatpush.msra.mxu0 %v4914
        %5748 = vmatpush.msra.mxu0 %v4913
        %5749 = vmatpush.msra.mxu0 %v4912
        %5750 = vmatpush.msra.mxu0 %v4911
        %5751 = vmatpush.msra.mxu0 %v4910
        %5752 = vmatmul.f32.gmra.mxu0 %v5574
        %v5753 = vpop.f32.mrf.mxu0
        %v5754 = vadd.f32 %v5734, %v5753
        %5755 = vdwg.mxu0
        %v5756 = vmax.f32 %v5754, 0.0
        %5757 = vst [vmem:[%s1913 + $0x1] sm:$0x3f] %v5756
        %v5758 = vld [vmem:[%s686] sm:$0xff]
        %v5759 = vld [vmem:[%s689] sm:$0xff]
        %v5760 = vld [vmem:[%s692] sm:$0xff]
        %v5762 = vrot.slane %v5758, 1
        %v5764 = vrot.slane %v5758, 2
        %v5767 = vrot.slane %v5759, 1
        %v5769 = vrot.slane %v5759, 2
        %v5772 = vrot.slane %v5760, 1
        %v5774 = vrot.slane %v5760, 2
        %5776 = vmatpush.msra.mxu0 %v4797
        %5777 = vmatpush.msra.mxu0 %v4796
        %5778 = vmatpush.msra.mxu0 %v4795
        %5779 = vmatpush.msra.mxu0 %v4794
        %5780 = vmatpush.msra.mxu0 %v4793
        %5781 = vmatpush.msra.mxu0 %v4792
        %5782 = vmatpush.msra.mxu0 %v4791
        %5783 = vmatpush.msra.mxu0 %v4790
        %5784 = vmatpush.msra.mxu0 %v4789
        %5785 = vmatpush.msra.mxu0 %v4788
        %5786 = vmatpush.msra.mxu0 %v4787
        %5787 = vmatpush.msra.mxu0 %v4786
        %5788 = vmatpush.msra.mxu0 %v4785
        %5789 = vmatpush.msra.mxu0 %v4784
        %5790 = vmatpush.msra.mxu0 %v4783
        %5791 = vmatpush.msra.mxu0 %v4782
        %5792 = vmatmul.f32.gmra.mxu0 %v5758
        %v5793 = vpop.f32.mrf.mxu0
        %v5794 = vadd.f32 0.0, %v5793
        %5795 = vdwg.mxu0
        %5796 = vmatpush.msra.mxu0 %v4813
        %5797 = vmatpush.msra.mxu0 %v4812
        %5798 = vmatpush.msra.mxu0 %v4811
        %5799 = vmatpush.msra.mxu0 %v4810
        %5800 = vmatpush.msra.mxu0 %v4809
        %5801 = vmatpush.msra.mxu0 %v4808
        %5802 = vmatpush.msra.mxu0 %v4807
        %5803 = vmatpush.msra.mxu0 %v4806
        %5804 = vmatpush.msra.mxu0 %v4805
        %5805 = vmatpush.msra.mxu0 %v4804
        %5806 = vmatpush.msra.mxu0 %v4803
        %5807 = vmatpush.msra.mxu0 %v4802
        %5808 = vmatpush.msra.mxu0 %v4801
        %5809 = vmatpush.msra.mxu0 %v4800
        %5810 = vmatpush.msra.mxu0 %v4799
        %5811 = vmatpush.msra.mxu0 %v4798
        %5812 = vmatmul.f32.gmra.mxu0 %v5762
        %v5813 = vpop.f32.mrf.mxu0
        %v5814 = vadd.f32 %v5794, %v5813
        %5815 = vdwg.mxu0
        %5816 = vmatpush.msra.mxu0 %v4829
        %5817 = vmatpush.msra.mxu0 %v4828
        %5818 = vmatpush.msra.mxu0 %v4827
        %5819 = vmatpush.msra.mxu0 %v4826
        %5820 = vmatpush.msra.mxu0 %v4825
        %5821 = vmatpush.msra.mxu0 %v4824
        %5822 = vmatpush.msra.mxu0 %v4823
        %5823 = vmatpush.msra.mxu0 %v4822
        %5824 = vmatpush.msra.mxu0 %v4821
        %5825 = vmatpush.msra.mxu0 %v4820
        %5826 = vmatpush.msra.mxu0 %v4819
        %5827 = vmatpush.msra.mxu0 %v4818
        %5828 = vmatpush.msra.mxu0 %v4817
        %5829 = vmatpush.msra.mxu0 %v4816
        %5830 = vmatpush.msra.mxu0 %v4815
        %5831 = vmatpush.msra.mxu0 %v4814
        %5832 = vmatmul.f32.gmra.mxu0 %v5764
        %v5833 = vpop.f32.mrf.mxu0
        %v5834 = vadd.f32 %v5814, %v5833
        %5835 = vdwg.mxu0
        %5836 = vmatpush.msra.mxu0 %v4845
        %5837 = vmatpush.msra.mxu0 %v4844
        %5838 = vmatpush.msra.mxu0 %v4843
        %5839 = vmatpush.msra.mxu0 %v4842
        %5840 = vmatpush.msra.mxu0 %v4841
        %5841 = vmatpush.msra.mxu0 %v4840
        %5842 = vmatpush.msra.mxu0 %v4839
        %5843 = vmatpush.msra.mxu0 %v4838
        %5844 = vmatpush.msra.mxu0 %v4837
        %5845 = vmatpush.msra.mxu0 %v4836
        %5846 = vmatpush.msra.mxu0 %v4835
        %5847 = vmatpush.msra.mxu0 %v4834
        %5848 = vmatpush.msra.mxu0 %v4833
        %5849 = vmatpush.msra.mxu0 %v4832
        %5850 = vmatpush.msra.mxu0 %v4831
        %5851 = vmatpush.msra.mxu0 %v4830
        %5852 = vmatmul.f32.gmra.mxu0 %v5759
        %v5853 = vpop.f32.mrf.mxu0
        %v5854 = vadd.f32 %v5834, %v5853
        %5855 = vdwg.mxu0
        %5856 = vmatpush.msra.mxu0 %v4861
        %5857 = vmatpush.msra.mxu0 %v4860
        %5858 = vmatpush.msra.mxu0 %v4859
        %5859 = vmatpush.msra.mxu0 %v4858
        %5860 = vmatpush.msra.mxu0 %v4857
        %5861 = vmatpush.msra.mxu0 %v4856
        %5862 = vmatpush.msra.mxu0 %v4855
        %5863 = vmatpush.msra.mxu0 %v4854
        %5864 = vmatpush.msra.mxu0 %v4853
        %5865 = vmatpush.msra.mxu0 %v4852
        %5866 = vmatpush.msra.mxu0 %v4851
        %5867 = vmatpush.msra.mxu0 %v4850
        %5868 = vmatpush.msra.mxu0 %v4849
        %5869 = vmatpush.msra.mxu0 %v4848
        %5870 = vmatpush.msra.mxu0 %v4847
        %5871 = vmatpush.msra.mxu0 %v4846
        %5872 = vmatmul.f32.gmra.mxu0 %v5767
        %v5873 = vpop.f32.mrf.mxu0
        %v5874 = vadd.f32 %v5854, %v5873
        %5875 = vdwg.mxu0
        %5876 = vmatpush.msra.mxu0 %v4877
        %5877 = vmatpush.msra.mxu0 %v4876
        %5878 = vmatpush.msra.mxu0 %v4875
        %5879 = vmatpush.msra.mxu0 %v4874
        %5880 = vmatpush.msra.mxu0 %v4873
        %5881 = vmatpush.msra.mxu0 %v4872
        %5882 = vmatpush.msra.mxu0 %v4871
        %5883 = vmatpush.msra.mxu0 %v4870
        %5884 = vmatpush.msra.mxu0 %v4869
        %5885 = vmatpush.msra.mxu0 %v4868
        %5886 = vmatpush.msra.mxu0 %v4867
        %5887 = vmatpush.msra.mxu0 %v4866
        %5888 = vmatpush.msra.mxu0 %v4865
        %5889 = vmatpush.msra.mxu0 %v4864
        %5890 = vmatpush.msra.mxu0 %v4863
        %5891 = vmatpush.msra.mxu0 %v4862
        %5892 = vmatmul.f32.gmra.mxu0 %v5769
        %v5893 = vpop.f32.mrf.mxu0
        %v5894 = vadd.f32 %v5874, %v5893
        %5895 = vdwg.mxu0
        %5896 = vmatpush.msra.mxu0 %v4893
        %5897 = vmatpush.msra.mxu0 %v4892
        %5898 = vmatpush.msra.mxu0 %v4891
        %5899 = vmatpush.msra.mxu0 %v4890
        %5900 = vmatpush.msra.mxu0 %v4889
        %5901 = vmatpush.msra.mxu0 %v4888
        %5902 = vmatpush.msra.mxu0 %v4887
        %5903 = vmatpush.msra.mxu0 %v4886
        %5904 = vmatpush.msra.mxu0 %v4885
        %5905 = vmatpush.msra.mxu0 %v4884
        %5906 = vmatpush.msra.mxu0 %v4883
        %5907 = vmatpush.msra.mxu0 %v4882
        %5908 = vmatpush.msra.mxu0 %v4881
        %5909 = vmatpush.msra.mxu0 %v4880
        %5910 = vmatpush.msra.mxu0 %v4879
        %5911 = vmatpush.msra.mxu0 %v4878
        %5912 = vmatmul.f32.gmra.mxu0 %v5760
        %v5913 = vpop.f32.mrf.mxu0
        %v5914 = vadd.f32 %v5894, %v5913
        %5915 = vdwg.mxu0
        %5916 = vmatpush.msra.mxu0 %v4909
        %5917 = vmatpush.msra.mxu0 %v4908
        %5918 = vmatpush.msra.mxu0 %v4907
        %5919 = vmatpush.msra.mxu0 %v4906
        %5920 = vmatpush.msra.mxu0 %v4905
        %5921 = vmatpush.msra.mxu0 %v4904
        %5922 = vmatpush.msra.mxu0 %v4903
        %5923 = vmatpush.msra.mxu0 %v4902
        %5924 = vmatpush.msra.mxu0 %v4901
        %5925 = vmatpush.msra.mxu0 %v4900
        %5926 = vmatpush.msra.mxu0 %v4899
        %5927 = vmatpush.msra.mxu0 %v4898
        %5928 = vmatpush.msra.mxu0 %v4897
        %5929 = vmatpush.msra.mxu0 %v4896
        %5930 = vmatpush.msra.mxu0 %v4895
        %5931 = vmatpush.msra.mxu0 %v4894
        %5932 = vmatmul.f32.gmra.mxu0 %v5772
        %v5933 = vpop.f32.mrf.mxu0
        %v5934 = vadd.f32 %v5914, %v5933
        %5935 = vdwg.mxu0
        %5936 = vmatpush.msra.mxu0 %v4925
        %5937 = vmatpush.msra.mxu0 %v4924
        %5938 = vmatpush.msra.mxu0 %v4923
        %5939 = vmatpush.msra.mxu0 %v4922
        %5940 = vmatpush.msra.mxu0 %v4921
        %5941 = vmatpush.msra.mxu0 %v4920
        %5942 = vmatpush.msra.mxu0 %v4919
        %5943 = vmatpush.msra.mxu0 %v4918
        %5944 = vmatpush.msra.mxu0 %v4917
        %5945 = vmatpush.msra.mxu0 %v4916
        %5946 = vmatpush.msra.mxu0 %v4915
        %5947 = vmatpush.msra.mxu0 %v4914
        %5948 = vmatpush.msra.mxu0 %v4913
        %5949 = vmatpush.msra.mxu0 %v4912
        %5950 = vmatpush.msra.mxu0 %v4911
        %5951 = vmatpush.msra.mxu0 %v4910
        %5952 = vmatmul.f32.gmra.mxu0 %v5774
        %v5953 = vpop.f32.mrf.mxu0
        %v5954 = vadd.f32 %v5934, %v5953
        %5955 = vdwg.mxu0
        %v5956 = vmax.f32 %v5954, 0.0
        %5957 = vst [vmem:[%s2167 + $0x1] sm:$0x3f] %v5956
        %v5958 = vld [vmem:[%s689] sm:$0xff]
        %v5959 = vld [vmem:[%s692] sm:$0xff]
        %v5960 = vld [vmem:[%s695] sm:$0xff]
        %v5962 = vrot.slane %v5958, 1
        %v5964 = vrot.slane %v5958, 2
        %v5967 = vrot.slane %v5959, 1
        %v5969 = vrot.slane %v5959, 2
        %v5972 = vrot.slane %v5960, 1
        %v5974 = vrot.slane %v5960, 2
        %5976 = vmatpush.msra.mxu0 %v4797
        %5977 = vmatpush.msra.mxu0 %v4796
        %5978 = vmatpush.msra.mxu0 %v4795
        %5979 = vmatpush.msra.mxu0 %v4794
        %5980 = vmatpush.msra.mxu0 %v4793
        %5981 = vmatpush.msra.mxu0 %v4792
        %5982 = vmatpush.msra.mxu0 %v4791
        %5983 = vmatpush.msra.mxu0 %v4790
        %5984 = vmatpush.msra.mxu0 %v4789
        %5985 = vmatpush.msra.mxu0 %v4788
        %5986 = vmatpush.msra.mxu0 %v4787
        %5987 = vmatpush.msra.mxu0 %v4786
        %5988 = vmatpush.msra.mxu0 %v4785
        %5989 = vmatpush.msra.mxu0 %v4784
        %5990 = vmatpush.msra.mxu0 %v4783
        %5991 = vmatpush.msra.mxu0 %v4782
        %5992 = vmatmul.f32.gmra.mxu0 %v5958
        %v5993 = vpop.f32.mrf.mxu0
        %v5994 = vadd.f32 0.0, %v5993
        %5995 = vdwg.mxu0
        %5996 = vmatpush.msra.mxu0 %v4813
        %5997 = vmatpush.msra.mxu0 %v4812
        %5998 = vmatpush.msra.mxu0 %v4811
        %5999 = vmatpush.msra.mxu0 %v4810
        %6000 = vmatpush.msra.mxu0 %v4809
        %6001 = vmatpush.msra.mxu0 %v4808
        %6002 = vmatpush.msra.mxu0 %v4807
        %6003 = vmatpush.msra.mxu0 %v4806
        %6004 = vmatpush.msra.mxu0 %v4805
        %6005 = vmatpush.msra.mxu0 %v4804
        %6006 = vmatpush.msra.mxu0 %v4803
        %6007 = vmatpush.msra.mxu0 %v4802
        %6008 = vmatpush.msra.mxu0 %v4801
        %6009 = vmatpush.msra.mxu0 %v4800
        %6010 = vmatpush.msra.mxu0 %v4799
        %6011 = vmatpush.msra.mxu0 %v4798
        %6012 = vmatmul.f32.gmra.mxu0 %v5962
        %v6013 = vpop.f32.mrf.mxu0
        %v6014 = vadd.f32 %v5994, %v6013
        %6015 = vdwg.mxu0
        %6016 = vmatpush.msra.mxu0 %v4829
        %6017 = vmatpush.msra.mxu0 %v4828
        %6018 = vmatpush.msra.mxu0 %v4827
        %6019 = vmatpush.msra.mxu0 %v4826
        %6020 = vmatpush.msra.mxu0 %v4825
        %6021 = vmatpush.msra.mxu0 %v4824
        %6022 = vmatpush.msra.mxu0 %v4823
        %6023 = vmatpush.msra.mxu0 %v4822
        %6024 = vmatpush.msra.mxu0 %v4821
        %6025 = vmatpush.msra.mxu0 %v4820
        %6026 = vmatpush.msra.mxu0 %v4819
        %6027 = vmatpush.msra.mxu0 %v4818
        %6028 = vmatpush.msra.mxu0 %v4817
        %6029 = vmatpush.msra.mxu0 %v4816
        %6030 = vmatpush.msra.mxu0 %v4815
        %6031 = vmatpush.msra.mxu0 %v4814
        %6032 = vmatmul.f32.gmra.mxu0 %v5964
        %v6033 = vpop.f32.mrf.mxu0
        %v6034 = vadd.f32 %v6014, %v6033
        %6035 = vdwg.mxu0
        %6036 = vmatpush.msra.mxu0 %v4845
        %6037 = vmatpush.msra.mxu0 %v4844
        %6038 = vmatpush.msra.mxu0 %v4843
        %6039 = vmatpush.msra.mxu0 %v4842
        %6040 = vmatpush.msra.mxu0 %v4841
        %6041 = vmatpush.msra.mxu0 %v4840
        %6042 = vmatpush.msra.mxu0 %v4839
        %6043 = vmatpush.msra.mxu0 %v4838
        %6044 = vmatpush.msra.mxu0 %v4837
        %6045 = vmatpush.msra.mxu0 %v4836
        %6046 = vmatpush.msra.mxu0 %v4835
        %6047 = vmatpush.msra.mxu0 %v4834
        %6048 = vmatpush.msra.mxu0 %v4833
        %6049 = vmatpush.msra.mxu0 %v4832
        %6050 = vmatpush.msra.mxu0 %v4831
        %6051 = vmatpush.msra.mxu0 %v4830
        %6052 = vmatmul.f32.gmra.mxu0 %v5959
        %v6053 = vpop.f32.mrf.mxu0
        %v6054 = vadd.f32 %v6034, %v6053
        %6055 = vdwg.mxu0
        %6056 = vmatpush.msra.mxu0 %v4861
        %6057 = vmatpush.msra.mxu0 %v4860
        %6058 = vmatpush.msra.mxu0 %v4859
        %6059 = vmatpush.msra.mxu0 %v4858
        %6060 = vmatpush.msra.mxu0 %v4857
        %6061 = vmatpush.msra.mxu0 %v4856
        %6062 = vmatpush.msra.mxu0 %v4855
        %6063 = vmatpush.msra.mxu0 %v4854
        %6064 = vmatpush.msra.mxu0 %v4853
        %6065 = vmatpush.msra.mxu0 %v4852
        %6066 = vmatpush.msra.mxu0 %v4851
        %6067 = vmatpush.msra.mxu0 %v4850
        %6068 = vmatpush.msra.mxu0 %v4849
        %6069 = vmatpush.msra.mxu0 %v4848
        %6070 = vmatpush.msra.mxu0 %v4847
        %6071 = vmatpush.msra.mxu0 %v4846
        %6072 = vmatmul.f32.gmra.mxu0 %v5967
        %v6073 = vpop.f32.mrf.mxu0
        %v6074 = vadd.f32 %v6054, %v6073
        %6075 = vdwg.mxu0
        %6076 = vmatpush.msra.mxu0 %v4877
        %6077 = vmatpush.msra.mxu0 %v4876
        %6078 = vmatpush.msra.mxu0 %v4875
        %6079 = vmatpush.msra.mxu0 %v4874
        %6080 = vmatpush.msra.mxu0 %v4873
        %6081 = vmatpush.msra.mxu0 %v4872
        %6082 = vmatpush.msra.mxu0 %v4871
        %6083 = vmatpush.msra.mxu0 %v4870
        %6084 = vmatpush.msra.mxu0 %v4869
        %6085 = vmatpush.msra.mxu0 %v4868
        %6086 = vmatpush.msra.mxu0 %v4867
        %6087 = vmatpush.msra.mxu0 %v4866
        %6088 = vmatpush.msra.mxu0 %v4865
        %6089 = vmatpush.msra.mxu0 %v4864
        %6090 = vmatpush.msra.mxu0 %v4863
        %6091 = vmatpush.msra.mxu0 %v4862
        %6092 = vmatmul.f32.gmra.mxu0 %v5969
        %v6093 = vpop.f32.mrf.mxu0
        %v6094 = vadd.f32 %v6074, %v6093
        %6095 = vdwg.mxu0
        %6096 = vmatpush.msra.mxu0 %v4893
        %6097 = vmatpush.msra.mxu0 %v4892
        %6098 = vmatpush.msra.mxu0 %v4891
        %6099 = vmatpush.msra.mxu0 %v4890
        %6100 = vmatpush.msra.mxu0 %v4889
        %6101 = vmatpush.msra.mxu0 %v4888
        %6102 = vmatpush.msra.mxu0 %v4887
        %6103 = vmatpush.msra.mxu0 %v4886
        %6104 = vmatpush.msra.mxu0 %v4885
        %6105 = vmatpush.msra.mxu0 %v4884
        %6106 = vmatpush.msra.mxu0 %v4883
        %6107 = vmatpush.msra.mxu0 %v4882
        %6108 = vmatpush.msra.mxu0 %v4881
        %6109 = vmatpush.msra.mxu0 %v4880
        %6110 = vmatpush.msra.mxu0 %v4879
        %6111 = vmatpush.msra.mxu0 %v4878
        %6112 = vmatmul.f32.gmra.mxu0 %v5960
        %v6113 = vpop.f32.mrf.mxu0
        %v6114 = vadd.f32 %v6094, %v6113
        %6115 = vdwg.mxu0
        %6116 = vmatpush.msra.mxu0 %v4909
        %6117 = vmatpush.msra.mxu0 %v4908
        %6118 = vmatpush.msra.mxu0 %v4907
        %6119 = vmatpush.msra.mxu0 %v4906
        %6120 = vmatpush.msra.mxu0 %v4905
        %6121 = vmatpush.msra.mxu0 %v4904
        %6122 = vmatpush.msra.mxu0 %v4903
        %6123 = vmatpush.msra.mxu0 %v4902
        %6124 = vmatpush.msra.mxu0 %v4901
        %6125 = vmatpush.msra.mxu0 %v4900
        %6126 = vmatpush.msra.mxu0 %v4899
        %6127 = vmatpush.msra.mxu0 %v4898
        %6128 = vmatpush.msra.mxu0 %v4897
        %6129 = vmatpush.msra.mxu0 %v4896
        %6130 = vmatpush.msra.mxu0 %v4895
        %6131 = vmatpush.msra.mxu0 %v4894
        %6132 = vmatmul.f32.gmra.mxu0 %v5972
        %v6133 = vpop.f32.mrf.mxu0
        %v6134 = vadd.f32 %v6114, %v6133
        %6135 = vdwg.mxu0
        %6136 = vmatpush.msra.mxu0 %v4925
        %6137 = vmatpush.msra.mxu0 %v4924
        %6138 = vmatpush.msra.mxu0 %v4923
        %6139 = vmatpush.msra.mxu0 %v4922
        %6140 = vmatpush.msra.mxu0 %v4921
        %6141 = vmatpush.msra.mxu0 %v4920
        %6142 = vmatpush.msra.mxu0 %v4919
        %6143 = vmatpush.msra.mxu0 %v4918
        %6144 = vmatpush.msra.mxu0 %v4917
        %6145 = vmatpush.msra.mxu0 %v4916
        %6146 = vmatpush.msra.mxu0 %v4915
        %6147 = vmatpush.msra.mxu0 %v4914
        %6148 = vmatpush.msra.mxu0 %v4913
        %6149 = vmatpush.msra.mxu0 %v4912
        %6150 = vmatpush.msra.mxu0 %v4911
        %6151 = vmatpush.msra.mxu0 %v4910
        %6152 = vmatmul.f32.gmra.mxu0 %v5974
        %v6153 = vpop.f32.mrf.mxu0
        %v6154 = vadd.f32 %v6134, %v6153
        %6155 = vdwg.mxu0
        %v6156 = vmax.f32 %v6154, 0.0
        %6157 = vst [vmem:[%s2421 + $0x1] sm:$0x3f] %v6156
        %v6158 = vld [vmem:[#allocation3] sm:$0xff]
        %v6159 = vld [vmem:[%s1151] sm:$0xff]
        %v6160 = vmax.f32 %v6158, %v6159
        %v6162 = vrot.slane %v6160, 1
        %v6164 = vmax.f32 %v6160, %v6162
        %6165 = vst [vmem:[#allocation2] sm:$0x7f] %v6164
        %v6166 = vld [vmem:[%s1151] sm:$0xff]
        %v6167 = vld [vmem:[%s1405] sm:$0xff]
        %v6168 = vmax.f32 %v6166, %v6167
        %v6170 = vrot.slane %v6168, 1
        %v6172 = vmax.f32 %v6168, %v6170
        %6173 = vst [vmem:[%s677] sm:$0x7f] %v6172
        %v6174 = vld [vmem:[%s1405] sm:$0xff]
        %v6175 = vld [vmem:[%s1659] sm:$0xff]
        %v6176 = vmax.f32 %v6174, %v6175
        %v6178 = vrot.slane %v6176, 1
        %v6180 = vmax.f32 %v6176, %v6178
        %6181 = vst [vmem:[%s680] sm:$0x7f] %v6180
        %v6182 = vld [vmem:[%s1659] sm:$0xff]
        %v6183 = vld [vmem:[%s1913] sm:$0xff]
        %v6184 = vmax.f32 %v6182, %v6183
        %v6186 = vrot.slane %v6184, 1
        %v6188 = vmax.f32 %v6184, %v6186
        %6189 = vst [vmem:[%s683] sm:$0x7f] %v6188
        %v6190 = vld [vmem:[%s1913] sm:$0xff]
        %v6191 = vld [vmem:[%s2167] sm:$0xff]
        %v6192 = vmax.f32 %v6190, %v6191
        %v6194 = vrot.slane %v6192, 1
        %v6196 = vmax.f32 %v6192, %v6194
        %6197 = vst [vmem:[%s686] sm:$0x7f] %v6196
        %v6198 = vld [vmem:[%s2167] sm:$0xff]
        %v6199 = vld [vmem:[%s2421] sm:$0xff]
        %v6200 = vmax.f32 %v6198, %v6199
        %v6202 = vrot.slane %v6200, 1
        %v6204 = vmax.f32 %v6200, %v6202
        %6205 = vst [vmem:[%s689] sm:$0x7f] %v6204
        %v6206 = vld [vmem:[%s2421] sm:$0xff]
        %v6207 = vld [vmem:[%s2675] sm:$0xff]
        %v6208 = vmax.f32 %v6206, %v6207
        %v6210 = vrot.slane %v6208, 1
        %v6212 = vmax.f32 %v6208, %v6210
        %6213 = vst [vmem:[%s692] sm:$0x7f] %v6212
        %s6214 = scalar_lea.vmem [#allocation10], 2304
        %v6215 = vld [vmem:[%s6214] sm:$0xff]
        %v6216 = vld [vmem:[%s6214 + $0x8] sm:$0xff]
        %v6217 = vld [vmem:[%s6214 + $0x10] sm:$0xff]
        %v6218 = vld [vmem:[%s6214 + $0x18] sm:$0xff]
        %v6219 = vld [vmem:[%s6214 + $0x20] sm:$0xff]
        %v6220 = vld [vmem:[%s6214 + $0x28] sm:$0xff]
        %v6221 = vld [vmem:[%s6214 + $0x30] sm:$0xff]
        %v6222 = vld [vmem:[%s6214 + $0x38] sm:$0xff]
        %v6223 = vld [vmem:[%s6214 + $0x40] sm:$0xff]
        %v6224 = vld [vmem:[%s6214 + $0x48] sm:$0xff]
        %v6225 = vld [vmem:[%s6214 + $0x50] sm:$0xff]
        %v6226 = vld [vmem:[%s6214 + $0x58] sm:$0xff]
        %v6227 = vld [vmem:[%s6214 + $0x60] sm:$0xff]
        %v6228 = vld [vmem:[%s6214 + $0x68] sm:$0xff]
        %v6229 = vld [vmem:[%s6214 + $0x70] sm:$0xff]
        %v6230 = vld [vmem:[%s6214 + $0x78] sm:$0xff]
        %v6231 = vld [vmem:[%s6214 + $0x80] sm:$0xff]
        %v6232 = vld [vmem:[%s6214 + $0x88] sm:$0xff]
        %v6233 = vld [vmem:[%s6214 + $0x90] sm:$0xff]
        %v6234 = vld [vmem:[%s6214 + $0x98] sm:$0xff]
        %v6235 = vld [vmem:[%s6214 + $0xa0] sm:$0xff]
        %v6236 = vld [vmem:[%s6214 + $0xa8] sm:$0xff]
        %v6237 = vld [vmem:[%s6214 + $0xb0] sm:$0xff]
        %v6238 = vld [vmem:[%s6214 + $0xb8] sm:$0xff]
        %v6239 = vld [vmem:[%s6214 + $0xc0] sm:$0xff]
        %v6240 = vld [vmem:[%s6214 + $0xc8] sm:$0xff]
        %v6241 = vld [vmem:[%s6214 + $0xd0] sm:$0xff]
        %v6242 = vld [vmem:[%s6214 + $0xd8] sm:$0xff]
        %v6243 = vld [vmem:[%s6214 + $0xe0] sm:$0xff]
        %v6244 = vld [vmem:[%s6214 + $0xe8] sm:$0xff]
        %v6245 = vld [vmem:[%s6214 + $0xf0] sm:$0xff]
        %v6246 = vld [vmem:[%s6214 + $0xf8] sm:$0xff]
        %v6247 = vld [vmem:[%s6214 + $0x100] sm:$0xff]
        %v6248 = vld [vmem:[%s6214 + $0x108] sm:$0xff]
        %v6249 = vld [vmem:[%s6214 + $0x110] sm:$0xff]
        %v6250 = vld [vmem:[%s6214 + $0x118] sm:$0xff]
        %v6251 = vld [vmem:[%s6214 + $0x120] sm:$0xff]
        %v6252 = vld [vmem:[%s6214 + $0x128] sm:$0xff]
        %v6253 = vld [vmem:[%s6214 + $0x130] sm:$0xff]
        %v6254 = vld [vmem:[%s6214 + $0x138] sm:$0xff]
        %v6255 = vld [vmem:[%s6214 + $0x140] sm:$0xff]
        %v6256 = vld [vmem:[%s6214 + $0x148] sm:$0xff]
        %v6257 = vld [vmem:[%s6214 + $0x150] sm:$0xff]
        %v6258 = vld [vmem:[%s6214 + $0x158] sm:$0xff]
        %v6259 = vld [vmem:[%s6214 + $0x160] sm:$0xff]
        %v6260 = vld [vmem:[%s6214 + $0x168] sm:$0xff]
        %v6261 = vld [vmem:[%s6214 + $0x170] sm:$0xff]
        %v6262 = vld [vmem:[%s6214 + $0x178] sm:$0xff]
        %v6263 = vld [vmem:[%s6214 + $0x180] sm:$0xff]
        %v6264 = vld [vmem:[%s6214 + $0x188] sm:$0xff]
        %v6265 = vld [vmem:[%s6214 + $0x190] sm:$0xff]
        %v6266 = vld [vmem:[%s6214 + $0x198] sm:$0xff]
        %v6267 = vld [vmem:[%s6214 + $0x1a0] sm:$0xff]
        %v6268 = vld [vmem:[%s6214 + $0x1a8] sm:$0xff]
        %v6269 = vld [vmem:[%s6214 + $0x1b0] sm:$0xff]
        %v6270 = vld [vmem:[%s6214 + $0x1b8] sm:$0xff]
        %v6271 = vld [vmem:[%s6214 + $0x1c0] sm:$0xff]
        %v6272 = vld [vmem:[%s6214 + $0x1c8] sm:$0xff]
        %v6273 = vld [vmem:[%s6214 + $0x1d0] sm:$0xff]
        %v6274 = vld [vmem:[%s6214 + $0x1d8] sm:$0xff]
        %v6275 = vld [vmem:[%s6214 + $0x1e0] sm:$0xff]
        %v6276 = vld [vmem:[%s6214 + $0x1e8] sm:$0xff]
        %v6277 = vld [vmem:[%s6214 + $0x1f0] sm:$0xff]
        %v6278 = vld [vmem:[%s6214 + $0x1f8] sm:$0xff]
        %v6279 = vld [vmem:[%s6214 + $0x200] sm:$0xff]
        %v6280 = vld [vmem:[%s6214 + $0x208] sm:$0xff]
        %v6281 = vld [vmem:[%s6214 + $0x210] sm:$0xff]
        %v6282 = vld [vmem:[%s6214 + $0x218] sm:$0xff]
        %v6283 = vld [vmem:[%s6214 + $0x220] sm:$0xff]
        %v6284 = vld [vmem:[%s6214 + $0x228] sm:$0xff]
        %v6285 = vld [vmem:[%s6214 + $0x230] sm:$0xff]
        %v6286 = vld [vmem:[%s6214 + $0x238] sm:$0xff]
        %v6287 = vld [vmem:[%s6214 + $0x240] sm:$0xff]
        %v6288 = vld [vmem:[%s6214 + $0x248] sm:$0xff]
        %v6289 = vld [vmem:[%s6214 + $0x250] sm:$0xff]
        %v6290 = vld [vmem:[%s6214 + $0x258] sm:$0xff]
        %v6291 = vld [vmem:[%s6214 + $0x260] sm:$0xff]
        %v6292 = vld [vmem:[%s6214 + $0x268] sm:$0xff]
        %v6293 = vld [vmem:[%s6214 + $0x270] sm:$0xff]
        %v6294 = vld [vmem:[%s6214 + $0x278] sm:$0xff]
        %v6295 = vld [vmem:[%s6214 + $0x280] sm:$0xff]
        %v6296 = vld [vmem:[%s6214 + $0x288] sm:$0xff]
        %v6297 = vld [vmem:[%s6214 + $0x290] sm:$0xff]
        %v6298 = vld [vmem:[%s6214 + $0x298] sm:$0xff]
        %v6299 = vld [vmem:[%s6214 + $0x2a0] sm:$0xff]
        %v6300 = vld [vmem:[%s6214 + $0x2a8] sm:$0xff]
        %v6301 = vld [vmem:[%s6214 + $0x2b0] sm:$0xff]
        %v6302 = vld [vmem:[%s6214 + $0x2b8] sm:$0xff]
        %v6303 = vld [vmem:[%s6214 + $0x2c0] sm:$0xff]
        %v6304 = vld [vmem:[%s6214 + $0x2c8] sm:$0xff]
        %v6305 = vld [vmem:[%s6214 + $0x2d0] sm:$0xff]
        %v6306 = vld [vmem:[%s6214 + $0x2d8] sm:$0xff]
        %v6307 = vld [vmem:[%s6214 + $0x2e0] sm:$0xff]
        %v6308 = vld [vmem:[%s6214 + $0x2e8] sm:$0xff]
        %v6309 = vld [vmem:[%s6214 + $0x2f0] sm:$0xff]
        %v6310 = vld [vmem:[%s6214 + $0x2f8] sm:$0xff]
        %v6311 = vld [vmem:[%s6214 + $0x300] sm:$0xff]
        %v6312 = vld [vmem:[%s6214 + $0x308] sm:$0xff]
        %v6313 = vld [vmem:[%s6214 + $0x310] sm:$0xff]
        %v6314 = vld [vmem:[%s6214 + $0x318] sm:$0xff]
        %v6315 = vld [vmem:[%s6214 + $0x320] sm:$0xff]
        %v6316 = vld [vmem:[%s6214 + $0x328] sm:$0xff]
        %v6317 = vld [vmem:[%s6214 + $0x330] sm:$0xff]
        %v6318 = vld [vmem:[%s6214 + $0x338] sm:$0xff]
        %v6319 = vld [vmem:[%s6214 + $0x340] sm:$0xff]
        %v6320 = vld [vmem:[%s6214 + $0x348] sm:$0xff]
        %v6321 = vld [vmem:[%s6214 + $0x350] sm:$0xff]
        %v6322 = vld [vmem:[%s6214 + $0x358] sm:$0xff]
        %v6323 = vld [vmem:[%s6214 + $0x360] sm:$0xff]
        %v6324 = vld [vmem:[%s6214 + $0x368] sm:$0xff]
        %v6325 = vld [vmem:[%s6214 + $0x370] sm:$0xff]
        %v6326 = vld [vmem:[%s6214 + $0x378] sm:$0xff]
        %v6327 = vld [vmem:[%s6214 + $0x380] sm:$0xff]
        %v6328 = vld [vmem:[%s6214 + $0x388] sm:$0xff]
        %v6329 = vld [vmem:[%s6214 + $0x390] sm:$0xff]
        %v6330 = vld [vmem:[%s6214 + $0x398] sm:$0xff]
        %v6331 = vld [vmem:[%s6214 + $0x3a0] sm:$0xff]
        %v6332 = vld [vmem:[%s6214 + $0x3a8] sm:$0xff]
        %v6333 = vld [vmem:[%s6214 + $0x3b0] sm:$0xff]
        %v6334 = vld [vmem:[%s6214 + $0x3b8] sm:$0xff]
        %v6335 = vld [vmem:[%s6214 + $0x3c0] sm:$0xff]
        %v6336 = vld [vmem:[%s6214 + $0x3c8] sm:$0xff]
        %v6337 = vld [vmem:[%s6214 + $0x3d0] sm:$0xff]
        %v6338 = vld [vmem:[%s6214 + $0x3d8] sm:$0xff]
        %v6339 = vld [vmem:[%s6214 + $0x3e0] sm:$0xff]
        %v6340 = vld [vmem:[%s6214 + $0x3e8] sm:$0xff]
        %v6341 = vld [vmem:[%s6214 + $0x3f0] sm:$0xff]
        %v6342 = vld [vmem:[%s6214 + $0x3f8] sm:$0xff]
        %v6343 = vld [vmem:[%s6214 + $0x400] sm:$0xff]
        %v6344 = vld [vmem:[%s6214 + $0x408] sm:$0xff]
        %v6345 = vld [vmem:[%s6214 + $0x410] sm:$0xff]
        %v6346 = vld [vmem:[%s6214 + $0x418] sm:$0xff]
        %v6347 = vld [vmem:[%s6214 + $0x420] sm:$0xff]
        %v6348 = vld [vmem:[%s6214 + $0x428] sm:$0xff]
        %v6349 = vld [vmem:[%s6214 + $0x430] sm:$0xff]
        %v6350 = vld [vmem:[%s6214 + $0x438] sm:$0xff]
        %v6351 = vld [vmem:[%s6214 + $0x440] sm:$0xff]
        %v6352 = vld [vmem:[%s6214 + $0x448] sm:$0xff]
        %v6353 = vld [vmem:[%s6214 + $0x450] sm:$0xff]
        %v6354 = vld [vmem:[%s6214 + $0x458] sm:$0xff]
        %v6355 = vld [vmem:[%s6214 + $0x460] sm:$0xff]
        %v6356 = vld [vmem:[%s6214 + $0x468] sm:$0xff]
        %v6357 = vld [vmem:[%s6214 + $0x470] sm:$0xff]
        %v6358 = vld [vmem:[%s6214 + $0x478] sm:$0xff]
        %6359 = vst [vmem:[#allocation3] sm:$0xff] 0.0
        %6360 = vst [vmem:[#allocation3 + $0x8] sm:$0xff] 0.0
        %6361 = vst [vmem:[#allocation3 + $0x10] sm:$0xff] 0.0
        %6362 = vst [vmem:[#allocation3 + $0x18] sm:$0xff] 0.0
        %6363 = vst [vmem:[#allocation3 + $0x20] sm:$0xff] 0.0
        %6364 = vst [vmem:[#allocation3 + $0x28] sm:$0xff] 0.0
        %6365 = vst [vmem:[#allocation3 + $0x30] sm:$0xff] 0.0
        %6366 = vst [vmem:[#allocation3 + $0x38] sm:$0xff] 0.0
        %6367 = vst [vmem:[#allocation3 + $0x40] sm:$0xff] 0.0
        %6368 = vst [vmem:[#allocation3 + $0x48] sm:$0xff] 0.0
        %6369 = vst [vmem:[#allocation3 + $0x50] sm:$0xff] 0.0
        %6370 = vst [vmem:[#allocation3 + $0x58] sm:$0xff] 0.0
        %6371 = vst [vmem:[#allocation3 + $0x60] sm:$0xff] 0.0
        %6372 = vst [vmem:[#allocation3 + $0x68] sm:$0xff] 0.0
        %6373 = vst [vmem:[#allocation3 + $0x70] sm:$0xff] 0.0
        %6374 = vst [vmem:[#allocation3 + $0x78] sm:$0xff] 0.0
        %6375 = vst [vmem:[#allocation3 + $0x80] sm:$0xff] 0.0
        %6376 = vst [vmem:[#allocation3 + $0x88] sm:$0xff] 0.0
        %6377 = vst [vmem:[#allocation3 + $0x90] sm:$0xff] 0.0
        %6378 = vst [vmem:[#allocation3 + $0x98] sm:$0xff] 0.0
        %6379 = vst [vmem:[#allocation3 + $0xa0] sm:$0xff] 0.0
        %6380 = vst [vmem:[#allocation3 + $0xa8] sm:$0xff] 0.0
        %6381 = vst [vmem:[#allocation3 + $0xb0] sm:$0xff] 0.0
        %6382 = vst [vmem:[#allocation3 + $0xb8] sm:$0xff] 0.0
        %6383 = vst [vmem:[#allocation3 + $0xc0] sm:$0xff] 0.0
        %6384 = vst [vmem:[#allocation3 + $0xc8] sm:$0xff] 0.0
        %6385 = vst [vmem:[#allocation3 + $0xd0] sm:$0xff] 0.0
        %6386 = vst [vmem:[#allocation3 + $0xd8] sm:$0xff] 0.0
        %6387 = vst [vmem:[#allocation3 + $0xe0] sm:$0xff] 0.0
        %6388 = vst [vmem:[#allocation3 + $0xe8] sm:$0xff] 0.0
        %6389 = vst [vmem:[#allocation3 + $0xf0] sm:$0xff] 0.0
        %6390 = vst [vmem:[#allocation3 + $0xf8] sm:$0xff] 0.0
        %v6391 = vld [vmem:[#allocation2] sm:$0x7f]
        %v6392 = vld [vmem:[%s677] sm:$0x7f]
        %v6393 = vld [vmem:[%s680] sm:$0x7f]
        %v6395 = vrot.slane %v6391, 1
        %v6397 = vrot.slane %v6391, 2
        %v6400 = vrot.slane %v6392, 1
        %v6402 = vrot.slane %v6392, 2
        %v6405 = vrot.slane %v6393, 1
        %v6407 = vrot.slane %v6393, 2
        %6409 = vmatpush.msra.mxu0 %v6230
        %6410 = vmatpush.msra.mxu0 %v6229
        %6411 = vmatpush.msra.mxu0 %v6228
        %6412 = vmatpush.msra.mxu0 %v6227
        %6413 = vmatpush.msra.mxu0 %v6226
        %6414 = vmatpush.msra.mxu0 %v6225
        %6415 = vmatpush.msra.mxu0 %v6224
        %6416 = vmatpush.msra.mxu0 %v6223
        %6417 = vmatpush.msra.mxu0 %v6222
        %6418 = vmatpush.msra.mxu0 %v6221
        %6419 = vmatpush.msra.mxu0 %v6220
        %6420 = vmatpush.msra.mxu0 %v6219
        %6421 = vmatpush.msra.mxu0 %v6218
        %6422 = vmatpush.msra.mxu0 %v6217
        %6423 = vmatpush.msra.mxu0 %v6216
        %6424 = vmatpush.msra.mxu0 %v6215
        %6425 = vmatmul.f32.gmra.mxu0 %v6391
        %v6426 = vpop.f32.mrf.mxu0
        %v6427 = vadd.f32 0.0, %v6426
        %6428 = vdwg.mxu0
        %6429 = vmatpush.msra.mxu0 %v6246
        %6430 = vmatpush.msra.mxu0 %v6245
        %6431 = vmatpush.msra.mxu0 %v6244
        %6432 = vmatpush.msra.mxu0 %v6243
        %6433 = vmatpush.msra.mxu0 %v6242
        %6434 = vmatpush.msra.mxu0 %v6241
        %6435 = vmatpush.msra.mxu0 %v6240
        %6436 = vmatpush.msra.mxu0 %v6239
        %6437 = vmatpush.msra.mxu0 %v6238
        %6438 = vmatpush.msra.mxu0 %v6237
        %6439 = vmatpush.msra.mxu0 %v6236
        %6440 = vmatpush.msra.mxu0 %v6235
        %6441 = vmatpush.msra.mxu0 %v6234
        %6442 = vmatpush.msra.mxu0 %v6233
        %6443 = vmatpush.msra.mxu0 %v6232
        %6444 = vmatpush.msra.mxu0 %v6231
        %6445 = vmatmul.f32.gmra.mxu0 %v6395
        %v6446 = vpop.f32.mrf.mxu0
        %v6447 = vadd.f32 %v6427, %v6446
        %6448 = vdwg.mxu0
        %6449 = vmatpush.msra.mxu0 %v6262
        %6450 = vmatpush.msra.mxu0 %v6261
        %6451 = vmatpush.msra.mxu0 %v6260
        %6452 = vmatpush.msra.mxu0 %v6259
        %6453 = vmatpush.msra.mxu0 %v6258
        %6454 = vmatpush.msra.mxu0 %v6257
        %6455 = vmatpush.msra.mxu0 %v6256
        %6456 = vmatpush.msra.mxu0 %v6255
        %6457 = vmatpush.msra.mxu0 %v6254
        %6458 = vmatpush.msra.mxu0 %v6253
        %6459 = vmatpush.msra.mxu0 %v6252
        %6460 = vmatpush.msra.mxu0 %v6251
        %6461 = vmatpush.msra.mxu0 %v6250
        %6462 = vmatpush.msra.mxu0 %v6249
        %6463 = vmatpush.msra.mxu0 %v6248
        %6464 = vmatpush.msra.mxu0 %v6247
        %6465 = vmatmul.f32.gmra.mxu0 %v6397
        %v6466 = vpop.f32.mrf.mxu0
        %v6467 = vadd.f32 %v6447, %v6466
        %6468 = vdwg.mxu0
        %6469 = vmatpush.msra.mxu0 %v6278
        %6470 = vmatpush.msra.mxu0 %v6277
        %6471 = vmatpush.msra.mxu0 %v6276
        %6472 = vmatpush.msra.mxu0 %v6275
        %6473 = vmatpush.msra.mxu0 %v6274
        %6474 = vmatpush.msra.mxu0 %v6273
        %6475 = vmatpush.msra.mxu0 %v6272
        %6476 = vmatpush.msra.mxu0 %v6271
        %6477 = vmatpush.msra.mxu0 %v6270
        %6478 = vmatpush.msra.mxu0 %v6269
        %6479 = vmatpush.msra.mxu0 %v6268
        %6480 = vmatpush.msra.mxu0 %v6267
        %6481 = vmatpush.msra.mxu0 %v6266
        %6482 = vmatpush.msra.mxu0 %v6265
        %6483 = vmatpush.msra.mxu0 %v6264
        %6484 = vmatpush.msra.mxu0 %v6263
        %6485 = vmatmul.f32.gmra.mxu0 %v6392
        %v6486 = vpop.f32.mrf.mxu0
        %v6487 = vadd.f32 %v6467, %v6486
        %6488 = vdwg.mxu0
        %6489 = vmatpush.msra.mxu0 %v6294
        %6490 = vmatpush.msra.mxu0 %v6293
        %6491 = vmatpush.msra.mxu0 %v6292
        %6492 = vmatpush.msra.mxu0 %v6291
        %6493 = vmatpush.msra.mxu0 %v6290
        %6494 = vmatpush.msra.mxu0 %v6289
        %6495 = vmatpush.msra.mxu0 %v6288
        %6496 = vmatpush.msra.mxu0 %v6287
        %6497 = vmatpush.msra.mxu0 %v6286
        %6498 = vmatpush.msra.mxu0 %v6285
        %6499 = vmatpush.msra.mxu0 %v6284
        %6500 = vmatpush.msra.mxu0 %v6283
        %6501 = vmatpush.msra.mxu0 %v6282
        %6502 = vmatpush.msra.mxu0 %v6281
        %6503 = vmatpush.msra.mxu0 %v6280
        %6504 = vmatpush.msra.mxu0 %v6279
        %6505 = vmatmul.f32.gmra.mxu0 %v6400
        %v6506 = vpop.f32.mrf.mxu0
        %v6507 = vadd.f32 %v6487, %v6506
        %6508 = vdwg.mxu0
        %6509 = vmatpush.msra.mxu0 %v6310
        %6510 = vmatpush.msra.mxu0 %v6309
        %6511 = vmatpush.msra.mxu0 %v6308
        %6512 = vmatpush.msra.mxu0 %v6307
        %6513 = vmatpush.msra.mxu0 %v6306
        %6514 = vmatpush.msra.mxu0 %v6305
        %6515 = vmatpush.msra.mxu0 %v6304
        %6516 = vmatpush.msra.mxu0 %v6303
        %6517 = vmatpush.msra.mxu0 %v6302
        %6518 = vmatpush.msra.mxu0 %v6301
        %6519 = vmatpush.msra.mxu0 %v6300
        %6520 = vmatpush.msra.mxu0 %v6299
        %6521 = vmatpush.msra.mxu0 %v6298
        %6522 = vmatpush.msra.mxu0 %v6297
        %6523 = vmatpush.msra.mxu0 %v6296
        %6524 = vmatpush.msra.mxu0 %v6295
        %6525 = vmatmul.f32.gmra.mxu0 %v6402
        %v6526 = vpop.f32.mrf.mxu0
        %v6527 = vadd.f32 %v6507, %v6526
        %6528 = vdwg.mxu0
        %6529 = vmatpush.msra.mxu0 %v6326
        %6530 = vmatpush.msra.mxu0 %v6325
        %6531 = vmatpush.msra.mxu0 %v6324
        %6532 = vmatpush.msra.mxu0 %v6323
        %6533 = vmatpush.msra.mxu0 %v6322
        %6534 = vmatpush.msra.mxu0 %v6321
        %6535 = vmatpush.msra.mxu0 %v6320
        %6536 = vmatpush.msra.mxu0 %v6319
        %6537 = vmatpush.msra.mxu0 %v6318
        %6538 = vmatpush.msra.mxu0 %v6317
        %6539 = vmatpush.msra.mxu0 %v6316
        %6540 = vmatpush.msra.mxu0 %v6315
        %6541 = vmatpush.msra.mxu0 %v6314
        %6542 = vmatpush.msra.mxu0 %v6313
        %6543 = vmatpush.msra.mxu0 %v6312
        %6544 = vmatpush.msra.mxu0 %v6311
        %6545 = vmatmul.f32.gmra.mxu0 %v6393
        %v6546 = vpop.f32.mrf.mxu0
        %v6547 = vadd.f32 %v6527, %v6546
        %6548 = vdwg.mxu0
        %6549 = vmatpush.msra.mxu0 %v6342
        %6550 = vmatpush.msra.mxu0 %v6341
        %6551 = vmatpush.msra.mxu0 %v6340
        %6552 = vmatpush.msra.mxu0 %v6339
        %6553 = vmatpush.msra.mxu0 %v6338
        %6554 = vmatpush.msra.mxu0 %v6337
        %6555 = vmatpush.msra.mxu0 %v6336
        %6556 = vmatpush.msra.mxu0 %v6335
        %6557 = vmatpush.msra.mxu0 %v6334
        %6558 = vmatpush.msra.mxu0 %v6333
        %6559 = vmatpush.msra.mxu0 %v6332
        %6560 = vmatpush.msra.mxu0 %v6331
        %6561 = vmatpush.msra.mxu0 %v6330
        %6562 = vmatpush.msra.mxu0 %v6329
        %6563 = vmatpush.msra.mxu0 %v6328
        %6564 = vmatpush.msra.mxu0 %v6327
        %6565 = vmatmul.f32.gmra.mxu0 %v6405
        %v6566 = vpop.f32.mrf.mxu0
        %v6567 = vadd.f32 %v6547, %v6566
        %6568 = vdwg.mxu0
        %6569 = vmatpush.msra.mxu0 %v6358
        %6570 = vmatpush.msra.mxu0 %v6357
        %6571 = vmatpush.msra.mxu0 %v6356
        %6572 = vmatpush.msra.mxu0 %v6355
        %6573 = vmatpush.msra.mxu0 %v6354
        %6574 = vmatpush.msra.mxu0 %v6353
        %6575 = vmatpush.msra.mxu0 %v6352
        %6576 = vmatpush.msra.mxu0 %v6351
        %6577 = vmatpush.msra.mxu0 %v6350
        %6578 = vmatpush.msra.mxu0 %v6349
        %6579 = vmatpush.msra.mxu0 %v6348
        %6580 = vmatpush.msra.mxu0 %v6347
        %6581 = vmatpush.msra.mxu0 %v6346
        %6582 = vmatpush.msra.mxu0 %v6345
        %6583 = vmatpush.msra.mxu0 %v6344
        %6584 = vmatpush.msra.mxu0 %v6343
        %6585 = vmatmul.f32.gmra.mxu0 %v6407
        %v6586 = vpop.f32.mrf.mxu0
        %v6587 = vadd.f32 %v6567, %v6586
        %6588 = vdwg.mxu0
        %v6589 = vmax.f32 %v6587, 0.0
        %6590 = vst [vmem:[%s1151 + $0x1] sm:$0x1f] %v6589
        %v6591 = vld [vmem:[%s677] sm:$0x7f]
        %v6592 = vld [vmem:[%s680] sm:$0x7f]
        %v6593 = vld [vmem:[%s683] sm:$0x7f]
        %v6595 = vrot.slane %v6591, 1
        %v6597 = vrot.slane %v6591, 2
        %v6600 = vrot.slane %v6592, 1
        %v6602 = vrot.slane %v6592, 2
        %v6605 = vrot.slane %v6593, 1
        %v6607 = vrot.slane %v6593, 2
        %6609 = vmatpush.msra.mxu0 %v6230
        %6610 = vmatpush.msra.mxu0 %v6229
        %6611 = vmatpush.msra.mxu0 %v6228
        %6612 = vmatpush.msra.mxu0 %v6227
        %6613 = vmatpush.msra.mxu0 %v6226
        %6614 = vmatpush.msra.mxu0 %v6225
        %6615 = vmatpush.msra.mxu0 %v6224
        %6616 = vmatpush.msra.mxu0 %v6223
        %6617 = vmatpush.msra.mxu0 %v6222
        %6618 = vmatpush.msra.mxu0 %v6221
        %6619 = vmatpush.msra.mxu0 %v6220
        %6620 = vmatpush.msra.mxu0 %v6219
        %6621 = vmatpush.msra.mxu0 %v6218
        %6622 = vmatpush.msra.mxu0 %v6217
        %6623 = vmatpush.msra.mxu0 %v6216
        %6624 = vmatpush.msra.mxu0 %v6215
        %6625 = vmatmul.f32.gmra.mxu0 %v6591
        %v6626 = vpop.f32.mrf.mxu0
        %v6627 = vadd.f32 0.0, %v6626
        %6628 = vdwg.mxu0
        %6629 = vmatpush.msra.mxu0 %v6246
        %6630 = vmatpush.msra.mxu0 %v6245
        %6631 = vmatpush.msra.mxu0 %v6244
        %6632 = vmatpush.msra.mxu0 %v6243
        %6633 = vmatpush.msra.mxu0 %v6242
        %6634 = vmatpush.msra.mxu0 %v6241
        %6635 = vmatpush.msra.mxu0 %v6240
        %6636 = vmatpush.msra.mxu0 %v6239
        %6637 = vmatpush.msra.mxu0 %v6238
        %6638 = vmatpush.msra.mxu0 %v6237
        %6639 = vmatpush.msra.mxu0 %v6236
        %6640 = vmatpush.msra.mxu0 %v6235
        %6641 = vmatpush.msra.mxu0 %v6234
        %6642 = vmatpush.msra.mxu0 %v6233
        %6643 = vmatpush.msra.mxu0 %v6232
        %6644 = vmatpush.msra.mxu0 %v6231
        %6645 = vmatmul.f32.gmra.mxu0 %v6595
        %v6646 = vpop.f32.mrf.mxu0
        %v6647 = vadd.f32 %v6627, %v6646
        %6648 = vdwg.mxu0
        %6649 = vmatpush.msra.mxu0 %v6262
        %6650 = vmatpush.msra.mxu0 %v6261
        %6651 = vmatpush.msra.mxu0 %v6260
        %6652 = vmatpush.msra.mxu0 %v6259
        %6653 = vmatpush.msra.mxu0 %v6258
        %6654 = vmatpush.msra.mxu0 %v6257
        %6655 = vmatpush.msra.mxu0 %v6256
        %6656 = vmatpush.msra.mxu0 %v6255
        %6657 = vmatpush.msra.mxu0 %v6254
        %6658 = vmatpush.msra.mxu0 %v6253
        %6659 = vmatpush.msra.mxu0 %v6252
        %6660 = vmatpush.msra.mxu0 %v6251
        %6661 = vmatpush.msra.mxu0 %v6250
        %6662 = vmatpush.msra.mxu0 %v6249
        %6663 = vmatpush.msra.mxu0 %v6248
        %6664 = vmatpush.msra.mxu0 %v6247
        %6665 = vmatmul.f32.gmra.mxu0 %v6597
        %v6666 = vpop.f32.mrf.mxu0
        %v6667 = vadd.f32 %v6647, %v6666
        %6668 = vdwg.mxu0
        %6669 = vmatpush.msra.mxu0 %v6278
        %6670 = vmatpush.msra.mxu0 %v6277
        %6671 = vmatpush.msra.mxu0 %v6276
        %6672 = vmatpush.msra.mxu0 %v6275
        %6673 = vmatpush.msra.mxu0 %v6274
        %6674 = vmatpush.msra.mxu0 %v6273
        %6675 = vmatpush.msra.mxu0 %v6272
        %6676 = vmatpush.msra.mxu0 %v6271
        %6677 = vmatpush.msra.mxu0 %v6270
        %6678 = vmatpush.msra.mxu0 %v6269
        %6679 = vmatpush.msra.mxu0 %v6268
        %6680 = vmatpush.msra.mxu0 %v6267
        %6681 = vmatpush.msra.mxu0 %v6266
        %6682 = vmatpush.msra.mxu0 %v6265
        %6683 = vmatpush.msra.mxu0 %v6264
        %6684 = vmatpush.msra.mxu0 %v6263
        %6685 = vmatmul.f32.gmra.mxu0 %v6592
        %v6686 = vpop.f32.mrf.mxu0
        %v6687 = vadd.f32 %v6667, %v6686
        %6688 = vdwg.mxu0
        %6689 = vmatpush.msra.mxu0 %v6294
        %6690 = vmatpush.msra.mxu0 %v6293
        %6691 = vmatpush.msra.mxu0 %v6292
        %6692 = vmatpush.msra.mxu0 %v6291
        %6693 = vmatpush.msra.mxu0 %v6290
        %6694 = vmatpush.msra.mxu0 %v6289
        %6695 = vmatpush.msra.mxu0 %v6288
        %6696 = vmatpush.msra.mxu0 %v6287
        %6697 = vmatpush.msra.mxu0 %v6286
        %6698 = vmatpush.msra.mxu0 %v6285
        %6699 = vmatpush.msra.mxu0 %v6284
        %6700 = vmatpush.msra.mxu0 %v6283
        %6701 = vmatpush.msra.mxu0 %v6282
        %6702 = vmatpush.msra.mxu0 %v6281
        %6703 = vmatpush.msra.mxu0 %v6280
        %6704 = vmatpush.msra.mxu0 %v6279
        %6705 = vmatmul.f32.gmra.mxu0 %v6600
        %v6706 = vpop.f32.mrf.mxu0
        %v6707 = vadd.f32 %v6687, %v6706
        %6708 = vdwg.mxu0
        %6709 = vmatpush.msra.mxu0 %v6310
        %6710 = vmatpush.msra.mxu0 %v6309
        %6711 = vmatpush.msra.mxu0 %v6308
        %6712 = vmatpush.msra.mxu0 %v6307
        %6713 = vmatpush.msra.mxu0 %v6306
        %6714 = vmatpush.msra.mxu0 %v6305
        %6715 = vmatpush.msra.mxu0 %v6304
        %6716 = vmatpush.msra.mxu0 %v6303
        %6717 = vmatpush.msra.mxu0 %v6302
        %6718 = vmatpush.msra.mxu0 %v6301
        %6719 = vmatpush.msra.mxu0 %v6300
        %6720 = vmatpush.msra.mxu0 %v6299
        %6721 = vmatpush.msra.mxu0 %v6298
        %6722 = vmatpush.msra.mxu0 %v6297
        %6723 = vmatpush.msra.mxu0 %v6296
        %6724 = vmatpush.msra.mxu0 %v6295
        %6725 = vmatmul.f32.gmra.mxu0 %v6602
        %v6726 = vpop.f32.mrf.mxu0
        %v6727 = vadd.f32 %v6707, %v6726
        %6728 = vdwg.mxu0
        %6729 = vmatpush.msra.mxu0 %v6326
        %6730 = vmatpush.msra.mxu0 %v6325
        %6731 = vmatpush.msra.mxu0 %v6324
        %6732 = vmatpush.msra.mxu0 %v6323
        %6733 = vmatpush.msra.mxu0 %v6322
        %6734 = vmatpush.msra.mxu0 %v6321
        %6735 = vmatpush.msra.mxu0 %v6320
        %6736 = vmatpush.msra.mxu0 %v6319
        %6737 = vmatpush.msra.mxu0 %v6318
        %6738 = vmatpush.msra.mxu0 %v6317
        %6739 = vmatpush.msra.mxu0 %v6316
        %6740 = vmatpush.msra.mxu0 %v6315
        %6741 = vmatpush.msra.mxu0 %v6314
        %6742 = vmatpush.msra.mxu0 %v6313
        %6743 = vmatpush.msra.mxu0 %v6312
        %6744 = vmatpush.msra.mxu0 %v6311
        %6745 = vmatmul.f32.gmra.mxu0 %v6593
        %v6746 = vpop.f32.mrf.mxu0
        %v6747 = vadd.f32 %v6727, %v6746
        %6748 = vdwg.mxu0
        %6749 = vmatpush.msra.mxu0 %v6342
        %6750 = vmatpush.msra.mxu0 %v6341
        %6751 = vmatpush.msra.mxu0 %v6340
        %6752 = vmatpush.msra.mxu0 %v6339
        %6753 = vmatpush.msra.mxu0 %v6338
        %6754 = vmatpush.msra.mxu0 %v6337
        %6755 = vmatpush.msra.mxu0 %v6336
        %6756 = vmatpush.msra.mxu0 %v6335
        %6757 = vmatpush.msra.mxu0 %v6334
        %6758 = vmatpush.msra.mxu0 %v6333
        %6759 = vmatpush.msra.mxu0 %v6332
        %6760 = vmatpush.msra.mxu0 %v6331
        %6761 = vmatpush.msra.mxu0 %v6330
        %6762 = vmatpush.msra.mxu0 %v6329
        %6763 = vmatpush.msra.mxu0 %v6328
        %6764 = vmatpush.msra.mxu0 %v6327
        %6765 = vmatmul.f32.gmra.mxu0 %v6605
        %v6766 = vpop.f32.mrf.mxu0
        %v6767 = vadd.f32 %v6747, %v6766
        %6768 = vdwg.mxu0
        %6769 = vmatpush.msra.mxu0 %v6358
        %6770 = vmatpush.msra.mxu0 %v6357
        %6771 = vmatpush.msra.mxu0 %v6356
        %6772 = vmatpush.msra.mxu0 %v6355
        %6773 = vmatpush.msra.mxu0 %v6354
        %6774 = vmatpush.msra.mxu0 %v6353
        %6775 = vmatpush.msra.mxu0 %v6352
        %6776 = vmatpush.msra.mxu0 %v6351
        %6777 = vmatpush.msra.mxu0 %v6350
        %6778 = vmatpush.msra.mxu0 %v6349
        %6779 = vmatpush.msra.mxu0 %v6348
        %6780 = vmatpush.msra.mxu0 %v6347
        %6781 = vmatpush.msra.mxu0 %v6346
        %6782 = vmatpush.msra.mxu0 %v6345
        %6783 = vmatpush.msra.mxu0 %v6344
        %6784 = vmatpush.msra.mxu0 %v6343
        %6785 = vmatmul.f32.gmra.mxu0 %v6607
        %v6786 = vpop.f32.mrf.mxu0
        %v6787 = vadd.f32 %v6767, %v6786
        %6788 = vdwg.mxu0
        %v6789 = vmax.f32 %v6787, 0.0
        %6790 = vst [vmem:[%s1405 + $0x1] sm:$0x1f] %v6789
        %v6791 = vld [vmem:[%s680] sm:$0x7f]
        %v6792 = vld [vmem:[%s683] sm:$0x7f]
        %v6793 = vld [vmem:[%s686] sm:$0x7f]
        %v6795 = vrot.slane %v6791, 1
        %v6797 = vrot.slane %v6791, 2
        %v6800 = vrot.slane %v6792, 1
        %v6802 = vrot.slane %v6792, 2
        %v6805 = vrot.slane %v6793, 1
        %v6807 = vrot.slane %v6793, 2
        %6809 = vmatpush.msra.mxu0 %v6230
        %6810 = vmatpush.msra.mxu0 %v6229
        %6811 = vmatpush.msra.mxu0 %v6228
        %6812 = vmatpush.msra.mxu0 %v6227
        %6813 = vmatpush.msra.mxu0 %v6226
        %6814 = vmatpush.msra.mxu0 %v6225
        %6815 = vmatpush.msra.mxu0 %v6224
        %6816 = vmatpush.msra.mxu0 %v6223
        %6817 = vmatpush.msra.mxu0 %v6222
        %6818 = vmatpush.msra.mxu0 %v6221
        %6819 = vmatpush.msra.mxu0 %v6220
        %6820 = vmatpush.msra.mxu0 %v6219
        %6821 = vmatpush.msra.mxu0 %v6218
        %6822 = vmatpush.msra.mxu0 %v6217
        %6823 = vmatpush.msra.mxu0 %v6216
        %6824 = vmatpush.msra.mxu0 %v6215
        %6825 = vmatmul.f32.gmra.mxu0 %v6791
        %v6826 = vpop.f32.mrf.mxu0
        %v6827 = vadd.f32 0.0, %v6826
        %6828 = vdwg.mxu0
        %6829 = vmatpush.msra.mxu0 %v6246
        %6830 = vmatpush.msra.mxu0 %v6245
        %6831 = vmatpush.msra.mxu0 %v6244
        %6832 = vmatpush.msra.mxu0 %v6243
        %6833 = vmatpush.msra.mxu0 %v6242
        %6834 = vmatpush.msra.mxu0 %v6241
        %6835 = vmatpush.msra.mxu0 %v6240
        %6836 = vmatpush.msra.mxu0 %v6239
        %6837 = vmatpush.msra.mxu0 %v6238
        %6838 = vmatpush.msra.mxu0 %v6237
        %6839 = vmatpush.msra.mxu0 %v6236
        %6840 = vmatpush.msra.mxu0 %v6235
        %6841 = vmatpush.msra.mxu0 %v6234
        %6842 = vmatpush.msra.mxu0 %v6233
        %6843 = vmatpush.msra.mxu0 %v6232
        %6844 = vmatpush.msra.mxu0 %v6231
        %6845 = vmatmul.f32.gmra.mxu0 %v6795
        %v6846 = vpop.f32.mrf.mxu0
        %v6847 = vadd.f32 %v6827, %v6846
        %6848 = vdwg.mxu0
        %6849 = vmatpush.msra.mxu0 %v6262
        %6850 = vmatpush.msra.mxu0 %v6261
        %6851 = vmatpush.msra.mxu0 %v6260
        %6852 = vmatpush.msra.mxu0 %v6259
        %6853 = vmatpush.msra.mxu0 %v6258
        %6854 = vmatpush.msra.mxu0 %v6257
        %6855 = vmatpush.msra.mxu0 %v6256
        %6856 = vmatpush.msra.mxu0 %v6255
        %6857 = vmatpush.msra.mxu0 %v6254
        %6858 = vmatpush.msra.mxu0 %v6253
        %6859 = vmatpush.msra.mxu0 %v6252
        %6860 = vmatpush.msra.mxu0 %v6251
        %6861 = vmatpush.msra.mxu0 %v6250
        %6862 = vmatpush.msra.mxu0 %v6249
        %6863 = vmatpush.msra.mxu0 %v6248
        %6864 = vmatpush.msra.mxu0 %v6247
        %6865 = vmatmul.f32.gmra.mxu0 %v6797
        %v6866 = vpop.f32.mrf.mxu0
        %v6867 = vadd.f32 %v6847, %v6866
        %6868 = vdwg.mxu0
        %6869 = vmatpush.msra.mxu0 %v6278
        %6870 = vmatpush.msra.mxu0 %v6277
        %6871 = vmatpush.msra.mxu0 %v6276
        %6872 = vmatpush.msra.mxu0 %v6275
        %6873 = vmatpush.msra.mxu0 %v6274
        %6874 = vmatpush.msra.mxu0 %v6273
        %6875 = vmatpush.msra.mxu0 %v6272
        %6876 = vmatpush.msra.mxu0 %v6271
        %6877 = vmatpush.msra.mxu0 %v6270
        %6878 = vmatpush.msra.mxu0 %v6269
        %6879 = vmatpush.msra.mxu0 %v6268
        %6880 = vmatpush.msra.mxu0 %v6267
        %6881 = vmatpush.msra.mxu0 %v6266
        %6882 = vmatpush.msra.mxu0 %v6265
        %6883 = vmatpush.msra.mxu0 %v6264
        %6884 = vmatpush.msra.mxu0 %v6263
        %6885 = vmatmul.f32.gmra.mxu0 %v6792
        %v6886 = vpop.f32.mrf.mxu0
        %v6887 = vadd.f32 %v6867, %v6886
        %6888 = vdwg.mxu0
        %6889 = vmatpush.msra.mxu0 %v6294
        %6890 = vmatpush.msra.mxu0 %v6293
        %6891 = vmatpush.msra.mxu0 %v6292
        %6892 = vmatpush.msra.mxu0 %v6291
        %6893 = vmatpush.msra.mxu0 %v6290
        %6894 = vmatpush.msra.mxu0 %v6289
        %6895 = vmatpush.msra.mxu0 %v6288
        %6896 = vmatpush.msra.mxu0 %v6287
        %6897 = vmatpush.msra.mxu0 %v6286
        %6898 = vmatpush.msra.mxu0 %v6285
        %6899 = vmatpush.msra.mxu0 %v6284
        %6900 = vmatpush.msra.mxu0 %v6283
        %6901 = vmatpush.msra.mxu0 %v6282
        %6902 = vmatpush.msra.mxu0 %v6281
        %6903 = vmatpush.msra.mxu0 %v6280
        %6904 = vmatpush.msra.mxu0 %v6279
        %6905 = vmatmul.f32.gmra.mxu0 %v6800
        %v6906 = vpop.f32.mrf.mxu0
        %v6907 = vadd.f32 %v6887, %v6906
        %6908 = vdwg.mxu0
        %6909 = vmatpush.msra.mxu0 %v6310
        %6910 = vmatpush.msra.mxu0 %v6309
        %6911 = vmatpush.msra.mxu0 %v6308
        %6912 = vmatpush.msra.mxu0 %v6307
        %6913 = vmatpush.msra.mxu0 %v6306
        %6914 = vmatpush.msra.mxu0 %v6305
        %6915 = vmatpush.msra.mxu0 %v6304
        %6916 = vmatpush.msra.mxu0 %v6303
        %6917 = vmatpush.msra.mxu0 %v6302
        %6918 = vmatpush.msra.mxu0 %v6301
        %6919 = vmatpush.msra.mxu0 %v6300
        %6920 = vmatpush.msra.mxu0 %v6299
        %6921 = vmatpush.msra.mxu0 %v6298
        %6922 = vmatpush.msra.mxu0 %v6297
        %6923 = vmatpush.msra.mxu0 %v6296
        %6924 = vmatpush.msra.mxu0 %v6295
        %6925 = vmatmul.f32.gmra.mxu0 %v6802
        %v6926 = vpop.f32.mrf.mxu0
        %v6927 = vadd.f32 %v6907, %v6926
        %6928 = vdwg.mxu0
        %6929 = vmatpush.msra.mxu0 %v6326
        %6930 = vmatpush.msra.mxu0 %v6325
        %6931 = vmatpush.msra.mxu0 %v6324
        %6932 = vmatpush.msra.mxu0 %v6323
        %6933 = vmatpush.msra.mxu0 %v6322
        %6934 = vmatpush.msra.mxu0 %v6321
        %6935 = vmatpush.msra.mxu0 %v6320
        %6936 = vmatpush.msra.mxu0 %v6319
        %6937 = vmatpush.msra.mxu0 %v6318
        %6938 = vmatpush.msra.mxu0 %v6317
        %6939 = vmatpush.msra.mxu0 %v6316
        %6940 = vmatpush.msra.mxu0 %v6315
        %6941 = vmatpush.msra.mxu0 %v6314
        %6942 = vmatpush.msra.mxu0 %v6313
        %6943 = vmatpush.msra.mxu0 %v6312
        %6944 = vmatpush.msra.mxu0 %v6311
        %6945 = vmatmul.f32.gmra.mxu0 %v6793
        %v6946 = vpop.f32.mrf.mxu0
        %v6947 = vadd.f32 %v6927, %v6946
        %6948 = vdwg.mxu0
        %6949 = vmatpush.msra.mxu0 %v6342
        %6950 = vmatpush.msra.mxu0 %v6341
        %6951 = vmatpush.msra.mxu0 %v6340
        %6952 = vmatpush.msra.mxu0 %v6339
        %6953 = vmatpush.msra.mxu0 %v6338
        %6954 = vmatpush.msra.mxu0 %v6337
        %6955 = vmatpush.msra.mxu0 %v6336
        %6956 = vmatpush.msra.mxu0 %v6335
        %6957 = vmatpush.msra.mxu0 %v6334
        %6958 = vmatpush.msra.mxu0 %v6333
        %6959 = vmatpush.msra.mxu0 %v6332
        %6960 = vmatpush.msra.mxu0 %v6331
        %6961 = vmatpush.msra.mxu0 %v6330
        %6962 = vmatpush.msra.mxu0 %v6329
        %6963 = vmatpush.msra.mxu0 %v6328
        %6964 = vmatpush.msra.mxu0 %v6327
        %6965 = vmatmul.f32.gmra.mxu0 %v6805
        %v6966 = vpop.f32.mrf.mxu0
        %v6967 = vadd.f32 %v6947, %v6966
        %6968 = vdwg.mxu0
        %6969 = vmatpush.msra.mxu0 %v6358
        %6970 = vmatpush.msra.mxu0 %v6357
        %6971 = vmatpush.msra.mxu0 %v6356
        %6972 = vmatpush.msra.mxu0 %v6355
        %6973 = vmatpush.msra.mxu0 %v6354
        %6974 = vmatpush.msra.mxu0 %v6353
        %6975 = vmatpush.msra.mxu0 %v6352
        %6976 = vmatpush.msra.mxu0 %v6351
        %6977 = vmatpush.msra.mxu0 %v6350
        %6978 = vmatpush.msra.mxu0 %v6349
        %6979 = vmatpush.msra.mxu0 %v6348
        %6980 = vmatpush.msra.mxu0 %v6347
        %6981 = vmatpush.msra.mxu0 %v6346
        %6982 = vmatpush.msra.mxu0 %v6345
        %6983 = vmatpush.msra.mxu0 %v6344
        %6984 = vmatpush.msra.mxu0 %v6343
        %6985 = vmatmul.f32.gmra.mxu0 %v6807
        %v6986 = vpop.f32.mrf.mxu0
        %v6987 = vadd.f32 %v6967, %v6986
        %6988 = vdwg.mxu0
        %v6989 = vmax.f32 %v6987, 0.0
        %6990 = vst [vmem:[%s1659 + $0x1] sm:$0x1f] %v6989
        %v6991 = vld [vmem:[%s683] sm:$0x7f]
        %v6992 = vld [vmem:[%s686] sm:$0x7f]
        %v6993 = vld [vmem:[%s689] sm:$0x7f]
        %v6995 = vrot.slane %v6991, 1
        %v6997 = vrot.slane %v6991, 2
        %v7000 = vrot.slane %v6992, 1
        %v7002 = vrot.slane %v6992, 2
        %v7005 = vrot.slane %v6993, 1
        %v7007 = vrot.slane %v6993, 2
        %7009 = vmatpush.msra.mxu0 %v6230
        %7010 = vmatpush.msra.mxu0 %v6229
        %7011 = vmatpush.msra.mxu0 %v6228
        %7012 = vmatpush.msra.mxu0 %v6227
        %7013 = vmatpush.msra.mxu0 %v6226
        %7014 = vmatpush.msra.mxu0 %v6225
        %7015 = vmatpush.msra.mxu0 %v6224
        %7016 = vmatpush.msra.mxu0 %v6223
        %7017 = vmatpush.msra.mxu0 %v6222
        %7018 = vmatpush.msra.mxu0 %v6221
        %7019 = vmatpush.msra.mxu0 %v6220
        %7020 = vmatpush.msra.mxu0 %v6219
        %7021 = vmatpush.msra.mxu0 %v6218
        %7022 = vmatpush.msra.mxu0 %v6217
        %7023 = vmatpush.msra.mxu0 %v6216
        %7024 = vmatpush.msra.mxu0 %v6215
        %7025 = vmatmul.f32.gmra.mxu0 %v6991
        %v7026 = vpop.f32.mrf.mxu0
        %v7027 = vadd.f32 0.0, %v7026
        %7028 = vdwg.mxu0
        %7029 = vmatpush.msra.mxu0 %v6246
        %7030 = vmatpush.msra.mxu0 %v6245
        %7031 = vmatpush.msra.mxu0 %v6244
        %7032 = vmatpush.msra.mxu0 %v6243
        %7033 = vmatpush.msra.mxu0 %v6242
        %7034 = vmatpush.msra.mxu0 %v6241
        %7035 = vmatpush.msra.mxu0 %v6240
        %7036 = vmatpush.msra.mxu0 %v6239
        %7037 = vmatpush.msra.mxu0 %v6238
        %7038 = vmatpush.msra.mxu0 %v6237
        %7039 = vmatpush.msra.mxu0 %v6236
        %7040 = vmatpush.msra.mxu0 %v6235
        %7041 = vmatpush.msra.mxu0 %v6234
        %7042 = vmatpush.msra.mxu0 %v6233
        %7043 = vmatpush.msra.mxu0 %v6232
        %7044 = vmatpush.msra.mxu0 %v6231
        %7045 = vmatmul.f32.gmra.mxu0 %v6995
        %v7046 = vpop.f32.mrf.mxu0
        %v7047 = vadd.f32 %v7027, %v7046
        %7048 = vdwg.mxu0
        %7049 = vmatpush.msra.mxu0 %v6262
        %7050 = vmatpush.msra.mxu0 %v6261
        %7051 = vmatpush.msra.mxu0 %v6260
        %7052 = vmatpush.msra.mxu0 %v6259
        %7053 = vmatpush.msra.mxu0 %v6258
        %7054 = vmatpush.msra.mxu0 %v6257
        %7055 = vmatpush.msra.mxu0 %v6256
        %7056 = vmatpush.msra.mxu0 %v6255
        %7057 = vmatpush.msra.mxu0 %v6254
        %7058 = vmatpush.msra.mxu0 %v6253
        %7059 = vmatpush.msra.mxu0 %v6252
        %7060 = vmatpush.msra.mxu0 %v6251
        %7061 = vmatpush.msra.mxu0 %v6250
        %7062 = vmatpush.msra.mxu0 %v6249
        %7063 = vmatpush.msra.mxu0 %v6248
        %7064 = vmatpush.msra.mxu0 %v6247
        %7065 = vmatmul.f32.gmra.mxu0 %v6997
        %v7066 = vpop.f32.mrf.mxu0
        %v7067 = vadd.f32 %v7047, %v7066
        %7068 = vdwg.mxu0
        %7069 = vmatpush.msra.mxu0 %v6278
        %7070 = vmatpush.msra.mxu0 %v6277
        %7071 = vmatpush.msra.mxu0 %v6276
        %7072 = vmatpush.msra.mxu0 %v6275
        %7073 = vmatpush.msra.mxu0 %v6274
        %7074 = vmatpush.msra.mxu0 %v6273
        %7075 = vmatpush.msra.mxu0 %v6272
        %7076 = vmatpush.msra.mxu0 %v6271
        %7077 = vmatpush.msra.mxu0 %v6270
        %7078 = vmatpush.msra.mxu0 %v6269
        %7079 = vmatpush.msra.mxu0 %v6268
        %7080 = vmatpush.msra.mxu0 %v6267
        %7081 = vmatpush.msra.mxu0 %v6266
        %7082 = vmatpush.msra.mxu0 %v6265
        %7083 = vmatpush.msra.mxu0 %v6264
        %7084 = vmatpush.msra.mxu0 %v6263
        %7085 = vmatmul.f32.gmra.mxu0 %v6992
        %v7086 = vpop.f32.mrf.mxu0
        %v7087 = vadd.f32 %v7067, %v7086
        %7088 = vdwg.mxu0
        %7089 = vmatpush.msra.mxu0 %v6294
        %7090 = vmatpush.msra.mxu0 %v6293
        %7091 = vmatpush.msra.mxu0 %v6292
        %7092 = vmatpush.msra.mxu0 %v6291
        %7093 = vmatpush.msra.mxu0 %v6290
        %7094 = vmatpush.msra.mxu0 %v6289
        %7095 = vmatpush.msra.mxu0 %v6288
        %7096 = vmatpush.msra.mxu0 %v6287
        %7097 = vmatpush.msra.mxu0 %v6286
        %7098 = vmatpush.msra.mxu0 %v6285
        %7099 = vmatpush.msra.mxu0 %v6284
        %7100 = vmatpush.msra.mxu0 %v6283
        %7101 = vmatpush.msra.mxu0 %v6282
        %7102 = vmatpush.msra.mxu0 %v6281
        %7103 = vmatpush.msra.mxu0 %v6280
        %7104 = vmatpush.msra.mxu0 %v6279
        %7105 = vmatmul.f32.gmra.mxu0 %v7000
        %v7106 = vpop.f32.mrf.mxu0
        %v7107 = vadd.f32 %v7087, %v7106
        %7108 = vdwg.mxu0
        %7109 = vmatpush.msra.mxu0 %v6310
        %7110 = vmatpush.msra.mxu0 %v6309
        %7111 = vmatpush.msra.mxu0 %v6308
        %7112 = vmatpush.msra.mxu0 %v6307
        %7113 = vmatpush.msra.mxu0 %v6306
        %7114 = vmatpush.msra.mxu0 %v6305
        %7115 = vmatpush.msra.mxu0 %v6304
        %7116 = vmatpush.msra.mxu0 %v6303
        %7117 = vmatpush.msra.mxu0 %v6302
        %7118 = vmatpush.msra.mxu0 %v6301
        %7119 = vmatpush.msra.mxu0 %v6300
        %7120 = vmatpush.msra.mxu0 %v6299
        %7121 = vmatpush.msra.mxu0 %v6298
        %7122 = vmatpush.msra.mxu0 %v6297
        %7123 = vmatpush.msra.mxu0 %v6296
        %7124 = vmatpush.msra.mxu0 %v6295
        %7125 = vmatmul.f32.gmra.mxu0 %v7002
        %v7126 = vpop.f32.mrf.mxu0
        %v7127 = vadd.f32 %v7107, %v7126
        %7128 = vdwg.mxu0
        %7129 = vmatpush.msra.mxu0 %v6326
        %7130 = vmatpush.msra.mxu0 %v6325
        %7131 = vmatpush.msra.mxu0 %v6324
        %7132 = vmatpush.msra.mxu0 %v6323
        %7133 = vmatpush.msra.mxu0 %v6322
        %7134 = vmatpush.msra.mxu0 %v6321
        %7135 = vmatpush.msra.mxu0 %v6320
        %7136 = vmatpush.msra.mxu0 %v6319
        %7137 = vmatpush.msra.mxu0 %v6318
        %7138 = vmatpush.msra.mxu0 %v6317
        %7139 = vmatpush.msra.mxu0 %v6316
        %7140 = vmatpush.msra.mxu0 %v6315
        %7141 = vmatpush.msra.mxu0 %v6314
        %7142 = vmatpush.msra.mxu0 %v6313
        %7143 = vmatpush.msra.mxu0 %v6312
        %7144 = vmatpush.msra.mxu0 %v6311
        %7145 = vmatmul.f32.gmra.mxu0 %v6993
        %v7146 = vpop.f32.mrf.mxu0
        %v7147 = vadd.f32 %v7127, %v7146
        %7148 = vdwg.mxu0
        %7149 = vmatpush.msra.mxu0 %v6342
        %7150 = vmatpush.msra.mxu0 %v6341
        %7151 = vmatpush.msra.mxu0 %v6340
        %7152 = vmatpush.msra.mxu0 %v6339
        %7153 = vmatpush.msra.mxu0 %v6338
        %7154 = vmatpush.msra.mxu0 %v6337
        %7155 = vmatpush.msra.mxu0 %v6336
        %7156 = vmatpush.msra.mxu0 %v6335
        %7157 = vmatpush.msra.mxu0 %v6334
        %7158 = vmatpush.msra.mxu0 %v6333
        %7159 = vmatpush.msra.mxu0 %v6332
        %7160 = vmatpush.msra.mxu0 %v6331
        %7161 = vmatpush.msra.mxu0 %v6330
        %7162 = vmatpush.msra.mxu0 %v6329
        %7163 = vmatpush.msra.mxu0 %v6328
        %7164 = vmatpush.msra.mxu0 %v6327
        %7165 = vmatmul.f32.gmra.mxu0 %v7005
        %v7166 = vpop.f32.mrf.mxu0
        %v7167 = vadd.f32 %v7147, %v7166
        %7168 = vdwg.mxu0
        %7169 = vmatpush.msra.mxu0 %v6358
        %7170 = vmatpush.msra.mxu0 %v6357
        %7171 = vmatpush.msra.mxu0 %v6356
        %7172 = vmatpush.msra.mxu0 %v6355
        %7173 = vmatpush.msra.mxu0 %v6354
        %7174 = vmatpush.msra.mxu0 %v6353
        %7175 = vmatpush.msra.mxu0 %v6352
        %7176 = vmatpush.msra.mxu0 %v6351
        %7177 = vmatpush.msra.mxu0 %v6350
        %7178 = vmatpush.msra.mxu0 %v6349
        %7179 = vmatpush.msra.mxu0 %v6348
        %7180 = vmatpush.msra.mxu0 %v6347
        %7181 = vmatpush.msra.mxu0 %v6346
        %7182 = vmatpush.msra.mxu0 %v6345
        %7183 = vmatpush.msra.mxu0 %v6344
        %7184 = vmatpush.msra.mxu0 %v6343
        %7185 = vmatmul.f32.gmra.mxu0 %v7007
        %v7186 = vpop.f32.mrf.mxu0
        %v7187 = vadd.f32 %v7167, %v7186
        %7188 = vdwg.mxu0
        %v7189 = vmax.f32 %v7187, 0.0
        %7190 = vst [vmem:[%s1913 + $0x1] sm:$0x1f] %v7189
        %v7191 = vld [vmem:[%s686] sm:$0x7f]
        %v7192 = vld [vmem:[%s689] sm:$0x7f]
        %v7193 = vld [vmem:[%s692] sm:$0x7f]
        %v7195 = vrot.slane %v7191, 1
        %v7197 = vrot.slane %v7191, 2
        %v7200 = vrot.slane %v7192, 1
        %v7202 = vrot.slane %v7192, 2
        %v7205 = vrot.slane %v7193, 1
        %v7207 = vrot.slane %v7193, 2
        %7209 = vmatpush.msra.mxu0 %v6230
        %7210 = vmatpush.msra.mxu0 %v6229
        %7211 = vmatpush.msra.mxu0 %v6228
        %7212 = vmatpush.msra.mxu0 %v6227
        %7213 = vmatpush.msra.mxu0 %v6226
        %7214 = vmatpush.msra.mxu0 %v6225
        %7215 = vmatpush.msra.mxu0 %v6224
        %7216 = vmatpush.msra.mxu0 %v6223
        %7217 = vmatpush.msra.mxu0 %v6222
        %7218 = vmatpush.msra.mxu0 %v6221
        %7219 = vmatpush.msra.mxu0 %v6220
        %7220 = vmatpush.msra.mxu0 %v6219
        %7221 = vmatpush.msra.mxu0 %v6218
        %7222 = vmatpush.msra.mxu0 %v6217
        %7223 = vmatpush.msra.mxu0 %v6216
        %7224 = vmatpush.msra.mxu0 %v6215
        %7225 = vmatmul.f32.gmra.mxu0 %v7191
        %v7226 = vpop.f32.mrf.mxu0
        %v7227 = vadd.f32 0.0, %v7226
        %7228 = vdwg.mxu0
        %7229 = vmatpush.msra.mxu0 %v6246
        %7230 = vmatpush.msra.mxu0 %v6245
        %7231 = vmatpush.msra.mxu0 %v6244
        %7232 = vmatpush.msra.mxu0 %v6243
        %7233 = vmatpush.msra.mxu0 %v6242
        %7234 = vmatpush.msra.mxu0 %v6241
        %7235 = vmatpush.msra.mxu0 %v6240
        %7236 = vmatpush.msra.mxu0 %v6239
        %7237 = vmatpush.msra.mxu0 %v6238
        %7238 = vmatpush.msra.mxu0 %v6237
        %7239 = vmatpush.msra.mxu0 %v6236
        %7240 = vmatpush.msra.mxu0 %v6235
        %7241 = vmatpush.msra.mxu0 %v6234
        %7242 = vmatpush.msra.mxu0 %v6233
        %7243 = vmatpush.msra.mxu0 %v6232
        %7244 = vmatpush.msra.mxu0 %v6231
        %7245 = vmatmul.f32.gmra.mxu0 %v7195
        %v7246 = vpop.f32.mrf.mxu0
        %v7247 = vadd.f32 %v7227, %v7246
        %7248 = vdwg.mxu0
        %7249 = vmatpush.msra.mxu0 %v6262
        %7250 = vmatpush.msra.mxu0 %v6261
        %7251 = vmatpush.msra.mxu0 %v6260
        %7252 = vmatpush.msra.mxu0 %v6259
        %7253 = vmatpush.msra.mxu0 %v6258
        %7254 = vmatpush.msra.mxu0 %v6257
        %7255 = vmatpush.msra.mxu0 %v6256
        %7256 = vmatpush.msra.mxu0 %v6255
        %7257 = vmatpush.msra.mxu0 %v6254
        %7258 = vmatpush.msra.mxu0 %v6253
        %7259 = vmatpush.msra.mxu0 %v6252
        %7260 = vmatpush.msra.mxu0 %v6251
        %7261 = vmatpush.msra.mxu0 %v6250
        %7262 = vmatpush.msra.mxu0 %v6249
        %7263 = vmatpush.msra.mxu0 %v6248
        %7264 = vmatpush.msra.mxu0 %v6247
        %7265 = vmatmul.f32.gmra.mxu0 %v7197
        %v7266 = vpop.f32.mrf.mxu0
        %v7267 = vadd.f32 %v7247, %v7266
        %7268 = vdwg.mxu0
        %7269 = vmatpush.msra.mxu0 %v6278
        %7270 = vmatpush.msra.mxu0 %v6277
        %7271 = vmatpush.msra.mxu0 %v6276
        %7272 = vmatpush.msra.mxu0 %v6275
        %7273 = vmatpush.msra.mxu0 %v6274
        %7274 = vmatpush.msra.mxu0 %v6273
        %7275 = vmatpush.msra.mxu0 %v6272
        %7276 = vmatpush.msra.mxu0 %v6271
        %7277 = vmatpush.msra.mxu0 %v6270
        %7278 = vmatpush.msra.mxu0 %v6269
        %7279 = vmatpush.msra.mxu0 %v6268
        %7280 = vmatpush.msra.mxu0 %v6267
        %7281 = vmatpush.msra.mxu0 %v6266
        %7282 = vmatpush.msra.mxu0 %v6265
        %7283 = vmatpush.msra.mxu0 %v6264
        %7284 = vmatpush.msra.mxu0 %v6263
        %7285 = vmatmul.f32.gmra.mxu0 %v7192
        %v7286 = vpop.f32.mrf.mxu0
        %v7287 = vadd.f32 %v7267, %v7286
        %7288 = vdwg.mxu0
        %7289 = vmatpush.msra.mxu0 %v6294
        %7290 = vmatpush.msra.mxu0 %v6293
        %7291 = vmatpush.msra.mxu0 %v6292
        %7292 = vmatpush.msra.mxu0 %v6291
        %7293 = vmatpush.msra.mxu0 %v6290
        %7294 = vmatpush.msra.mxu0 %v6289
        %7295 = vmatpush.msra.mxu0 %v6288
        %7296 = vmatpush.msra.mxu0 %v6287
        %7297 = vmatpush.msra.mxu0 %v6286
        %7298 = vmatpush.msra.mxu0 %v6285
        %7299 = vmatpush.msra.mxu0 %v6284
        %7300 = vmatpush.msra.mxu0 %v6283
        %7301 = vmatpush.msra.mxu0 %v6282
        %7302 = vmatpush.msra.mxu0 %v6281
        %7303 = vmatpush.msra.mxu0 %v6280
        %7304 = vmatpush.msra.mxu0 %v6279
        %7305 = vmatmul.f32.gmra.mxu0 %v7200
        %v7306 = vpop.f32.mrf.mxu0
        %v7307 = vadd.f32 %v7287, %v7306
        %7308 = vdwg.mxu0
        %7309 = vmatpush.msra.mxu0 %v6310
        %7310 = vmatpush.msra.mxu0 %v6309
        %7311 = vmatpush.msra.mxu0 %v6308
        %7312 = vmatpush.msra.mxu0 %v6307
        %7313 = vmatpush.msra.mxu0 %v6306
        %7314 = vmatpush.msra.mxu0 %v6305
        %7315 = vmatpush.msra.mxu0 %v6304
        %7316 = vmatpush.msra.mxu0 %v6303
        %7317 = vmatpush.msra.mxu0 %v6302
        %7318 = vmatpush.msra.mxu0 %v6301
        %7319 = vmatpush.msra.mxu0 %v6300
        %7320 = vmatpush.msra.mxu0 %v6299
        %7321 = vmatpush.msra.mxu0 %v6298
        %7322 = vmatpush.msra.mxu0 %v6297
        %7323 = vmatpush.msra.mxu0 %v6296
        %7324 = vmatpush.msra.mxu0 %v6295
        %7325 = vmatmul.f32.gmra.mxu0 %v7202
        %v7326 = vpop.f32.mrf.mxu0
        %v7327 = vadd.f32 %v7307, %v7326
        %7328 = vdwg.mxu0
        %7329 = vmatpush.msra.mxu0 %v6326
        %7330 = vmatpush.msra.mxu0 %v6325
        %7331 = vmatpush.msra.mxu0 %v6324
        %7332 = vmatpush.msra.mxu0 %v6323
        %7333 = vmatpush.msra.mxu0 %v6322
        %7334 = vmatpush.msra.mxu0 %v6321
        %7335 = vmatpush.msra.mxu0 %v6320
        %7336 = vmatpush.msra.mxu0 %v6319
        %7337 = vmatpush.msra.mxu0 %v6318
        %7338 = vmatpush.msra.mxu0 %v6317
        %7339 = vmatpush.msra.mxu0 %v6316
        %7340 = vmatpush.msra.mxu0 %v6315
        %7341 = vmatpush.msra.mxu0 %v6314
        %7342 = vmatpush.msra.mxu0 %v6313
        %7343 = vmatpush.msra.mxu0 %v6312
        %7344 = vmatpush.msra.mxu0 %v6311
        %7345 = vmatmul.f32.gmra.mxu0 %v7193
        %v7346 = vpop.f32.mrf.mxu0
        %v7347 = vadd.f32 %v7327, %v7346
        %7348 = vdwg.mxu0
        %7349 = vmatpush.msra.mxu0 %v6342
        %7350 = vmatpush.msra.mxu0 %v6341
        %7351 = vmatpush.msra.mxu0 %v6340
        %7352 = vmatpush.msra.mxu0 %v6339
        %7353 = vmatpush.msra.mxu0 %v6338
        %7354 = vmatpush.msra.mxu0 %v6337
        %7355 = vmatpush.msra.mxu0 %v6336
        %7356 = vmatpush.msra.mxu0 %v6335
        %7357 = vmatpush.msra.mxu0 %v6334
        %7358 = vmatpush.msra.mxu0 %v6333
        %7359 = vmatpush.msra.mxu0 %v6332
        %7360 = vmatpush.msra.mxu0 %v6331
        %7361 = vmatpush.msra.mxu0 %v6330
        %7362 = vmatpush.msra.mxu0 %v6329
        %7363 = vmatpush.msra.mxu0 %v6328
        %7364 = vmatpush.msra.mxu0 %v6327
        %7365 = vmatmul.f32.gmra.mxu0 %v7205
        %v7366 = vpop.f32.mrf.mxu0
        %v7367 = vadd.f32 %v7347, %v7366
        %7368 = vdwg.mxu0
        %7369 = vmatpush.msra.mxu0 %v6358
        %7370 = vmatpush.msra.mxu0 %v6357
        %7371 = vmatpush.msra.mxu0 %v6356
        %7372 = vmatpush.msra.mxu0 %v6355
        %7373 = vmatpush.msra.mxu0 %v6354
        %7374 = vmatpush.msra.mxu0 %v6353
        %7375 = vmatpush.msra.mxu0 %v6352
        %7376 = vmatpush.msra.mxu0 %v6351
        %7377 = vmatpush.msra.mxu0 %v6350
        %7378 = vmatpush.msra.mxu0 %v6349
        %7379 = vmatpush.msra.mxu0 %v6348
        %7380 = vmatpush.msra.mxu0 %v6347
        %7381 = vmatpush.msra.mxu0 %v6346
        %7382 = vmatpush.msra.mxu0 %v6345
        %7383 = vmatpush.msra.mxu0 %v6344
        %7384 = vmatpush.msra.mxu0 %v6343
        %7385 = vmatmul.f32.gmra.mxu0 %v7207
        %v7386 = vpop.f32.mrf.mxu0
        %v7387 = vadd.f32 %v7367, %v7386
        %7388 = vdwg.mxu0
        %v7389 = vmax.f32 %v7387, 0.0
        %7390 = vst [vmem:[%s2167 + $0x1] sm:$0x1f] %v7389
        %v7391 = vld [vmem:[#allocation3] sm:$0x7f]
        %v7392 = vld [vmem:[%s1151] sm:$0x7f]
        %v7393 = vmax.f32 %v7391, %v7392
        %v7395 = vrot.slane %v7393, 1
        %v7397 = vmax.f32 %v7393, %v7395
        %vm7398 = vcmask 48128
        %v7399 = vsel %vm7398, %v4463, 0
        %v7402 = vsel %vm912, %v7397, 0
        %7404 = vmatpush.msra.mxu0 0.0
        %7405 = vmatpush.msra.mxu0 0.0
        %7406 = vmatpush.msra.mxu0 0.0
        %7407 = vmatpush.msra.mxu0 0.0
        %7408 = vmatpush.msra.mxu0 0.0
        %7409 = vmatpush.msra.mxu0 0.0
        %7410 = vmatpush.msra.mxu0 0.0
        %7411 = vmatpush.msra.mxu0 0.0
        %7412 = vmatpush.msra.mxu0 0.0
        %7413 = vmatpush.msra.mxu0 0.0
        %7414 = vmatpush.msra.mxu0 0.0
        %7415 = vmatpush.msra.mxu0 0.0
        %7416 = vmatpush.msra.mxu0 0.0
        %7417 = vmatpush.msra.mxu0 0.0
        %7418 = vmatpush.msra.mxu0 0.0
        %7419 = vmatpush.msra.mxu0 %v7402
        %7420 = vmatmul.f32.gmra.mxu0 %v7399
        %v7421 = vpop.f32.mrf.mxu0
        %v7422 = vadd.f32 0.0, %v7421
        %7423 = vdwg.mxu0
        %7424 = vst [vmem:[#allocation2] sm:$0x7] %v7422
        %v7425 = vld [vmem:[%s1405] sm:$0x7f]
        %v7426 = vld [vmem:[%s1659] sm:$0x7f]
        %v7427 = vmax.f32 %v7425, %v7426
        %v7429 = vrot.slane %v7427, 1
        %v7431 = vmax.f32 %v7427, %v7429
        %v7433 = vsel %vm912, %v7431, 0
        %7435 = vmatpush.msra.mxu0 0.0
        %7436 = vmatpush.msra.mxu0 0.0
        %7437 = vmatpush.msra.mxu0 0.0
        %7438 = vmatpush.msra.mxu0 0.0
        %7439 = vmatpush.msra.mxu0 0.0
        %7440 = vmatpush.msra.mxu0 0.0
        %7441 = vmatpush.msra.mxu0 0.0
        %7442 = vmatpush.msra.mxu0 0.0
        %7443 = vmatpush.msra.mxu0 0.0
        %7444 = vmatpush.msra.mxu0 0.0
        %7445 = vmatpush.msra.mxu0 0.0
        %7446 = vmatpush.msra.mxu0 0.0
        %7447 = vmatpush.msra.mxu0 0.0
        %7448 = vmatpush.msra.mxu0 0.0
        %7449 = vmatpush.msra.mxu0 0.0
        %7450 = vmatpush.msra.mxu0 %v7433
        %7451 = vmatmul.f32.gmra.mxu0 %v7399
        %v7452 = vpop.f32.mrf.mxu0
        %v7453 = vadd.f32 0.0, %v7452
        %7454 = vdwg.mxu0
        %7455 = vst [vmem:[%s677] sm:$0x7] %v7453
        %v7456 = vld [vmem:[%s1913] sm:$0x7f]
        %v7457 = vld [vmem:[%s2167] sm:$0x7f]
        %v7458 = vmax.f32 %v7456, %v7457
        %v7460 = vrot.slane %v7458, 1
        %v7462 = vmax.f32 %v7458, %v7460
        %v7464 = vsel %vm912, %v7462, 0
        %7466 = vmatpush.msra.mxu0 0.0
        %7467 = vmatpush.msra.mxu0 0.0
        %7468 = vmatpush.msra.mxu0 0.0
        %7469 = vmatpush.msra.mxu0 0.0
        %7470 = vmatpush.msra.mxu0 0.0
        %7471 = vmatpush.msra.mxu0 0.0
        %7472 = vmatpush.msra.mxu0 0.0
        %7473 = vmatpush.msra.mxu0 0.0
        %7474 = vmatpush.msra.mxu0 0.0
        %7475 = vmatpush.msra.mxu0 0.0
        %7476 = vmatpush.msra.mxu0 0.0
        %7477 = vmatpush.msra.mxu0 0.0
        %7478 = vmatpush.msra.mxu0 0.0
        %7479 = vmatpush.msra.mxu0 0.0
        %7480 = vmatpush.msra.mxu0 0.0
        %7481 = vmatpush.msra.mxu0 %v7464
        %7482 = vmatmul.f32.gmra.mxu0 %v7399
        %v7483 = vpop.f32.mrf.mxu0
        %v7484 = vadd.f32 0.0, %v7483
        %7485 = vdwg.mxu0
        %7486 = vst [vmem:[%s680] sm:$0x7] %v7484
        %v7487 = vld [vmem:[#allocation2] sm:$0x7]
        %7488 = vst [vmem:[%s324] sm:$0x7] %v7487
        %v7489 = vld [vmem:[%s677] sm:$0x7]
        %s7490 = scalar_lea.vmem %s324, 4
        %7491 = vst [vmem:[%s7490] sm:$0x7] %v7489
        %v7492 = vld [vmem:[%s680] sm:$0x7]
        %s7493 = scalar_lea.vmem %s324, 8
        %7494 = vst [vmem:[%s7493] sm:$0x7] %v7492
        %s7495 = scalar_lea.vmem [#allocation10], 3456
        %v7496 = vld [vmem:[%s7495] sm:$0xff]
        %v7497 = vld [vmem:[%s7495 + $0x8] sm:$0xff]
        %v7498 = vld [vmem:[%s7495 + $0x10] sm:$0xff]
        %v7499 = vld [vmem:[%s7495 + $0x18] sm:$0xff]
        %v7500 = vld [vmem:[%s7495 + $0x20] sm:$0xff]
        %v7501 = vld [vmem:[%s7495 + $0x28] sm:$0xff]
        %v7502 = vld [vmem:[%s7495 + $0x30] sm:$0xff]
        %v7503 = vld [vmem:[%s7495 + $0x38] sm:$0xff]
        %v7504 = vld [vmem:[%s7495 + $0x40] sm:$0xff]
        %v7505 = vld [vmem:[%s7495 + $0x48] sm:$0xff]
        %v7506 = vld [vmem:[%s7495 + $0x50] sm:$0xff]
        %v7507 = vld [vmem:[%s7495 + $0x58] sm:$0xff]
        %v7508 = vld [vmem:[%s7495 + $0x60] sm:$0xff]
        %v7509 = vld [vmem:[%s7495 + $0x68] sm:$0xff]
        %v7510 = vld [vmem:[%s7495 + $0x70] sm:$0xff]
        %v7511 = vld [vmem:[%s7495 + $0x78] sm:$0xff]
        %v7512 = vld [vmem:[%s7495 + $0x80] sm:$0xff]
        %v7513 = vld [vmem:[%s7495 + $0x88] sm:$0xff]
        %v7514 = vld [vmem:[%s7495 + $0x90] sm:$0xff]
        %v7515 = vld [vmem:[%s7495 + $0x98] sm:$0xff]
        %v7516 = vld [vmem:[%s7495 + $0xa0] sm:$0xff]
        %v7517 = vld [vmem:[%s7495 + $0xa8] sm:$0xff]
        %v7518 = vld [vmem:[%s7495 + $0xb0] sm:$0xff]
        %v7519 = vld [vmem:[%s7495 + $0xb8] sm:$0xff]
        %v7520 = vld [vmem:[%s7495 + $0xc0] sm:$0xff]
        %v7521 = vld [vmem:[%s7495 + $0xc8] sm:$0xff]
        %v7522 = vld [vmem:[%s7495 + $0xd0] sm:$0xff]
        %v7523 = vld [vmem:[%s7495 + $0xd8] sm:$0xff]
        %v7524 = vld [vmem:[%s7495 + $0xe0] sm:$0xff]
        %v7525 = vld [vmem:[%s7495 + $0xe8] sm:$0xff]
        %v7526 = vld [vmem:[%s7495 + $0xf0] sm:$0xff]
        %v7527 = vld [vmem:[%s7495 + $0xf8] sm:$0xff]
        %v7528 = vld [vmem:[%s7495 + $0x100] sm:$0xff]
        %v7529 = vld [vmem:[%s7495 + $0x108] sm:$0xff]
        %v7530 = vld [vmem:[%s7495 + $0x110] sm:$0xff]
        %v7531 = vld [vmem:[%s7495 + $0x118] sm:$0xff]
        %v7532 = vld [vmem:[%s7495 + $0x120] sm:$0xff]
        %v7533 = vld [vmem:[%s7495 + $0x128] sm:$0xff]
        %v7534 = vld [vmem:[%s7495 + $0x130] sm:$0xff]
        %v7535 = vld [vmem:[%s7495 + $0x138] sm:$0xff]
        %v7536 = vld [vmem:[%s7495 + $0x140] sm:$0xff]
        %v7537 = vld [vmem:[%s7495 + $0x148] sm:$0xff]
        %v7538 = vld [vmem:[%s7495 + $0x150] sm:$0xff]
        %v7539 = vld [vmem:[%s7495 + $0x158] sm:$0xff]
        %v7540 = vld [vmem:[%s7495 + $0x160] sm:$0xff]
        %v7541 = vld [vmem:[%s7495 + $0x168] sm:$0xff]
        %v7542 = vld [vmem:[%s7495 + $0x170] sm:$0xff]
        %v7543 = vld [vmem:[%s7495 + $0x178] sm:$0xff]
        %v7544 = vld [vmem:[%s7495 + $0x180] sm:$0xff]
        %v7545 = vld [vmem:[%s7495 + $0x188] sm:$0xff]
        %v7546 = vld [vmem:[%s7495 + $0x190] sm:$0xff]
        %v7547 = vld [vmem:[%s7495 + $0x198] sm:$0xff]
        %v7548 = vld [vmem:[%s7495 + $0x1a0] sm:$0xff]
        %v7549 = vld [vmem:[%s7495 + $0x1a8] sm:$0xff]
        %v7550 = vld [vmem:[%s7495 + $0x1b0] sm:$0xff]
        %v7551 = vld [vmem:[%s7495 + $0x1b8] sm:$0xff]
        %v7552 = vld [vmem:[%s7495 + $0x1c0] sm:$0xff]
        %v7553 = vld [vmem:[%s7495 + $0x1c8] sm:$0xff]
        %v7554 = vld [vmem:[%s7495 + $0x1d0] sm:$0xff]
        %v7555 = vld [vmem:[%s7495 + $0x1d8] sm:$0xff]
        %v7556 = vld [vmem:[%s7495 + $0x1e0] sm:$0xff]
        %v7557 = vld [vmem:[%s7495 + $0x1e8] sm:$0xff]
        %v7558 = vld [vmem:[%s7495 + $0x1f0] sm:$0xff]
        %v7559 = vld [vmem:[%s7495 + $0x1f8] sm:$0xff]
        %v7560 = vld [vmem:[%s7495 + $0x200] sm:$0xff]
        %v7561 = vld [vmem:[%s7495 + $0x208] sm:$0xff]
        %v7562 = vld [vmem:[%s7495 + $0x210] sm:$0xff]
        %v7563 = vld [vmem:[%s7495 + $0x218] sm:$0xff]
        %v7564 = vld [vmem:[%s7495 + $0x220] sm:$0xff]
        %v7565 = vld [vmem:[%s7495 + $0x228] sm:$0xff]
        %v7566 = vld [vmem:[%s7495 + $0x230] sm:$0xff]
        %v7567 = vld [vmem:[%s7495 + $0x238] sm:$0xff]
        %v7568 = vld [vmem:[%s7495 + $0x240] sm:$0xff]
        %v7569 = vld [vmem:[%s7495 + $0x248] sm:$0xff]
        %v7570 = vld [vmem:[%s7495 + $0x250] sm:$0xff]
        %v7571 = vld [vmem:[%s7495 + $0x258] sm:$0xff]
        %v7572 = vld [vmem:[%s7495 + $0x260] sm:$0xff]
        %v7573 = vld [vmem:[%s7495 + $0x268] sm:$0xff]
        %v7574 = vld [vmem:[%s7495 + $0x270] sm:$0xff]
        %v7575 = vld [vmem:[%s7495 + $0x278] sm:$0xff]
        %v7576 = vld [vmem:[%s7495 + $0x280] sm:$0xff]
        %v7577 = vld [vmem:[%s7495 + $0x288] sm:$0xff]
        %v7578 = vld [vmem:[%s7495 + $0x290] sm:$0xff]
        %v7579 = vld [vmem:[%s7495 + $0x298] sm:$0xff]
        %v7580 = vld [vmem:[%s7495 + $0x2a0] sm:$0xff]
        %v7581 = vld [vmem:[%s7495 + $0x2a8] sm:$0xff]
        %v7582 = vld [vmem:[%s7495 + $0x2b0] sm:$0xff]
        %v7583 = vld [vmem:[%s7495 + $0x2b8] sm:$0xff]
        %v7584 = vld [vmem:[%s7495 + $0x2c0] sm:$0xff]
        %v7585 = vld [vmem:[%s7495 + $0x2c8] sm:$0xff]
        %v7586 = vld [vmem:[%s7495 + $0x2d0] sm:$0xff]
        %v7587 = vld [vmem:[%s7495 + $0x2d8] sm:$0xff]
        %v7588 = vld [vmem:[%s7495 + $0x2e0] sm:$0xff]
        %v7589 = vld [vmem:[%s7495 + $0x2e8] sm:$0xff]
        %v7590 = vld [vmem:[%s7495 + $0x2f0] sm:$0xff]
        %v7591 = vld [vmem:[%s7495 + $0x2f8] sm:$0xff]
        %v7592 = vld [vmem:[%s7495 + $0x300] sm:$0xff]
        %v7593 = vld [vmem:[%s7495 + $0x308] sm:$0xff]
        %v7594 = vld [vmem:[%s7495 + $0x310] sm:$0xff]
        %v7595 = vld [vmem:[%s7495 + $0x318] sm:$0xff]
        %v7596 = vld [vmem:[%s7495 + $0x320] sm:$0xff]
        %v7597 = vld [vmem:[%s7495 + $0x328] sm:$0xff]
        %v7598 = vld [vmem:[%s7495 + $0x330] sm:$0xff]
        %v7599 = vld [vmem:[%s7495 + $0x338] sm:$0xff]
        %v7600 = vld [vmem:[%s7495 + $0x340] sm:$0xff]
        %v7601 = vld [vmem:[%s7495 + $0x348] sm:$0xff]
        %v7602 = vld [vmem:[%s7495 + $0x350] sm:$0xff]
        %v7603 = vld [vmem:[%s7495 + $0x358] sm:$0xff]
        %v7604 = vld [vmem:[%s7495 + $0x360] sm:$0xff]
        %v7605 = vld [vmem:[%s7495 + $0x368] sm:$0xff]
        %v7606 = vld [vmem:[%s7495 + $0x370] sm:$0xff]
        %v7607 = vld [vmem:[%s7495 + $0x378] sm:$0xff]
        %v7608 = vld [vmem:[%s7495 + $0x380] sm:$0xff]
        %v7609 = vld [vmem:[%s7495 + $0x388] sm:$0xff]
        %v7610 = vld [vmem:[%s7495 + $0x390] sm:$0xff]
        %v7611 = vld [vmem:[%s7495 + $0x398] sm:$0xff]
        %v7612 = vld [vmem:[%s7495 + $0x3a0] sm:$0xff]
        %v7613 = vld [vmem:[%s7495 + $0x3a8] sm:$0xff]
        %v7614 = vld [vmem:[%s7495 + $0x3b0] sm:$0xff]
        %v7615 = vld [vmem:[%s7495 + $0x3b8] sm:$0xff]
        %v7616 = vld [vmem:[%s7495 + $0x3c0] sm:$0xff]
        %v7617 = vld [vmem:[%s7495 + $0x3c8] sm:$0xff]
        %v7618 = vld [vmem:[%s7495 + $0x3d0] sm:$0xff]
        %v7619 = vld [vmem:[%s7495 + $0x3d8] sm:$0xff]
        %v7620 = vld [vmem:[%s7495 + $0x3e0] sm:$0xff]
        %v7621 = vld [vmem:[%s7495 + $0x3e8] sm:$0xff]
        %v7622 = vld [vmem:[%s7495 + $0x3f0] sm:$0xff]
        %v7623 = vld [vmem:[%s7495 + $0x3f8] sm:$0xff]
        %v7624 = vld [vmem:[%s7495 + $0x400] sm:$0xff]
        %v7625 = vld [vmem:[%s7495 + $0x408] sm:$0xff]
        %v7626 = vld [vmem:[%s7495 + $0x410] sm:$0xff]
        %v7627 = vld [vmem:[%s7495 + $0x418] sm:$0xff]
        %v7628 = vld [vmem:[%s7495 + $0x420] sm:$0xff]
        %v7629 = vld [vmem:[%s7495 + $0x428] sm:$0xff]
        %v7630 = vld [vmem:[%s7495 + $0x430] sm:$0xff]
        %v7631 = vld [vmem:[%s7495 + $0x438] sm:$0xff]
        %v7632 = vld [vmem:[%s7495 + $0x440] sm:$0xff]
        %v7633 = vld [vmem:[%s7495 + $0x448] sm:$0xff]
        %v7634 = vld [vmem:[%s7495 + $0x450] sm:$0xff]
        %v7635 = vld [vmem:[%s7495 + $0x458] sm:$0xff]
        %v7636 = vld [vmem:[%s7495 + $0x460] sm:$0xff]
        %v7637 = vld [vmem:[%s7495 + $0x468] sm:$0xff]
        %v7638 = vld [vmem:[%s7495 + $0x470] sm:$0xff]
        %v7639 = vld [vmem:[%s7495 + $0x478] sm:$0xff]
        %7640 = vst [vmem:[#allocation3] sm:$0xff] 0.0
        %7641 = vst [vmem:[#allocation3 + $0x8] sm:$0xff] 0.0
        %7642 = vst [vmem:[#allocation3 + $0x10] sm:$0xff] 0.0
        %7643 = vst [vmem:[#allocation3 + $0x18] sm:$0xff] 0.0
        %7644 = vst [vmem:[#allocation3 + $0x20] sm:$0xff] 0.0
        %7645 = vst [vmem:[#allocation3 + $0x28] sm:$0xff] 0.0
        %7646 = vst [vmem:[#allocation3 + $0x30] sm:$0xff] 0.0
        %7647 = vst [vmem:[#allocation3 + $0x38] sm:$0xff] 0.0
        %7648 = vst [vmem:[#allocation3 + $0x40] sm:$0xff] 0.0
        %7649 = vst [vmem:[#allocation3 + $0x48] sm:$0xff] 0.0
        %7650 = vst [vmem:[#allocation3 + $0x50] sm:$0xff] 0.0
        %7651 = vst [vmem:[#allocation3 + $0x58] sm:$0xff] 0.0
        %7652 = vst [vmem:[#allocation3 + $0x60] sm:$0xff] 0.0
        %7653 = vst [vmem:[#allocation3 + $0x68] sm:$0xff] 0.0
        %7654 = vst [vmem:[#allocation3 + $0x70] sm:$0xff] 0.0
        %7655 = vst [vmem:[#allocation3 + $0x78] sm:$0xff] 0.0
        %7656 = vst [vmem:[#allocation3 + $0x80] sm:$0xff] 0.0
        %7657 = vst [vmem:[#allocation3 + $0x88] sm:$0xff] 0.0
        %7658 = vst [vmem:[#allocation3 + $0x90] sm:$0xff] 0.0
        %7659 = vst [vmem:[#allocation3 + $0x98] sm:$0xff] 0.0
        %7660 = vst [vmem:[#allocation3 + $0xa0] sm:$0xff] 0.0
        %7661 = vst [vmem:[#allocation3 + $0xa8] sm:$0xff] 0.0
        %7662 = vst [vmem:[#allocation3 + $0xb0] sm:$0xff] 0.0
        %7663 = vst [vmem:[#allocation3 + $0xb8] sm:$0xff] 0.0
        %7664 = vst [vmem:[#allocation3 + $0xc0] sm:$0xff] 0.0
        %7665 = vst [vmem:[#allocation3 + $0xc8] sm:$0xff] 0.0
        %7666 = vst [vmem:[#allocation3 + $0xd0] sm:$0xff] 0.0
        %7667 = vst [vmem:[#allocation3 + $0xd8] sm:$0xff] 0.0
        %7668 = vst [vmem:[#allocation3 + $0xe0] sm:$0xff] 0.0
        %7669 = vst [vmem:[#allocation3 + $0xe8] sm:$0xff] 0.0
        %7670 = vst [vmem:[#allocation3 + $0xf0] sm:$0xff] 0.0
        %7671 = vst [vmem:[#allocation3 + $0xf8] sm:$0xff] 0.0
        %v7672 = vld [vmem:[#allocation2] sm:$0x7]
        %v7673 = vld [vmem:[%s677] sm:$0x7]
        %v7674 = vld [vmem:[%s680] sm:$0x7]
        %v7676 = vrot.slane %v7672, 1
        %v7678 = vrot.slane %v7672, 2
        %v7681 = vrot.slane %v7673, 1
        %v7683 = vrot.slane %v7673, 2
        %v7686 = vrot.slane %v7674, 1
        %v7688 = vrot.slane %v7674, 2
        %7690 = vmatpush.msra.mxu0 %v7511
        %7691 = vmatpush.msra.mxu0 %v7510
        %7692 = vmatpush.msra.mxu0 %v7509
        %7693 = vmatpush.msra.mxu0 %v7508
        %7694 = vmatpush.msra.mxu0 %v7507
        %7695 = vmatpush.msra.mxu0 %v7506
        %7696 = vmatpush.msra.mxu0 %v7505
        %7697 = vmatpush.msra.mxu0 %v7504
        %7698 = vmatpush.msra.mxu0 %v7503
        %7699 = vmatpush.msra.mxu0 %v7502
        %7700 = vmatpush.msra.mxu0 %v7501
        %7701 = vmatpush.msra.mxu0 %v7500
        %7702 = vmatpush.msra.mxu0 %v7499
        %7703 = vmatpush.msra.mxu0 %v7498
        %7704 = vmatpush.msra.mxu0 %v7497
        %7705 = vmatpush.msra.mxu0 %v7496
        %7706 = vmatmul.f32.gmra.mxu0 %v7672
        %v7707 = vpop.f32.mrf.mxu0
        %v7708 = vadd.f32 0.0, %v7707
        %7709 = vdwg.mxu0
        %7710 = vmatpush.msra.mxu0 %v7527
        %7711 = vmatpush.msra.mxu0 %v7526
        %7712 = vmatpush.msra.mxu0 %v7525
        %7713 = vmatpush.msra.mxu0 %v7524
        %7714 = vmatpush.msra.mxu0 %v7523
        %7715 = vmatpush.msra.mxu0 %v7522
        %7716 = vmatpush.msra.mxu0 %v7521
        %7717 = vmatpush.msra.mxu0 %v7520
        %7718 = vmatpush.msra.mxu0 %v7519
        %7719 = vmatpush.msra.mxu0 %v7518
        %7720 = vmatpush.msra.mxu0 %v7517
        %7721 = vmatpush.msra.mxu0 %v7516
        %7722 = vmatpush.msra.mxu0 %v7515
        %7723 = vmatpush.msra.mxu0 %v7514
        %7724 = vmatpush.msra.mxu0 %v7513
        %7725 = vmatpush.msra.mxu0 %v7512
        %7726 = vmatmul.f32.gmra.mxu0 %v7676
        %v7727 = vpop.f32.mrf.mxu0
        %v7728 = vadd.f32 %v7708, %v7727
        %7729 = vdwg.mxu0
        %7730 = vmatpush.msra.mxu0 %v7543
        %7731 = vmatpush.msra.mxu0 %v7542
        %7732 = vmatpush.msra.mxu0 %v7541
        %7733 = vmatpush.msra.mxu0 %v7540
        %7734 = vmatpush.msra.mxu0 %v7539
        %7735 = vmatpush.msra.mxu0 %v7538
        %7736 = vmatpush.msra.mxu0 %v7537
        %7737 = vmatpush.msra.mxu0 %v7536
        %7738 = vmatpush.msra.mxu0 %v7535
        %7739 = vmatpush.msra.mxu0 %v7534
        %7740 = vmatpush.msra.mxu0 %v7533
        %7741 = vmatpush.msra.mxu0 %v7532
        %7742 = vmatpush.msra.mxu0 %v7531
        %7743 = vmatpush.msra.mxu0 %v7530
        %7744 = vmatpush.msra.mxu0 %v7529
        %7745 = vmatpush.msra.mxu0 %v7528
        %7746 = vmatmul.f32.gmra.mxu0 %v7678
        %v7747 = vpop.f32.mrf.mxu0
        %v7748 = vadd.f32 %v7728, %v7747
        %7749 = vdwg.mxu0
        %7750 = vmatpush.msra.mxu0 %v7559
        %7751 = vmatpush.msra.mxu0 %v7558
        %7752 = vmatpush.msra.mxu0 %v7557
        %7753 = vmatpush.msra.mxu0 %v7556
        %7754 = vmatpush.msra.mxu0 %v7555
        %7755 = vmatpush.msra.mxu0 %v7554
        %7756 = vmatpush.msra.mxu0 %v7553
        %7757 = vmatpush.msra.mxu0 %v7552
        %7758 = vmatpush.msra.mxu0 %v7551
        %7759 = vmatpush.msra.mxu0 %v7550
        %7760 = vmatpush.msra.mxu0 %v7549
        %7761 = vmatpush.msra.mxu0 %v7548
        %7762 = vmatpush.msra.mxu0 %v7547
        %7763 = vmatpush.msra.mxu0 %v7546
        %7764 = vmatpush.msra.mxu0 %v7545
        %7765 = vmatpush.msra.mxu0 %v7544
        %7766 = vmatmul.f32.gmra.mxu0 %v7673
        %v7767 = vpop.f32.mrf.mxu0
        %v7768 = vadd.f32 %v7748, %v7767
        %7769 = vdwg.mxu0
        %7770 = vmatpush.msra.mxu0 %v7575
        %7771 = vmatpush.msra.mxu0 %v7574
        %7772 = vmatpush.msra.mxu0 %v7573
        %7773 = vmatpush.msra.mxu0 %v7572
        %7774 = vmatpush.msra.mxu0 %v7571
        %7775 = vmatpush.msra.mxu0 %v7570
        %7776 = vmatpush.msra.mxu0 %v7569
        %7777 = vmatpush.msra.mxu0 %v7568
        %7778 = vmatpush.msra.mxu0 %v7567
        %7779 = vmatpush.msra.mxu0 %v7566
        %7780 = vmatpush.msra.mxu0 %v7565
        %7781 = vmatpush.msra.mxu0 %v7564
        %7782 = vmatpush.msra.mxu0 %v7563
        %7783 = vmatpush.msra.mxu0 %v7562
        %7784 = vmatpush.msra.mxu0 %v7561
        %7785 = vmatpush.msra.mxu0 %v7560
        %7786 = vmatmul.f32.gmra.mxu0 %v7681
        %v7787 = vpop.f32.mrf.mxu0
        %v7788 = vadd.f32 %v7768, %v7787
        %7789 = vdwg.mxu0
        %7790 = vmatpush.msra.mxu0 %v7591
        %7791 = vmatpush.msra.mxu0 %v7590
        %7792 = vmatpush.msra.mxu0 %v7589
        %7793 = vmatpush.msra.mxu0 %v7588
        %7794 = vmatpush.msra.mxu0 %v7587
        %7795 = vmatpush.msra.mxu0 %v7586
        %7796 = vmatpush.msra.mxu0 %v7585
        %7797 = vmatpush.msra.mxu0 %v7584
        %7798 = vmatpush.msra.mxu0 %v7583
        %7799 = vmatpush.msra.mxu0 %v7582
        %7800 = vmatpush.msra.mxu0 %v7581
        %7801 = vmatpush.msra.mxu0 %v7580
        %7802 = vmatpush.msra.mxu0 %v7579
        %7803 = vmatpush.msra.mxu0 %v7578
        %7804 = vmatpush.msra.mxu0 %v7577
        %7805 = vmatpush.msra.mxu0 %v7576
        %7806 = vmatmul.f32.gmra.mxu0 %v7683
        %v7807 = vpop.f32.mrf.mxu0
        %v7808 = vadd.f32 %v7788, %v7807
        %7809 = vdwg.mxu0
        %7810 = vmatpush.msra.mxu0 %v7607
        %7811 = vmatpush.msra.mxu0 %v7606
        %7812 = vmatpush.msra.mxu0 %v7605
        %7813 = vmatpush.msra.mxu0 %v7604
        %7814 = vmatpush.msra.mxu0 %v7603
        %7815 = vmatpush.msra.mxu0 %v7602
        %7816 = vmatpush.msra.mxu0 %v7601
        %7817 = vmatpush.msra.mxu0 %v7600
        %7818 = vmatpush.msra.mxu0 %v7599
        %7819 = vmatpush.msra.mxu0 %v7598
        %7820 = vmatpush.msra.mxu0 %v7597
        %7821 = vmatpush.msra.mxu0 %v7596
        %7822 = vmatpush.msra.mxu0 %v7595
        %7823 = vmatpush.msra.mxu0 %v7594
        %7824 = vmatpush.msra.mxu0 %v7593
        %7825 = vmatpush.msra.mxu0 %v7592
        %7826 = vmatmul.f32.gmra.mxu0 %v7674
        %v7827 = vpop.f32.mrf.mxu0
        %v7828 = vadd.f32 %v7808, %v7827
        %7829 = vdwg.mxu0
        %7830 = vmatpush.msra.mxu0 %v7623
        %7831 = vmatpush.msra.mxu0 %v7622
        %7832 = vmatpush.msra.mxu0 %v7621
        %7833 = vmatpush.msra.mxu0 %v7620
        %7834 = vmatpush.msra.mxu0 %v7619
        %7835 = vmatpush.msra.mxu0 %v7618
        %7836 = vmatpush.msra.mxu0 %v7617
        %7837 = vmatpush.msra.mxu0 %v7616
        %7838 = vmatpush.msra.mxu0 %v7615
        %7839 = vmatpush.msra.mxu0 %v7614
        %7840 = vmatpush.msra.mxu0 %v7613
        %7841 = vmatpush.msra.mxu0 %v7612
        %7842 = vmatpush.msra.mxu0 %v7611
        %7843 = vmatpush.msra.mxu0 %v7610
        %7844 = vmatpush.msra.mxu0 %v7609
        %7845 = vmatpush.msra.mxu0 %v7608
        %7846 = vmatmul.f32.gmra.mxu0 %v7686
        %v7847 = vpop.f32.mrf.mxu0
        %v7848 = vadd.f32 %v7828, %v7847
        %7849 = vdwg.mxu0
        %7850 = vmatpush.msra.mxu0 %v7639
        %7851 = vmatpush.msra.mxu0 %v7638
        %7852 = vmatpush.msra.mxu0 %v7637
        %7853 = vmatpush.msra.mxu0 %v7636
        %7854 = vmatpush.msra.mxu0 %v7635
        %7855 = vmatpush.msra.mxu0 %v7634
        %7856 = vmatpush.msra.mxu0 %v7633
        %7857 = vmatpush.msra.mxu0 %v7632
        %7858 = vmatpush.msra.mxu0 %v7631
        %7859 = vmatpush.msra.mxu0 %v7630
        %7860 = vmatpush.msra.mxu0 %v7629
        %7861 = vmatpush.msra.mxu0 %v7628
        %7862 = vmatpush.msra.mxu0 %v7627
        %7863 = vmatpush.msra.mxu0 %v7626
        %7864 = vmatpush.msra.mxu0 %v7625
        %7865 = vmatpush.msra.mxu0 %v7624
        %7866 = vmatmul.f32.gmra.mxu0 %v7688
        %v7867 = vpop.f32.mrf.mxu0
        %v7868 = vadd.f32 %v7848, %v7867
        %7869 = vdwg.mxu0
        %v7870 = vmax.f32 %v7868, 0.0
        %7871 = vst [vmem:[%s1151 + $0x1] sm:$0x1] %v7870
        %v7872 = vld [vmem:[#allocation3] sm:$0x7]
        %v7873 = vld [vmem:[%s1151] sm:$0x7]
        %v7874 = vmax.f32 %v7872, %v7873
        %v7876 = vrot.slane %v7874, 1
        %v7878 = vmax.f32 %v7874, %v7876
        %vm7879 = vcmask 15360
        %v7880 = vsel %vm7879, %v4463, 0
        %vm7882 = vcmask 1041408
        %v7884 = vsel %vm7882, %v7878, 0
        %7886 = vmatpush.msra.mxu0 0.0
        %7887 = vmatpush.msra.mxu0 0.0
        %7888 = vmatpush.msra.mxu0 0.0
        %7889 = vmatpush.msra.mxu0 0.0
        %7890 = vmatpush.msra.mxu0 0.0
        %7891 = vmatpush.msra.mxu0 0.0
        %7892 = vmatpush.msra.mxu0 0.0
        %7893 = vmatpush.msra.mxu0 0.0
        %7894 = vmatpush.msra.mxu0 0.0
        %7895 = vmatpush.msra.mxu0 0.0
        %7896 = vmatpush.msra.mxu0 0.0
        %7897 = vmatpush.msra.mxu0 0.0
        %7898 = vmatpush.msra.mxu0 0.0
        %7899 = vmatpush.msra.mxu0 0.0
        %7900 = vmatpush.msra.mxu0 0.0
        %7901 = vmatpush.msra.mxu0 %v7884
        %7902 = vmatmul.f32.gmra.mxu0 %v7880
        %v7903 = vpop.f32.mrf.mxu0
        %v7904 = vadd.f32 0.0, %v7903
        %7905 = vdwg.mxu0
        %7906 = vst [vmem:[#allocation2] sm:$0x1] %v7904
        %v7907 = vld [vmem:[#allocation2] sm:$0x1]
        %7908 = vst [vmem:[%s314] sm:$0x1] %v7907
        %p7909 = scmp.lt.s32.totalorder %s24, 1
        %s7910 = scalar_select %p7909, %s24, 1
        %s7911 = smul.addr %s7910, 3
        %s7912 = smul.addr %s7911, 4
        %s7913 = scalar_lea.vmem %s5, %s7912
        %s7914 = sand.u32 %s168, 1
        %s7915 = scalar_lea.sflag [#allocation6], %s7914
        %s7916 = sand.u32 %s168, 1
        %s7917 = scalar_lea.vmem [#allocation12], %s7916
        // Predicated region
        $region57: #{tpu_custom_call.1} parent=39 // pred_check
          %p7918 = pneg %p152
        $region58: #{tpu_custom_call.1} parent=39 // pred_check_branch
          %7920 = sbr.rel (%p7918) target = $region60
        $region59: #{tpu_custom_call.1} parent=39 // pred_region
          _
        $region60: #{tpu_custom_call.1} parent=39 // pred_fallthru
          _
        // Predicated region
        $region61: #{tpu_custom_call.1} parent=39 // pred_check
          %p7921 = pneg %p178
        $region62: #{tpu_custom_call.1} parent=39 // pred_check_branch
          %7923 = sbr.rel (%p7921) target = $region64
        $region63: #{tpu_custom_call.1} parent=39 // pred_region
          %7925 = vsyncadd %s7915, 0
          %s7926 = scalar_lea.hbm %s6, %s24
          %s7928 = sshll.u32 %s7917, 4
          %s7929 = int_to_ptr.vmem [resolvable:$true] %s7928
          %s7930 = sshll.u32 %s7926, 4
          %s7931 = int_to_ptr.hbm [resolvable:$true] %s7930
          %7933 = dma.vmem_to_hbm [thread:$0]  %s7929, 16, %s7931, %s7915
        $region64: #{tpu_custom_call.1} parent=39 // pred_fallthru
          _
      $region40: #{tpu_custom_call.1} parent=5 // pred_fallthru
        _
      %p7934 = scmp.le.s32.totalorder 2, %s19
      // Predicated region
      $region65: #{tpu_custom_call.1} parent=5 // pred_check
        %p7935 = pneg %p7934
      $region66: #{tpu_custom_call.1} parent=5 // pred_check_branch
        %7937 = sbr.rel (%p7935) target = $region68
      $region67: #{tpu_custom_call.1} parent=5 // pred_region
        %s7938 = ssub.s32 %s19, 2
        // Predicated region
        $region69: #{tpu_custom_call.1} parent=67 // pred_check
          %p7939 = pneg %p158
        $region70: #{tpu_custom_call.1} parent=67 // pred_check_branch
          %7941 = sbr.rel (%p7939) target = $region72
        $region71: #{tpu_custom_call.1} parent=67 // pred_region
          %p7942 = scmp.lt.s32.totalorder %s25, 1
          %s7943 = scalar_select %p7942, %s25, 1
          %s7944 = smul.addr %s7943, 3
          %s7945 = smul.addr %s7944, 4
          %s7946 = scalar_lea.vmem %s5, %s7945
        $region72: #{tpu_custom_call.1} parent=67 // pred_fallthru
          _
        // Predicated region
        $region73: #{tpu_custom_call.1} parent=67 // pred_check
          %p7947 = pneg %p184
        $region74: #{tpu_custom_call.1} parent=67 // pred_check_branch
          %7949 = sbr.rel (%p7947) target = $region76
        $region75: #{tpu_custom_call.1} parent=67 // pred_region
          %s7950 = sand.u32 %s169, 1
          %s7951 = scalar_lea.sflag [#allocation6], %s7950
          %s7952 = sand.u32 %s169, 1
          %s7953 = scalar_lea.vmem [#allocation12], %s7952
          %7955 = dma.done %s7951, 16
        $region76: #{tpu_custom_call.1} parent=67 // pred_fallthru
          _
      $region68: #{tpu_custom_call.1} parent=5 // pred_fallthru
        _
    $region6: #{tpu_custom_call.1} parent=1 // loop_footer
      %s23 = sadd.s32 1, %s19
    $region7: #{tpu_custom_call.1} parent=1 // loop_footer_branch
      %18 = sbr.rel target = $region3
    $region8: #{tpu_custom_call.1} parent=1 // loop_exit
      _
    %7956 = vsyncpa [#allocation5], 1
    %s7957 = scalar_lea.sflag [#allocation5], 1
    %7958 = vsyncpa %s7957, 1
    %7959 = vsyncpa [#allocation8], 1
    %7960 = vsyncpa [#allocation11], 1
    %7961 = vsyncpa [#allocation6], 1
    %s7962 = scalar_lea.sflag [#allocation6], 1
    %7963 = vsyncpa %s7962, 1

</llo_original>
